<compile_context>
chip_gen: v7x
topology: tpu7x:2x2x1
jax: 0.10.0
libtpu: 0.0.40
codegen_flags: <defaults>
</compile_context>

<pallas_src>
import numpy as np
import jax
import jax.numpy as jnp
from jax.experimental import pallas as pl
from jax.experimental.pallas import tpu as pltpu

_LEAKY = 0.01
_VMEM_LIMIT = 48 * 1024 * 1024


def _round_up(x, m):
    return (x + m - 1) // m * m


# ----------------------------------------------------------------------------
# Pallas kernels
# ----------------------------------------------------------------------------
def _conv_pool_kernel(p_ref, w_ref, b_ref, o_ref):
    """Fused conv (im2col matmul with px-packed block-diagonal weight) + bias
    + LeakyReLU + 2x2 max-pool, lane-dense (128-wide) output.

    p_ref: (4, TM, K) bf16 -- 4 pool-candidate patch matrices; each row packs
                              `group` adjacent pooled pixels along K.
    w_ref: (K, 128)   bf16 -- block-diagonal weight (group copies of the
                              (k*k*Cin, Cout) conv matrix).
    b_ref: (1, 128)   f32  -- bias tiled `group` times.
    o_ref: (TM, 128)  bf16 -- group pixels x Cout channels per row (bit-
                              identical to the NHWC flatten in HBM).
    """
    w = w_ref[...]
    y = jnp.dot(p_ref[0], w, preferred_element_type=jnp.float32)
    for t in range(1, 4):                      # max over the 2x2 pool window
        y = jnp.maximum(y, jnp.dot(p_ref[t], w,
                                   preferred_element_type=jnp.float32))
    y = y + b_ref[...]
    o_ref[...] = jnp.maximum(y, _LEAKY * y).astype(o_ref.dtype)   # LeakyReLU


def _head_kernel(flat_ref, w1_ref, b1_ref, w2_ref, b2_ref, w3_ref, b3_ref,
                 o_ref):
    """Batch-tiled fused fc1+LeakyReLU+fc2+LeakyReLU+fc3+Sigmoid; the `f`
    branch lives in extra fc1 columns (extracted pre-activation)."""
    d1 = w2_ref.shape[0]                                     # 1024
    flat = flat_ref[...]                                     # (TB, 1024) bf16
    z1 = jnp.dot(flat, w1_ref[...],
                 preferred_element_type=jnp.float32) + b1_ref[...]
    f = z1[:, d1:d1 + 1]                                     # f branch (no act)
    a1 = z1[:, :d1]
    a1 = jnp.maximum(a1, _LEAKY * a1).astype(jnp.bfloat16)
    z2 = jnp.dot(a1, w2_ref[...],
                 preferred_element_type=jnp.float32) + b2_ref[...]
    a2 = jnp.maximum(z2, _LEAKY * z2).astype(jnp.bfloat16)
    s = jnp.dot(a2, w3_ref[...],
                preferred_element_type=jnp.float32) + b3_ref[...]
    score = 0.5 * (jnp.tanh(0.5 * s) + 1.0)    # sigmoid via EUP tanh, in [0,1]
    o_ref[:, 0:1] = score.astype(o_ref.dtype)
    o_ref[:, 1:2] = f.astype(o_ref.dtype)


# ----------------------------------------------------------------------------
# Pallas wrappers
# ----------------------------------------------------------------------------
def conv_pool(patches4, w, b, tm):
    """patches4: (4, M, K) bf16; w: (K, 128) bf16; b: (1, 128) f32 -> (M, 128)."""
    _, M, K = patches4.shape
    N = w.shape[1]
    assert M % tm == 0
    return pl.pallas_call(
        _conv_pool_kernel,
        out_shape=jax.ShapeDtypeStruct((M, N), jnp.bfloat16),
        grid=(M // tm,),
        in_specs=[
            pl.BlockSpec((4, tm, K), lambda m: (0, m, 0)),
            pl.BlockSpec((K, N), lambda m: (0, 0)),
            pl.BlockSpec((1, N), lambda m: (0, 0)),
        ],
        out_specs=pl.BlockSpec((tm, N), lambda m: (m, 0)),
        compiler_params=pltpu.CompilerParams(
            dimension_semantics=("parallel",),
            vmem_limit_bytes=_VMEM_LIMIT),
    )(patches4, w, b)


def head(flat, p, tb):
    """Batch-tiled fused head.  flat: (Bp, 1024) bf16 (NHWC flatten order)."""
    Bp, D = flat.shape
    assert Bp % tb == 0
    return pl.pallas_call(
        _head_kernel,
        out_shape=jax.ShapeDtypeStruct((Bp, 2), jnp.float32),
        grid=(Bp // tb,),
        in_specs=[
            pl.BlockSpec((tb, D), lambda i: (i, 0)),
            pl.BlockSpec(p["fc1_w"].shape, lambda i: (0, 0)),
            pl.BlockSpec(p["fc1_b"].shape, lambda i: (0, 0)),
            pl.BlockSpec(p["fc2_w"].shape, lambda i: (0, 0)),
            pl.BlockSpec(p["fc2_b"].shape, lambda i: (0, 0)),
            pl.BlockSpec(p["fc3_w"].shape, lambda i: (0, 0)),
            pl.BlockSpec(p["fc3_b"].shape, lambda i: (0, 0)),
        ],
        out_specs=pl.BlockSpec((tb, 2), lambda i: (i, 0)),
        compiler_params=pltpu.CompilerParams(
            dimension_semantics=("parallel",),
            vmem_limit_bytes=_VMEM_LIMIT),
    )(flat, p["fc1_w"], p["fc1_b"], p["fc2_w"], p["fc2_b"],
      p["fc3_w"], p["fc3_b"])


# ----------------------------------------------------------------------------
# im2col glue (pure slicing / reshape in XLA, no compute)
# ----------------------------------------------------------------------------
def _pooled_patches(x, k, group):
    """x: (B, H, W, C) bf16 -> (4, B*ph*(pw//group), group*k*k*C) bf16.

    Axis 0 is the 2x2 max-pool candidate (dy, dx); each row packs `group`
    adjacent pooled output columns along K (K order: (q, i, j, c)) so the
    matmul against the block-diagonal weight yields 128 lane-dense outputs.
    # TODO(synk): patch extraction still materializes the patch tensor in HBM.
    """
    B, H, W, C = x.shape
    oh, ow = H - k + 1, W - k + 1
    ph, pw = oh // 2, ow // 2
    assert pw % group == 0
    K0 = k * k * C
    cols = [x[:, i:i + oh, j:j + ow, :] for i in range(k) for j in range(k)]
    p = jnp.stack(cols, axis=3).reshape(B, oh, ow, K0)
    subs = []
    for dy in (0, 1):
        for dx in (0, 1):
            cand = p[:, dy::2, dx::2, :]                        # (B,ph,pw,K0)
            subs.append(cand.reshape(B * ph * (pw // group), group * K0))
    return jnp.stack(subs, axis=0), ph, pw


# ----------------------------------------------------------------------------
# Parameters: PyTorch layout -> one-time kernel layout conversion
# ----------------------------------------------------------------------------
def init_torch_params(key):
    """Deterministic random params in the PyTorch Discriminator layout."""
    ks = jax.random.split(key, 12)
    s = 0.05
    n = lambda k, shape: jax.random.normal(k, shape, jnp.float32) * s
    return {
        "conv1_w": n(ks[0], (32, 1, 5, 5)),  "conv1_b": n(ks[1], (32,)),
        "conv2_w": n(ks[2], (64, 32, 5, 5)), "conv2_b": n(ks[3], (64,)),
        "fc1_w": n(ks[4], (1024, 1024)),     "fc1_b": n(ks[5], (1024,)),
        "fc2_w": n(ks[6], (512, 1024)),      "fc2_b": n(ks[7], (512,)),
        "fc3_w": n(ks[8], (1, 512)),         "fc3_b": n(ks[9], (1,)),
        "f_w": n(ks[10], (1, 64, 4, 4)),     "f_b": n(ks[11], (1,)),
    }


def prepare_params(tp):
    """One-time conversion (at init, never per forward):
    * conv weights -> block-diagonal (group*k*k*Cin, 128) bf16 matrices,
      biases tiled to 128 lanes.
    * fc1 rows permuted from PyTorch's NCHW .view order to NHWC flatten order;
      the f branch (Conv2d(64,1,4,2,1)+AvgPool2d(2)) folded into fc1 column
      1024 (padded to 1152 lanes).
    """
    def conv_mat(w):                      # (O, Cin, kh, kw) -> (kh*kw*Cin, O)
        w = np.asarray(w, np.float32)
        o, c, kh, kw = w.shape
        return np.transpose(w, (2, 3, 1, 0)).reshape(kh * kw * c, o)

    def block_diag(wm, group):
        k0, o = wm.shape
        bd = np.zeros((group * k0, group * o), np.float32)
        for q in range(group):
            bd[q * k0:(q + 1) * k0, q * o:(q + 1) * o] = wm
        return bd

    def tiled_bias(b, group):
        return np.tile(np.asarray(b, np.float32)[None, :], (1, group))

    # NHWC flatten index (h*256 + w*64 + c) -> NCHW index (c*16 + h*4 + w)
    hh, ww, cc = np.meshgrid(np.arange(4), np.arange(4), np.arange(64),
                             indexing="ij")
    perm = (cc * 16 + hh * 4 + ww).reshape(1024)

    # Fold Conv2d(64,1,4,2,1)+AvgPool2d(2) into a linear functional of the
    # NHWC-flattened 4x4x64 feature map.
    fw = np.asarray(tp["f_w"], np.float32)[0]          # (64, 4, 4) = [c, i, j]
    acc = np.zeros((4, 4, 64), np.float32)             # [h, w, c]
    for oy in (0, 1):
        for ox in (0, 1):
            for h in range(4):
                i = h + 1 - 2 * oy
                if not 0 <= i < 4:
                    continue
                for w in range(4):
                    j = w + 1 - 2 * ox
                    if not 0 <= j < 4:
                        continue
                    acc[h, w, :] += fw[:, i, j]
    f_vec = 0.25 * acc.reshape(1024)

    fc1 = np.asarray(tp["fc1_w"], np.float32).T[perm, :]        # (1024, 1024)
    d_ext = 1024 + 128
    fc1_ext = np.zeros((1024, d_ext), np.float32)
    fc1_ext[:, :1024] = fc1
    fc1_ext[:, 1024] = f_vec
    b1_ext = np.zeros((1, d_ext), np.float32)
    b1_ext[0, :1024] = np.asarray(tp["fc1_b"], np.float32)
    b1_ext[0, 1024] = float(np.asarray(tp["f_b"], np.float32)[0])

    bf16 = jnp.bfloat16
    return {
        "conv1_w": jnp.asarray(block_diag(conv_mat(tp["conv1_w"]), 4), bf16),
        "conv1_b": jnp.asarray(tiled_bias(tp["conv1_b"], 4), jnp.float32),
        "conv2_w": jnp.asarray(block_diag(conv_mat(tp["conv2_w"]), 2), bf16),
        "conv2_b": jnp.asarray(tiled_bias(tp["conv2_b"], 2), jnp.float32),
        "fc1_w": jnp.asarray(fc1_ext, bf16),
        "fc1_b": jnp.asarray(b1_ext, jnp.float32),
        "fc2_w": jnp.asarray(np.asarray(tp["fc2_w"], np.float32).T, bf16),
        "fc2_b": jnp.asarray(np.asarray(tp["fc2_b"], np.float32)[None, :],
                             jnp.float32),
        "fc3_w": jnp.asarray(np.asarray(tp["fc3_w"], np.float32).T, bf16),
        "fc3_b": jnp.asarray(np.asarray(tp["fc3_b"], np.float32)[None, :],
                             jnp.float32),
    }


# ----------------------------------------------------------------------------
# Forward pass (matches PyTorch Discriminator.forward)
# ----------------------------------------------------------------------------
def discriminator_forward(params, x, *, batch_tile=64):
    """x: (B, 1, 28, 28) f32 NCHW.  Returns (sigmoid score (B,1), f (B,))."""
    B = x.shape[0]
    tb = B if B <= batch_tile else batch_tile
    Bp = _round_up(B, tb)

    x_nhwc = jnp.transpose(x, (0, 2, 3, 1)).astype(jnp.bfloat16)  # (B,28,28,1)
    if Bp != B:
        x_nhwc = jnp.pad(x_nhwc, ((0, Bp - B), (0, 0), (0, 0), (0, 0)))

    # conv1 + LeakyReLU + maxpool -> (Bp, 12, 12, 32)
    p1, ph1, pw1 = _pooled_patches(x_nhwc, 5, group=4)      # (4, Bp*36, 100)
    h1 = conv_pool(p1, params["conv1_w"], params["conv1_b"], tm=tb * 36)
    h1 = h1.reshape(Bp, ph1, pw1, 32)

    # conv2 + LeakyReLU + maxpool -> (Bp, 4, 4, 64), NHWC-flattened
    p2, ph2, pw2 = _pooled_patches(h1, 5, group=2)          # (4, Bp*8, 1600)
    h2 = conv_pool(p2, params["conv2_w"], params["conv2_b"], tm=tb * 8)
    flat = h2.reshape(Bp, ph2 * pw2 * 64)                   # (Bp, 1024)

    # TODO(synk): conv2 + head could be one pallas_call now that tiles align,
    #             saving one HBM round trip of `flat`.
    out = head(flat, params, tb=tb)                         # (Bp, 2)
    return out[:B, 0:1], out[:B, 1]


# ----------------------------------------------------------------------------
# Pure-JAX f32 reference (for a bf16-tolerance self-check)
# ----------------------------------------------------------------------------
def _maxpool2(y):  # NCHW 2x2 / stride-2 max pool
    return jnp.maximum(jnp.maximum(y[:, :, 0::2, 0::2], y[:, :, 0::2, 1::2]),
                       jnp.maximum(y[:, :, 1::2, 0::2], y[:, :, 1::2, 1::2]))


def reference_forward(tp, x):
    leaky = lambda v: jnp.where(v > 0, v, _LEAKY * v)
    dn = ("NCHW", "OIHW", "NCHW")
    y = jax.lax.conv_general_dilated(x, tp["conv1_w"], (1, 1), "VALID",
                                     dimension_numbers=dn)
    y = _maxpool2(leaky(y + tp["conv1_b"].reshape(1, -1, 1, 1)))
    y = jax.lax.conv_general_dilated(y, tp["conv2_w"], (1, 1), "VALID",
                                     dimension_numbers=dn)
    y = _maxpool2(leaky(y + tp["conv2_b"].reshape(1, -1, 1, 1)))  # (B,64,4,4)
    fmap = jax.lax.conv_general_dilated(y, tp["f_w"], (2, 2),
                                        ((1, 1), (1, 1)),
                                        dimension_numbers=dn)     # (B,1,2,2)
    f = jnp.mean(fmap + tp["f_b"].reshape(1, -1, 1, 1), axis=(1, 2, 3))
    z = y.reshape(y.shape[0], -1)
    z = leaky(z @ tp["fc1_w"].T + tp["fc1_b"])
    z = leaky(z @ tp["fc2_w"].T + tp["fc2_b"])
    score = jax.nn.sigmoid(z @ tp["fc3_w"].T + tp["fc3_b"])
    return score, f


if __name__ == "__main__":
    key = jax.random.PRNGKey(0)
    k_param, k_x = jax.random.split(key)
    torch_params = init_torch_params(k_param)
    params = prepare_params(torch_params)

    # fc expects 64*4*4 = 1024 flattened features -> input is (B, 1, 28, 28)
    x = jax.random.normal(k_x, (2, 1, 28, 28), jnp.float32)

    fwd = jax.jit(discriminator_forward)
    score, feat = fwd(params, x)
    jax.block_until_ready((score, feat))

    assert score.shape == (2, 1) and feat.shape == (2,)
    assert bool(jnp.all(jnp.isfinite(score))) and bool(jnp.all(jnp.isfinite(feat)))
    assert bool(jnp.all((score >= 0.0) & (score <= 1.0)))

    # bf16-operand tolerance check against the f32 reference.
    score_ref, f_ref = jax.jit(reference_forward)(torch_params, x)
    assert float(jnp.max(jnp.abs(score - score_ref))) < 5e-2
    assert float(jnp.max(jnp.abs(feat - f_ref))) < 5e-2

    print("KERNEL_OK")
</pallas_src>

<mosaic_0001>
module attributes {stable_mosaic.version = 11 : i64} {
  func.func @_conv_pool_kernel(%arg0: i32, %arg1: memref<4x72x100xbf16, #tpu.memory_space<vmem>>, %arg2: memref<100x128xbf16, #tpu.memory_space<vmem>>, %arg3: memref<1x128xf32, #tpu.memory_space<vmem>>, %arg4: memref<72x128xbf16, #tpu.memory_space<vmem>>) attributes {dimension_semantics = [#tpu.dimension_semantics<parallel>], iteration_bounds = array<i64: 1>, scalar_prefetch = 0 : i64, scratch_operands = 0 : i64, tpu.core_type = #tpu.core_type<tc>, window_params = [{transform_indices = @transform_0, window_bounds = array<i64: 4, 72, 100>}, {pipeline_mode = #tpu.pipeline_mode<synchronous>, transform_indices = @transform_1, window_bounds = array<i64: 100, 128>}, {pipeline_mode = #tpu.pipeline_mode<synchronous>, transform_indices = @transform_2, window_bounds = array<i64: 1, 128>}, {transform_indices = @transform_3, window_bounds = array<i64: 72, 128>}]} {
    %c0 = arith.constant 0 : index
    %c0_0 = arith.constant 0 : index
    %0 = vector.load %arg2[%c0, %c0_0] : memref<100x128xbf16, #tpu.memory_space<vmem>>, vector<100x128xbf16>
    %c0_1 = arith.constant 0 : index
    %c0_2 = arith.constant 0 : index
    %c0_3 = arith.constant 0 : index
    %1 = vector.load %arg1[%c0_1, %c0_2, %c0_3] : memref<4x72x100xbf16, #tpu.memory_space<vmem>>, vector<1x72x100xbf16>
    %2 = vector.shape_cast %1 : vector<1x72x100xbf16> to vector<72x100xbf16>
    %cst = arith.constant dense<0.000000e+00> : vector<72x128xf32>
    %3 = tpu.matmul %2, %0, %cst {dimension_numbers = #tpu.dot_dimension_numbers<[1], [0], [0], [1], [0, 0, 1, 1], [], []>} : vector<72x100xbf16>, vector<100x128xbf16>, vector<72x128xf32> -> vector<72x128xf32>
    %c1 = arith.constant 1 : index
    %c0_4 = arith.constant 0 : index
    %c0_5 = arith.constant 0 : index
    %4 = vector.load %arg1[%c1, %c0_4, %c0_5] : memref<4x72x100xbf16, #tpu.memory_space<vmem>>, vector<1x72x100xbf16>
    %5 = vector.shape_cast %4 : vector<1x72x100xbf16> to vector<72x100xbf16>
    %cst_6 = arith.constant dense<0.000000e+00> : vector<72x128xf32>
    %6 = tpu.matmul %5, %0, %cst_6 {dimension_numbers = #tpu.dot_dimension_numbers<[1], [0], [0], [1], [0, 0, 1, 1], [], []>} : vector<72x100xbf16>, vector<100x128xbf16>, vector<72x128xf32> -> vector<72x128xf32>
    %7 = arith.maximumf %3, %6 : vector<72x128xf32>
    %c2 = arith.constant 2 : index
    %c0_7 = arith.constant 0 : index
    %c0_8 = arith.constant 0 : index
    %8 = vector.load %arg1[%c2, %c0_7, %c0_8] : memref<4x72x100xbf16, #tpu.memory_space<vmem>>, vector<1x72x100xbf16>
    %9 = vector.shape_cast %8 : vector<1x72x100xbf16> to vector<72x100xbf16>
    %cst_9 = arith.constant dense<0.000000e+00> : vector<72x128xf32>
    %10 = tpu.matmul %9, %0, %cst_9 {dimension_numbers = #tpu.dot_dimension_numbers<[1], [0], [0], [1], [0, 0, 1, 1], [], []>} : vector<72x100xbf16>, vector<100x128xbf16>, vector<72x128xf32> -> vector<72x128xf32>
    %11 = arith.maximumf %7, %10 : vector<72x128xf32>
    %c3 = arith.constant 3 : index
    %c0_10 = arith.constant 0 : index
    %c0_11 = arith.constant 0 : index
    %12 = vector.load %arg1[%c3, %c0_10, %c0_11] : memref<4x72x100xbf16, #tpu.memory_space<vmem>>, vector<1x72x100xbf16>
    %13 = vector.shape_cast %12 : vector<1x72x100xbf16> to vector<72x100xbf16>
    %cst_12 = arith.constant dense<0.000000e+00> : vector<72x128xf32>
    %14 = tpu.matmul %13, %0, %cst_12 {dimension_numbers = #tpu.dot_dimension_numbers<[1], [0], [0], [1], [0, 0, 1, 1], [], []>} : vector<72x100xbf16>, vector<100x128xbf16>, vector<72x128xf32> -> vector<72x128xf32>
    %15 = arith.maximumf %11, %14 : vector<72x128xf32>
    %c0_13 = arith.constant 0 : index
    %c0_14 = arith.constant 0 : index
    %16 = vector.load %arg3[%c0_13, %c0_14] : memref<1x128xf32, #tpu.memory_space<vmem>>, vector<1x128xf32>
    %17 = vector.broadcast %16 : vector<1x128xf32> to vector<72x128xf32>
    %18 = arith.addf %15, %17 : vector<72x128xf32>
    %cst_15 = arith.constant 0.00999999977 : f32
    %19 = vector.broadcast %cst_15 : f32 to vector<72x128xf32>
    %20 = arith.mulf %19, %18 : vector<72x128xf32>
    %21 = arith.maximumf %18, %20 : vector<72x128xf32>
    %22 = arith.truncf %21 : vector<72x128xf32> to vector<72x128xbf16>
    %c0_16 = arith.constant 0 : index
    %c0_17 = arith.constant 0 : index
    %23 = vector.load %arg4[%c0_16, %c0_17] : memref<72x128xbf16, #tpu.memory_space<vmem>>, vector<72x128xbf16>
    tpu.vector_store %arg4[%c0_16, %c0_17], %22 {strides = array<i32>} : memref<72x128xbf16, #tpu.memory_space<vmem>>, vector<72x128xbf16>,
    return
  }
  func.func @transform_0(%arg0: i32) -> (i32, i32, i32) {
    %c0_i32 = arith.constant 0 : i32
    %c0_i32_0 = arith.constant 0 : i32
    %c0_i32_1 = arith.constant 0 : i32
    return %c0_i32, %arg0, %c0_i32_0 : i32, i32, i32
  }
  func.func @transform_1(%arg0: i32) -> (i32, i32) {
    %c0_i32 = arith.constant 0 : i32
    %c0_i32_0 = arith.constant 0 : i32
    %c0_i32_1 = arith.constant 0 : i32
    return %c0_i32, %c0_i32_0 : i32, i32
  }
  func.func @transform_2(%arg0: i32) -> (i32, i32) {
    %c0_i32 = arith.constant 0 : i32
    %c0_i32_0 = arith.constant 0 : i32
    %c0_i32_1 = arith.constant 0 : i32
    return %c0_i32, %c0_i32_0 : i32, i32
  }
  func.func @transform_3(%arg0: i32) -> (i32, i32) {
    %c0_i32 = arith.constant 0 : i32
    %c0_i32_0 = arith.constant 0 : i32
    return %arg0, %c0_i32 : i32, i32
  }
}

module attributes {stable_mosaic.version = 11 : i64} {
  func.func @_conv_pool_kernel(%arg0: i32, %arg1: memref<4x16x1600xbf16, #tpu.memory_space<vmem>>, %arg2: memref<1600x128xbf16, #tpu.memory_space<vmem>>, %arg3: memref<1x128xf32, #tpu.memory_space<vmem>>, %arg4: memref<16x128xbf16, #tpu.memory_space<vmem>>) attributes {dimension_semantics = [#tpu.dimension_semantics<parallel>], iteration_bounds = array<i64: 1>, scalar_prefetch = 0 : i64, scratch_operands = 0 : i64, tpu.core_type = #tpu.core_type<tc>, window_params = [{transform_indices = @transform_0, window_bounds = array<i64: 4, 16, 1600>}, {pipeline_mode = #tpu.pipeline_mode<synchronous>, transform_indices = @transform_1, window_bounds = array<i64: 1600, 128>}, {pipeline_mode = #tpu.pipeline_mode<synchronous>, transform_indices = @transform_2, window_bounds = array<i64: 1, 128>}, {transform_indices = @transform_3, window_bounds = array<i64: 16, 128>}]} {
    %c0 = arith.constant 0 : index
    %c0_0 = arith.constant 0 : index
    %0 = vector.load %arg2[%c0, %c0_0] : memref<1600x128xbf16, #tpu.memory_space<vmem>>, vector<1600x128xbf16>
    %c0_1 = arith.constant 0 : index
    %c0_2 = arith.constant 0 : index
    %c0_3 = arith.constant 0 : index
    %1 = vector.load %arg1[%c0_1, %c0_2, %c0_3] : memref<4x16x1600xbf16, #tpu.memory_space<vmem>>, vector<1x16x1600xbf16>
    %2 = vector.shape_cast %1 : vector<1x16x1600xbf16> to vector<16x1600xbf16>
    %cst = arith.constant dense<0.000000e+00> : vector<16x128xf32>
    %3 = tpu.matmul %2, %0, %cst {dimension_numbers = #tpu.dot_dimension_numbers<[1], [0], [0], [1], [0, 0, 1, 1], [], []>} : vector<16x1600xbf16>, vector<1600x128xbf16>, vector<16x128xf32> -> vector<16x128xf32>
    %c1 = arith.constant 1 : index
    %c0_4 = arith.constant 0 : index
    %c0_5 = arith.constant 0 : index
    %4 = vector.load %arg1[%c1, %c0_4, %c0_5] : memref<4x16x1600xbf16, #tpu.memory_space<vmem>>, vector<1x16x1600xbf16>
    %5 = vector.shape_cast %4 : vector<1x16x1600xbf16> to vector<16x1600xbf16>
    %cst_6 = arith.constant dense<0.000000e+00> : vector<16x128xf32>
    %6 = tpu.matmul %5, %0, %cst_6 {dimension_numbers = #tpu.dot_dimension_numbers<[1], [0], [0], [1], [0, 0, 1, 1], [], []>} : vector<16x1600xbf16>, vector<1600x128xbf16>, vector<16x128xf32> -> vector<16x128xf32>
    %7 = arith.maximumf %3, %6 : vector<16x128xf32>
    %c2 = arith.constant 2 : index
    %c0_7 = arith.constant 0 : index
    %c0_8 = arith.constant 0 : index
    %8 = vector.load %arg1[%c2, %c0_7, %c0_8] : memref<4x16x1600xbf16, #tpu.memory_space<vmem>>, vector<1x16x1600xbf16>
    %9 = vector.shape_cast %8 : vector<1x16x1600xbf16> to vector<16x1600xbf16>
    %cst_9 = arith.constant dense<0.000000e+00> : vector<16x128xf32>
    %10 = tpu.matmul %9, %0, %cst_9 {dimension_numbers = #tpu.dot_dimension_numbers<[1], [0], [0], [1], [0, 0, 1, 1], [], []>} : vector<16x1600xbf16>, vector<1600x128xbf16>, vector<16x128xf32> -> vector<16x128xf32>
    %11 = arith.maximumf %7, %10 : vector<16x128xf32>
    %c3 = arith.constant 3 : index
    %c0_10 = arith.constant 0 : index
    %c0_11 = arith.constant 0 : index
    %12 = vector.load %arg1[%c3, %c0_10, %c0_11] : memref<4x16x1600xbf16, #tpu.memory_space<vmem>>, vector<1x16x1600xbf16>
    %13 = vector.shape_cast %12 : vector<1x16x1600xbf16> to vector<16x1600xbf16>
    %cst_12 = arith.constant dense<0.000000e+00> : vector<16x128xf32>
    %14 = tpu.matmul %13, %0, %cst_12 {dimension_numbers = #tpu.dot_dimension_numbers<[1], [0], [0], [1], [0, 0, 1, 1], [], []>} : vector<16x1600xbf16>, vector<1600x128xbf16>, vector<16x128xf32> -> vector<16x128xf32>
    %15 = arith.maximumf %11, %14 : vector<16x128xf32>
    %c0_13 = arith.constant 0 : index
    %c0_14 = arith.constant 0 : index
    %16 = vector.load %arg3[%c0_13, %c0_14] : memref<1x128xf32, #tpu.memory_space<vmem>>, vector<1x128xf32>
    %17 = vector.broadcast %16 : vector<1x128xf32> to vector<16x128xf32>
    %18 = arith.addf %15, %17 : vector<16x128xf32>
    %cst_15 = arith.constant 0.00999999977 : f32
    %19 = vector.broadcast %cst_15 : f32 to vector<16x128xf32>
    %20 = arith.mulf %19, %18 : vector<16x128xf32>
    %21 = arith.maximumf %18, %20 : vector<16x128xf32>
    %22 = arith.truncf %21 : vector<16x128xf32> to vector<16x128xbf16>
    %c0_16 = arith.constant 0 : index
    %c0_17 = arith.constant 0 : index
    %23 = vector.load %arg4[%c0_16, %c0_17] : memref<16x128xbf16, #tpu.memory_space<vmem>>, vector<16x128xbf16>
    tpu.vector_store %arg4[%c0_16, %c0_17], %22 {strides = array<i32>} : memref<16x128xbf16, #tpu.memory_space<vmem>>, vector<16x128xbf16>,
    return
  }
  func.func @transform_0(%arg0: i32) -> (i32, i32, i32) {
    %c0_i32 = arith.constant 0 : i32
    %c0_i32_0 = arith.constant 0 : i32
    %c0_i32_1 = arith.constant 0 : i32
    return %c0_i32, %arg0, %c0_i32_0 : i32, i32, i32
  }
  func.func @transform_1(%arg0: i32) -> (i32, i32) {
    %c0_i32 = arith.constant 0 : i32
    %c0_i32_0 = arith.constant 0 : i32
    %c0_i32_1 = arith.constant 0 : i32
    return %c0_i32, %c0_i32_0 : i32, i32
  }
  func.func @transform_2(%arg0: i32) -> (i32, i32) {
    %c0_i32 = arith.constant 0 : i32
    %c0_i32_0 = arith.constant 0 : i32
    %c0_i32_1 = arith.constant 0 : i32
    return %c0_i32, %c0_i32_0 : i32, i32
  }
  func.func @transform_3(%arg0: i32) -> (i32, i32) {
    %c0_i32 = arith.constant 0 : i32
    %c0_i32_0 = arith.constant 0 : i32
    return %arg0, %c0_i32 : i32, i32
  }
}

module attributes {stable_mosaic.version = 11 : i64} {
  func.func @_head_kernel(%arg0: i32, %arg1: memref<2x1024xbf16, #tpu.memory_space<vmem>>, %arg2: memref<1024x1152xbf16, #tpu.memory_space<vmem>>, %arg3: memref<1x1152xf32, #tpu.memory_space<vmem>>, %arg4: memref<1024x512xbf16, #tpu.memory_space<vmem>>, %arg5: memref<1x512xf32, #tpu.memory_space<vmem>>, %arg6: memref<512x1xbf16, #tpu.memory_space<vmem>>, %arg7: memref<1x1xf32, #tpu.memory_space<vmem>>, %arg8: memref<2x2xf32, #tpu.memory_space<vmem>>) attributes {dimension_semantics = [#tpu.dimension_semantics<parallel>], iteration_bounds = array<i64: 1>, scalar_prefetch = 0 : i64, scratch_operands = 0 : i64, tpu.core_type = #tpu.core_type<tc>, window_params = [{transform_indices = @transform_0, window_bounds = array<i64: 2, 1024>}, {pipeline_mode = #tpu.pipeline_mode<synchronous>, transform_indices = @transform_1, window_bounds = array<i64: 1024, 1152>}, {pipeline_mode = #tpu.pipeline_mode<synchronous>, transform_indices = @transform_2, window_bounds = array<i64: 1, 1152>}, {pipeline_mode = #tpu.pipeline_mode<synchronous>, transform_indices = @transform_3, window_bounds = array<i64: 1024, 512>}, {pipeline_mode = #tpu.pipeline_mode<synchronous>, transform_indices = @transform_4, window_bounds = array<i64: 1, 512>}, {pipeline_mode = #tpu.pipeline_mode<synchronous>, transform_indices = @transform_5, window_bounds = array<i64: 512, 1>}, {pipeline_mode = #tpu.pipeline_mode<synchronous>, transform_indices = @transform_6, window_bounds = array<i64: 1, 1>}, {transform_indices = @transform_7, window_bounds = array<i64: 2, 2>}]} {
    %c0 = arith.constant 0 : index
    %c0_0 = arith.constant 0 : index
    %0 = vector.load %arg1[%c0, %c0_0] : memref<2x1024xbf16, #tpu.memory_space<vmem>>, vector<2x1024xbf16>
    %c0_1 = arith.constant 0 : index
    %c0_2 = arith.constant 0 : index
    %1 = vector.load %arg2[%c0_1, %c0_2] : memref<1024x1152xbf16, #tpu.memory_space<vmem>>, vector<1024x1152xbf16>
    %cst = arith.constant dense<0.000000e+00> : vector<2x1152xf32>
    %2 = tpu.matmul %0, %1, %cst {dimension_numbers = #tpu.dot_dimension_numbers<[1], [0], [0], [1], [0, 0, 1, 1], [], []>} : vector<2x1024xbf16>, vector<1024x1152xbf16>, vector<2x1152xf32> -> vector<2x1152xf32>
    %c0_3 = arith.constant 0 : index
    %c0_4 = arith.constant 0 : index
    %3 = vector.load %arg3[%c0_3, %c0_4] : memref<1x1152xf32, #tpu.memory_space<vmem>>, vector<1x1152xf32>
    %4 = vector.broadcast %3 : vector<1x1152xf32> to vector<2x1152xf32>
    %5 = arith.addf %2, %4 : vector<2x1152xf32>
    %6 = vector.extract_strided_slice %5 {offsets = [0, 1024], sizes = [2, 1], strides = [1, 1]} : vector<2x1152xf32> to vector<2x1xf32>
    %7 = vector.extract_strided_slice %5 {offsets = [0, 0], sizes = [2, 1024], strides = [1, 1]} : vector<2x1152xf32> to vector<2x1024xf32>
    %cst_5 = arith.constant 0.00999999977 : f32
    %8 = vector.broadcast %cst_5 : f32 to vector<2x1024xf32>
    %9 = arith.mulf %8, %7 : vector<2x1024xf32>
    %10 = arith.maximumf %7, %9 : vector<2x1024xf32>
    %11 = arith.truncf %10 : vector<2x1024xf32> to vector<2x1024xbf16>
    %c0_6 = arith.constant 0 : index
    %c0_7 = arith.constant 0 : index
    %12 = vector.load %arg4[%c0_6, %c0_7] : memref<1024x512xbf16, #tpu.memory_space<vmem>>, vector<1024x512xbf16>
    %cst_8 = arith.constant dense<0.000000e+00> : vector<2x512xf32>
    %13 = tpu.matmul %11, %12, %cst_8 {dimension_numbers = #tpu.dot_dimension_numbers<[1], [0], [0], [1], [0, 0, 1, 1], [], []>} : vector<2x1024xbf16>, vector<1024x512xbf16>, vector<2x512xf32> -> vector<2x512xf32>
    %c0_9 = arith.constant 0 : index
    %c0_10 = arith.constant 0 : index
    %14 = vector.load %arg5[%c0_9, %c0_10] : memref<1x512xf32, #tpu.memory_space<vmem>>, vector<1x512xf32>
    %15 = vector.broadcast %14 : vector<1x512xf32> to vector<2x512xf32>
    %16 = arith.addf %13, %15 : vector<2x512xf32>
    %cst_11 = arith.constant 0.00999999977 : f32
    %17 = vector.broadcast %cst_11 : f32 to vector<2x512xf32>
    %18 = arith.mulf %17, %16 : vector<2x512xf32>
    %19 = arith.maximumf %16, %18 : vector<2x512xf32>
    %20 = arith.truncf %19 : vector<2x512xf32> to vector<2x512xbf16>
    %c0_12 = arith.constant 0 : index
    %c0_13 = arith.constant 0 : index
    %21 = vector.load %arg6[%c0_12, %c0_13] : memref<512x1xbf16, #tpu.memory_space<vmem>>, vector<512x1xbf16>
    %cst_14 = arith.constant dense<0.000000e+00> : vector<2x1xf32>
    %22 = tpu.matmul %20, %21, %cst_14 {dimension_numbers = #tpu.dot_dimension_numbers<[1], [0], [0], [1], [0, 0, 1, 1], [], []>} : vector<2x512xbf16>, vector<512x1xbf16>, vector<2x1xf32> -> vector<2x1xf32>
    %c0_15 = arith.constant 0 : index
    %c0_16 = arith.constant 0 : index
    %23 = vector.load %arg7[%c0_15, %c0_16] : memref<1x1xf32, #tpu.memory_space<vmem>>, vector<1x1xf32>
    %24 = vector.broadcast %23 : vector<1x1xf32> to vector<2x1xf32>
    %25 = arith.addf %22, %24 : vector<2x1xf32>
    %cst_17 = arith.constant 5.000000e-01 : f32
    %26 = vector.broadcast %cst_17 : f32 to vector<2x1xf32>
    %27 = arith.mulf %26, %25 : vector<2x1xf32>
    %28 = math.tanh %27 : vector<2x1xf32>
    %cst_18 = arith.constant 1.000000e+00 : f32
    %29 = vector.broadcast %cst_18 : f32 to vector<2x1xf32>
    %30 = arith.addf %28, %29 : vector<2x1xf32>
    %cst_19 = arith.constant 5.000000e-01 : f32
    %31 = vector.broadcast %cst_19 : f32 to vector<2x1xf32>
    %32 = arith.mulf %31, %30 : vector<2x1xf32>
    %c0_20 = arith.constant 0 : index
    %c0_21 = arith.constant 0 : index
    %33 = vector.load %arg8[%c0_20, %c0_21] : memref<2x2xf32, #tpu.memory_space<vmem>>, vector<2x1xf32>
    tpu.vector_store %arg8[%c0_20, %c0_21], %32 {strides = array<i32>} : memref<2x2xf32, #tpu.memory_space<vmem>>, vector<2x1xf32>,
    %c0_22 = arith.constant 0 : index
    %c1 = arith.constant 1 : index
    %34 = vector.load %arg8[%c0_22, %c1] : memref<2x2xf32, #tpu.memory_space<vmem>>, vector<2x1xf32>
    tpu.vector_store %arg8[%c0_22, %c1], %6 {strides = array<i32>} : memref<2x2xf32, #tpu.memory_space<vmem>>, vector<2x1xf32>,
    return
  }
  func.func @transform_0(%arg0: i32) -> (i32, i32) {
    %c0_i32 = arith.constant 0 : i32
    %c0_i32_0 = arith.constant 0 : i32
    return %arg0, %c0_i32 : i32, i32
  }
  func.func @transform_1(%arg0: i32) -> (i32, i32) {
    %c0_i32 = arith.constant 0 : i32
    %c0_i32_0 = arith.constant 0 : i32
    %c0_i32_1 = arith.constant 0 : i32
    return %c0_i32, %c0_i32_0 : i32, i32
  }
  func.func @transform_2(%arg0: i32) -> (i32, i32) {
    %c0_i32 = arith.constant 0 : i32
    %c0_i32_0 = arith.constant 0 : i32
    %c0_i32_1 = arith.constant 0 : i32
    return %c0_i32, %c0_i32_0 : i32, i32
  }
  func.func @transform_3(%arg0: i32) -> (i32, i32) {
    %c0_i32 = arith.constant 0 : i32
    %c0_i32_0 = arith.constant 0 : i32
    %c0_i32_1 = arith.constant 0 : i32
    return %c0_i32, %c0_i32_0 : i32, i32
  }
  func.func @transform_4(%arg0: i32) -> (i32, i32) {
    %c0_i32 = arith.constant 0 : i32
    %c0_i32_0 = arith.constant 0 : i32
    %c0_i32_1 = arith.constant 0 : i32
    return %c0_i32, %c0_i32_0 : i32, i32
  }
  func.func @transform_5(%arg0: i32) -> (i32, i32) {
    %c0_i32 = arith.constant 0 : i32
    %c0_i32_0 = arith.constant 0 : i32
    %c0_i32_1 = arith.constant 0 : i32
    return %c0_i32, %c0_i32_0 : i32, i32
  }
  func.func @transform_6(%arg0: i32) -> (i32, i32) {
    %c0_i32 = arith.constant 0 : i32
    %c0_i32_0 = arith.constant 0 : i32
    %c0_i32_1 = arith.constant 0 : i32
    return %c0_i32, %c0_i32_0 : i32, i32
  }
  func.func @transform_7(%arg0: i32) -> (i32, i32) {
    %c0_i32 = arith.constant 0 : i32
    %c0_i32_0 = arith.constant 0 : i32
    return %arg0, %c0_i32 : i32, i32
  }
}

</mosaic_0001>

<llo_original>
// kernel: discriminator_forward.3
$region0: #{discriminator_forward.3}
  #allocation0 [shape = 'u32[]', space=smem, size = 0x4, offset = 0x4, fixed_abs, tag = 'smem constant byte address 0x4 - core index']
  #allocation1 [shape = 'u32[144,128]{1,0:T(1,128)}', space=vmem, size = 0x12000, scoped, tag = 'internal scratch']
  %s0 = inlined_call_operand.vmem [shape: bf16[4,72,100], index: 0, kind: input, shape index: {}]
  %s1 = inlined_call_operand.vmem [shape: bf16[100,128], index: 1, kind: input, shape index: {}]
  %s2 = inlined_call_operand.vmem [shape: f32[1,128], index: 2, kind: input, shape index: {}]
  %s3 = inlined_call_operand.vmem [shape: bf16[72,128], index: 3, kind: output, shape index: {}]
  %s4 = sld [smem:[#allocation0]]
  $region22: #{discriminator_forward.3} parent=0
    _
  %s6 = ssub.s32 1, %s4
  %s7 = scalar_select 0, %s6, %s4
  // Predicated region
  $region2: #{discriminator_forward.3} parent=0 // pred_check
    _
  $region3: #{discriminator_forward.3} parent=0 // pred_check_branch
    %9 = sbr.rel (0) target = $region5
  $region4: #{discriminator_forward.3} parent=0 // pred_region
    _
  $region5: #{discriminator_forward.3} parent=0 // pred_fallthru
    _
  // Predicated region
  $region6: #{discriminator_forward.3} parent=0 // pred_check
    _
  $region7: #{discriminator_forward.3} parent=0 // pred_check_branch
    %11 = sbr.rel (0) target = $region9
  $region8: #{discriminator_forward.3} parent=0 // pred_region
    _
  $region9: #{discriminator_forward.3} parent=0 // pred_fallthru
    _
  // Predicated region
  $region10: #{discriminator_forward.3} parent=0 // pred_check
    _
  $region11: #{discriminator_forward.3} parent=0 // pred_check_branch
    %13 = sbr.rel (0) target = $region13
  $region12: #{discriminator_forward.3} parent=0 // pred_region
    _
  $region13: #{discriminator_forward.3} parent=0 // pred_fallthru
    _
  %v15 = vld [vmem:[%s1] sm:$0xf]
  %v16 = vld [vmem:[%s1 + $0x4] sm:$0xf]
  %v17 = vld [vmem:[%s1 + $0x8] sm:$0xf]
  %v18 = vld [vmem:[%s1 + $0xc] sm:$0xf]
  %v19 = vld [vmem:[%s1 + $0x10] sm:$0xf]
  %v20 = vld [vmem:[%s1 + $0x14] sm:$0xf]
  %v21 = vld [vmem:[%s1 + $0x18] sm:$0xf]
  %v22 = vld [vmem:[%s1 + $0x1c] sm:$0xf]
  %v23 = vld [vmem:[%s1 + $0x20] sm:$0xf]
  %v24 = vld [vmem:[%s1 + $0x24] sm:$0xf]
  %v25 = vld [vmem:[%s1 + $0x28] sm:$0xf]
  %v26 = vld [vmem:[%s1 + $0x2c] sm:$0xf]
  %v27 = vld [vmem:[%s1 + $0x30] sm:$0x3]
  %v28 = vld [vmem:[%s0] sm:$0xf]
  %v29 = vld [vmem:[%s0 + $0x4] sm:$0xf]
  %v30 = vld [vmem:[%s0 + $0x8] sm:$0xf]
  %v31 = vld [vmem:[%s0 + $0xc] sm:$0xf]
  %v32 = vld [vmem:[%s0 + $0x10] sm:$0xf]
  %v33 = vld [vmem:[%s0 + $0x14] sm:$0xf]
  %v34 = vld [vmem:[%s0 + $0x18] sm:$0xf]
  %v35 = vld [vmem:[%s0 + $0x1c] sm:$0xf]
  %v36 = vld [vmem:[%s0 + $0x20] sm:$0xf]
  %v46 = vunpack.c.l.b16 %v28
  %v47 = vunpack.c.l.b16 %v29
  %v48 = vunpack.c.l.b16 %v30
  %v49 = vunpack.c.l.b16 %v31
  %v50 = vunpack.c.l.b16 %v32
  %v51 = vunpack.c.l.b16 %v33
  %v52 = vunpack.c.l.b16 %v34
  %v53 = vunpack.c.l.b16 %v35
  %v54 = vunpack.c.l.b16 %v36
  %v55 = vpack.c.b16 %v47, %v46
  %v56 = vpack.c.b16 %v49, %v48
  %v57 = vpack.c.b16 %v51, %v50
  %v58 = vpack.c.b16 %v53, %v52
  %v59 = vpack.c.b16 %v54, %v54
  %v73 = vunpack.c.l.b16 %v15
  %v74 = vunpack.c.l.b16 %v16
  %v75 = vunpack.c.l.b16 %v17
  %v76 = vunpack.c.l.b16 %v18
  %v77 = vunpack.c.l.b16 %v19
  %v78 = vunpack.c.l.b16 %v20
  %v79 = vunpack.c.l.b16 %v21
  %v80 = vunpack.c.l.b16 %v22
  %v81 = vunpack.c.l.b16 %v23
  %v82 = vunpack.c.l.b16 %v24
  %v83 = vunpack.c.l.b16 %v25
  %v84 = vunpack.c.l.b16 %v26
  %v85 = vunpack.c.l.b16 %v27
  %v86 = vpack.c.b16 %v74, %v73
  %v87 = vpack.c.b16 %v76, %v75
  %v88 = vpack.c.b16 %v78, %v77
  %v89 = vpack.c.b16 %v80, %v79
  %v90 = vpack.c.b16 %v82, %v81
  %v91 = vpack.c.b16 %v84, %v83
  %v92 = vpack.c.b16 %v85, %v85
  %vm99 = vcmask 818176
  %v101 = vsel %vm99, %v55, 0
  %v104 = vsel %vm99, %v56, 0
  %v107 = vsel %vm99, %v57, 0
  %v110 = vsel %vm99, %v58, 0
  %v113 = vsel %vm99, %v59, 0
  %vm115 = vcmask 1041408
  %v117 = vsel %vm115, %v92, 0
  %119 = vmatprep.subr.bf16.mxu0 0
  %120 = vmatpush1.bf16.msra.mxu0 %v86
  %121 = vmatprep.subr.bf16.mxu0 0
  %122 = vmatpush1.bf16.msra.mxu0 %v87
  %123 = vmatprep.subr.bf16.mxu0 0
  %124 = vmatpush1.bf16.msra.mxu0 %v88
  %125 = vmatprep.subr.bf16.mxu0 0
  %126 = vmatpush1.bf16.msra.mxu0 %v89
  %127 = vmatprep.subr.bf16.mxu0 0
  %128 = vmatpush1.bf16.msra.mxu0 %v90
  %129 = vmatprep.subr.bf16.mxu0 0
  %130 = vmatpush1.bf16.msra.mxu0 %v91
  %131 = vmatprep.subr.bf16.mxu0 0
  %132 = vmatpush1.bf16.msra.mxu0 %v117
  %133 = vmatprep.subr.bf16.mxu0 0
  %134 = vmatpush1.bf16.msra.mxu0 0
  %135 = vmatprep.subr.bf16.mxu0 0
  %136 = vmatpush1.bf16.msra.mxu0 0
  %137 = vmatprep.subr.bf16.mxu0 0
  %138 = vmatpush1.bf16.msra.mxu0 0
  %139 = vmatprep.subr.bf16.mxu0 0
  %140 = vmatpush1.bf16.msra.mxu0 0
  %141 = vmatprep.subr.bf16.mxu0 0
  %142 = vmatpush1.bf16.msra.mxu0 0
  %143 = vmatprep.subr.bf16.mxu0 0
  %144 = vmatpush1.bf16.msra.mxu0 0
  %145 = vmatprep.subr.bf16.mxu0 0
  %146 = vmatpush1.bf16.msra.mxu0 0
  %147 = vmatprep.subr.bf16.mxu0 0
  %148 = vmatpush1.bf16.msra.mxu0 0
  %149 = vmatprep.subr.bf16.mxu0 0
  %150 = vmatpush1.bf16.msra.mxu0 0
  %151 = vmatprep.mubr.bf16.mxu0 0
  %152 = vmatmul.mubr.bf16.gmra.mrb[0].mxu0 %v101
  %v153 = vpop.f32.mrb[0].mxu0
  %v154 = vadd.f32 0.0, %v153
  %v155 = vpop.f32.mrb[0].mxu0
  %v156 = vpop.f32.mrb[0].mxu0
  %v157 = vadd.f32 0.0, %v156
  %v158 = vpop.f32.mrb[0].mxu0
  %159 = vmatprep.mubr.bf16.mxu0 0
  %160 = vmatmul.mubr.bf16.gmra.mrb[0].mxu0 %v104
  %v161 = vpop.f32.mrb[0].mxu0
  %v162 = vadd.f32 0.0, %v161
  %v163 = vpop.f32.mrb[0].mxu0
  %v164 = vpop.f32.mrb[0].mxu0
  %v165 = vadd.f32 0.0, %v164
  %v166 = vpop.f32.mrb[0].mxu0
  %167 = vmatprep.mubr.bf16.mxu0 0
  %168 = vmatmul.mubr.bf16.gmra.mrb[0].mxu0 %v107
  %v169 = vpop.f32.mrb[0].mxu0
  %v170 = vadd.f32 0.0, %v169
  %v171 = vpop.f32.mrb[0].mxu0
  %v172 = vpop.f32.mrb[0].mxu0
  %v173 = vadd.f32 0.0, %v172
  %v174 = vpop.f32.mrb[0].mxu0
  %175 = vmatprep.mubr.bf16.mxu0 0
  %176 = vmatmul.mubr.bf16.gmra.mrb[0].mxu0 %v110
  %v177 = vpop.f32.mrb[0].mxu0
  %v178 = vadd.f32 0.0, %v177
  %v179 = vpop.f32.mrb[0].mxu0
  %v180 = vpop.f32.mrb[0].mxu0
  %v181 = vadd.f32 0.0, %v180
  %v182 = vpop.f32.mrb[0].mxu0
  %183 = vmatprep.mubr.bf16.mxu0 0
  %184 = vmatmul.mubr.bf16.gmra.mrb[0].mxu0 %v113
  %v185 = vpop.f32.mrb[0].mxu0
  %v186 = vadd.f32 0.0, %v185
  %v187 = vpop.f32.mrb[0].mxu0
  %v188 = vpop.f32.mrb[0].mxu0
  %v189 = vpop.f32.mrb[0].mxu0
  %190 = vdwg.mxu0
  %s191 = scalar_lea.vmem %s0, 36
  %v192 = vld [vmem:[%s191] sm:$0xf]
  %v193 = vld [vmem:[%s191 + $0x4] sm:$0xf]
  %v194 = vld [vmem:[%s191 + $0x8] sm:$0xf]
  %v195 = vld [vmem:[%s191 + $0xc] sm:$0xf]
  %v196 = vld [vmem:[%s191 + $0x10] sm:$0xf]
  %v197 = vld [vmem:[%s191 + $0x14] sm:$0xf]
  %v198 = vld [vmem:[%s191 + $0x18] sm:$0xf]
  %v199 = vld [vmem:[%s191 + $0x1c] sm:$0xf]
  %v200 = vld [vmem:[%s191 + $0x20] sm:$0xf]
  %v210 = vunpack.c.l.b16 %v192
  %v211 = vunpack.c.l.b16 %v193
  %v212 = vunpack.c.l.b16 %v194
  %v213 = vunpack.c.l.b16 %v195
  %v214 = vunpack.c.l.b16 %v196
  %v215 = vunpack.c.l.b16 %v197
  %v216 = vunpack.c.l.b16 %v198
  %v217 = vunpack.c.l.b16 %v199
  %v218 = vunpack.c.l.b16 %v200
  %v219 = vpack.c.b16 %v211, %v210
  %v220 = vpack.c.b16 %v213, %v212
  %v221 = vpack.c.b16 %v215, %v214
  %v222 = vpack.c.b16 %v217, %v216
  %v223 = vpack.c.b16 %v218, %v218
  %v225 = vsel %vm99, %v219, 0
  %v228 = vsel %vm99, %v220, 0
  %v231 = vsel %vm99, %v221, 0
  %v234 = vsel %vm99, %v222, 0
  %v237 = vsel %vm99, %v223, 0
  %239 = vmatprep.subr.bf16.mxu0 0
  %240 = vmatpush1.bf16.msra.mxu0 %v86
  %241 = vmatprep.subr.bf16.mxu0 0
  %242 = vmatpush1.bf16.msra.mxu0 %v87
  %243 = vmatprep.subr.bf16.mxu0 0
  %244 = vmatpush1.bf16.msra.mxu0 %v88
  %245 = vmatprep.subr.bf16.mxu0 0
  %246 = vmatpush1.bf16.msra.mxu0 %v89
  %247 = vmatprep.subr.bf16.mxu0 0
  %248 = vmatpush1.bf16.msra.mxu0 %v90
  %249 = vmatprep.subr.bf16.mxu0 0
  %250 = vmatpush1.bf16.msra.mxu0 %v91
  %251 = vmatprep.subr.bf16.mxu0 0
  %252 = vmatpush1.bf16.msra.mxu0 %v117
  %253 = vmatprep.subr.bf16.mxu0 0
  %254 = vmatpush1.bf16.msra.mxu0 0
  %255 = vmatprep.subr.bf16.mxu0 0
  %256 = vmatpush1.bf16.msra.mxu0 0
  %257 = vmatprep.subr.bf16.mxu0 0
  %258 = vmatpush1.bf16.msra.mxu0 0
  %259 = vmatprep.subr.bf16.mxu0 0
  %260 = vmatpush1.bf16.msra.mxu0 0
  %261 = vmatprep.subr.bf16.mxu0 0
  %262 = vmatpush1.bf16.msra.mxu0 0
  %263 = vmatprep.subr.bf16.mxu0 0
  %264 = vmatpush1.bf16.msra.mxu0 0
  %265 = vmatprep.subr.bf16.mxu0 0
  %266 = vmatpush1.bf16.msra.mxu0 0
  %267 = vmatprep.subr.bf16.mxu0 0
  %268 = vmatpush1.bf16.msra.mxu0 0
  %269 = vmatprep.subr.bf16.mxu0 0
  %270 = vmatpush1.bf16.msra.mxu0 0
  %271 = vmatprep.mubr.bf16.mxu0 0
  %272 = vmatmul.mubr.bf16.gmra.mrb[0].mxu0 %v225
  %v273 = vpop.f32.mrb[0].mxu0
  %v274 = vadd.f32 0.0, %v273
  %v275 = vpop.f32.mrb[0].mxu0
  %v276 = vpop.f32.mrb[0].mxu0
  %v277 = vadd.f32 0.0, %v276
  %v278 = vpop.f32.mrb[0].mxu0
  %279 = vmatprep.mubr.bf16.mxu0 0
  %280 = vmatmul.mubr.bf16.gmra.mrb[0].mxu0 %v228
  %v281 = vpop.f32.mrb[0].mxu0
  %v282 = vadd.f32 0.0, %v281
  %v283 = vpop.f32.mrb[0].mxu0
  %v284 = vpop.f32.mrb[0].mxu0
  %v285 = vadd.f32 0.0, %v284
  %v286 = vpop.f32.mrb[0].mxu0
  %287 = vmatprep.mubr.bf16.mxu0 0
  %288 = vmatmul.mubr.bf16.gmra.mrb[0].mxu0 %v231
  %v289 = vpop.f32.mrb[0].mxu0
  %v290 = vadd.f32 0.0, %v289
  %v291 = vpop.f32.mrb[0].mxu0
  %v292 = vpop.f32.mrb[0].mxu0
  %v293 = vadd.f32 0.0, %v292
  %v294 = vpop.f32.mrb[0].mxu0
  %295 = vmatprep.mubr.bf16.mxu0 0
  %296 = vmatmul.mubr.bf16.gmra.mrb[0].mxu0 %v234
  %v297 = vpop.f32.mrb[0].mxu0
  %v298 = vadd.f32 0.0, %v297
  %v299 = vpop.f32.mrb[0].mxu0
  %v300 = vpop.f32.mrb[0].mxu0
  %v301 = vadd.f32 0.0, %v300
  %v302 = vpop.f32.mrb[0].mxu0
  %303 = vmatprep.mubr.bf16.mxu0 0
  %304 = vmatmul.mubr.bf16.gmra.mrb[0].mxu0 %v237
  %v305 = vpop.f32.mrb[0].mxu0
  %v306 = vadd.f32 0.0, %v305
  %v307 = vpop.f32.mrb[0].mxu0
  %v308 = vpop.f32.mrb[0].mxu0
  %v309 = vpop.f32.mrb[0].mxu0
  %310 = vdwg.mxu0
  %v311 = vmax.f32 %v154, %v274
  %v312 = vmax.f32 %v157, %v277
  %v313 = vmax.f32 %v162, %v282
  %v314 = vmax.f32 %v165, %v285
  %v315 = vmax.f32 %v170, %v290
  %v316 = vmax.f32 %v173, %v293
  %v317 = vmax.f32 %v178, %v298
  %v318 = vmax.f32 %v181, %v301
  %v319 = vmax.f32 %v186, %v306
  %s320 = scalar_lea.vmem %s0, 72
  %v321 = vld [vmem:[%s320] sm:$0xf]
  %v322 = vld [vmem:[%s320 + $0x4] sm:$0xf]
  %v323 = vld [vmem:[%s320 + $0x8] sm:$0xf]
  %v324 = vld [vmem:[%s320 + $0xc] sm:$0xf]
  %v325 = vld [vmem:[%s320 + $0x10] sm:$0xf]
  %v326 = vld [vmem:[%s320 + $0x14] sm:$0xf]
  %v327 = vld [vmem:[%s320 + $0x18] sm:$0xf]
  %v328 = vld [vmem:[%s320 + $0x1c] sm:$0xf]
  %v329 = vld [vmem:[%s320 + $0x20] sm:$0xf]
  %v339 = vunpack.c.l.b16 %v321
  %v340 = vunpack.c.l.b16 %v322
  %v341 = vunpack.c.l.b16 %v323
  %v342 = vunpack.c.l.b16 %v324
  %v343 = vunpack.c.l.b16 %v325
  %v344 = vunpack.c.l.b16 %v326
  %v345 = vunpack.c.l.b16 %v327
  %v346 = vunpack.c.l.b16 %v328
  %v347 = vunpack.c.l.b16 %v329
  %v348 = vpack.c.b16 %v340, %v339
  %v349 = vpack.c.b16 %v342, %v341
  %v350 = vpack.c.b16 %v344, %v343
  %v351 = vpack.c.b16 %v346, %v345
  %v352 = vpack.c.b16 %v347, %v347
  %v354 = vsel %vm99, %v348, 0
  %v357 = vsel %vm99, %v349, 0
  %v360 = vsel %vm99, %v350, 0
  %v363 = vsel %vm99, %v351, 0
  %v366 = vsel %vm99, %v352, 0
  %368 = vmatprep.subr.bf16.mxu0 0
  %369 = vmatpush1.bf16.msra.mxu0 %v86
  %370 = vmatprep.subr.bf16.mxu0 0
  %371 = vmatpush1.bf16.msra.mxu0 %v87
  %372 = vmatprep.subr.bf16.mxu0 0
  %373 = vmatpush1.bf16.msra.mxu0 %v88
  %374 = vmatprep.subr.bf16.mxu0 0
  %375 = vmatpush1.bf16.msra.mxu0 %v89
  %376 = vmatprep.subr.bf16.mxu0 0
  %377 = vmatpush1.bf16.msra.mxu0 %v90
  %378 = vmatprep.subr.bf16.mxu0 0
  %379 = vmatpush1.bf16.msra.mxu0 %v91
  %380 = vmatprep.subr.bf16.mxu0 0
  %381 = vmatpush1.bf16.msra.mxu0 %v117
  %382 = vmatprep.subr.bf16.mxu0 0
  %383 = vmatpush1.bf16.msra.mxu0 0
  %384 = vmatprep.subr.bf16.mxu0 0
  %385 = vmatpush1.bf16.msra.mxu0 0
  %386 = vmatprep.subr.bf16.mxu0 0
  %387 = vmatpush1.bf16.msra.mxu0 0
  %388 = vmatprep.subr.bf16.mxu0 0
  %389 = vmatpush1.bf16.msra.mxu0 0
  %390 = vmatprep.subr.bf16.mxu0 0
  %391 = vmatpush1.bf16.msra.mxu0 0
  %392 = vmatprep.subr.bf16.mxu0 0
  %393 = vmatpush1.bf16.msra.mxu0 0
  %394 = vmatprep.subr.bf16.mxu0 0
  %395 = vmatpush1.bf16.msra.mxu0 0
  %396 = vmatprep.subr.bf16.mxu0 0
  %397 = vmatpush1.bf16.msra.mxu0 0
  %398 = vmatprep.subr.bf16.mxu0 0
  %399 = vmatpush1.bf16.msra.mxu0 0
  %400 = vmatprep.mubr.bf16.mxu0 0
  %401 = vmatmul.mubr.bf16.gmra.mrb[0].mxu0 %v354
  %v402 = vpop.f32.mrb[0].mxu0
  %v403 = vadd.f32 0.0, %v402
  %v404 = vpop.f32.mrb[0].mxu0
  %v405 = vpop.f32.mrb[0].mxu0
  %v406 = vadd.f32 0.0, %v405
  %v407 = vpop.f32.mrb[0].mxu0
  %408 = vmatprep.mubr.bf16.mxu0 0
  %409 = vmatmul.mubr.bf16.gmra.mrb[0].mxu0 %v357
  %v410 = vpop.f32.mrb[0].mxu0
  %v411 = vadd.f32 0.0, %v410
  %v412 = vpop.f32.mrb[0].mxu0
  %v413 = vpop.f32.mrb[0].mxu0
  %v414 = vadd.f32 0.0, %v413
  %v415 = vpop.f32.mrb[0].mxu0
  %416 = vmatprep.mubr.bf16.mxu0 0
  %417 = vmatmul.mubr.bf16.gmra.mrb[0].mxu0 %v360
  %v418 = vpop.f32.mrb[0].mxu0
  %v419 = vadd.f32 0.0, %v418
  %v420 = vpop.f32.mrb[0].mxu0
  %v421 = vpop.f32.mrb[0].mxu0
  %v422 = vadd.f32 0.0, %v421
  %v423 = vpop.f32.mrb[0].mxu0
  %424 = vmatprep.mubr.bf16.mxu0 0
  %425 = vmatmul.mubr.bf16.gmra.mrb[0].mxu0 %v363
  %v426 = vpop.f32.mrb[0].mxu0
  %v427 = vadd.f32 0.0, %v426
  %v428 = vpop.f32.mrb[0].mxu0
  %v429 = vpop.f32.mrb[0].mxu0
  %v430 = vadd.f32 0.0, %v429
  %v431 = vpop.f32.mrb[0].mxu0
  %432 = vmatprep.mubr.bf16.mxu0 0
  %433 = vmatmul.mubr.bf16.gmra.mrb[0].mxu0 %v366
  %v434 = vpop.f32.mrb[0].mxu0
  %v435 = vadd.f32 0.0, %v434
  %v436 = vpop.f32.mrb[0].mxu0
  %v437 = vpop.f32.mrb[0].mxu0
  %v438 = vpop.f32.mrb[0].mxu0
  %439 = vdwg.mxu0
  %v440 = vmax.f32 %v311, %v403
  %v441 = vmax.f32 %v312, %v406
  %v442 = vmax.f32 %v313, %v411
  %v443 = vmax.f32 %v314, %v414
  %v444 = vmax.f32 %v315, %v419
  %v445 = vmax.f32 %v316, %v422
  %v446 = vmax.f32 %v317, %v427
  %v447 = vmax.f32 %v318, %v430
  %v448 = vmax.f32 %v319, %v435
  %s449 = scalar_lea.vmem %s0, 108
  %v450 = vld [vmem:[%s449] sm:$0xf]
  %v451 = vld [vmem:[%s449 + $0x4] sm:$0xf]
  %v452 = vld [vmem:[%s449 + $0x8] sm:$0xf]
  %v453 = vld [vmem:[%s449 + $0xc] sm:$0xf]
  %v454 = vld [vmem:[%s449 + $0x10] sm:$0xf]
  %v455 = vld [vmem:[%s449 + $0x14] sm:$0xf]
  %v456 = vld [vmem:[%s449 + $0x18] sm:$0xf]
  %v457 = vld [vmem:[%s449 + $0x1c] sm:$0xf]
  %v458 = vld [vmem:[%s449 + $0x20] sm:$0xf]
  %v468 = vunpack.c.l.b16 %v450
  %v469 = vunpack.c.l.b16 %v451
  %v470 = vunpack.c.l.b16 %v452
  %v471 = vunpack.c.l.b16 %v453
  %v472 = vunpack.c.l.b16 %v454
  %v473 = vunpack.c.l.b16 %v455
  %v474 = vunpack.c.l.b16 %v456
  %v475 = vunpack.c.l.b16 %v457
  %v476 = vunpack.c.l.b16 %v458
  %v477 = vpack.c.b16 %v469, %v468
  %v478 = vpack.c.b16 %v471, %v470
  %v479 = vpack.c.b16 %v473, %v472
  %v480 = vpack.c.b16 %v475, %v474
  %v481 = vpack.c.b16 %v476, %v476
  %v483 = vsel %vm99, %v477, 0
  %v486 = vsel %vm99, %v478, 0
  %v489 = vsel %vm99, %v479, 0
  %v492 = vsel %vm99, %v480, 0
  %v495 = vsel %vm99, %v481, 0
  %497 = vmatprep.subr.bf16.mxu0 0
  %498 = vmatpush1.bf16.msra.mxu0 %v86
  %499 = vmatprep.subr.bf16.mxu0 0
  %500 = vmatpush1.bf16.msra.mxu0 %v87
  %501 = vmatprep.subr.bf16.mxu0 0
  %502 = vmatpush1.bf16.msra.mxu0 %v88
  %503 = vmatprep.subr.bf16.mxu0 0
  %504 = vmatpush1.bf16.msra.mxu0 %v89
  %505 = vmatprep.subr.bf16.mxu0 0
  %506 = vmatpush1.bf16.msra.mxu0 %v90
  %507 = vmatprep.subr.bf16.mxu0 0
  %508 = vmatpush1.bf16.msra.mxu0 %v91
  %509 = vmatprep.subr.bf16.mxu0 0
  %510 = vmatpush1.bf16.msra.mxu0 %v117
  %511 = vmatprep.subr.bf16.mxu0 0
  %512 = vmatpush1.bf16.msra.mxu0 0
  %513 = vmatprep.subr.bf16.mxu0 0
  %514 = vmatpush1.bf16.msra.mxu0 0
  %515 = vmatprep.subr.bf16.mxu0 0
  %516 = vmatpush1.bf16.msra.mxu0 0
  %517 = vmatprep.subr.bf16.mxu0 0
  %518 = vmatpush1.bf16.msra.mxu0 0
  %519 = vmatprep.subr.bf16.mxu0 0
  %520 = vmatpush1.bf16.msra.mxu0 0
  %521 = vmatprep.subr.bf16.mxu0 0
  %522 = vmatpush1.bf16.msra.mxu0 0
  %523 = vmatprep.subr.bf16.mxu0 0
  %524 = vmatpush1.bf16.msra.mxu0 0
  %525 = vmatprep.subr.bf16.mxu0 0
  %526 = vmatpush1.bf16.msra.mxu0 0
  %527 = vmatprep.subr.bf16.mxu0 0
  %528 = vmatpush1.bf16.msra.mxu0 0
  %529 = vmatprep.mubr.bf16.mxu0 0
  %530 = vmatmul.mubr.bf16.gmra.mrb[0].mxu0 %v483
  %v531 = vpop.f32.mrb[0].mxu0
  %v532 = vadd.f32 0.0, %v531
  %v533 = vpop.f32.mrb[0].mxu0
  %v534 = vpop.f32.mrb[0].mxu0
  %v535 = vadd.f32 0.0, %v534
  %v536 = vpop.f32.mrb[0].mxu0
  %537 = vmatprep.mubr.bf16.mxu0 0
  %538 = vmatmul.mubr.bf16.gmra.mrb[0].mxu0 %v486
  %v539 = vpop.f32.mrb[0].mxu0
  %v540 = vadd.f32 0.0, %v539
  %v541 = vpop.f32.mrb[0].mxu0
  %v542 = vpop.f32.mrb[0].mxu0
  %v543 = vadd.f32 0.0, %v542
  %v544 = vpop.f32.mrb[0].mxu0
  %545 = vmatprep.mubr.bf16.mxu0 0
  %546 = vmatmul.mubr.bf16.gmra.mrb[0].mxu0 %v489
  %v547 = vpop.f32.mrb[0].mxu0
  %v548 = vadd.f32 0.0, %v547
  %v549 = vpop.f32.mrb[0].mxu0
  %v550 = vpop.f32.mrb[0].mxu0
  %v551 = vadd.f32 0.0, %v550
  %v552 = vpop.f32.mrb[0].mxu0
  %553 = vmatprep.mubr.bf16.mxu0 0
  %554 = vmatmul.mubr.bf16.gmra.mrb[0].mxu0 %v492
  %v555 = vpop.f32.mrb[0].mxu0
  %v556 = vadd.f32 0.0, %v555
  %v557 = vpop.f32.mrb[0].mxu0
  %v558 = vpop.f32.mrb[0].mxu0
  %v559 = vadd.f32 0.0, %v558
  %v560 = vpop.f32.mrb[0].mxu0
  %561 = vmatprep.mubr.bf16.mxu0 0
  %562 = vmatmul.mubr.bf16.gmra.mrb[0].mxu0 %v495
  %v563 = vpop.f32.mrb[0].mxu0
  %v564 = vadd.f32 0.0, %v563
  %v565 = vpop.f32.mrb[0].mxu0
  %v566 = vpop.f32.mrb[0].mxu0
  %v567 = vpop.f32.mrb[0].mxu0
  %568 = vdwg.mxu0
  %v569 = vmax.f32 %v440, %v532
  %v570 = vmax.f32 %v441, %v535
  %v571 = vmax.f32 %v442, %v540
  %v572 = vmax.f32 %v443, %v543
  %v573 = vmax.f32 %v444, %v548
  %v574 = vmax.f32 %v445, %v551
  %v575 = vmax.f32 %v446, %v556
  %v576 = vmax.f32 %v447, %v559
  %v577 = vmax.f32 %v448, %v564
  %v578 = vld [vmem:[%s2] sm:$0x1]
  %v580 = vlaneseq
  %v581 = vshrl.u32 %v580, 7
  %v582 = vsub.s32 0, %v581
  %v583 = vrot.slane %v578, %v582
  %v585 = vadd.f32 %v569, %v583
  %v586 = vadd.f32 %v570, %v583
  %v587 = vadd.f32 %v571, %v583
  %v588 = vadd.f32 %v572, %v583
  %v589 = vadd.f32 %v573, %v583
  %v590 = vadd.f32 %v574, %v583
  %v591 = vadd.f32 %v575, %v583
  %v592 = vadd.f32 %v576, %v583
  %v593 = vadd.f32 %v577, %v583
  %v594 = vmul.f32 %v585, 0.01
  %v595 = vmul.f32 %v586, 0.01
  %v596 = vmul.f32 %v587, 0.01
  %v597 = vmul.f32 %v588, 0.01
  %v598 = vmul.f32 %v589, 0.01
  %v599 = vmul.f32 %v590, 0.01
  %v600 = vmul.f32 %v591, 0.01
  %v601 = vmul.f32 %v592, 0.01
  %v602 = vmul.f32 %v593, 0.01
  %v603 = vmax.f32 %v585, %v594
  %v604 = vmax.f32 %v586, %v595
  %v605 = vmax.f32 %v587, %v596
  %v606 = vmax.f32 %v588, %v597
  %v607 = vmax.f32 %v589, %v598
  %v608 = vmax.f32 %v590, %v599
  %v609 = vmax.f32 %v591, %v600
  %v610 = vmax.f32 %v592, %v601
  %v611 = vmax.f32 %v593, %v602
  %v612 = vpack.c.bf16 %v604, %v603
  %v613 = vpack.c.bf16 %v606, %v605
  %v614 = vpack.c.bf16 %v608, %v607
  %v615 = vpack.c.bf16 %v610, %v609
  %v616 = vpack.c.bf16 %v611, %v611
  %v622 = vunpack.c.l.b16 %v612
  %v623 = vunpack.c.h.b16 %v612
  %v624 = vunpack.c.l.b16 %v613
  %v625 = vunpack.c.h.b16 %v613
  %v626 = vunpack.c.l.b16 %v614
  %v627 = vunpack.c.h.b16 %v614
  %v628 = vunpack.c.l.b16 %v615
  %v629 = vunpack.c.h.b16 %v615
  %v630 = vunpack.c.l.b16 %v616
  %v631 = vpack.c.b16 %v622, %v622
  %v632 = vpack.c.b16 %v623, %v623
  %v633 = vpack.c.b16 %v624, %v624
  %v634 = vpack.c.b16 %v625, %v625
  %v635 = vpack.c.b16 %v626, %v626
  %v636 = vpack.c.b16 %v627, %v627
  %v637 = vpack.c.b16 %v628, %v628
  %v638 = vpack.c.b16 %v629, %v629
  %v639 = vpack.c.b16 %v630, %v630
  %649 = vst [vmem:[%s3] sm:$0xf] %v631
  %650 = vst [vmem:[%s3 + $0x4] sm:$0xf] %v632
  %651 = vst [vmem:[%s3 + $0x8] sm:$0xf] %v633
  %652 = vst [vmem:[%s3 + $0xc] sm:$0xf] %v634
  %653 = vst [vmem:[%s3 + $0x10] sm:$0xf] %v635
  %654 = vst [vmem:[%s3 + $0x14] sm:$0xf] %v636
  %655 = vst [vmem:[%s3 + $0x18] sm:$0xf] %v637
  %656 = vst [vmem:[%s3 + $0x1c] sm:$0xf] %v638
  %657 = vst [vmem:[%s3 + $0x20] sm:$0xf] %v639
  // Predicated region
  $region14: #{discriminator_forward.3} parent=0 // pred_check
    _
  $region15: #{discriminator_forward.3} parent=0 // pred_check_branch
    %659 = sbr.rel (0) target = $region17
  $region16: #{discriminator_forward.3} parent=0 // pred_region
    _
  $region17: #{discriminator_forward.3} parent=0 // pred_fallthru
    _
  // Predicated region
  $region18: #{discriminator_forward.3} parent=0 // pred_check
    _
  $region19: #{discriminator_forward.3} parent=0 // pred_check_branch
    %661 = sbr.rel (0) target = $region21
  $region20: #{discriminator_forward.3} parent=0 // pred_region
    _
  $region21: #{discriminator_forward.3} parent=0 // pred_fallthru
    _

// kernel: discriminator_forward.4
$region0: #{discriminator_forward.4}
  #allocation0 [shape = 'u32[]', space=smem, size = 0x4, offset = 0x4, fixed_abs, tag = 'smem constant byte address 0x4 - core index']
  #allocation1 [shape = 'u32[144,128]{1,0:T(1,128)}', space=vmem, size = 0x12000, scoped, tag = 'internal scratch']
  %s0 = inlined_call_operand.vmem [shape: bf16[4,16,1600], index: 0, kind: input, shape index: {}]
  %s1 = inlined_call_operand.vmem [shape: bf16[1600,128], index: 1, kind: input, shape index: {}]
  %s2 = inlined_call_operand.vmem [shape: f32[1,128], index: 2, kind: input, shape index: {}]
  %s3 = inlined_call_operand.vmem [shape: bf16[16,128], index: 3, kind: output, shape index: {}]
  %s4 = sld [smem:[#allocation0]]
  $region22: #{discriminator_forward.4} parent=0
    _
  %s6 = ssub.s32 1, %s4
  %s7 = scalar_select 0, %s6, %s4
  // Predicated region
  $region2: #{discriminator_forward.4} parent=0 // pred_check
    _
  $region3: #{discriminator_forward.4} parent=0 // pred_check_branch
    %9 = sbr.rel (0) target = $region5
  $region4: #{discriminator_forward.4} parent=0 // pred_region
    _
  $region5: #{discriminator_forward.4} parent=0 // pred_fallthru
    _
  // Predicated region
  $region6: #{discriminator_forward.4} parent=0 // pred_check
    _
  $region7: #{discriminator_forward.4} parent=0 // pred_check_branch
    %11 = sbr.rel (0) target = $region9
  $region8: #{discriminator_forward.4} parent=0 // pred_region
    _
  $region9: #{discriminator_forward.4} parent=0 // pred_fallthru
    _
  // Predicated region
  $region10: #{discriminator_forward.4} parent=0 // pred_check
    _
  $region11: #{discriminator_forward.4} parent=0 // pred_check_branch
    %13 = sbr.rel (0) target = $region13
  $region12: #{discriminator_forward.4} parent=0 // pred_region
    _
  $region13: #{discriminator_forward.4} parent=0 // pred_fallthru
    _
  %v15 = vld [vmem:[%s1] sm:$0xf]
  %v16 = vld [vmem:[%s1 + $0x4] sm:$0xf]
  %v17 = vld [vmem:[%s1 + $0x8] sm:$0xf]
  %v18 = vld [vmem:[%s1 + $0xc] sm:$0xf]
  %v19 = vld [vmem:[%s1 + $0x10] sm:$0xf]
  %v20 = vld [vmem:[%s1 + $0x14] sm:$0xf]
  %v21 = vld [vmem:[%s1 + $0x18] sm:$0xf]
  %v22 = vld [vmem:[%s1 + $0x1c] sm:$0xf]
  %v23 = vld [vmem:[%s1 + $0x20] sm:$0xf]
  %v24 = vld [vmem:[%s1 + $0x24] sm:$0xf]
  %v25 = vld [vmem:[%s1 + $0x28] sm:$0xf]
  %v26 = vld [vmem:[%s1 + $0x2c] sm:$0xf]
  %v27 = vld [vmem:[%s1 + $0x30] sm:$0xf]
  %v28 = vld [vmem:[%s1 + $0x34] sm:$0xf]
  %v29 = vld [vmem:[%s1 + $0x38] sm:$0xf]
  %v30 = vld [vmem:[%s1 + $0x3c] sm:$0xf]
  %v31 = vld [vmem:[%s1 + $0x40] sm:$0xf]
  %v32 = vld [vmem:[%s1 + $0x44] sm:$0xf]
  %v33 = vld [vmem:[%s1 + $0x48] sm:$0xf]
  %v34 = vld [vmem:[%s1 + $0x4c] sm:$0xf]
  %v35 = vld [vmem:[%s1 + $0x50] sm:$0xf]
  %v36 = vld [vmem:[%s1 + $0x54] sm:$0xf]
  %v37 = vld [vmem:[%s1 + $0x58] sm:$0xf]
  %v38 = vld [vmem:[%s1 + $0x5c] sm:$0xf]
  %v39 = vld [vmem:[%s1 + $0x60] sm:$0xf]
  %v40 = vld [vmem:[%s1 + $0x64] sm:$0xf]
  %v41 = vld [vmem:[%s1 + $0x68] sm:$0xf]
  %v42 = vld [vmem:[%s1 + $0x6c] sm:$0xf]
  %v43 = vld [vmem:[%s1 + $0x70] sm:$0xf]
  %v44 = vld [vmem:[%s1 + $0x74] sm:$0xf]
  %v45 = vld [vmem:[%s1 + $0x78] sm:$0xf]
  %v46 = vld [vmem:[%s1 + $0x7c] sm:$0xf]
  %v47 = vld [vmem:[%s1 + $0x80] sm:$0xf]
  %v48 = vld [vmem:[%s1 + $0x84] sm:$0xf]
  %v49 = vld [vmem:[%s1 + $0x88] sm:$0xf]
  %v50 = vld [vmem:[%s1 + $0x8c] sm:$0xf]
  %v51 = vld [vmem:[%s1 + $0x90] sm:$0xf]
  %v52 = vld [vmem:[%s1 + $0x94] sm:$0xf]
  %v53 = vld [vmem:[%s1 + $0x98] sm:$0xf]
  %v54 = vld [vmem:[%s1 + $0x9c] sm:$0xf]
  %v55 = vld [vmem:[%s1 + $0xa0] sm:$0xf]
  %v56 = vld [vmem:[%s1 + $0xa4] sm:$0xf]
  %v57 = vld [vmem:[%s1 + $0xa8] sm:$0xf]
  %v58 = vld [vmem:[%s1 + $0xac] sm:$0xf]
  %v59 = vld [vmem:[%s1 + $0xb0] sm:$0xf]
  %v60 = vld [vmem:[%s1 + $0xb4] sm:$0xf]
  %v61 = vld [vmem:[%s1 + $0xb8] sm:$0xf]
  %v62 = vld [vmem:[%s1 + $0xbc] sm:$0xf]
  %v63 = vld [vmem:[%s1 + $0xc0] sm:$0xf]
  %v64 = vld [vmem:[%s1 + $0xc4] sm:$0xf]
  %v65 = vld [vmem:[%s1 + $0xc8] sm:$0xf]
  %v66 = vld [vmem:[%s1 + $0xcc] sm:$0xf]
  %v67 = vld [vmem:[%s1 + $0xd0] sm:$0xf]
  %v68 = vld [vmem:[%s1 + $0xd4] sm:$0xf]
  %v69 = vld [vmem:[%s1 + $0xd8] sm:$0xf]
  %v70 = vld [vmem:[%s1 + $0xdc] sm:$0xf]
  %v71 = vld [vmem:[%s1 + $0xe0] sm:$0xf]
  %v72 = vld [vmem:[%s1 + $0xe4] sm:$0xf]
  %v73 = vld [vmem:[%s1 + $0xe8] sm:$0xf]
  %v74 = vld [vmem:[%s1 + $0xec] sm:$0xf]
  %v75 = vld [vmem:[%s1 + $0xf0] sm:$0xf]
  %v76 = vld [vmem:[%s1 + $0xf4] sm:$0xf]
  %v77 = vld [vmem:[%s1 + $0xf8] sm:$0xf]
  %v78 = vld [vmem:[%s1 + $0xfc] sm:$0xf]
  %v79 = vld [vmem:[%s1 + $0x100] sm:$0xf]
  %v80 = vld [vmem:[%s1 + $0x104] sm:$0xf]
  %v81 = vld [vmem:[%s1 + $0x108] sm:$0xf]
  %v82 = vld [vmem:[%s1 + $0x10c] sm:$0xf]
  %v83 = vld [vmem:[%s1 + $0x110] sm:$0xf]
  %v84 = vld [vmem:[%s1 + $0x114] sm:$0xf]
  %v85 = vld [vmem:[%s1 + $0x118] sm:$0xf]
  %v86 = vld [vmem:[%s1 + $0x11c] sm:$0xf]
  %v87 = vld [vmem:[%s1 + $0x120] sm:$0xf]
  %v88 = vld [vmem:[%s1 + $0x124] sm:$0xf]
  %v89 = vld [vmem:[%s1 + $0x128] sm:$0xf]
  %v90 = vld [vmem:[%s1 + $0x12c] sm:$0xf]
  %v91 = vld [vmem:[%s1 + $0x130] sm:$0xf]
  %v92 = vld [vmem:[%s1 + $0x134] sm:$0xf]
  %v93 = vld [vmem:[%s1 + $0x138] sm:$0xf]
  %v94 = vld [vmem:[%s1 + $0x13c] sm:$0xf]
  %v95 = vld [vmem:[%s1 + $0x140] sm:$0xf]
  %v96 = vld [vmem:[%s1 + $0x144] sm:$0xf]
  %v97 = vld [vmem:[%s1 + $0x148] sm:$0xf]
  %v98 = vld [vmem:[%s1 + $0x14c] sm:$0xf]
  %v99 = vld [vmem:[%s1 + $0x150] sm:$0xf]
  %v100 = vld [vmem:[%s1 + $0x154] sm:$0xf]
  %v101 = vld [vmem:[%s1 + $0x158] sm:$0xf]
  %v102 = vld [vmem:[%s1 + $0x15c] sm:$0xf]
  %v103 = vld [vmem:[%s1 + $0x160] sm:$0xf]
  %v104 = vld [vmem:[%s1 + $0x164] sm:$0xf]
  %v105 = vld [vmem:[%s1 + $0x168] sm:$0xf]
  %v106 = vld [vmem:[%s1 + $0x16c] sm:$0xf]
  %v107 = vld [vmem:[%s1 + $0x170] sm:$0xf]
  %v108 = vld [vmem:[%s1 + $0x174] sm:$0xf]
  %v109 = vld [vmem:[%s1 + $0x178] sm:$0xf]
  %v110 = vld [vmem:[%s1 + $0x17c] sm:$0xf]
  %v111 = vld [vmem:[%s1 + $0x180] sm:$0xf]
  %v112 = vld [vmem:[%s1 + $0x184] sm:$0xf]
  %v113 = vld [vmem:[%s1 + $0x188] sm:$0xf]
  %v114 = vld [vmem:[%s1 + $0x18c] sm:$0xf]
  %v115 = vld [vmem:[%s1 + $0x190] sm:$0xf]
  %v116 = vld [vmem:[%s1 + $0x194] sm:$0xf]
  %v117 = vld [vmem:[%s1 + $0x198] sm:$0xf]
  %v118 = vld [vmem:[%s1 + $0x19c] sm:$0xf]
  %v119 = vld [vmem:[%s1 + $0x1a0] sm:$0xf]
  %v120 = vld [vmem:[%s1 + $0x1a4] sm:$0xf]
  %v121 = vld [vmem:[%s1 + $0x1a8] sm:$0xf]
  %v122 = vld [vmem:[%s1 + $0x1ac] sm:$0xf]
  %v123 = vld [vmem:[%s1 + $0x1b0] sm:$0xf]
  %v124 = vld [vmem:[%s1 + $0x1b4] sm:$0xf]
  %v125 = vld [vmem:[%s1 + $0x1b8] sm:$0xf]
  %v126 = vld [vmem:[%s1 + $0x1bc] sm:$0xf]
  %v127 = vld [vmem:[%s1 + $0x1c0] sm:$0xf]
  %v128 = vld [vmem:[%s1 + $0x1c4] sm:$0xf]
  %v129 = vld [vmem:[%s1 + $0x1c8] sm:$0xf]
  %v130 = vld [vmem:[%s1 + $0x1cc] sm:$0xf]
  %v131 = vld [vmem:[%s1 + $0x1d0] sm:$0xf]
  %v132 = vld [vmem:[%s1 + $0x1d4] sm:$0xf]
  %v133 = vld [vmem:[%s1 + $0x1d8] sm:$0xf]
  %v134 = vld [vmem:[%s1 + $0x1dc] sm:$0xf]
  %v135 = vld [vmem:[%s1 + $0x1e0] sm:$0xf]
  %v136 = vld [vmem:[%s1 + $0x1e4] sm:$0xf]
  %v137 = vld [vmem:[%s1 + $0x1e8] sm:$0xf]
  %v138 = vld [vmem:[%s1 + $0x1ec] sm:$0xf]
  %v139 = vld [vmem:[%s1 + $0x1f0] sm:$0xf]
  %v140 = vld [vmem:[%s1 + $0x1f4] sm:$0xf]
  %v141 = vld [vmem:[%s1 + $0x1f8] sm:$0xf]
  %v142 = vld [vmem:[%s1 + $0x1fc] sm:$0xf]
  %v143 = vld [vmem:[%s1 + $0x200] sm:$0xf]
  %v144 = vld [vmem:[%s1 + $0x204] sm:$0xf]
  %v145 = vld [vmem:[%s1 + $0x208] sm:$0xf]
  %v146 = vld [vmem:[%s1 + $0x20c] sm:$0xf]
  %v147 = vld [vmem:[%s1 + $0x210] sm:$0xf]
  %v148 = vld [vmem:[%s1 + $0x214] sm:$0xf]
  %v149 = vld [vmem:[%s1 + $0x218] sm:$0xf]
  %v150 = vld [vmem:[%s1 + $0x21c] sm:$0xf]
  %v151 = vld [vmem:[%s1 + $0x220] sm:$0xf]
  %v152 = vld [vmem:[%s1 + $0x224] sm:$0xf]
  %v153 = vld [vmem:[%s1 + $0x228] sm:$0xf]
  %v154 = vld [vmem:[%s1 + $0x22c] sm:$0xf]
  %v155 = vld [vmem:[%s1 + $0x230] sm:$0xf]
  %v156 = vld [vmem:[%s1 + $0x234] sm:$0xf]
  %v157 = vld [vmem:[%s1 + $0x238] sm:$0xf]
  %v158 = vld [vmem:[%s1 + $0x23c] sm:$0xf]
  %v159 = vld [vmem:[%s1 + $0x240] sm:$0xf]
  %v160 = vld [vmem:[%s1 + $0x244] sm:$0xf]
  %v161 = vld [vmem:[%s1 + $0x248] sm:$0xf]
  %v162 = vld [vmem:[%s1 + $0x24c] sm:$0xf]
  %v163 = vld [vmem:[%s1 + $0x250] sm:$0xf]
  %v164 = vld [vmem:[%s1 + $0x254] sm:$0xf]
  %v165 = vld [vmem:[%s1 + $0x258] sm:$0xf]
  %v166 = vld [vmem:[%s1 + $0x25c] sm:$0xf]
  %v167 = vld [vmem:[%s1 + $0x260] sm:$0xf]
  %v168 = vld [vmem:[%s1 + $0x264] sm:$0xf]
  %v169 = vld [vmem:[%s1 + $0x268] sm:$0xf]
  %v170 = vld [vmem:[%s1 + $0x26c] sm:$0xf]
  %v171 = vld [vmem:[%s1 + $0x270] sm:$0xf]
  %v172 = vld [vmem:[%s1 + $0x274] sm:$0xf]
  %v173 = vld [vmem:[%s1 + $0x278] sm:$0xf]
  %v174 = vld [vmem:[%s1 + $0x27c] sm:$0xf]
  %v175 = vld [vmem:[%s1 + $0x280] sm:$0xf]
  %v176 = vld [vmem:[%s1 + $0x284] sm:$0xf]
  %v177 = vld [vmem:[%s1 + $0x288] sm:$0xf]
  %v178 = vld [vmem:[%s1 + $0x28c] sm:$0xf]
  %v179 = vld [vmem:[%s1 + $0x290] sm:$0xf]
  %v180 = vld [vmem:[%s1 + $0x294] sm:$0xf]
  %v181 = vld [vmem:[%s1 + $0x298] sm:$0xf]
  %v182 = vld [vmem:[%s1 + $0x29c] sm:$0xf]
  %v183 = vld [vmem:[%s1 + $0x2a0] sm:$0xf]
  %v184 = vld [vmem:[%s1 + $0x2a4] sm:$0xf]
  %v185 = vld [vmem:[%s1 + $0x2a8] sm:$0xf]
  %v186 = vld [vmem:[%s1 + $0x2ac] sm:$0xf]
  %v187 = vld [vmem:[%s1 + $0x2b0] sm:$0xf]
  %v188 = vld [vmem:[%s1 + $0x2b4] sm:$0xf]
  %v189 = vld [vmem:[%s1 + $0x2b8] sm:$0xf]
  %v190 = vld [vmem:[%s1 + $0x2bc] sm:$0xf]
  %v191 = vld [vmem:[%s1 + $0x2c0] sm:$0xf]
  %v192 = vld [vmem:[%s1 + $0x2c4] sm:$0xf]
  %v193 = vld [vmem:[%s1 + $0x2c8] sm:$0xf]
  %v194 = vld [vmem:[%s1 + $0x2cc] sm:$0xf]
  %v195 = vld [vmem:[%s1 + $0x2d0] sm:$0xf]
  %v196 = vld [vmem:[%s1 + $0x2d4] sm:$0xf]
  %v197 = vld [vmem:[%s1 + $0x2d8] sm:$0xf]
  %v198 = vld [vmem:[%s1 + $0x2dc] sm:$0xf]
  %v199 = vld [vmem:[%s1 + $0x2e0] sm:$0xf]
  %v200 = vld [vmem:[%s1 + $0x2e4] sm:$0xf]
  %v201 = vld [vmem:[%s1 + $0x2e8] sm:$0xf]
  %v202 = vld [vmem:[%s1 + $0x2ec] sm:$0xf]
  %v203 = vld [vmem:[%s1 + $0x2f0] sm:$0xf]
  %v204 = vld [vmem:[%s1 + $0x2f4] sm:$0xf]
  %v205 = vld [vmem:[%s1 + $0x2f8] sm:$0xf]
  %v206 = vld [vmem:[%s1 + $0x2fc] sm:$0xf]
  %v207 = vld [vmem:[%s1 + $0x300] sm:$0xf]
  %v208 = vld [vmem:[%s1 + $0x304] sm:$0xf]
  %v209 = vld [vmem:[%s1 + $0x308] sm:$0xf]
  %v210 = vld [vmem:[%s1 + $0x30c] sm:$0xf]
  %v211 = vld [vmem:[%s1 + $0x310] sm:$0xf]
  %v212 = vld [vmem:[%s1 + $0x314] sm:$0xf]
  %v213 = vld [vmem:[%s1 + $0x318] sm:$0xf]
  %v214 = vld [vmem:[%s1 + $0x31c] sm:$0xf]
  %v215 = vld [vmem:[%s0] sm:$0xff]
  %v216 = vld [vmem:[%s0 + $0x8] sm:$0xff]
  %v217 = vld [vmem:[%s0 + $0x10] sm:$0xff]
  %v218 = vld [vmem:[%s0 + $0x18] sm:$0xff]
  %v219 = vld [vmem:[%s0 + $0x20] sm:$0xff]
  %v220 = vld [vmem:[%s0 + $0x28] sm:$0xff]
  %v221 = vld [vmem:[%s0 + $0x30] sm:$0xf]
  %v222 = vld [vmem:[%s0 + $0x34] sm:$0xff]
  %v223 = vld [vmem:[%s0 + $0x3c] sm:$0xff]
  %v224 = vld [vmem:[%s0 + $0x44] sm:$0xff]
  %v225 = vld [vmem:[%s0 + $0x4c] sm:$0xff]
  %v226 = vld [vmem:[%s0 + $0x54] sm:$0xff]
  %v227 = vld [vmem:[%s0 + $0x5c] sm:$0xff]
  %v228 = vld [vmem:[%s0 + $0x64] sm:$0xf]
  %v243 = vunpack.c.l.b16 %v215
  %v244 = vunpack.c.h.b16 %v215
  %v245 = vunpack.c.l.b16 %v216
  %v246 = vunpack.c.h.b16 %v216
  %v247 = vunpack.c.l.b16 %v217
  %v248 = vunpack.c.h.b16 %v217
  %v249 = vunpack.c.l.b16 %v218
  %v250 = vunpack.c.h.b16 %v218
  %v251 = vunpack.c.l.b16 %v219
  %v252 = vunpack.c.h.b16 %v219
  %v253 = vunpack.c.l.b16 %v220
  %v254 = vunpack.c.h.b16 %v220
  %v255 = vunpack.c.l.b16 %v221
  %v256 = vunpack.c.l.b16 %v222
  %v257 = vunpack.c.h.b16 %v222
  %v258 = vunpack.c.l.b16 %v223
  %v259 = vunpack.c.h.b16 %v223
  %v260 = vunpack.c.l.b16 %v224
  %v261 = vunpack.c.h.b16 %v224
  %v262 = vunpack.c.l.b16 %v225
  %v263 = vunpack.c.h.b16 %v225
  %v264 = vunpack.c.l.b16 %v226
  %v265 = vunpack.c.h.b16 %v226
  %v266 = vunpack.c.l.b16 %v227
  %v267 = vunpack.c.h.b16 %v227
  %v268 = vunpack.c.l.b16 %v228
  %v269 = vpack.c.b16 %v256, %v243
  %v270 = vpack.c.b16 %v257, %v244
  %v271 = vpack.c.b16 %v258, %v245
  %v272 = vpack.c.b16 %v259, %v246
  %v273 = vpack.c.b16 %v260, %v247
  %v274 = vpack.c.b16 %v261, %v248
  %v275 = vpack.c.b16 %v262, %v249
  %v276 = vpack.c.b16 %v263, %v250
  %v277 = vpack.c.b16 %v264, %v251
  %v278 = vpack.c.b16 %v265, %v252
  %v279 = vpack.c.b16 %v266, %v253
  %v280 = vpack.c.b16 %v267, %v254
  %v281 = vpack.c.b16 %v268, %v255
  %v494 = vunpack.c.l.b16 %v15
  %v495 = vunpack.c.l.b16 %v16
  %v496 = vunpack.c.l.b16 %v17
  %v497 = vunpack.c.l.b16 %v18
  %v498 = vunpack.c.l.b16 %v19
  %v499 = vunpack.c.l.b16 %v20
  %v500 = vunpack.c.l.b16 %v21
  %v501 = vunpack.c.l.b16 %v22
  %v502 = vunpack.c.l.b16 %v23
  %v503 = vunpack.c.l.b16 %v24
  %v504 = vunpack.c.l.b16 %v25
  %v505 = vunpack.c.l.b16 %v26
  %v506 = vunpack.c.l.b16 %v27
  %v507 = vunpack.c.l.b16 %v28
  %v508 = vunpack.c.l.b16 %v29
  %v509 = vunpack.c.l.b16 %v30
  %v510 = vunpack.c.l.b16 %v31
  %v511 = vunpack.c.l.b16 %v32
  %v512 = vunpack.c.l.b16 %v33
  %v513 = vunpack.c.l.b16 %v34
  %v514 = vunpack.c.l.b16 %v35
  %v515 = vunpack.c.l.b16 %v36
  %v516 = vunpack.c.l.b16 %v37
  %v517 = vunpack.c.l.b16 %v38
  %v518 = vunpack.c.l.b16 %v39
  %v519 = vunpack.c.l.b16 %v40
  %v520 = vunpack.c.l.b16 %v41
  %v521 = vunpack.c.l.b16 %v42
  %v522 = vunpack.c.l.b16 %v43
  %v523 = vunpack.c.l.b16 %v44
  %v524 = vunpack.c.l.b16 %v45
  %v525 = vunpack.c.l.b16 %v46
  %v526 = vunpack.c.l.b16 %v47
  %v527 = vunpack.c.l.b16 %v48
  %v528 = vunpack.c.l.b16 %v49
  %v529 = vunpack.c.l.b16 %v50
  %v530 = vunpack.c.l.b16 %v51
  %v531 = vunpack.c.l.b16 %v52
  %v532 = vunpack.c.l.b16 %v53
  %v533 = vunpack.c.l.b16 %v54
  %v534 = vunpack.c.l.b16 %v55
  %v535 = vunpack.c.l.b16 %v56
  %v536 = vunpack.c.l.b16 %v57
  %v537 = vunpack.c.l.b16 %v58
  %v538 = vunpack.c.l.b16 %v59
  %v539 = vunpack.c.l.b16 %v60
  %v540 = vunpack.c.l.b16 %v61
  %v541 = vunpack.c.l.b16 %v62
  %v542 = vunpack.c.l.b16 %v63
  %v543 = vunpack.c.l.b16 %v64
  %v544 = vunpack.c.l.b16 %v65
  %v545 = vunpack.c.l.b16 %v66
  %v546 = vunpack.c.l.b16 %v67
  %v547 = vunpack.c.l.b16 %v68
  %v548 = vunpack.c.l.b16 %v69
  %v549 = vunpack.c.l.b16 %v70
  %v550 = vunpack.c.l.b16 %v71
  %v551 = vunpack.c.l.b16 %v72
  %v552 = vunpack.c.l.b16 %v73
  %v553 = vunpack.c.l.b16 %v74
  %v554 = vunpack.c.l.b16 %v75
  %v555 = vunpack.c.l.b16 %v76
  %v556 = vunpack.c.l.b16 %v77
  %v557 = vunpack.c.l.b16 %v78
  %v558 = vunpack.c.l.b16 %v79
  %v559 = vunpack.c.l.b16 %v80
  %v560 = vunpack.c.l.b16 %v81
  %v561 = vunpack.c.l.b16 %v82
  %v562 = vunpack.c.l.b16 %v83
  %v563 = vunpack.c.l.b16 %v84
  %v564 = vunpack.c.l.b16 %v85
  %v565 = vunpack.c.l.b16 %v86
  %v566 = vunpack.c.l.b16 %v87
  %v567 = vunpack.c.l.b16 %v88
  %v568 = vunpack.c.l.b16 %v89
  %v569 = vunpack.c.l.b16 %v90
  %v570 = vunpack.c.l.b16 %v91
  %v571 = vunpack.c.l.b16 %v92
  %v572 = vunpack.c.l.b16 %v93
  %v573 = vunpack.c.l.b16 %v94
  %v574 = vunpack.c.l.b16 %v95
  %v575 = vunpack.c.l.b16 %v96
  %v576 = vunpack.c.l.b16 %v97
  %v577 = vunpack.c.l.b16 %v98
  %v578 = vunpack.c.l.b16 %v99
  %v579 = vunpack.c.l.b16 %v100
  %v580 = vunpack.c.l.b16 %v101
  %v581 = vunpack.c.l.b16 %v102
  %v582 = vunpack.c.l.b16 %v103
  %v583 = vunpack.c.l.b16 %v104
  %v584 = vunpack.c.l.b16 %v105
  %v585 = vunpack.c.l.b16 %v106
  %v586 = vunpack.c.l.b16 %v107
  %v587 = vunpack.c.l.b16 %v108
  %v588 = vunpack.c.l.b16 %v109
  %v589 = vunpack.c.l.b16 %v110
  %v590 = vunpack.c.l.b16 %v111
  %v591 = vunpack.c.l.b16 %v112
  %v592 = vunpack.c.l.b16 %v113
  %v593 = vunpack.c.l.b16 %v114
  %v594 = vunpack.c.l.b16 %v115
  %v595 = vunpack.c.l.b16 %v116
  %v596 = vunpack.c.l.b16 %v117
  %v597 = vunpack.c.l.b16 %v118
  %v598 = vunpack.c.l.b16 %v119
  %v599 = vunpack.c.l.b16 %v120
  %v600 = vunpack.c.l.b16 %v121
  %v601 = vunpack.c.l.b16 %v122
  %v602 = vunpack.c.l.b16 %v123
  %v603 = vunpack.c.l.b16 %v124
  %v604 = vunpack.c.l.b16 %v125
  %v605 = vunpack.c.l.b16 %v126
  %v606 = vunpack.c.l.b16 %v127
  %v607 = vunpack.c.l.b16 %v128
  %v608 = vunpack.c.l.b16 %v129
  %v609 = vunpack.c.l.b16 %v130
  %v610 = vunpack.c.l.b16 %v131
  %v611 = vunpack.c.l.b16 %v132
  %v612 = vunpack.c.l.b16 %v133
  %v613 = vunpack.c.l.b16 %v134
  %v614 = vunpack.c.l.b16 %v135
  %v615 = vunpack.c.l.b16 %v136
  %v616 = vunpack.c.l.b16 %v137
  %v617 = vunpack.c.l.b16 %v138
  %v618 = vunpack.c.l.b16 %v139
  %v619 = vunpack.c.l.b16 %v140
  %v620 = vunpack.c.l.b16 %v141
  %v621 = vunpack.c.l.b16 %v142
  %v622 = vunpack.c.l.b16 %v143
  %v623 = vunpack.c.l.b16 %v144
  %v624 = vunpack.c.l.b16 %v145
  %v625 = vunpack.c.l.b16 %v146
  %v626 = vunpack.c.l.b16 %v147
  %v627 = vunpack.c.l.b16 %v148
  %v628 = vunpack.c.l.b16 %v149
  %v629 = vunpack.c.l.b16 %v150
  %v630 = vunpack.c.l.b16 %v151
  %v631 = vunpack.c.l.b16 %v152
  %v632 = vunpack.c.l.b16 %v153
  %v633 = vunpack.c.l.b16 %v154
  %v634 = vunpack.c.l.b16 %v155
  %v635 = vunpack.c.l.b16 %v156
  %v636 = vunpack.c.l.b16 %v157
  %v637 = vunpack.c.l.b16 %v158
  %v638 = vunpack.c.l.b16 %v159
  %v639 = vunpack.c.l.b16 %v160
  %v640 = vunpack.c.l.b16 %v161
  %v641 = vunpack.c.l.b16 %v162
  %v642 = vunpack.c.l.b16 %v163
  %v643 = vunpack.c.l.b16 %v164
  %v644 = vunpack.c.l.b16 %v165
  %v645 = vunpack.c.l.b16 %v166
  %v646 = vunpack.c.l.b16 %v167
  %v647 = vunpack.c.l.b16 %v168
  %v648 = vunpack.c.l.b16 %v169
  %v649 = vunpack.c.l.b16 %v170
  %v650 = vunpack.c.l.b16 %v171
  %v651 = vunpack.c.l.b16 %v172
  %v652 = vunpack.c.l.b16 %v173
  %v653 = vunpack.c.l.b16 %v174
  %v654 = vunpack.c.l.b16 %v175
  %v655 = vunpack.c.l.b16 %v176
  %v656 = vunpack.c.l.b16 %v177
  %v657 = vunpack.c.l.b16 %v178
  %v658 = vunpack.c.l.b16 %v179
  %v659 = vunpack.c.l.b16 %v180
  %v660 = vunpack.c.l.b16 %v181
  %v661 = vunpack.c.l.b16 %v182
  %v662 = vunpack.c.l.b16 %v183
  %v663 = vunpack.c.l.b16 %v184
  %v664 = vunpack.c.l.b16 %v185
  %v665 = vunpack.c.l.b16 %v186
  %v666 = vunpack.c.l.b16 %v187
  %v667 = vunpack.c.l.b16 %v188
  %v668 = vunpack.c.l.b16 %v189
  %v669 = vunpack.c.l.b16 %v190
  %v670 = vunpack.c.l.b16 %v191
  %v671 = vunpack.c.l.b16 %v192
  %v672 = vunpack.c.l.b16 %v193
  %v673 = vunpack.c.l.b16 %v194
  %v674 = vunpack.c.l.b16 %v195
  %v675 = vunpack.c.l.b16 %v196
  %v676 = vunpack.c.l.b16 %v197
  %v677 = vunpack.c.l.b16 %v198
  %v678 = vunpack.c.l.b16 %v199
  %v679 = vunpack.c.l.b16 %v200
  %v680 = vunpack.c.l.b16 %v201
  %v681 = vunpack.c.l.b16 %v202
  %v682 = vunpack.c.l.b16 %v203
  %v683 = vunpack.c.l.b16 %v204
  %v684 = vunpack.c.l.b16 %v205
  %v685 = vunpack.c.l.b16 %v206
  %v686 = vunpack.c.l.b16 %v207
  %v687 = vunpack.c.l.b16 %v208
  %v688 = vunpack.c.l.b16 %v209
  %v689 = vunpack.c.l.b16 %v210
  %v690 = vunpack.c.l.b16 %v211
  %v691 = vunpack.c.l.b16 %v212
  %v692 = vunpack.c.l.b16 %v213
  %v693 = vunpack.c.l.b16 %v214
  %v694 = vpack.c.b16 %v495, %v494
  %v695 = vpack.c.b16 %v497, %v496
  %v696 = vpack.c.b16 %v499, %v498
  %v697 = vpack.c.b16 %v501, %v500
  %v698 = vpack.c.b16 %v503, %v502
  %v699 = vpack.c.b16 %v505, %v504
  %v700 = vpack.c.b16 %v507, %v506
  %v701 = vpack.c.b16 %v509, %v508
  %v702 = vpack.c.b16 %v511, %v510
  %v703 = vpack.c.b16 %v513, %v512
  %v704 = vpack.c.b16 %v515, %v514
  %v705 = vpack.c.b16 %v517, %v516
  %v706 = vpack.c.b16 %v519, %v518
  %v707 = vpack.c.b16 %v521, %v520
  %v708 = vpack.c.b16 %v523, %v522
  %v709 = vpack.c.b16 %v525, %v524
  %v710 = vpack.c.b16 %v527, %v526
  %v711 = vpack.c.b16 %v529, %v528
  %v712 = vpack.c.b16 %v531, %v530
  %v713 = vpack.c.b16 %v533, %v532
  %v714 = vpack.c.b16 %v535, %v534
  %v715 = vpack.c.b16 %v537, %v536
  %v716 = vpack.c.b16 %v539, %v538
  %v717 = vpack.c.b16 %v541, %v540
  %v718 = vpack.c.b16 %v543, %v542
  %v719 = vpack.c.b16 %v545, %v544
  %v720 = vpack.c.b16 %v547, %v546
  %v721 = vpack.c.b16 %v549, %v548
  %v722 = vpack.c.b16 %v551, %v550
  %v723 = vpack.c.b16 %v553, %v552
  %v724 = vpack.c.b16 %v555, %v554
  %v725 = vpack.c.b16 %v557, %v556
  %v726 = vpack.c.b16 %v559, %v558
  %v727 = vpack.c.b16 %v561, %v560
  %v728 = vpack.c.b16 %v563, %v562
  %v729 = vpack.c.b16 %v565, %v564
  %v730 = vpack.c.b16 %v567, %v566
  %v731 = vpack.c.b16 %v569, %v568
  %v732 = vpack.c.b16 %v571, %v570
  %v733 = vpack.c.b16 %v573, %v572
  %v734 = vpack.c.b16 %v575, %v574
  %v735 = vpack.c.b16 %v577, %v576
  %v736 = vpack.c.b16 %v579, %v578
  %v737 = vpack.c.b16 %v581, %v580
  %v738 = vpack.c.b16 %v583, %v582
  %v739 = vpack.c.b16 %v585, %v584
  %v740 = vpack.c.b16 %v587, %v586
  %v741 = vpack.c.b16 %v589, %v588
  %v742 = vpack.c.b16 %v591, %v590
  %v743 = vpack.c.b16 %v593, %v592
  %v744 = vpack.c.b16 %v595, %v594
  %v745 = vpack.c.b16 %v597, %v596
  %v746 = vpack.c.b16 %v599, %v598
  %v747 = vpack.c.b16 %v601, %v600
  %v748 = vpack.c.b16 %v603, %v602
  %v749 = vpack.c.b16 %v605, %v604
  %v750 = vpack.c.b16 %v607, %v606
  %v751 = vpack.c.b16 %v609, %v608
  %v752 = vpack.c.b16 %v611, %v610
  %v753 = vpack.c.b16 %v613, %v612
  %v754 = vpack.c.b16 %v615, %v614
  %v755 = vpack.c.b16 %v617, %v616
  %v756 = vpack.c.b16 %v619, %v618
  %v757 = vpack.c.b16 %v621, %v620
  %v758 = vpack.c.b16 %v623, %v622
  %v759 = vpack.c.b16 %v625, %v624
  %v760 = vpack.c.b16 %v627, %v626
  %v761 = vpack.c.b16 %v629, %v628
  %v762 = vpack.c.b16 %v631, %v630
  %v763 = vpack.c.b16 %v633, %v632
  %v764 = vpack.c.b16 %v635, %v634
  %v765 = vpack.c.b16 %v637, %v636
  %v766 = vpack.c.b16 %v639, %v638
  %v767 = vpack.c.b16 %v641, %v640
  %v768 = vpack.c.b16 %v643, %v642
  %v769 = vpack.c.b16 %v645, %v644
  %v770 = vpack.c.b16 %v647, %v646
  %v771 = vpack.c.b16 %v649, %v648
  %v772 = vpack.c.b16 %v651, %v650
  %v773 = vpack.c.b16 %v653, %v652
  %v774 = vpack.c.b16 %v655, %v654
  %v775 = vpack.c.b16 %v657, %v656
  %v776 = vpack.c.b16 %v659, %v658
  %v777 = vpack.c.b16 %v661, %v660
  %v778 = vpack.c.b16 %v663, %v662
  %v779 = vpack.c.b16 %v665, %v664
  %v780 = vpack.c.b16 %v667, %v666
  %v781 = vpack.c.b16 %v669, %v668
  %v782 = vpack.c.b16 %v671, %v670
  %v783 = vpack.c.b16 %v673, %v672
  %v784 = vpack.c.b16 %v675, %v674
  %v785 = vpack.c.b16 %v677, %v676
  %v786 = vpack.c.b16 %v679, %v678
  %v787 = vpack.c.b16 %v681, %v680
  %v788 = vpack.c.b16 %v683, %v682
  %v789 = vpack.c.b16 %v685, %v684
  %v790 = vpack.c.b16 %v687, %v686
  %v791 = vpack.c.b16 %v689, %v688
  %v792 = vpack.c.b16 %v691, %v690
  %v793 = vpack.c.b16 %v693, %v692
  %vm894 = vcmask 523264
  %v896 = vsel %vm894, %v281, 0
  %898 = vmatprep.subr.bf16.mxu0 0
  %899 = vmatpush1.bf16.msra.mxu0 %v694
  %900 = vmatprep.subr.bf16.mxu0 0
  %901 = vmatpush1.bf16.msra.mxu0 %v695
  %902 = vmatprep.subr.bf16.mxu0 0
  %903 = vmatpush1.bf16.msra.mxu0 %v696
  %904 = vmatprep.subr.bf16.mxu0 0
  %905 = vmatpush1.bf16.msra.mxu0 %v697
  %906 = vmatprep.subr.bf16.mxu0 0
  %907 = vmatpush1.bf16.msra.mxu0 %v698
  %908 = vmatprep.subr.bf16.mxu0 0
  %909 = vmatpush1.bf16.msra.mxu0 %v699
  %910 = vmatprep.subr.bf16.mxu0 0
  %911 = vmatpush1.bf16.msra.mxu0 %v700
  %912 = vmatprep.subr.bf16.mxu0 0
  %913 = vmatpush1.bf16.msra.mxu0 %v701
  %914 = vmatprep.subr.bf16.mxu0 0
  %915 = vmatpush1.bf16.msra.mxu0 %v702
  %916 = vmatprep.subr.bf16.mxu0 0
  %917 = vmatpush1.bf16.msra.mxu0 %v703
  %918 = vmatprep.subr.bf16.mxu0 0
  %919 = vmatpush1.bf16.msra.mxu0 %v704
  %920 = vmatprep.subr.bf16.mxu0 0
  %921 = vmatpush1.bf16.msra.mxu0 %v705
  %922 = vmatprep.subr.bf16.mxu0 0
  %923 = vmatpush1.bf16.msra.mxu0 %v706
  %924 = vmatprep.subr.bf16.mxu0 0
  %925 = vmatpush1.bf16.msra.mxu0 %v707
  %926 = vmatprep.subr.bf16.mxu0 0
  %927 = vmatpush1.bf16.msra.mxu0 %v708
  %928 = vmatprep.subr.bf16.mxu0 0
  %929 = vmatpush1.bf16.msra.mxu0 %v709
  %930 = vmatprep.mubr.bf16.mxu0 %v270
  %931 = vmatmul.mubr.bf16.gmra.mrb[0].mxu0 %v269
  %v932 = vpop.f32.mrb[0].mxu0
  %v933 = vadd.f32 0.0, %v932
  %v934 = vpop.f32.mrb[0].mxu0
  %v935 = vpop.f32.mrb[0].mxu0
  %v936 = vadd.f32 0.0, %v935
  %v937 = vpop.f32.mrb[0].mxu0
  %938 = vdwg.mxu0
  %939 = vmatprep.subr.bf16.mxu0 0
  %940 = vmatpush1.bf16.msra.mxu0 %v710
  %941 = vmatprep.subr.bf16.mxu0 0
  %942 = vmatpush1.bf16.msra.mxu0 %v711
  %943 = vmatprep.subr.bf16.mxu0 0
  %944 = vmatpush1.bf16.msra.mxu0 %v712
  %945 = vmatprep.subr.bf16.mxu0 0
  %946 = vmatpush1.bf16.msra.mxu0 %v713
  %947 = vmatprep.subr.bf16.mxu0 0
  %948 = vmatpush1.bf16.msra.mxu0 %v714
  %949 = vmatprep.subr.bf16.mxu0 0
  %950 = vmatpush1.bf16.msra.mxu0 %v715
  %951 = vmatprep.subr.bf16.mxu0 0
  %952 = vmatpush1.bf16.msra.mxu0 %v716
  %953 = vmatprep.subr.bf16.mxu0 0
  %954 = vmatpush1.bf16.msra.mxu0 %v717
  %955 = vmatprep.subr.bf16.mxu0 0
  %956 = vmatpush1.bf16.msra.mxu0 %v718
  %957 = vmatprep.subr.bf16.mxu0 0
  %958 = vmatpush1.bf16.msra.mxu0 %v719
  %959 = vmatprep.subr.bf16.mxu0 0
  %960 = vmatpush1.bf16.msra.mxu0 %v720
  %961 = vmatprep.subr.bf16.mxu0 0
  %962 = vmatpush1.bf16.msra.mxu0 %v721
  %963 = vmatprep.subr.bf16.mxu0 0
  %964 = vmatpush1.bf16.msra.mxu0 %v722
  %965 = vmatprep.subr.bf16.mxu0 0
  %966 = vmatpush1.bf16.msra.mxu0 %v723
  %967 = vmatprep.subr.bf16.mxu0 0
  %968 = vmatpush1.bf16.msra.mxu0 %v724
  %969 = vmatprep.subr.bf16.mxu0 0
  %970 = vmatpush1.bf16.msra.mxu0 %v725
  %971 = vmatprep.mubr.bf16.mxu0 %v272
  %972 = vmatmul.mubr.bf16.gmra.mrb[0].mxu0 %v271
  %v973 = vpop.f32.mrb[0].mxu0
  %v974 = vadd.f32 %v933, %v973
  %v975 = vpop.f32.mrb[0].mxu0
  %v976 = vpop.f32.mrb[0].mxu0
  %v977 = vadd.f32 %v936, %v976
  %v978 = vpop.f32.mrb[0].mxu0
  %979 = vdwg.mxu0
  %980 = vmatprep.subr.bf16.mxu0 0
  %981 = vmatpush1.bf16.msra.mxu0 %v726
  %982 = vmatprep.subr.bf16.mxu0 0
  %983 = vmatpush1.bf16.msra.mxu0 %v727
  %984 = vmatprep.subr.bf16.mxu0 0
  %985 = vmatpush1.bf16.msra.mxu0 %v728
  %986 = vmatprep.subr.bf16.mxu0 0
  %987 = vmatpush1.bf16.msra.mxu0 %v729
  %988 = vmatprep.subr.bf16.mxu0 0
  %989 = vmatpush1.bf16.msra.mxu0 %v730
  %990 = vmatprep.subr.bf16.mxu0 0
  %991 = vmatpush1.bf16.msra.mxu0 %v731
  %992 = vmatprep.subr.bf16.mxu0 0
  %993 = vmatpush1.bf16.msra.mxu0 %v732
  %994 = vmatprep.subr.bf16.mxu0 0
  %995 = vmatpush1.bf16.msra.mxu0 %v733
  %996 = vmatprep.subr.bf16.mxu0 0
  %997 = vmatpush1.bf16.msra.mxu0 %v734
  %998 = vmatprep.subr.bf16.mxu0 0
  %999 = vmatpush1.bf16.msra.mxu0 %v735
  %1000 = vmatprep.subr.bf16.mxu0 0
  %1001 = vmatpush1.bf16.msra.mxu0 %v736
  %1002 = vmatprep.subr.bf16.mxu0 0
  %1003 = vmatpush1.bf16.msra.mxu0 %v737
  %1004 = vmatprep.subr.bf16.mxu0 0
  %1005 = vmatpush1.bf16.msra.mxu0 %v738
  %1006 = vmatprep.subr.bf16.mxu0 0
  %1007 = vmatpush1.bf16.msra.mxu0 %v739
  %1008 = vmatprep.subr.bf16.mxu0 0
  %1009 = vmatpush1.bf16.msra.mxu0 %v740
  %1010 = vmatprep.subr.bf16.mxu0 0
  %1011 = vmatpush1.bf16.msra.mxu0 %v741
  %1012 = vmatprep.mubr.bf16.mxu0 %v274
  %1013 = vmatmul.mubr.bf16.gmra.mrb[0].mxu0 %v273
  %v1014 = vpop.f32.mrb[0].mxu0
  %v1015 = vadd.f32 %v974, %v1014
  %v1016 = vpop.f32.mrb[0].mxu0
  %v1017 = vpop.f32.mrb[0].mxu0
  %v1018 = vadd.f32 %v977, %v1017
  %v1019 = vpop.f32.mrb[0].mxu0
  %1020 = vdwg.mxu0
  %1021 = vmatprep.subr.bf16.mxu0 0
  %1022 = vmatpush1.bf16.msra.mxu0 %v742
  %1023 = vmatprep.subr.bf16.mxu0 0
  %1024 = vmatpush1.bf16.msra.mxu0 %v743
  %1025 = vmatprep.subr.bf16.mxu0 0
  %1026 = vmatpush1.bf16.msra.mxu0 %v744
  %1027 = vmatprep.subr.bf16.mxu0 0
  %1028 = vmatpush1.bf16.msra.mxu0 %v745
  %1029 = vmatprep.subr.bf16.mxu0 0
  %1030 = vmatpush1.bf16.msra.mxu0 %v746
  %1031 = vmatprep.subr.bf16.mxu0 0
  %1032 = vmatpush1.bf16.msra.mxu0 %v747
  %1033 = vmatprep.subr.bf16.mxu0 0
  %1034 = vmatpush1.bf16.msra.mxu0 %v748
  %1035 = vmatprep.subr.bf16.mxu0 0
  %1036 = vmatpush1.bf16.msra.mxu0 %v749
  %1037 = vmatprep.subr.bf16.mxu0 0
  %1038 = vmatpush1.bf16.msra.mxu0 %v750
  %1039 = vmatprep.subr.bf16.mxu0 0
  %1040 = vmatpush1.bf16.msra.mxu0 %v751
  %1041 = vmatprep.subr.bf16.mxu0 0
  %1042 = vmatpush1.bf16.msra.mxu0 %v752
  %1043 = vmatprep.subr.bf16.mxu0 0
  %1044 = vmatpush1.bf16.msra.mxu0 %v753
  %1045 = vmatprep.subr.bf16.mxu0 0
  %1046 = vmatpush1.bf16.msra.mxu0 %v754
  %1047 = vmatprep.subr.bf16.mxu0 0
  %1048 = vmatpush1.bf16.msra.mxu0 %v755
  %1049 = vmatprep.subr.bf16.mxu0 0
  %1050 = vmatpush1.bf16.msra.mxu0 %v756
  %1051 = vmatprep.subr.bf16.mxu0 0
  %1052 = vmatpush1.bf16.msra.mxu0 %v757
  %1053 = vmatprep.mubr.bf16.mxu0 %v276
  %1054 = vmatmul.mubr.bf16.gmra.mrb[0].mxu0 %v275
  %v1055 = vpop.f32.mrb[0].mxu0
  %v1056 = vadd.f32 %v1015, %v1055
  %v1057 = vpop.f32.mrb[0].mxu0
  %v1058 = vpop.f32.mrb[0].mxu0
  %v1059 = vadd.f32 %v1018, %v1058
  %v1060 = vpop.f32.mrb[0].mxu0
  %1061 = vdwg.mxu0
  %1062 = vmatprep.subr.bf16.mxu0 0
  %1063 = vmatpush1.bf16.msra.mxu0 %v758
  %1064 = vmatprep.subr.bf16.mxu0 0
  %1065 = vmatpush1.bf16.msra.mxu0 %v759
  %1066 = vmatprep.subr.bf16.mxu0 0
  %1067 = vmatpush1.bf16.msra.mxu0 %v760
  %1068 = vmatprep.subr.bf16.mxu0 0
  %1069 = vmatpush1.bf16.msra.mxu0 %v761
  %1070 = vmatprep.subr.bf16.mxu0 0
  %1071 = vmatpush1.bf16.msra.mxu0 %v762
  %1072 = vmatprep.subr.bf16.mxu0 0
  %1073 = vmatpush1.bf16.msra.mxu0 %v763
  %1074 = vmatprep.subr.bf16.mxu0 0
  %1075 = vmatpush1.bf16.msra.mxu0 %v764
  %1076 = vmatprep.subr.bf16.mxu0 0
  %1077 = vmatpush1.bf16.msra.mxu0 %v765
  %1078 = vmatprep.subr.bf16.mxu0 0
  %1079 = vmatpush1.bf16.msra.mxu0 %v766
  %1080 = vmatprep.subr.bf16.mxu0 0
  %1081 = vmatpush1.bf16.msra.mxu0 %v767
  %1082 = vmatprep.subr.bf16.mxu0 0
  %1083 = vmatpush1.bf16.msra.mxu0 %v768
  %1084 = vmatprep.subr.bf16.mxu0 0
  %1085 = vmatpush1.bf16.msra.mxu0 %v769
  %1086 = vmatprep.subr.bf16.mxu0 0
  %1087 = vmatpush1.bf16.msra.mxu0 %v770
  %1088 = vmatprep.subr.bf16.mxu0 0
  %1089 = vmatpush1.bf16.msra.mxu0 %v771
  %1090 = vmatprep.subr.bf16.mxu0 0
  %1091 = vmatpush1.bf16.msra.mxu0 %v772
  %1092 = vmatprep.subr.bf16.mxu0 0
  %1093 = vmatpush1.bf16.msra.mxu0 %v773
  %1094 = vmatprep.mubr.bf16.mxu0 %v278
  %1095 = vmatmul.mubr.bf16.gmra.mrb[0].mxu0 %v277
  %v1096 = vpop.f32.mrb[0].mxu0
  %v1097 = vadd.f32 %v1056, %v1096
  %v1098 = vpop.f32.mrb[0].mxu0
  %v1099 = vpop.f32.mrb[0].mxu0
  %v1100 = vadd.f32 %v1059, %v1099
  %v1101 = vpop.f32.mrb[0].mxu0
  %1102 = vdwg.mxu0
  %1103 = vmatprep.subr.bf16.mxu0 0
  %1104 = vmatpush1.bf16.msra.mxu0 %v774
  %1105 = vmatprep.subr.bf16.mxu0 0
  %1106 = vmatpush1.bf16.msra.mxu0 %v775
  %1107 = vmatprep.subr.bf16.mxu0 0
  %1108 = vmatpush1.bf16.msra.mxu0 %v776
  %1109 = vmatprep.subr.bf16.mxu0 0
  %1110 = vmatpush1.bf16.msra.mxu0 %v777
  %1111 = vmatprep.subr.bf16.mxu0 0
  %1112 = vmatpush1.bf16.msra.mxu0 %v778
  %1113 = vmatprep.subr.bf16.mxu0 0
  %1114 = vmatpush1.bf16.msra.mxu0 %v779
  %1115 = vmatprep.subr.bf16.mxu0 0
  %1116 = vmatpush1.bf16.msra.mxu0 %v780
  %1117 = vmatprep.subr.bf16.mxu0 0
  %1118 = vmatpush1.bf16.msra.mxu0 %v781
  %1119 = vmatprep.subr.bf16.mxu0 0
  %1120 = vmatpush1.bf16.msra.mxu0 %v782
  %1121 = vmatprep.subr.bf16.mxu0 0
  %1122 = vmatpush1.bf16.msra.mxu0 %v783
  %1123 = vmatprep.subr.bf16.mxu0 0
  %1124 = vmatpush1.bf16.msra.mxu0 %v784
  %1125 = vmatprep.subr.bf16.mxu0 0
  %1126 = vmatpush1.bf16.msra.mxu0 %v785
  %1127 = vmatprep.subr.bf16.mxu0 0
  %1128 = vmatpush1.bf16.msra.mxu0 %v786
  %1129 = vmatprep.subr.bf16.mxu0 0
  %1130 = vmatpush1.bf16.msra.mxu0 %v787
  %1131 = vmatprep.subr.bf16.mxu0 0
  %1132 = vmatpush1.bf16.msra.mxu0 %v788
  %1133 = vmatprep.subr.bf16.mxu0 0
  %1134 = vmatpush1.bf16.msra.mxu0 %v789
  %1135 = vmatprep.mubr.bf16.mxu0 %v280
  %1136 = vmatmul.mubr.bf16.gmra.mrb[0].mxu0 %v279
  %v1137 = vpop.f32.mrb[0].mxu0
  %v1138 = vadd.f32 %v1097, %v1137
  %v1139 = vpop.f32.mrb[0].mxu0
  %v1140 = vpop.f32.mrb[0].mxu0
  %v1141 = vadd.f32 %v1100, %v1140
  %v1142 = vpop.f32.mrb[0].mxu0
  %1143 = vdwg.mxu0
  %1144 = vmatprep.subr.bf16.mxu0 0
  %1145 = vmatpush1.bf16.msra.mxu0 %v790
  %1146 = vmatprep.subr.bf16.mxu0 0
  %1147 = vmatpush1.bf16.msra.mxu0 %v791
  %1148 = vmatprep.subr.bf16.mxu0 0
  %1149 = vmatpush1.bf16.msra.mxu0 %v792
  %1150 = vmatprep.subr.bf16.mxu0 0
  %1151 = vmatpush1.bf16.msra.mxu0 %v793
  %1152 = vmatprep.subr.bf16.mxu0 0
  %1153 = vmatpush1.bf16.msra.mxu0 0
  %1154 = vmatprep.subr.bf16.mxu0 0
  %1155 = vmatpush1.bf16.msra.mxu0 0
  %1156 = vmatprep.subr.bf16.mxu0 0
  %1157 = vmatpush1.bf16.msra.mxu0 0
  %1158 = vmatprep.subr.bf16.mxu0 0
  %1159 = vmatpush1.bf16.msra.mxu0 0
  %1160 = vmatprep.subr.bf16.mxu0 0
  %1161 = vmatpush1.bf16.msra.mxu0 0
  %1162 = vmatprep.subr.bf16.mxu0 0
  %1163 = vmatpush1.bf16.msra.mxu0 0
  %1164 = vmatprep.subr.bf16.mxu0 0
  %1165 = vmatpush1.bf16.msra.mxu0 0
  %1166 = vmatprep.subr.bf16.mxu0 0
  %1167 = vmatpush1.bf16.msra.mxu0 0
  %1168 = vmatprep.subr.bf16.mxu0 0
  %1169 = vmatpush1.bf16.msra.mxu0 0
  %1170 = vmatprep.subr.bf16.mxu0 0
  %1171 = vmatpush1.bf16.msra.mxu0 0
  %1172 = vmatprep.subr.bf16.mxu0 0
  %1173 = vmatpush1.bf16.msra.mxu0 0
  %1174 = vmatprep.subr.bf16.mxu0 0
  %1175 = vmatpush1.bf16.msra.mxu0 0
  %1176 = vmatprep.mubr.bf16.mxu0 0
  %1177 = vmatmul.mubr.bf16.gmra.mrb[0].mxu0 %v896
  %v1178 = vpop.f32.mrb[0].mxu0
  %v1179 = vadd.f32 %v1138, %v1178
  %v1180 = vpop.f32.mrb[0].mxu0
  %v1181 = vpop.f32.mrb[0].mxu0
  %v1182 = vadd.f32 %v1141, %v1181
  %v1183 = vpop.f32.mrb[0].mxu0
  %1184 = vdwg.mxu0
  %s1185 = scalar_lea.vmem %s0, 104
  %v1186 = vld [vmem:[%s1185] sm:$0xff]
  %v1187 = vld [vmem:[%s1185 + $0x8] sm:$0xff]
  %v1188 = vld [vmem:[%s1185 + $0x10] sm:$0xff]
  %v1189 = vld [vmem:[%s1185 + $0x18] sm:$0xff]
  %v1190 = vld [vmem:[%s1185 + $0x20] sm:$0xff]
  %v1191 = vld [vmem:[%s1185 + $0x28] sm:$0xff]
  %v1192 = vld [vmem:[%s1185 + $0x30] sm:$0xf]
  %v1193 = vld [vmem:[%s1185 + $0x34] sm:$0xff]
  %v1194 = vld [vmem:[%s1185 + $0x3c] sm:$0xff]
  %v1195 = vld [vmem:[%s1185 + $0x44] sm:$0xff]
  %v1196 = vld [vmem:[%s1185 + $0x4c] sm:$0xff]
  %v1197 = vld [vmem:[%s1185 + $0x54] sm:$0xff]
  %v1198 = vld [vmem:[%s1185 + $0x5c] sm:$0xff]
  %v1199 = vld [vmem:[%s1185 + $0x64] sm:$0xf]
  %v1214 = vunpack.c.l.b16 %v1186
  %v1215 = vunpack.c.h.b16 %v1186
  %v1216 = vunpack.c.l.b16 %v1187
  %v1217 = vunpack.c.h.b16 %v1187
  %v1218 = vunpack.c.l.b16 %v1188
  %v1219 = vunpack.c.h.b16 %v1188
  %v1220 = vunpack.c.l.b16 %v1189
  %v1221 = vunpack.c.h.b16 %v1189
  %v1222 = vunpack.c.l.b16 %v1190
  %v1223 = vunpack.c.h.b16 %v1190
  %v1224 = vunpack.c.l.b16 %v1191
  %v1225 = vunpack.c.h.b16 %v1191
  %v1226 = vunpack.c.l.b16 %v1192
  %v1227 = vunpack.c.l.b16 %v1193
  %v1228 = vunpack.c.h.b16 %v1193
  %v1229 = vunpack.c.l.b16 %v1194
  %v1230 = vunpack.c.h.b16 %v1194
  %v1231 = vunpack.c.l.b16 %v1195
  %v1232 = vunpack.c.h.b16 %v1195
  %v1233 = vunpack.c.l.b16 %v1196
  %v1234 = vunpack.c.h.b16 %v1196
  %v1235 = vunpack.c.l.b16 %v1197
  %v1236 = vunpack.c.h.b16 %v1197
  %v1237 = vunpack.c.l.b16 %v1198
  %v1238 = vunpack.c.h.b16 %v1198
  %v1239 = vunpack.c.l.b16 %v1199
  %v1240 = vpack.c.b16 %v1227, %v1214
  %v1241 = vpack.c.b16 %v1228, %v1215
  %v1242 = vpack.c.b16 %v1229, %v1216
  %v1243 = vpack.c.b16 %v1230, %v1217
  %v1244 = vpack.c.b16 %v1231, %v1218
  %v1245 = vpack.c.b16 %v1232, %v1219
  %v1246 = vpack.c.b16 %v1233, %v1220
  %v1247 = vpack.c.b16 %v1234, %v1221
  %v1248 = vpack.c.b16 %v1235, %v1222
  %v1249 = vpack.c.b16 %v1236, %v1223
  %v1250 = vpack.c.b16 %v1237, %v1224
  %v1251 = vpack.c.b16 %v1238, %v1225
  %v1252 = vpack.c.b16 %v1239, %v1226
  %v1266 = vsel %vm894, %v1252, 0
  %1268 = vmatprep.subr.bf16.mxu0 0
  %1269 = vmatpush1.bf16.msra.mxu0 %v694
  %1270 = vmatprep.subr.bf16.mxu0 0
  %1271 = vmatpush1.bf16.msra.mxu0 %v695
  %1272 = vmatprep.subr.bf16.mxu0 0
  %1273 = vmatpush1.bf16.msra.mxu0 %v696
  %1274 = vmatprep.subr.bf16.mxu0 0
  %1275 = vmatpush1.bf16.msra.mxu0 %v697
  %1276 = vmatprep.subr.bf16.mxu0 0
  %1277 = vmatpush1.bf16.msra.mxu0 %v698
  %1278 = vmatprep.subr.bf16.mxu0 0
  %1279 = vmatpush1.bf16.msra.mxu0 %v699
  %1280 = vmatprep.subr.bf16.mxu0 0
  %1281 = vmatpush1.bf16.msra.mxu0 %v700
  %1282 = vmatprep.subr.bf16.mxu0 0
  %1283 = vmatpush1.bf16.msra.mxu0 %v701
  %1284 = vmatprep.subr.bf16.mxu0 0
  %1285 = vmatpush1.bf16.msra.mxu0 %v702
  %1286 = vmatprep.subr.bf16.mxu0 0
  %1287 = vmatpush1.bf16.msra.mxu0 %v703
  %1288 = vmatprep.subr.bf16.mxu0 0
  %1289 = vmatpush1.bf16.msra.mxu0 %v704
  %1290 = vmatprep.subr.bf16.mxu0 0
  %1291 = vmatpush1.bf16.msra.mxu0 %v705
  %1292 = vmatprep.subr.bf16.mxu0 0
  %1293 = vmatpush1.bf16.msra.mxu0 %v706
  %1294 = vmatprep.subr.bf16.mxu0 0
  %1295 = vmatpush1.bf16.msra.mxu0 %v707
  %1296 = vmatprep.subr.bf16.mxu0 0
  %1297 = vmatpush1.bf16.msra.mxu0 %v708
  %1298 = vmatprep.subr.bf16.mxu0 0
  %1299 = vmatpush1.bf16.msra.mxu0 %v709
  %1300 = vmatprep.mubr.bf16.mxu0 %v1241
  %1301 = vmatmul.mubr.bf16.gmra.mrb[0].mxu0 %v1240
  %v1302 = vpop.f32.mrb[0].mxu0
  %v1303 = vadd.f32 0.0, %v1302
  %v1304 = vpop.f32.mrb[0].mxu0
  %v1305 = vpop.f32.mrb[0].mxu0
  %v1306 = vadd.f32 0.0, %v1305
  %v1307 = vpop.f32.mrb[0].mxu0
  %1308 = vdwg.mxu0
  %1309 = vmatprep.subr.bf16.mxu0 0
  %1310 = vmatpush1.bf16.msra.mxu0 %v710
  %1311 = vmatprep.subr.bf16.mxu0 0
  %1312 = vmatpush1.bf16.msra.mxu0 %v711
  %1313 = vmatprep.subr.bf16.mxu0 0
  %1314 = vmatpush1.bf16.msra.mxu0 %v712
  %1315 = vmatprep.subr.bf16.mxu0 0
  %1316 = vmatpush1.bf16.msra.mxu0 %v713
  %1317 = vmatprep.subr.bf16.mxu0 0
  %1318 = vmatpush1.bf16.msra.mxu0 %v714
  %1319 = vmatprep.subr.bf16.mxu0 0
  %1320 = vmatpush1.bf16.msra.mxu0 %v715
  %1321 = vmatprep.subr.bf16.mxu0 0
  %1322 = vmatpush1.bf16.msra.mxu0 %v716
  %1323 = vmatprep.subr.bf16.mxu0 0
  %1324 = vmatpush1.bf16.msra.mxu0 %v717
  %1325 = vmatprep.subr.bf16.mxu0 0
  %1326 = vmatpush1.bf16.msra.mxu0 %v718
  %1327 = vmatprep.subr.bf16.mxu0 0
  %1328 = vmatpush1.bf16.msra.mxu0 %v719
  %1329 = vmatprep.subr.bf16.mxu0 0
  %1330 = vmatpush1.bf16.msra.mxu0 %v720
  %1331 = vmatprep.subr.bf16.mxu0 0
  %1332 = vmatpush1.bf16.msra.mxu0 %v721
  %1333 = vmatprep.subr.bf16.mxu0 0
  %1334 = vmatpush1.bf16.msra.mxu0 %v722
  %1335 = vmatprep.subr.bf16.mxu0 0
  %1336 = vmatpush1.bf16.msra.mxu0 %v723
  %1337 = vmatprep.subr.bf16.mxu0 0
  %1338 = vmatpush1.bf16.msra.mxu0 %v724
  %1339 = vmatprep.subr.bf16.mxu0 0
  %1340 = vmatpush1.bf16.msra.mxu0 %v725
  %1341 = vmatprep.mubr.bf16.mxu0 %v1243
  %1342 = vmatmul.mubr.bf16.gmra.mrb[0].mxu0 %v1242
  %v1343 = vpop.f32.mrb[0].mxu0
  %v1344 = vadd.f32 %v1303, %v1343
  %v1345 = vpop.f32.mrb[0].mxu0
  %v1346 = vpop.f32.mrb[0].mxu0
  %v1347 = vadd.f32 %v1306, %v1346
  %v1348 = vpop.f32.mrb[0].mxu0
  %1349 = vdwg.mxu0
  %1350 = vmatprep.subr.bf16.mxu0 0
  %1351 = vmatpush1.bf16.msra.mxu0 %v726
  %1352 = vmatprep.subr.bf16.mxu0 0
  %1353 = vmatpush1.bf16.msra.mxu0 %v727
  %1354 = vmatprep.subr.bf16.mxu0 0
  %1355 = vmatpush1.bf16.msra.mxu0 %v728
  %1356 = vmatprep.subr.bf16.mxu0 0
  %1357 = vmatpush1.bf16.msra.mxu0 %v729
  %1358 = vmatprep.subr.bf16.mxu0 0
  %1359 = vmatpush1.bf16.msra.mxu0 %v730
  %1360 = vmatprep.subr.bf16.mxu0 0
  %1361 = vmatpush1.bf16.msra.mxu0 %v731
  %1362 = vmatprep.subr.bf16.mxu0 0
  %1363 = vmatpush1.bf16.msra.mxu0 %v732
  %1364 = vmatprep.subr.bf16.mxu0 0
  %1365 = vmatpush1.bf16.msra.mxu0 %v733
  %1366 = vmatprep.subr.bf16.mxu0 0
  %1367 = vmatpush1.bf16.msra.mxu0 %v734
  %1368 = vmatprep.subr.bf16.mxu0 0
  %1369 = vmatpush1.bf16.msra.mxu0 %v735
  %1370 = vmatprep.subr.bf16.mxu0 0
  %1371 = vmatpush1.bf16.msra.mxu0 %v736
  %1372 = vmatprep.subr.bf16.mxu0 0
  %1373 = vmatpush1.bf16.msra.mxu0 %v737
  %1374 = vmatprep.subr.bf16.mxu0 0
  %1375 = vmatpush1.bf16.msra.mxu0 %v738
  %1376 = vmatprep.subr.bf16.mxu0 0
  %1377 = vmatpush1.bf16.msra.mxu0 %v739
  %1378 = vmatprep.subr.bf16.mxu0 0
  %1379 = vmatpush1.bf16.msra.mxu0 %v740
  %1380 = vmatprep.subr.bf16.mxu0 0
  %1381 = vmatpush1.bf16.msra.mxu0 %v741
  %1382 = vmatprep.mubr.bf16.mxu0 %v1245
  %1383 = vmatmul.mubr.bf16.gmra.mrb[0].mxu0 %v1244
  %v1384 = vpop.f32.mrb[0].mxu0
  %v1385 = vadd.f32 %v1344, %v1384
  %v1386 = vpop.f32.mrb[0].mxu0
  %v1387 = vpop.f32.mrb[0].mxu0
  %v1388 = vadd.f32 %v1347, %v1387
  %v1389 = vpop.f32.mrb[0].mxu0
  %1390 = vdwg.mxu0
  %1391 = vmatprep.subr.bf16.mxu0 0
  %1392 = vmatpush1.bf16.msra.mxu0 %v742
  %1393 = vmatprep.subr.bf16.mxu0 0
  %1394 = vmatpush1.bf16.msra.mxu0 %v743
  %1395 = vmatprep.subr.bf16.mxu0 0
  %1396 = vmatpush1.bf16.msra.mxu0 %v744
  %1397 = vmatprep.subr.bf16.mxu0 0
  %1398 = vmatpush1.bf16.msra.mxu0 %v745
  %1399 = vmatprep.subr.bf16.mxu0 0
  %1400 = vmatpush1.bf16.msra.mxu0 %v746
  %1401 = vmatprep.subr.bf16.mxu0 0
  %1402 = vmatpush1.bf16.msra.mxu0 %v747
  %1403 = vmatprep.subr.bf16.mxu0 0
  %1404 = vmatpush1.bf16.msra.mxu0 %v748
  %1405 = vmatprep.subr.bf16.mxu0 0
  %1406 = vmatpush1.bf16.msra.mxu0 %v749
  %1407 = vmatprep.subr.bf16.mxu0 0
  %1408 = vmatpush1.bf16.msra.mxu0 %v750
  %1409 = vmatprep.subr.bf16.mxu0 0
  %1410 = vmatpush1.bf16.msra.mxu0 %v751
  %1411 = vmatprep.subr.bf16.mxu0 0
  %1412 = vmatpush1.bf16.msra.mxu0 %v752
  %1413 = vmatprep.subr.bf16.mxu0 0
  %1414 = vmatpush1.bf16.msra.mxu0 %v753
  %1415 = vmatprep.subr.bf16.mxu0 0
  %1416 = vmatpush1.bf16.msra.mxu0 %v754
  %1417 = vmatprep.subr.bf16.mxu0 0
  %1418 = vmatpush1.bf16.msra.mxu0 %v755
  %1419 = vmatprep.subr.bf16.mxu0 0
  %1420 = vmatpush1.bf16.msra.mxu0 %v756
  %1421 = vmatprep.subr.bf16.mxu0 0
  %1422 = vmatpush1.bf16.msra.mxu0 %v757
  %1423 = vmatprep.mubr.bf16.mxu0 %v1247
  %1424 = vmatmul.mubr.bf16.gmra.mrb[0].mxu0 %v1246
  %v1425 = vpop.f32.mrb[0].mxu0
  %v1426 = vadd.f32 %v1385, %v1425
  %v1427 = vpop.f32.mrb[0].mxu0
  %v1428 = vpop.f32.mrb[0].mxu0
  %v1429 = vadd.f32 %v1388, %v1428
  %v1430 = vpop.f32.mrb[0].mxu0
  %1431 = vdwg.mxu0
  %1432 = vmatprep.subr.bf16.mxu0 0
  %1433 = vmatpush1.bf16.msra.mxu0 %v758
  %1434 = vmatprep.subr.bf16.mxu0 0
  %1435 = vmatpush1.bf16.msra.mxu0 %v759
  %1436 = vmatprep.subr.bf16.mxu0 0
  %1437 = vmatpush1.bf16.msra.mxu0 %v760
  %1438 = vmatprep.subr.bf16.mxu0 0
  %1439 = vmatpush1.bf16.msra.mxu0 %v761
  %1440 = vmatprep.subr.bf16.mxu0 0
  %1441 = vmatpush1.bf16.msra.mxu0 %v762
  %1442 = vmatprep.subr.bf16.mxu0 0
  %1443 = vmatpush1.bf16.msra.mxu0 %v763
  %1444 = vmatprep.subr.bf16.mxu0 0
  %1445 = vmatpush1.bf16.msra.mxu0 %v764
  %1446 = vmatprep.subr.bf16.mxu0 0
  %1447 = vmatpush1.bf16.msra.mxu0 %v765
  %1448 = vmatprep.subr.bf16.mxu0 0
  %1449 = vmatpush1.bf16.msra.mxu0 %v766
  %1450 = vmatprep.subr.bf16.mxu0 0
  %1451 = vmatpush1.bf16.msra.mxu0 %v767
  %1452 = vmatprep.subr.bf16.mxu0 0
  %1453 = vmatpush1.bf16.msra.mxu0 %v768
  %1454 = vmatprep.subr.bf16.mxu0 0
  %1455 = vmatpush1.bf16.msra.mxu0 %v769
  %1456 = vmatprep.subr.bf16.mxu0 0
  %1457 = vmatpush1.bf16.msra.mxu0 %v770
  %1458 = vmatprep.subr.bf16.mxu0 0
  %1459 = vmatpush1.bf16.msra.mxu0 %v771
  %1460 = vmatprep.subr.bf16.mxu0 0
  %1461 = vmatpush1.bf16.msra.mxu0 %v772
  %1462 = vmatprep.subr.bf16.mxu0 0
  %1463 = vmatpush1.bf16.msra.mxu0 %v773
  %1464 = vmatprep.mubr.bf16.mxu0 %v1249
  %1465 = vmatmul.mubr.bf16.gmra.mrb[0].mxu0 %v1248
  %v1466 = vpop.f32.mrb[0].mxu0
  %v1467 = vadd.f32 %v1426, %v1466
  %v1468 = vpop.f32.mrb[0].mxu0
  %v1469 = vpop.f32.mrb[0].mxu0
  %v1470 = vadd.f32 %v1429, %v1469
  %v1471 = vpop.f32.mrb[0].mxu0
  %1472 = vdwg.mxu0
  %1473 = vmatprep.subr.bf16.mxu0 0
  %1474 = vmatpush1.bf16.msra.mxu0 %v774
  %1475 = vmatprep.subr.bf16.mxu0 0
  %1476 = vmatpush1.bf16.msra.mxu0 %v775
  %1477 = vmatprep.subr.bf16.mxu0 0
  %1478 = vmatpush1.bf16.msra.mxu0 %v776
  %1479 = vmatprep.subr.bf16.mxu0 0
  %1480 = vmatpush1.bf16.msra.mxu0 %v777
  %1481 = vmatprep.subr.bf16.mxu0 0
  %1482 = vmatpush1.bf16.msra.mxu0 %v778
  %1483 = vmatprep.subr.bf16.mxu0 0
  %1484 = vmatpush1.bf16.msra.mxu0 %v779
  %1485 = vmatprep.subr.bf16.mxu0 0
  %1486 = vmatpush1.bf16.msra.mxu0 %v780
  %1487 = vmatprep.subr.bf16.mxu0 0
  %1488 = vmatpush1.bf16.msra.mxu0 %v781
  %1489 = vmatprep.subr.bf16.mxu0 0
  %1490 = vmatpush1.bf16.msra.mxu0 %v782
  %1491 = vmatprep.subr.bf16.mxu0 0
  %1492 = vmatpush1.bf16.msra.mxu0 %v783
  %1493 = vmatprep.subr.bf16.mxu0 0
  %1494 = vmatpush1.bf16.msra.mxu0 %v784
  %1495 = vmatprep.subr.bf16.mxu0 0
  %1496 = vmatpush1.bf16.msra.mxu0 %v785
  %1497 = vmatprep.subr.bf16.mxu0 0
  %1498 = vmatpush1.bf16.msra.mxu0 %v786
  %1499 = vmatprep.subr.bf16.mxu0 0
  %1500 = vmatpush1.bf16.msra.mxu0 %v787
  %1501 = vmatprep.subr.bf16.mxu0 0
  %1502 = vmatpush1.bf16.msra.mxu0 %v788
  %1503 = vmatprep.subr.bf16.mxu0 0
  %1504 = vmatpush1.bf16.msra.mxu0 %v789
  %1505 = vmatprep.mubr.bf16.mxu0 %v1251
  %1506 = vmatmul.mubr.bf16.gmra.mrb[0].mxu0 %v1250
  %v1507 = vpop.f32.mrb[0].mxu0
  %v1508 = vadd.f32 %v1467, %v1507
  %v1509 = vpop.f32.mrb[0].mxu0
  %v1510 = vpop.f32.mrb[0].mxu0
  %v1511 = vadd.f32 %v1470, %v1510
  %v1512 = vpop.f32.mrb[0].mxu0
  %1513 = vdwg.mxu0
  %1514 = vmatprep.subr.bf16.mxu0 0
  %1515 = vmatpush1.bf16.msra.mxu0 %v790
  %1516 = vmatprep.subr.bf16.mxu0 0
  %1517 = vmatpush1.bf16.msra.mxu0 %v791
  %1518 = vmatprep.subr.bf16.mxu0 0
  %1519 = vmatpush1.bf16.msra.mxu0 %v792
  %1520 = vmatprep.subr.bf16.mxu0 0
  %1521 = vmatpush1.bf16.msra.mxu0 %v793
  %1522 = vmatprep.subr.bf16.mxu0 0
  %1523 = vmatpush1.bf16.msra.mxu0 0
  %1524 = vmatprep.subr.bf16.mxu0 0
  %1525 = vmatpush1.bf16.msra.mxu0 0
  %1526 = vmatprep.subr.bf16.mxu0 0
  %1527 = vmatpush1.bf16.msra.mxu0 0
  %1528 = vmatprep.subr.bf16.mxu0 0
  %1529 = vmatpush1.bf16.msra.mxu0 0
  %1530 = vmatprep.subr.bf16.mxu0 0
  %1531 = vmatpush1.bf16.msra.mxu0 0
  %1532 = vmatprep.subr.bf16.mxu0 0
  %1533 = vmatpush1.bf16.msra.mxu0 0
  %1534 = vmatprep.subr.bf16.mxu0 0
  %1535 = vmatpush1.bf16.msra.mxu0 0
  %1536 = vmatprep.subr.bf16.mxu0 0
  %1537 = vmatpush1.bf16.msra.mxu0 0
  %1538 = vmatprep.subr.bf16.mxu0 0
  %1539 = vmatpush1.bf16.msra.mxu0 0
  %1540 = vmatprep.subr.bf16.mxu0 0
  %1541 = vmatpush1.bf16.msra.mxu0 0
  %1542 = vmatprep.subr.bf16.mxu0 0
  %1543 = vmatpush1.bf16.msra.mxu0 0
  %1544 = vmatprep.subr.bf16.mxu0 0
  %1545 = vmatpush1.bf16.msra.mxu0 0
  %1546 = vmatprep.mubr.bf16.mxu0 0
  %1547 = vmatmul.mubr.bf16.gmra.mrb[0].mxu0 %v1266
  %v1548 = vpop.f32.mrb[0].mxu0
  %v1549 = vadd.f32 %v1508, %v1548
  %v1550 = vpop.f32.mrb[0].mxu0
  %v1551 = vpop.f32.mrb[0].mxu0
  %v1552 = vadd.f32 %v1511, %v1551
  %v1553 = vpop.f32.mrb[0].mxu0
  %1554 = vdwg.mxu0
  %v1555 = vmax.f32 %v1179, %v1549
  %v1556 = vmax.f32 %v1182, %v1552
  %s1557 = scalar_lea.vmem %s0, 208
  %v1558 = vld [vmem:[%s1557] sm:$0xff]
  %v1559 = vld [vmem:[%s1557 + $0x8] sm:$0xff]
  %v1560 = vld [vmem:[%s1557 + $0x10] sm:$0xff]
  %v1561 = vld [vmem:[%s1557 + $0x18] sm:$0xff]
  %v1562 = vld [vmem:[%s1557 + $0x20] sm:$0xff]
  %v1563 = vld [vmem:[%s1557 + $0x28] sm:$0xff]
  %v1564 = vld [vmem:[%s1557 + $0x30] sm:$0xf]
  %v1565 = vld [vmem:[%s1557 + $0x34] sm:$0xff]
  %v1566 = vld [vmem:[%s1557 + $0x3c] sm:$0xff]
  %v1567 = vld [vmem:[%s1557 + $0x44] sm:$0xff]
  %v1568 = vld [vmem:[%s1557 + $0x4c] sm:$0xff]
  %v1569 = vld [vmem:[%s1557 + $0x54] sm:$0xff]
  %v1570 = vld [vmem:[%s1557 + $0x5c] sm:$0xff]
  %v1571 = vld [vmem:[%s1557 + $0x64] sm:$0xf]
  %v1586 = vunpack.c.l.b16 %v1558
  %v1587 = vunpack.c.h.b16 %v1558
  %v1588 = vunpack.c.l.b16 %v1559
  %v1589 = vunpack.c.h.b16 %v1559
  %v1590 = vunpack.c.l.b16 %v1560
  %v1591 = vunpack.c.h.b16 %v1560
  %v1592 = vunpack.c.l.b16 %v1561
  %v1593 = vunpack.c.h.b16 %v1561
  %v1594 = vunpack.c.l.b16 %v1562
  %v1595 = vunpack.c.h.b16 %v1562
  %v1596 = vunpack.c.l.b16 %v1563
  %v1597 = vunpack.c.h.b16 %v1563
  %v1598 = vunpack.c.l.b16 %v1564
  %v1599 = vunpack.c.l.b16 %v1565
  %v1600 = vunpack.c.h.b16 %v1565
  %v1601 = vunpack.c.l.b16 %v1566
  %v1602 = vunpack.c.h.b16 %v1566
  %v1603 = vunpack.c.l.b16 %v1567
  %v1604 = vunpack.c.h.b16 %v1567
  %v1605 = vunpack.c.l.b16 %v1568
  %v1606 = vunpack.c.h.b16 %v1568
  %v1607 = vunpack.c.l.b16 %v1569
  %v1608 = vunpack.c.h.b16 %v1569
  %v1609 = vunpack.c.l.b16 %v1570
  %v1610 = vunpack.c.h.b16 %v1570
  %v1611 = vunpack.c.l.b16 %v1571
  %v1612 = vpack.c.b16 %v1599, %v1586
  %v1613 = vpack.c.b16 %v1600, %v1587
  %v1614 = vpack.c.b16 %v1601, %v1588
  %v1615 = vpack.c.b16 %v1602, %v1589
  %v1616 = vpack.c.b16 %v1603, %v1590
  %v1617 = vpack.c.b16 %v1604, %v1591
  %v1618 = vpack.c.b16 %v1605, %v1592
  %v1619 = vpack.c.b16 %v1606, %v1593
  %v1620 = vpack.c.b16 %v1607, %v1594
  %v1621 = vpack.c.b16 %v1608, %v1595
  %v1622 = vpack.c.b16 %v1609, %v1596
  %v1623 = vpack.c.b16 %v1610, %v1597
  %v1624 = vpack.c.b16 %v1611, %v1598
  %v1638 = vsel %vm894, %v1624, 0
  %1640 = vmatprep.subr.bf16.mxu0 0
  %1641 = vmatpush1.bf16.msra.mxu0 %v694
  %1642 = vmatprep.subr.bf16.mxu0 0
  %1643 = vmatpush1.bf16.msra.mxu0 %v695
  %1644 = vmatprep.subr.bf16.mxu0 0
  %1645 = vmatpush1.bf16.msra.mxu0 %v696
  %1646 = vmatprep.subr.bf16.mxu0 0
  %1647 = vmatpush1.bf16.msra.mxu0 %v697
  %1648 = vmatprep.subr.bf16.mxu0 0
  %1649 = vmatpush1.bf16.msra.mxu0 %v698
  %1650 = vmatprep.subr.bf16.mxu0 0
  %1651 = vmatpush1.bf16.msra.mxu0 %v699
  %1652 = vmatprep.subr.bf16.mxu0 0
  %1653 = vmatpush1.bf16.msra.mxu0 %v700
  %1654 = vmatprep.subr.bf16.mxu0 0
  %1655 = vmatpush1.bf16.msra.mxu0 %v701
  %1656 = vmatprep.subr.bf16.mxu0 0
  %1657 = vmatpush1.bf16.msra.mxu0 %v702
  %1658 = vmatprep.subr.bf16.mxu0 0
  %1659 = vmatpush1.bf16.msra.mxu0 %v703
  %1660 = vmatprep.subr.bf16.mxu0 0
  %1661 = vmatpush1.bf16.msra.mxu0 %v704
  %1662 = vmatprep.subr.bf16.mxu0 0
  %1663 = vmatpush1.bf16.msra.mxu0 %v705
  %1664 = vmatprep.subr.bf16.mxu0 0
  %1665 = vmatpush1.bf16.msra.mxu0 %v706
  %1666 = vmatprep.subr.bf16.mxu0 0
  %1667 = vmatpush1.bf16.msra.mxu0 %v707
  %1668 = vmatprep.subr.bf16.mxu0 0
  %1669 = vmatpush1.bf16.msra.mxu0 %v708
  %1670 = vmatprep.subr.bf16.mxu0 0
  %1671 = vmatpush1.bf16.msra.mxu0 %v709
  %1672 = vmatprep.mubr.bf16.mxu0 %v1613
  %1673 = vmatmul.mubr.bf16.gmra.mrb[0].mxu0 %v1612
  %v1674 = vpop.f32.mrb[0].mxu0
  %v1675 = vadd.f32 0.0, %v1674
  %v1676 = vpop.f32.mrb[0].mxu0
  %v1677 = vpop.f32.mrb[0].mxu0
  %v1678 = vadd.f32 0.0, %v1677
  %v1679 = vpop.f32.mrb[0].mxu0
  %1680 = vdwg.mxu0
  %1681 = vmatprep.subr.bf16.mxu0 0
  %1682 = vmatpush1.bf16.msra.mxu0 %v710
  %1683 = vmatprep.subr.bf16.mxu0 0
  %1684 = vmatpush1.bf16.msra.mxu0 %v711
  %1685 = vmatprep.subr.bf16.mxu0 0
  %1686 = vmatpush1.bf16.msra.mxu0 %v712
  %1687 = vmatprep.subr.bf16.mxu0 0
  %1688 = vmatpush1.bf16.msra.mxu0 %v713
  %1689 = vmatprep.subr.bf16.mxu0 0
  %1690 = vmatpush1.bf16.msra.mxu0 %v714
  %1691 = vmatprep.subr.bf16.mxu0 0
  %1692 = vmatpush1.bf16.msra.mxu0 %v715
  %1693 = vmatprep.subr.bf16.mxu0 0
  %1694 = vmatpush1.bf16.msra.mxu0 %v716
  %1695 = vmatprep.subr.bf16.mxu0 0
  %1696 = vmatpush1.bf16.msra.mxu0 %v717
  %1697 = vmatprep.subr.bf16.mxu0 0
  %1698 = vmatpush1.bf16.msra.mxu0 %v718
  %1699 = vmatprep.subr.bf16.mxu0 0
  %1700 = vmatpush1.bf16.msra.mxu0 %v719
  %1701 = vmatprep.subr.bf16.mxu0 0
  %1702 = vmatpush1.bf16.msra.mxu0 %v720
  %1703 = vmatprep.subr.bf16.mxu0 0
  %1704 = vmatpush1.bf16.msra.mxu0 %v721
  %1705 = vmatprep.subr.bf16.mxu0 0
  %1706 = vmatpush1.bf16.msra.mxu0 %v722
  %1707 = vmatprep.subr.bf16.mxu0 0
  %1708 = vmatpush1.bf16.msra.mxu0 %v723
  %1709 = vmatprep.subr.bf16.mxu0 0
  %1710 = vmatpush1.bf16.msra.mxu0 %v724
  %1711 = vmatprep.subr.bf16.mxu0 0
  %1712 = vmatpush1.bf16.msra.mxu0 %v725
  %1713 = vmatprep.mubr.bf16.mxu0 %v1615
  %1714 = vmatmul.mubr.bf16.gmra.mrb[0].mxu0 %v1614
  %v1715 = vpop.f32.mrb[0].mxu0
  %v1716 = vadd.f32 %v1675, %v1715
  %v1717 = vpop.f32.mrb[0].mxu0
  %v1718 = vpop.f32.mrb[0].mxu0
  %v1719 = vadd.f32 %v1678, %v1718
  %v1720 = vpop.f32.mrb[0].mxu0
  %1721 = vdwg.mxu0
  %1722 = vmatprep.subr.bf16.mxu0 0
  %1723 = vmatpush1.bf16.msra.mxu0 %v726
  %1724 = vmatprep.subr.bf16.mxu0 0
  %1725 = vmatpush1.bf16.msra.mxu0 %v727
  %1726 = vmatprep.subr.bf16.mxu0 0
  %1727 = vmatpush1.bf16.msra.mxu0 %v728
  %1728 = vmatprep.subr.bf16.mxu0 0
  %1729 = vmatpush1.bf16.msra.mxu0 %v729
  %1730 = vmatprep.subr.bf16.mxu0 0
  %1731 = vmatpush1.bf16.msra.mxu0 %v730
  %1732 = vmatprep.subr.bf16.mxu0 0
  %1733 = vmatpush1.bf16.msra.mxu0 %v731
  %1734 = vmatprep.subr.bf16.mxu0 0
  %1735 = vmatpush1.bf16.msra.mxu0 %v732
  %1736 = vmatprep.subr.bf16.mxu0 0
  %1737 = vmatpush1.bf16.msra.mxu0 %v733
  %1738 = vmatprep.subr.bf16.mxu0 0
  %1739 = vmatpush1.bf16.msra.mxu0 %v734
  %1740 = vmatprep.subr.bf16.mxu0 0
  %1741 = vmatpush1.bf16.msra.mxu0 %v735
  %1742 = vmatprep.subr.bf16.mxu0 0
  %1743 = vmatpush1.bf16.msra.mxu0 %v736
  %1744 = vmatprep.subr.bf16.mxu0 0
  %1745 = vmatpush1.bf16.msra.mxu0 %v737
  %1746 = vmatprep.subr.bf16.mxu0 0
  %1747 = vmatpush1.bf16.msra.mxu0 %v738
  %1748 = vmatprep.subr.bf16.mxu0 0
  %1749 = vmatpush1.bf16.msra.mxu0 %v739
  %1750 = vmatprep.subr.bf16.mxu0 0
  %1751 = vmatpush1.bf16.msra.mxu0 %v740
  %1752 = vmatprep.subr.bf16.mxu0 0
  %1753 = vmatpush1.bf16.msra.mxu0 %v741
  %1754 = vmatprep.mubr.bf16.mxu0 %v1617
  %1755 = vmatmul.mubr.bf16.gmra.mrb[0].mxu0 %v1616
  %v1756 = vpop.f32.mrb[0].mxu0
  %v1757 = vadd.f32 %v1716, %v1756
  %v1758 = vpop.f32.mrb[0].mxu0
  %v1759 = vpop.f32.mrb[0].mxu0
  %v1760 = vadd.f32 %v1719, %v1759
  %v1761 = vpop.f32.mrb[0].mxu0
  %1762 = vdwg.mxu0
  %1763 = vmatprep.subr.bf16.mxu0 0
  %1764 = vmatpush1.bf16.msra.mxu0 %v742
  %1765 = vmatprep.subr.bf16.mxu0 0
  %1766 = vmatpush1.bf16.msra.mxu0 %v743
  %1767 = vmatprep.subr.bf16.mxu0 0
  %1768 = vmatpush1.bf16.msra.mxu0 %v744
  %1769 = vmatprep.subr.bf16.mxu0 0
  %1770 = vmatpush1.bf16.msra.mxu0 %v745
  %1771 = vmatprep.subr.bf16.mxu0 0
  %1772 = vmatpush1.bf16.msra.mxu0 %v746
  %1773 = vmatprep.subr.bf16.mxu0 0
  %1774 = vmatpush1.bf16.msra.mxu0 %v747
  %1775 = vmatprep.subr.bf16.mxu0 0
  %1776 = vmatpush1.bf16.msra.mxu0 %v748
  %1777 = vmatprep.subr.bf16.mxu0 0
  %1778 = vmatpush1.bf16.msra.mxu0 %v749
  %1779 = vmatprep.subr.bf16.mxu0 0
  %1780 = vmatpush1.bf16.msra.mxu0 %v750
  %1781 = vmatprep.subr.bf16.mxu0 0
  %1782 = vmatpush1.bf16.msra.mxu0 %v751
  %1783 = vmatprep.subr.bf16.mxu0 0
  %1784 = vmatpush1.bf16.msra.mxu0 %v752
  %1785 = vmatprep.subr.bf16.mxu0 0
  %1786 = vmatpush1.bf16.msra.mxu0 %v753
  %1787 = vmatprep.subr.bf16.mxu0 0
  %1788 = vmatpush1.bf16.msra.mxu0 %v754
  %1789 = vmatprep.subr.bf16.mxu0 0
  %1790 = vmatpush1.bf16.msra.mxu0 %v755
  %1791 = vmatprep.subr.bf16.mxu0 0
  %1792 = vmatpush1.bf16.msra.mxu0 %v756
  %1793 = vmatprep.subr.bf16.mxu0 0
  %1794 = vmatpush1.bf16.msra.mxu0 %v757
  %1795 = vmatprep.mubr.bf16.mxu0 %v1619
  %1796 = vmatmul.mubr.bf16.gmra.mrb[0].mxu0 %v1618
  %v1797 = vpop.f32.mrb[0].mxu0
  %v1798 = vadd.f32 %v1757, %v1797
  %v1799 = vpop.f32.mrb[0].mxu0
  %v1800 = vpop.f32.mrb[0].mxu0
  %v1801 = vadd.f32 %v1760, %v1800
  %v1802 = vpop.f32.mrb[0].mxu0
  %1803 = vdwg.mxu0
  %1804 = vmatprep.subr.bf16.mxu0 0
  %1805 = vmatpush1.bf16.msra.mxu0 %v758
  %1806 = vmatprep.subr.bf16.mxu0 0
  %1807 = vmatpush1.bf16.msra.mxu0 %v759
  %1808 = vmatprep.subr.bf16.mxu0 0
  %1809 = vmatpush1.bf16.msra.mxu0 %v760
  %1810 = vmatprep.subr.bf16.mxu0 0
  %1811 = vmatpush1.bf16.msra.mxu0 %v761
  %1812 = vmatprep.subr.bf16.mxu0 0
  %1813 = vmatpush1.bf16.msra.mxu0 %v762
  %1814 = vmatprep.subr.bf16.mxu0 0
  %1815 = vmatpush1.bf16.msra.mxu0 %v763
  %1816 = vmatprep.subr.bf16.mxu0 0
  %1817 = vmatpush1.bf16.msra.mxu0 %v764
  %1818 = vmatprep.subr.bf16.mxu0 0
  %1819 = vmatpush1.bf16.msra.mxu0 %v765
  %1820 = vmatprep.subr.bf16.mxu0 0
  %1821 = vmatpush1.bf16.msra.mxu0 %v766
  %1822 = vmatprep.subr.bf16.mxu0 0
  %1823 = vmatpush1.bf16.msra.mxu0 %v767
  %1824 = vmatprep.subr.bf16.mxu0 0
  %1825 = vmatpush1.bf16.msra.mxu0 %v768
  %1826 = vmatprep.subr.bf16.mxu0 0
  %1827 = vmatpush1.bf16.msra.mxu0 %v769
  %1828 = vmatprep.subr.bf16.mxu0 0
  %1829 = vmatpush1.bf16.msra.mxu0 %v770
  %1830 = vmatprep.subr.bf16.mxu0 0
  %1831 = vmatpush1.bf16.msra.mxu0 %v771
  %1832 = vmatprep.subr.bf16.mxu0 0
  %1833 = vmatpush1.bf16.msra.mxu0 %v772
  %1834 = vmatprep.subr.bf16.mxu0 0
  %1835 = vmatpush1.bf16.msra.mxu0 %v773
  %1836 = vmatprep.mubr.bf16.mxu0 %v1621
  %1837 = vmatmul.mubr.bf16.gmra.mrb[0].mxu0 %v1620
  %v1838 = vpop.f32.mrb[0].mxu0
  %v1839 = vadd.f32 %v1798, %v1838
  %v1840 = vpop.f32.mrb[0].mxu0
  %v1841 = vpop.f32.mrb[0].mxu0
  %v1842 = vadd.f32 %v1801, %v1841
  %v1843 = vpop.f32.mrb[0].mxu0
  %1844 = vdwg.mxu0
  %1845 = vmatprep.subr.bf16.mxu0 0
  %1846 = vmatpush1.bf16.msra.mxu0 %v774
  %1847 = vmatprep.subr.bf16.mxu0 0
  %1848 = vmatpush1.bf16.msra.mxu0 %v775
  %1849 = vmatprep.subr.bf16.mxu0 0
  %1850 = vmatpush1.bf16.msra.mxu0 %v776
  %1851 = vmatprep.subr.bf16.mxu0 0
  %1852 = vmatpush1.bf16.msra.mxu0 %v777
  %1853 = vmatprep.subr.bf16.mxu0 0
  %1854 = vmatpush1.bf16.msra.mxu0 %v778
  %1855 = vmatprep.subr.bf16.mxu0 0
  %1856 = vmatpush1.bf16.msra.mxu0 %v779
  %1857 = vmatprep.subr.bf16.mxu0 0
  %1858 = vmatpush1.bf16.msra.mxu0 %v780
  %1859 = vmatprep.subr.bf16.mxu0 0
  %1860 = vmatpush1.bf16.msra.mxu0 %v781
  %1861 = vmatprep.subr.bf16.mxu0 0
  %1862 = vmatpush1.bf16.msra.mxu0 %v782
  %1863 = vmatprep.subr.bf16.mxu0 0
  %1864 = vmatpush1.bf16.msra.mxu0 %v783
  %1865 = vmatprep.subr.bf16.mxu0 0
  %1866 = vmatpush1.bf16.msra.mxu0 %v784
  %1867 = vmatprep.subr.bf16.mxu0 0
  %1868 = vmatpush1.bf16.msra.mxu0 %v785
  %1869 = vmatprep.subr.bf16.mxu0 0
  %1870 = vmatpush1.bf16.msra.mxu0 %v786
  %1871 = vmatprep.subr.bf16.mxu0 0
  %1872 = vmatpush1.bf16.msra.mxu0 %v787
  %1873 = vmatprep.subr.bf16.mxu0 0
  %1874 = vmatpush1.bf16.msra.mxu0 %v788
  %1875 = vmatprep.subr.bf16.mxu0 0
  %1876 = vmatpush1.bf16.msra.mxu0 %v789
  %1877 = vmatprep.mubr.bf16.mxu0 %v1623
  %1878 = vmatmul.mubr.bf16.gmra.mrb[0].mxu0 %v1622
  %v1879 = vpop.f32.mrb[0].mxu0
  %v1880 = vadd.f32 %v1839, %v1879
  %v1881 = vpop.f32.mrb[0].mxu0
  %v1882 = vpop.f32.mrb[0].mxu0
  %v1883 = vadd.f32 %v1842, %v1882
  %v1884 = vpop.f32.mrb[0].mxu0
  %1885 = vdwg.mxu0
  %1886 = vmatprep.subr.bf16.mxu0 0
  %1887 = vmatpush1.bf16.msra.mxu0 %v790
  %1888 = vmatprep.subr.bf16.mxu0 0
  %1889 = vmatpush1.bf16.msra.mxu0 %v791
  %1890 = vmatprep.subr.bf16.mxu0 0
  %1891 = vmatpush1.bf16.msra.mxu0 %v792
  %1892 = vmatprep.subr.bf16.mxu0 0
  %1893 = vmatpush1.bf16.msra.mxu0 %v793
  %1894 = vmatprep.subr.bf16.mxu0 0
  %1895 = vmatpush1.bf16.msra.mxu0 0
  %1896 = vmatprep.subr.bf16.mxu0 0
  %1897 = vmatpush1.bf16.msra.mxu0 0
  %1898 = vmatprep.subr.bf16.mxu0 0
  %1899 = vmatpush1.bf16.msra.mxu0 0
  %1900 = vmatprep.subr.bf16.mxu0 0
  %1901 = vmatpush1.bf16.msra.mxu0 0
  %1902 = vmatprep.subr.bf16.mxu0 0
  %1903 = vmatpush1.bf16.msra.mxu0 0
  %1904 = vmatprep.subr.bf16.mxu0 0
  %1905 = vmatpush1.bf16.msra.mxu0 0
  %1906 = vmatprep.subr.bf16.mxu0 0
  %1907 = vmatpush1.bf16.msra.mxu0 0
  %1908 = vmatprep.subr.bf16.mxu0 0
  %1909 = vmatpush1.bf16.msra.mxu0 0
  %1910 = vmatprep.subr.bf16.mxu0 0
  %1911 = vmatpush1.bf16.msra.mxu0 0
  %1912 = vmatprep.subr.bf16.mxu0 0
  %1913 = vmatpush1.bf16.msra.mxu0 0
  %1914 = vmatprep.subr.bf16.mxu0 0
  %1915 = vmatpush1.bf16.msra.mxu0 0
  %1916 = vmatprep.subr.bf16.mxu0 0
  %1917 = vmatpush1.bf16.msra.mxu0 0
  %1918 = vmatprep.mubr.bf16.mxu0 0
  %1919 = vmatmul.mubr.bf16.gmra.mrb[0].mxu0 %v1638
  %v1920 = vpop.f32.mrb[0].mxu0
  %v1921 = vadd.f32 %v1880, %v1920
  %v1922 = vpop.f32.mrb[0].mxu0
  %v1923 = vpop.f32.mrb[0].mxu0
  %v1924 = vadd.f32 %v1883, %v1923
  %v1925 = vpop.f32.mrb[0].mxu0
  %1926 = vdwg.mxu0
  %v1927 = vmax.f32 %v1555, %v1921
  %v1928 = vmax.f32 %v1556, %v1924
  %s1929 = scalar_lea.vmem %s0, 312
  %v1930 = vld [vmem:[%s1929] sm:$0xff]
  %v1931 = vld [vmem:[%s1929 + $0x8] sm:$0xff]
  %v1932 = vld [vmem:[%s1929 + $0x10] sm:$0xff]
  %v1933 = vld [vmem:[%s1929 + $0x18] sm:$0xff]
  %v1934 = vld [vmem:[%s1929 + $0x20] sm:$0xff]
  %v1935 = vld [vmem:[%s1929 + $0x28] sm:$0xff]
  %v1936 = vld [vmem:[%s1929 + $0x30] sm:$0xf]
  %v1937 = vld [vmem:[%s1929 + $0x34] sm:$0xff]
  %v1938 = vld [vmem:[%s1929 + $0x3c] sm:$0xff]
  %v1939 = vld [vmem:[%s1929 + $0x44] sm:$0xff]
  %v1940 = vld [vmem:[%s1929 + $0x4c] sm:$0xff]
  %v1941 = vld [vmem:[%s1929 + $0x54] sm:$0xff]
  %v1942 = vld [vmem:[%s1929 + $0x5c] sm:$0xff]
  %v1943 = vld [vmem:[%s1929 + $0x64] sm:$0xf]
  %v1958 = vunpack.c.l.b16 %v1930
  %v1959 = vunpack.c.h.b16 %v1930
  %v1960 = vunpack.c.l.b16 %v1931
  %v1961 = vunpack.c.h.b16 %v1931
  %v1962 = vunpack.c.l.b16 %v1932
  %v1963 = vunpack.c.h.b16 %v1932
  %v1964 = vunpack.c.l.b16 %v1933
  %v1965 = vunpack.c.h.b16 %v1933
  %v1966 = vunpack.c.l.b16 %v1934
  %v1967 = vunpack.c.h.b16 %v1934
  %v1968 = vunpack.c.l.b16 %v1935
  %v1969 = vunpack.c.h.b16 %v1935
  %v1970 = vunpack.c.l.b16 %v1936
  %v1971 = vunpack.c.l.b16 %v1937
  %v1972 = vunpack.c.h.b16 %v1937
  %v1973 = vunpack.c.l.b16 %v1938
  %v1974 = vunpack.c.h.b16 %v1938
  %v1975 = vunpack.c.l.b16 %v1939
  %v1976 = vunpack.c.h.b16 %v1939
  %v1977 = vunpack.c.l.b16 %v1940
  %v1978 = vunpack.c.h.b16 %v1940
  %v1979 = vunpack.c.l.b16 %v1941
  %v1980 = vunpack.c.h.b16 %v1941
  %v1981 = vunpack.c.l.b16 %v1942
  %v1982 = vunpack.c.h.b16 %v1942
  %v1983 = vunpack.c.l.b16 %v1943
  %v1984 = vpack.c.b16 %v1971, %v1958
  %v1985 = vpack.c.b16 %v1972, %v1959
  %v1986 = vpack.c.b16 %v1973, %v1960
  %v1987 = vpack.c.b16 %v1974, %v1961
  %v1988 = vpack.c.b16 %v1975, %v1962
  %v1989 = vpack.c.b16 %v1976, %v1963
  %v1990 = vpack.c.b16 %v1977, %v1964
  %v1991 = vpack.c.b16 %v1978, %v1965
  %v1992 = vpack.c.b16 %v1979, %v1966
  %v1993 = vpack.c.b16 %v1980, %v1967
  %v1994 = vpack.c.b16 %v1981, %v1968
  %v1995 = vpack.c.b16 %v1982, %v1969
  %v1996 = vpack.c.b16 %v1983, %v1970
  %v2010 = vsel %vm894, %v1996, 0
  %2012 = vmatprep.subr.bf16.mxu0 0
  %2013 = vmatpush1.bf16.msra.mxu0 %v694
  %2014 = vmatprep.subr.bf16.mxu0 0
  %2015 = vmatpush1.bf16.msra.mxu0 %v695
  %2016 = vmatprep.subr.bf16.mxu0 0
  %2017 = vmatpush1.bf16.msra.mxu0 %v696
  %2018 = vmatprep.subr.bf16.mxu0 0
  %2019 = vmatpush1.bf16.msra.mxu0 %v697
  %2020 = vmatprep.subr.bf16.mxu0 0
  %2021 = vmatpush1.bf16.msra.mxu0 %v698
  %2022 = vmatprep.subr.bf16.mxu0 0
  %2023 = vmatpush1.bf16.msra.mxu0 %v699
  %2024 = vmatprep.subr.bf16.mxu0 0
  %2025 = vmatpush1.bf16.msra.mxu0 %v700
  %2026 = vmatprep.subr.bf16.mxu0 0
  %2027 = vmatpush1.bf16.msra.mxu0 %v701
  %2028 = vmatprep.subr.bf16.mxu0 0
  %2029 = vmatpush1.bf16.msra.mxu0 %v702
  %2030 = vmatprep.subr.bf16.mxu0 0
  %2031 = vmatpush1.bf16.msra.mxu0 %v703
  %2032 = vmatprep.subr.bf16.mxu0 0
  %2033 = vmatpush1.bf16.msra.mxu0 %v704
  %2034 = vmatprep.subr.bf16.mxu0 0
  %2035 = vmatpush1.bf16.msra.mxu0 %v705
  %2036 = vmatprep.subr.bf16.mxu0 0
  %2037 = vmatpush1.bf16.msra.mxu0 %v706
  %2038 = vmatprep.subr.bf16.mxu0 0
  %2039 = vmatpush1.bf16.msra.mxu0 %v707
  %2040 = vmatprep.subr.bf16.mxu0 0
  %2041 = vmatpush1.bf16.msra.mxu0 %v708
  %2042 = vmatprep.subr.bf16.mxu0 0
  %2043 = vmatpush1.bf16.msra.mxu0 %v709
  %2044 = vmatprep.mubr.bf16.mxu0 %v1985
  %2045 = vmatmul.mubr.bf16.gmra.mrb[0].mxu0 %v1984
  %v2046 = vpop.f32.mrb[0].mxu0
  %v2047 = vadd.f32 0.0, %v2046
  %v2048 = vpop.f32.mrb[0].mxu0
  %v2049 = vpop.f32.mrb[0].mxu0
  %v2050 = vadd.f32 0.0, %v2049
  %v2051 = vpop.f32.mrb[0].mxu0
  %2052 = vdwg.mxu0
  %2053 = vmatprep.subr.bf16.mxu0 0
  %2054 = vmatpush1.bf16.msra.mxu0 %v710
  %2055 = vmatprep.subr.bf16.mxu0 0
  %2056 = vmatpush1.bf16.msra.mxu0 %v711
  %2057 = vmatprep.subr.bf16.mxu0 0
  %2058 = vmatpush1.bf16.msra.mxu0 %v712
  %2059 = vmatprep.subr.bf16.mxu0 0
  %2060 = vmatpush1.bf16.msra.mxu0 %v713
  %2061 = vmatprep.subr.bf16.mxu0 0
  %2062 = vmatpush1.bf16.msra.mxu0 %v714
  %2063 = vmatprep.subr.bf16.mxu0 0
  %2064 = vmatpush1.bf16.msra.mxu0 %v715
  %2065 = vmatprep.subr.bf16.mxu0 0
  %2066 = vmatpush1.bf16.msra.mxu0 %v716
  %2067 = vmatprep.subr.bf16.mxu0 0
  %2068 = vmatpush1.bf16.msra.mxu0 %v717
  %2069 = vmatprep.subr.bf16.mxu0 0
  %2070 = vmatpush1.bf16.msra.mxu0 %v718
  %2071 = vmatprep.subr.bf16.mxu0 0
  %2072 = vmatpush1.bf16.msra.mxu0 %v719
  %2073 = vmatprep.subr.bf16.mxu0 0
  %2074 = vmatpush1.bf16.msra.mxu0 %v720
  %2075 = vmatprep.subr.bf16.mxu0 0
  %2076 = vmatpush1.bf16.msra.mxu0 %v721
  %2077 = vmatprep.subr.bf16.mxu0 0
  %2078 = vmatpush1.bf16.msra.mxu0 %v722
  %2079 = vmatprep.subr.bf16.mxu0 0
  %2080 = vmatpush1.bf16.msra.mxu0 %v723
  %2081 = vmatprep.subr.bf16.mxu0 0
  %2082 = vmatpush1.bf16.msra.mxu0 %v724
  %2083 = vmatprep.subr.bf16.mxu0 0
  %2084 = vmatpush1.bf16.msra.mxu0 %v725
  %2085 = vmatprep.mubr.bf16.mxu0 %v1987
  %2086 = vmatmul.mubr.bf16.gmra.mrb[0].mxu0 %v1986
  %v2087 = vpop.f32.mrb[0].mxu0
  %v2088 = vadd.f32 %v2047, %v2087
  %v2089 = vpop.f32.mrb[0].mxu0
  %v2090 = vpop.f32.mrb[0].mxu0
  %v2091 = vadd.f32 %v2050, %v2090
  %v2092 = vpop.f32.mrb[0].mxu0
  %2093 = vdwg.mxu0
  %2094 = vmatprep.subr.bf16.mxu0 0
  %2095 = vmatpush1.bf16.msra.mxu0 %v726
  %2096 = vmatprep.subr.bf16.mxu0 0
  %2097 = vmatpush1.bf16.msra.mxu0 %v727
  %2098 = vmatprep.subr.bf16.mxu0 0
  %2099 = vmatpush1.bf16.msra.mxu0 %v728
  %2100 = vmatprep.subr.bf16.mxu0 0
  %2101 = vmatpush1.bf16.msra.mxu0 %v729
  %2102 = vmatprep.subr.bf16.mxu0 0
  %2103 = vmatpush1.bf16.msra.mxu0 %v730
  %2104 = vmatprep.subr.bf16.mxu0 0
  %2105 = vmatpush1.bf16.msra.mxu0 %v731
  %2106 = vmatprep.subr.bf16.mxu0 0
  %2107 = vmatpush1.bf16.msra.mxu0 %v732
  %2108 = vmatprep.subr.bf16.mxu0 0
  %2109 = vmatpush1.bf16.msra.mxu0 %v733
  %2110 = vmatprep.subr.bf16.mxu0 0
  %2111 = vmatpush1.bf16.msra.mxu0 %v734
  %2112 = vmatprep.subr.bf16.mxu0 0
  %2113 = vmatpush1.bf16.msra.mxu0 %v735
  %2114 = vmatprep.subr.bf16.mxu0 0
  %2115 = vmatpush1.bf16.msra.mxu0 %v736
  %2116 = vmatprep.subr.bf16.mxu0 0
  %2117 = vmatpush1.bf16.msra.mxu0 %v737
  %2118 = vmatprep.subr.bf16.mxu0 0
  %2119 = vmatpush1.bf16.msra.mxu0 %v738
  %2120 = vmatprep.subr.bf16.mxu0 0
  %2121 = vmatpush1.bf16.msra.mxu0 %v739
  %2122 = vmatprep.subr.bf16.mxu0 0
  %2123 = vmatpush1.bf16.msra.mxu0 %v740
  %2124 = vmatprep.subr.bf16.mxu0 0
  %2125 = vmatpush1.bf16.msra.mxu0 %v741
  %2126 = vmatprep.mubr.bf16.mxu0 %v1989
  %2127 = vmatmul.mubr.bf16.gmra.mrb[0].mxu0 %v1988
  %v2128 = vpop.f32.mrb[0].mxu0
  %v2129 = vadd.f32 %v2088, %v2128
  %v2130 = vpop.f32.mrb[0].mxu0
  %v2131 = vpop.f32.mrb[0].mxu0
  %v2132 = vadd.f32 %v2091, %v2131
  %v2133 = vpop.f32.mrb[0].mxu0
  %2134 = vdwg.mxu0
  %2135 = vmatprep.subr.bf16.mxu0 0
  %2136 = vmatpush1.bf16.msra.mxu0 %v742
  %2137 = vmatprep.subr.bf16.mxu0 0
  %2138 = vmatpush1.bf16.msra.mxu0 %v743
  %2139 = vmatprep.subr.bf16.mxu0 0
  %2140 = vmatpush1.bf16.msra.mxu0 %v744
  %2141 = vmatprep.subr.bf16.mxu0 0
  %2142 = vmatpush1.bf16.msra.mxu0 %v745
  %2143 = vmatprep.subr.bf16.mxu0 0
  %2144 = vmatpush1.bf16.msra.mxu0 %v746
  %2145 = vmatprep.subr.bf16.mxu0 0
  %2146 = vmatpush1.bf16.msra.mxu0 %v747
  %2147 = vmatprep.subr.bf16.mxu0 0
  %2148 = vmatpush1.bf16.msra.mxu0 %v748
  %2149 = vmatprep.subr.bf16.mxu0 0
  %2150 = vmatpush1.bf16.msra.mxu0 %v749
  %2151 = vmatprep.subr.bf16.mxu0 0
  %2152 = vmatpush1.bf16.msra.mxu0 %v750
  %2153 = vmatprep.subr.bf16.mxu0 0
  %2154 = vmatpush1.bf16.msra.mxu0 %v751
  %2155 = vmatprep.subr.bf16.mxu0 0
  %2156 = vmatpush1.bf16.msra.mxu0 %v752
  %2157 = vmatprep.subr.bf16.mxu0 0
  %2158 = vmatpush1.bf16.msra.mxu0 %v753
  %2159 = vmatprep.subr.bf16.mxu0 0
  %2160 = vmatpush1.bf16.msra.mxu0 %v754
  %2161 = vmatprep.subr.bf16.mxu0 0
  %2162 = vmatpush1.bf16.msra.mxu0 %v755
  %2163 = vmatprep.subr.bf16.mxu0 0
  %2164 = vmatpush1.bf16.msra.mxu0 %v756
  %2165 = vmatprep.subr.bf16.mxu0 0
  %2166 = vmatpush1.bf16.msra.mxu0 %v757
  %2167 = vmatprep.mubr.bf16.mxu0 %v1991
  %2168 = vmatmul.mubr.bf16.gmra.mrb[0].mxu0 %v1990
  %v2169 = vpop.f32.mrb[0].mxu0
  %v2170 = vadd.f32 %v2129, %v2169
  %v2171 = vpop.f32.mrb[0].mxu0
  %v2172 = vpop.f32.mrb[0].mxu0
  %v2173 = vadd.f32 %v2132, %v2172
  %v2174 = vpop.f32.mrb[0].mxu0
  %2175 = vdwg.mxu0
  %2176 = vmatprep.subr.bf16.mxu0 0
  %2177 = vmatpush1.bf16.msra.mxu0 %v758
  %2178 = vmatprep.subr.bf16.mxu0 0
  %2179 = vmatpush1.bf16.msra.mxu0 %v759
  %2180 = vmatprep.subr.bf16.mxu0 0
  %2181 = vmatpush1.bf16.msra.mxu0 %v760
  %2182 = vmatprep.subr.bf16.mxu0 0
  %2183 = vmatpush1.bf16.msra.mxu0 %v761
  %2184 = vmatprep.subr.bf16.mxu0 0
  %2185 = vmatpush1.bf16.msra.mxu0 %v762
  %2186 = vmatprep.subr.bf16.mxu0 0
  %2187 = vmatpush1.bf16.msra.mxu0 %v763
  %2188 = vmatprep.subr.bf16.mxu0 0
  %2189 = vmatpush1.bf16.msra.mxu0 %v764
  %2190 = vmatprep.subr.bf16.mxu0 0
  %2191 = vmatpush1.bf16.msra.mxu0 %v765
  %2192 = vmatprep.subr.bf16.mxu0 0
  %2193 = vmatpush1.bf16.msra.mxu0 %v766
  %2194 = vmatprep.subr.bf16.mxu0 0
  %2195 = vmatpush1.bf16.msra.mxu0 %v767
  %2196 = vmatprep.subr.bf16.mxu0 0
  %2197 = vmatpush1.bf16.msra.mxu0 %v768
  %2198 = vmatprep.subr.bf16.mxu0 0
  %2199 = vmatpush1.bf16.msra.mxu0 %v769
  %2200 = vmatprep.subr.bf16.mxu0 0
  %2201 = vmatpush1.bf16.msra.mxu0 %v770
  %2202 = vmatprep.subr.bf16.mxu0 0
  %2203 = vmatpush1.bf16.msra.mxu0 %v771
  %2204 = vmatprep.subr.bf16.mxu0 0
  %2205 = vmatpush1.bf16.msra.mxu0 %v772
  %2206 = vmatprep.subr.bf16.mxu0 0
  %2207 = vmatpush1.bf16.msra.mxu0 %v773
  %2208 = vmatprep.mubr.bf16.mxu0 %v1993
  %2209 = vmatmul.mubr.bf16.gmra.mrb[0].mxu0 %v1992
  %v2210 = vpop.f32.mrb[0].mxu0
  %v2211 = vadd.f32 %v2170, %v2210
  %v2212 = vpop.f32.mrb[0].mxu0
  %v2213 = vpop.f32.mrb[0].mxu0
  %v2214 = vadd.f32 %v2173, %v2213
  %v2215 = vpop.f32.mrb[0].mxu0
  %2216 = vdwg.mxu0
  %2217 = vmatprep.subr.bf16.mxu0 0
  %2218 = vmatpush1.bf16.msra.mxu0 %v774
  %2219 = vmatprep.subr.bf16.mxu0 0
  %2220 = vmatpush1.bf16.msra.mxu0 %v775
  %2221 = vmatprep.subr.bf16.mxu0 0
  %2222 = vmatpush1.bf16.msra.mxu0 %v776
  %2223 = vmatprep.subr.bf16.mxu0 0
  %2224 = vmatpush1.bf16.msra.mxu0 %v777
  %2225 = vmatprep.subr.bf16.mxu0 0
  %2226 = vmatpush1.bf16.msra.mxu0 %v778
  %2227 = vmatprep.subr.bf16.mxu0 0
  %2228 = vmatpush1.bf16.msra.mxu0 %v779
  %2229 = vmatprep.subr.bf16.mxu0 0
  %2230 = vmatpush1.bf16.msra.mxu0 %v780
  %2231 = vmatprep.subr.bf16.mxu0 0
  %2232 = vmatpush1.bf16.msra.mxu0 %v781
  %2233 = vmatprep.subr.bf16.mxu0 0
  %2234 = vmatpush1.bf16.msra.mxu0 %v782
  %2235 = vmatprep.subr.bf16.mxu0 0
  %2236 = vmatpush1.bf16.msra.mxu0 %v783
  %2237 = vmatprep.subr.bf16.mxu0 0
  %2238 = vmatpush1.bf16.msra.mxu0 %v784
  %2239 = vmatprep.subr.bf16.mxu0 0
  %2240 = vmatpush1.bf16.msra.mxu0 %v785
  %2241 = vmatprep.subr.bf16.mxu0 0
  %2242 = vmatpush1.bf16.msra.mxu0 %v786
  %2243 = vmatprep.subr.bf16.mxu0 0
  %2244 = vmatpush1.bf16.msra.mxu0 %v787
  %2245 = vmatprep.subr.bf16.mxu0 0
  %2246 = vmatpush1.bf16.msra.mxu0 %v788
  %2247 = vmatprep.subr.bf16.mxu0 0
  %2248 = vmatpush1.bf16.msra.mxu0 %v789
  %2249 = vmatprep.mubr.bf16.mxu0 %v1995
  %2250 = vmatmul.mubr.bf16.gmra.mrb[0].mxu0 %v1994
  %v2251 = vpop.f32.mrb[0].mxu0
  %v2252 = vadd.f32 %v2211, %v2251
  %v2253 = vpop.f32.mrb[0].mxu0
  %v2254 = vpop.f32.mrb[0].mxu0
  %v2255 = vadd.f32 %v2214, %v2254
  %v2256 = vpop.f32.mrb[0].mxu0
  %2257 = vdwg.mxu0
  %2258 = vmatprep.subr.bf16.mxu0 0
  %2259 = vmatpush1.bf16.msra.mxu0 %v790
  %2260 = vmatprep.subr.bf16.mxu0 0
  %2261 = vmatpush1.bf16.msra.mxu0 %v791
  %2262 = vmatprep.subr.bf16.mxu0 0
  %2263 = vmatpush1.bf16.msra.mxu0 %v792
  %2264 = vmatprep.subr.bf16.mxu0 0
  %2265 = vmatpush1.bf16.msra.mxu0 %v793
  %2266 = vmatprep.subr.bf16.mxu0 0
  %2267 = vmatpush1.bf16.msra.mxu0 0
  %2268 = vmatprep.subr.bf16.mxu0 0
  %2269 = vmatpush1.bf16.msra.mxu0 0
  %2270 = vmatprep.subr.bf16.mxu0 0
  %2271 = vmatpush1.bf16.msra.mxu0 0
  %2272 = vmatprep.subr.bf16.mxu0 0
  %2273 = vmatpush1.bf16.msra.mxu0 0
  %2274 = vmatprep.subr.bf16.mxu0 0
  %2275 = vmatpush1.bf16.msra.mxu0 0
  %2276 = vmatprep.subr.bf16.mxu0 0
  %2277 = vmatpush1.bf16.msra.mxu0 0
  %2278 = vmatprep.subr.bf16.mxu0 0
  %2279 = vmatpush1.bf16.msra.mxu0 0
  %2280 = vmatprep.subr.bf16.mxu0 0
  %2281 = vmatpush1.bf16.msra.mxu0 0
  %2282 = vmatprep.subr.bf16.mxu0 0
  %2283 = vmatpush1.bf16.msra.mxu0 0
  %2284 = vmatprep.subr.bf16.mxu0 0
  %2285 = vmatpush1.bf16.msra.mxu0 0
  %2286 = vmatprep.subr.bf16.mxu0 0
  %2287 = vmatpush1.bf16.msra.mxu0 0
  %2288 = vmatprep.subr.bf16.mxu0 0
  %2289 = vmatpush1.bf16.msra.mxu0 0
  %2290 = vmatprep.mubr.bf16.mxu0 0
  %2291 = vmatmul.mubr.bf16.gmra.mrb[0].mxu0 %v2010
  %v2292 = vpop.f32.mrb[0].mxu0
  %v2293 = vadd.f32 %v2252, %v2292
  %v2294 = vpop.f32.mrb[0].mxu0
  %v2295 = vpop.f32.mrb[0].mxu0
  %v2296 = vadd.f32 %v2255, %v2295
  %v2297 = vpop.f32.mrb[0].mxu0
  %2298 = vdwg.mxu0
  %v2299 = vmax.f32 %v1927, %v2293
  %v2300 = vmax.f32 %v1928, %v2296
  %v2301 = vld [vmem:[%s2] sm:$0x1]
  %v2303 = vlaneseq
  %v2304 = vshrl.u32 %v2303, 7
  %v2305 = vsub.s32 0, %v2304
  %v2306 = vrot.slane %v2301, %v2305
  %v2308 = vadd.f32 %v2299, %v2306
  %v2309 = vadd.f32 %v2300, %v2306
  %v2310 = vmul.f32 %v2308, 0.01
  %v2311 = vmul.f32 %v2309, 0.01
  %v2312 = vmax.f32 %v2308, %v2310
  %v2313 = vmax.f32 %v2309, %v2311
  %v2314 = vpack.c.bf16 %v2313, %v2312
  %v2316 = vunpack.c.l.b16 %v2314
  %v2317 = vunpack.c.h.b16 %v2314
  %v2318 = vpack.c.b16 %v2316, %v2316
  %v2319 = vpack.c.b16 %v2317, %v2317
  %2322 = vst [vmem:[%s3] sm:$0xf] %v2318
  %2323 = vst [vmem:[%s3 + $0x4] sm:$0xf] %v2319
  // Predicated region
  $region14: #{discriminator_forward.4} parent=0 // pred_check
    _
  $region15: #{discriminator_forward.4} parent=0 // pred_check_branch
    %2325 = sbr.rel (0) target = $region17
  $region16: #{discriminator_forward.4} parent=0 // pred_region
    _
  $region17: #{discriminator_forward.4} parent=0 // pred_fallthru
    _
  // Predicated region
  $region18: #{discriminator_forward.4} parent=0 // pred_check
    _
  $region19: #{discriminator_forward.4} parent=0 // pred_check_branch
    %2327 = sbr.rel (0) target = $region21
  $region20: #{discriminator_forward.4} parent=0 // pred_region
    _
  $region21: #{discriminator_forward.4} parent=0 // pred_fallthru
    _

// kernel: discriminator_forward.5
$region0: #{discriminator_forward.5}
  #allocation0 [shape = 'u32[]', space=smem, size = 0x4, offset = 0x4, fixed_abs, tag = 'smem constant byte address 0x4 - core index']
  #allocation1 [shape = 'u32[144,128]{1,0:T(1,128)}', space=vmem, size = 0x12000, scoped, tag = 'internal scratch']
  #allocation2 [shape = 'f32[1,1]{1,0:T(1,128)S(1)}', space=vmem, size = 0x200, scoped, tag = 'scoped memory for discriminator_forward.5']
  %s0 = inlined_call_operand.vmem [shape: bf16[2,1024], index: 0, kind: input, shape index: {}]
  %s1 = inlined_call_operand.vmem [shape: bf16[1024,1152], index: 1, kind: input, shape index: {}]
  %s2 = inlined_call_operand.vmem [shape: f32[1,1152], index: 2, kind: input, shape index: {}]
  %s3 = inlined_call_operand.vmem [shape: bf16[1024,512], index: 3, kind: input, shape index: {}]
  %s4 = inlined_call_operand.vmem [shape: f32[1,512], index: 4, kind: input, shape index: {}]
  %s5 = inlined_call_operand.vmem [shape: bf16[512,1], index: 5, kind: input, shape index: {}]
  %s6 = inlined_call_operand.<no memory space> [shape: f32[1,1], index: 6, kind: input, shape index: {}]
  %s7 = inlined_call_operand.vmem [shape: f32[2,2], index: 7, kind: output, shape index: {}]
  %s8 = sld [smem:[#allocation0]]
  $region38: #{discriminator_forward.5} parent=0
    _
  %s10 = ssub.s32 1, %s8
  %s11 = scalar_select 0, %s10, %s8
  %v12 = vstv %s6
  %13 = vst [vmem:[#allocation2] sm:$0x1] %v12
  // Predicated region
  $region2: #{discriminator_forward.5} parent=0 // pred_check
    _
  $region3: #{discriminator_forward.5} parent=0 // pred_check_branch
    %15 = sbr.rel (0) target = $region5
  $region4: #{discriminator_forward.5} parent=0 // pred_region
    _
  $region5: #{discriminator_forward.5} parent=0 // pred_fallthru
    _
  // Predicated region
  $region6: #{discriminator_forward.5} parent=0 // pred_check
    _
  $region7: #{discriminator_forward.5} parent=0 // pred_check_branch
    %17 = sbr.rel (0) target = $region9
  $region8: #{discriminator_forward.5} parent=0 // pred_region
    _
  $region9: #{discriminator_forward.5} parent=0 // pred_fallthru
    _
  // Predicated region
  $region10: #{discriminator_forward.5} parent=0 // pred_check
    _
  $region11: #{discriminator_forward.5} parent=0 // pred_check_branch
    %19 = sbr.rel (0) target = $region13
  $region12: #{discriminator_forward.5} parent=0 // pred_region
    _
  $region13: #{discriminator_forward.5} parent=0 // pred_fallthru
    _
  // Predicated region
  $region14: #{discriminator_forward.5} parent=0 // pred_check
    _
  $region15: #{discriminator_forward.5} parent=0 // pred_check_branch
    %21 = sbr.rel (0) target = $region17
  $region16: #{discriminator_forward.5} parent=0 // pred_region
    _
  $region17: #{discriminator_forward.5} parent=0 // pred_fallthru
    _
  // Predicated region
  $region18: #{discriminator_forward.5} parent=0 // pred_check
    _
  $region19: #{discriminator_forward.5} parent=0 // pred_check_branch
    %23 = sbr.rel (0) target = $region21
  $region20: #{discriminator_forward.5} parent=0 // pred_region
    _
  $region21: #{discriminator_forward.5} parent=0 // pred_fallthru
    _
  // Predicated region
  $region22: #{discriminator_forward.5} parent=0 // pred_check
    _
  $region23: #{discriminator_forward.5} parent=0 // pred_check_branch
    %25 = sbr.rel (0) target = $region25
  $region24: #{discriminator_forward.5} parent=0 // pred_region
    _
  $region25: #{discriminator_forward.5} parent=0 // pred_fallthru
    _
  // Predicated region
  $region26: #{discriminator_forward.5} parent=0 // pred_check
    _
  $region27: #{discriminator_forward.5} parent=0 // pred_check_branch
    %27 = sbr.rel (0) target = $region29
  $region28: #{discriminator_forward.5} parent=0 // pred_region
    _
  $region29: #{discriminator_forward.5} parent=0 // pred_fallthru
    _
  %v29 = vld [vmem:[%s0] sm:$0xff]
  %v30 = vld [vmem:[%s1] sm:$0xff]
  %v31 = vld [vmem:[%s1 + $0x8] sm:$0xff]
  %v32 = vld [vmem:[%s1 + $0x10] sm:$0xff]
  %v33 = vld [vmem:[%s1 + $0x18] sm:$0xff]
  %v34 = vld [vmem:[%s1 + $0x20] sm:$0xf]
  %v35 = vld [vmem:[%s1 + $0x24] sm:$0xff]
  %v36 = vld [vmem:[%s1 + $0x2c] sm:$0xff]
  %v37 = vld [vmem:[%s1 + $0x34] sm:$0xff]
  %v38 = vld [vmem:[%s1 + $0x3c] sm:$0xff]
  %v39 = vld [vmem:[%s1 + $0x44] sm:$0xf]
  %v40 = vld [vmem:[%s1 + $0x48] sm:$0xff]
  %v41 = vld [vmem:[%s1 + $0x50] sm:$0xff]
  %v42 = vld [vmem:[%s1 + $0x58] sm:$0xff]
  %v43 = vld [vmem:[%s1 + $0x60] sm:$0xff]
  %v44 = vld [vmem:[%s1 + $0x68] sm:$0xf]
  %v45 = vld [vmem:[%s1 + $0x6c] sm:$0xff]
  %v46 = vld [vmem:[%s1 + $0x74] sm:$0xff]
  %v47 = vld [vmem:[%s1 + $0x7c] sm:$0xff]
  %v48 = vld [vmem:[%s1 + $0x84] sm:$0xff]
  %v49 = vld [vmem:[%s1 + $0x8c] sm:$0xf]
  %v50 = vld [vmem:[%s1 + $0x90] sm:$0xff]
  %v51 = vld [vmem:[%s1 + $0x98] sm:$0xff]
  %v52 = vld [vmem:[%s1 + $0xa0] sm:$0xff]
  %v53 = vld [vmem:[%s1 + $0xa8] sm:$0xff]
  %v54 = vld [vmem:[%s1 + $0xb0] sm:$0xf]
  %v55 = vld [vmem:[%s1 + $0xb4] sm:$0xff]
  %v56 = vld [vmem:[%s1 + $0xbc] sm:$0xff]
  %v57 = vld [vmem:[%s1 + $0xc4] sm:$0xff]
  %v58 = vld [vmem:[%s1 + $0xcc] sm:$0xff]
  %v59 = vld [vmem:[%s1 + $0xd4] sm:$0xf]
  %v60 = vld [vmem:[%s1 + $0xd8] sm:$0xff]
  %v61 = vld [vmem:[%s1 + $0xe0] sm:$0xff]
  %v62 = vld [vmem:[%s1 + $0xe8] sm:$0xff]
  %v63 = vld [vmem:[%s1 + $0xf0] sm:$0xff]
  %v64 = vld [vmem:[%s1 + $0xf8] sm:$0xf]
  %v65 = vld [vmem:[%s1 + $0xfc] sm:$0xff]
  %v66 = vld [vmem:[%s1 + $0x104] sm:$0xff]
  %v67 = vld [vmem:[%s1 + $0x10c] sm:$0xff]
  %v68 = vld [vmem:[%s1 + $0x114] sm:$0xff]
  %v69 = vld [vmem:[%s1 + $0x11c] sm:$0xf]
  %v70 = vld [vmem:[%s1 + $0x120] sm:$0xff]
  %v71 = vld [vmem:[%s1 + $0x128] sm:$0xff]
  %v72 = vld [vmem:[%s1 + $0x130] sm:$0xff]
  %v73 = vld [vmem:[%s1 + $0x138] sm:$0xff]
  %v74 = vld [vmem:[%s1 + $0x140] sm:$0xf]
  %v75 = vld [vmem:[%s1 + $0x144] sm:$0xff]
  %v76 = vld [vmem:[%s1 + $0x14c] sm:$0xff]
  %v77 = vld [vmem:[%s1 + $0x154] sm:$0xff]
  %v78 = vld [vmem:[%s1 + $0x15c] sm:$0xff]
  %v79 = vld [vmem:[%s1 + $0x164] sm:$0xf]
  %v80 = vld [vmem:[%s1 + $0x168] sm:$0xff]
  %v81 = vld [vmem:[%s1 + $0x170] sm:$0xff]
  %v82 = vld [vmem:[%s1 + $0x178] sm:$0xff]
  %v83 = vld [vmem:[%s1 + $0x180] sm:$0xff]
  %v84 = vld [vmem:[%s1 + $0x188] sm:$0xf]
  %v85 = vld [vmem:[%s1 + $0x18c] sm:$0xff]
  %v86 = vld [vmem:[%s1 + $0x194] sm:$0xff]
  %v87 = vld [vmem:[%s1 + $0x19c] sm:$0xff]
  %v88 = vld [vmem:[%s1 + $0x1a4] sm:$0xff]
  %v89 = vld [vmem:[%s1 + $0x1ac] sm:$0xf]
  %v90 = vld [vmem:[%s1 + $0x1b0] sm:$0xff]
  %v91 = vld [vmem:[%s1 + $0x1b8] sm:$0xff]
  %v92 = vld [vmem:[%s1 + $0x1c0] sm:$0xff]
  %v93 = vld [vmem:[%s1 + $0x1c8] sm:$0xff]
  %v94 = vld [vmem:[%s1 + $0x1d0] sm:$0xf]
  %v95 = vld [vmem:[%s1 + $0x1d4] sm:$0xff]
  %v96 = vld [vmem:[%s1 + $0x1dc] sm:$0xff]
  %v97 = vld [vmem:[%s1 + $0x1e4] sm:$0xff]
  %v98 = vld [vmem:[%s1 + $0x1ec] sm:$0xff]
  %v99 = vld [vmem:[%s1 + $0x1f4] sm:$0xf]
  %v100 = vld [vmem:[%s1 + $0x1f8] sm:$0xff]
  %v101 = vld [vmem:[%s1 + $0x200] sm:$0xff]
  %v102 = vld [vmem:[%s1 + $0x208] sm:$0xff]
  %v103 = vld [vmem:[%s1 + $0x210] sm:$0xff]
  %v104 = vld [vmem:[%s1 + $0x218] sm:$0xf]
  %v105 = vld [vmem:[%s1 + $0x21c] sm:$0xff]
  %v106 = vld [vmem:[%s1 + $0x224] sm:$0xff]
  %v107 = vld [vmem:[%s1 + $0x22c] sm:$0xff]
  %v108 = vld [vmem:[%s1 + $0x234] sm:$0xff]
  %v109 = vld [vmem:[%s1 + $0x23c] sm:$0xf]
  %v110 = vld [vmem:[%s1 + $0x240] sm:$0xff]
  %v111 = vld [vmem:[%s1 + $0x248] sm:$0xff]
  %v112 = vld [vmem:[%s1 + $0x250] sm:$0xff]
  %v113 = vld [vmem:[%s1 + $0x258] sm:$0xff]
  %v114 = vld [vmem:[%s1 + $0x260] sm:$0xf]
  %v115 = vld [vmem:[%s1 + $0x264] sm:$0xff]
  %v116 = vld [vmem:[%s1 + $0x26c] sm:$0xff]
  %v117 = vld [vmem:[%s1 + $0x274] sm:$0xff]
  %v118 = vld [vmem:[%s1 + $0x27c] sm:$0xff]
  %v119 = vld [vmem:[%s1 + $0x284] sm:$0xf]
  %v120 = vld [vmem:[%s1 + $0x288] sm:$0xff]
  %v121 = vld [vmem:[%s1 + $0x290] sm:$0xff]
  %v122 = vld [vmem:[%s1 + $0x298] sm:$0xff]
  %v123 = vld [vmem:[%s1 + $0x2a0] sm:$0xff]
  %v124 = vld [vmem:[%s1 + $0x2a8] sm:$0xf]
  %v125 = vld [vmem:[%s1 + $0x2ac] sm:$0xff]
  %v126 = vld [vmem:[%s1 + $0x2b4] sm:$0xff]
  %v127 = vld [vmem:[%s1 + $0x2bc] sm:$0xff]
  %v128 = vld [vmem:[%s1 + $0x2c4] sm:$0xff]
  %v129 = vld [vmem:[%s1 + $0x2cc] sm:$0xf]
  %v130 = vld [vmem:[%s1 + $0x2d0] sm:$0xff]
  %v131 = vld [vmem:[%s1 + $0x2d8] sm:$0xff]
  %v132 = vld [vmem:[%s1 + $0x2e0] sm:$0xff]
  %v133 = vld [vmem:[%s1 + $0x2e8] sm:$0xff]
  %v134 = vld [vmem:[%s1 + $0x2f0] sm:$0xf]
  %v135 = vld [vmem:[%s1 + $0x2f4] sm:$0xff]
  %v136 = vld [vmem:[%s1 + $0x2fc] sm:$0xff]
  %v137 = vld [vmem:[%s1 + $0x304] sm:$0xff]
  %v138 = vld [vmem:[%s1 + $0x30c] sm:$0xff]
  %v139 = vld [vmem:[%s1 + $0x314] sm:$0xf]
  %v140 = vld [vmem:[%s1 + $0x318] sm:$0xff]
  %v141 = vld [vmem:[%s1 + $0x320] sm:$0xff]
  %v142 = vld [vmem:[%s1 + $0x328] sm:$0xff]
  %v143 = vld [vmem:[%s1 + $0x330] sm:$0xff]
  %v144 = vld [vmem:[%s1 + $0x338] sm:$0xf]
  %v145 = vld [vmem:[%s1 + $0x33c] sm:$0xff]
  %v146 = vld [vmem:[%s1 + $0x344] sm:$0xff]
  %v147 = vld [vmem:[%s1 + $0x34c] sm:$0xff]
  %v148 = vld [vmem:[%s1 + $0x354] sm:$0xff]
  %v149 = vld [vmem:[%s1 + $0x35c] sm:$0xf]
  %v150 = vld [vmem:[%s1 + $0x360] sm:$0xff]
  %v151 = vld [vmem:[%s1 + $0x368] sm:$0xff]
  %v152 = vld [vmem:[%s1 + $0x370] sm:$0xff]
  %v153 = vld [vmem:[%s1 + $0x378] sm:$0xff]
  %v154 = vld [vmem:[%s1 + $0x380] sm:$0xf]
  %v155 = vld [vmem:[%s1 + $0x384] sm:$0xff]
  %v156 = vld [vmem:[%s1 + $0x38c] sm:$0xff]
  %v157 = vld [vmem:[%s1 + $0x394] sm:$0xff]
  %v158 = vld [vmem:[%s1 + $0x39c] sm:$0xff]
  %v159 = vld [vmem:[%s1 + $0x3a4] sm:$0xf]
  %v160 = vld [vmem:[%s1 + $0x3a8] sm:$0xff]
  %v161 = vld [vmem:[%s1 + $0x3b0] sm:$0xff]
  %v162 = vld [vmem:[%s1 + $0x3b8] sm:$0xff]
  %v163 = vld [vmem:[%s1 + $0x3c0] sm:$0xff]
  %v164 = vld [vmem:[%s1 + $0x3c8] sm:$0xf]
  %v165 = vld [vmem:[%s1 + $0x3cc] sm:$0xff]
  %v166 = vld [vmem:[%s1 + $0x3d4] sm:$0xff]
  %v167 = vld [vmem:[%s1 + $0x3dc] sm:$0xff]
  %v168 = vld [vmem:[%s1 + $0x3e4] sm:$0xff]
  %v169 = vld [vmem:[%s1 + $0x3ec] sm:$0xf]
  %v170 = vld [vmem:[%s1 + $0x3f0] sm:$0xff]
  %v171 = vld [vmem:[%s1 + $0x3f8] sm:$0xff]
  %v172 = vld [vmem:[%s1 + $0x400] sm:$0xff]
  %v173 = vld [vmem:[%s1 + $0x408] sm:$0xff]
  %v174 = vld [vmem:[%s1 + $0x410] sm:$0xf]
  %v175 = vld [vmem:[%s1 + $0x414] sm:$0xff]
  %v176 = vld [vmem:[%s1 + $0x41c] sm:$0xff]
  %v177 = vld [vmem:[%s1 + $0x424] sm:$0xff]
  %v178 = vld [vmem:[%s1 + $0x42c] sm:$0xff]
  %v179 = vld [vmem:[%s1 + $0x434] sm:$0xf]
  %v180 = vld [vmem:[%s1 + $0x438] sm:$0xff]
  %v181 = vld [vmem:[%s1 + $0x440] sm:$0xff]
  %v182 = vld [vmem:[%s1 + $0x448] sm:$0xff]
  %v183 = vld [vmem:[%s1 + $0x450] sm:$0xff]
  %v184 = vld [vmem:[%s1 + $0x458] sm:$0xf]
  %v185 = vld [vmem:[%s1 + $0x45c] sm:$0xff]
  %v186 = vld [vmem:[%s1 + $0x464] sm:$0xff]
  %v187 = vld [vmem:[%s1 + $0x46c] sm:$0xff]
  %v188 = vld [vmem:[%s1 + $0x474] sm:$0xff]
  %v189 = vld [vmem:[%s1 + $0x47c] sm:$0xf]
  %v190 = vld [vmem:[%s1 + $0x480] sm:$0xff]
  %v191 = vld [vmem:[%s1 + $0x488] sm:$0xff]
  %v192 = vld [vmem:[%s1 + $0x490] sm:$0xff]
  %v193 = vld [vmem:[%s1 + $0x498] sm:$0xff]
  %v194 = vld [vmem:[%s1 + $0x4a0] sm:$0xf]
  %v195 = vld [vmem:[%s1 + $0x4a4] sm:$0xff]
  %v196 = vld [vmem:[%s1 + $0x4ac] sm:$0xff]
  %v197 = vld [vmem:[%s1 + $0x4b4] sm:$0xff]
  %v198 = vld [vmem:[%s1 + $0x4bc] sm:$0xff]
  %v199 = vld [vmem:[%s1 + $0x4c4] sm:$0xf]
  %v200 = vld [vmem:[%s1 + $0x4c8] sm:$0xff]
  %v201 = vld [vmem:[%s1 + $0x4d0] sm:$0xff]
  %v202 = vld [vmem:[%s1 + $0x4d8] sm:$0xff]
  %v203 = vld [vmem:[%s1 + $0x4e0] sm:$0xff]
  %v204 = vld [vmem:[%s1 + $0x4e8] sm:$0xf]
  %v205 = vld [vmem:[%s1 + $0x4ec] sm:$0xff]
  %v206 = vld [vmem:[%s1 + $0x4f4] sm:$0xff]
  %v207 = vld [vmem:[%s1 + $0x4fc] sm:$0xff]
  %v208 = vld [vmem:[%s1 + $0x504] sm:$0xff]
  %v209 = vld [vmem:[%s1 + $0x50c] sm:$0xf]
  %v210 = vld [vmem:[%s1 + $0x510] sm:$0xff]
  %v211 = vld [vmem:[%s1 + $0x518] sm:$0xff]
  %v212 = vld [vmem:[%s1 + $0x520] sm:$0xff]
  %v213 = vld [vmem:[%s1 + $0x528] sm:$0xff]
  %v214 = vld [vmem:[%s1 + $0x530] sm:$0xf]
  %v215 = vld [vmem:[%s1 + $0x534] sm:$0xff]
  %v216 = vld [vmem:[%s1 + $0x53c] sm:$0xff]
  %v217 = vld [vmem:[%s1 + $0x544] sm:$0xff]
  %v218 = vld [vmem:[%s1 + $0x54c] sm:$0xff]
  %v219 = vld [vmem:[%s1 + $0x554] sm:$0xf]
  %v220 = vld [vmem:[%s1 + $0x558] sm:$0xff]
  %v221 = vld [vmem:[%s1 + $0x560] sm:$0xff]
  %v222 = vld [vmem:[%s1 + $0x568] sm:$0xff]
  %v223 = vld [vmem:[%s1 + $0x570] sm:$0xff]
  %v224 = vld [vmem:[%s1 + $0x578] sm:$0xf]
  %v225 = vld [vmem:[%s1 + $0x57c] sm:$0xff]
  %v226 = vld [vmem:[%s1 + $0x584] sm:$0xff]
  %v227 = vld [vmem:[%s1 + $0x58c] sm:$0xff]
  %v228 = vld [vmem:[%s1 + $0x594] sm:$0xff]
  %v229 = vld [vmem:[%s1 + $0x59c] sm:$0xf]
  %v230 = vld [vmem:[%s1 + $0x5a0] sm:$0xff]
  %v231 = vld [vmem:[%s1 + $0x5a8] sm:$0xff]
  %v232 = vld [vmem:[%s1 + $0x5b0] sm:$0xff]
  %v233 = vld [vmem:[%s1 + $0x5b8] sm:$0xff]
  %v234 = vld [vmem:[%s1 + $0x5c0] sm:$0xf]
  %v235 = vld [vmem:[%s1 + $0x5c4] sm:$0xff]
  %v236 = vld [vmem:[%s1 + $0x5cc] sm:$0xff]
  %v237 = vld [vmem:[%s1 + $0x5d4] sm:$0xff]
  %v238 = vld [vmem:[%s1 + $0x5dc] sm:$0xff]
  %v239 = vld [vmem:[%s1 + $0x5e4] sm:$0xf]
  %v240 = vld [vmem:[%s1 + $0x5e8] sm:$0xff]
  %v241 = vld [vmem:[%s1 + $0x5f0] sm:$0xff]
  %v242 = vld [vmem:[%s1 + $0x5f8] sm:$0xff]
  %v243 = vld [vmem:[%s1 + $0x600] sm:$0xff]
  %v244 = vld [vmem:[%s1 + $0x608] sm:$0xf]
  %v245 = vld [vmem:[%s1 + $0x60c] sm:$0xff]
  %v246 = vld [vmem:[%s1 + $0x614] sm:$0xff]
  %v247 = vld [vmem:[%s1 + $0x61c] sm:$0xff]
  %v248 = vld [vmem:[%s1 + $0x624] sm:$0xff]
  %v249 = vld [vmem:[%s1 + $0x62c] sm:$0xf]
  %v250 = vld [vmem:[%s1 + $0x630] sm:$0xff]
  %v251 = vld [vmem:[%s1 + $0x638] sm:$0xff]
  %v252 = vld [vmem:[%s1 + $0x640] sm:$0xff]
  %v253 = vld [vmem:[%s1 + $0x648] sm:$0xff]
  %v254 = vld [vmem:[%s1 + $0x650] sm:$0xf]
  %v255 = vld [vmem:[%s1 + $0x654] sm:$0xff]
  %v256 = vld [vmem:[%s1 + $0x65c] sm:$0xff]
  %v257 = vld [vmem:[%s1 + $0x664] sm:$0xff]
  %v258 = vld [vmem:[%s1 + $0x66c] sm:$0xff]
  %v259 = vld [vmem:[%s1 + $0x674] sm:$0xf]
  %v260 = vld [vmem:[%s1 + $0x678] sm:$0xff]
  %v261 = vld [vmem:[%s1 + $0x680] sm:$0xff]
  %v262 = vld [vmem:[%s1 + $0x688] sm:$0xff]
  %v263 = vld [vmem:[%s1 + $0x690] sm:$0xff]
  %v264 = vld [vmem:[%s1 + $0x698] sm:$0xf]
  %v265 = vld [vmem:[%s1 + $0x69c] sm:$0xff]
  %v266 = vld [vmem:[%s1 + $0x6a4] sm:$0xff]
  %v267 = vld [vmem:[%s1 + $0x6ac] sm:$0xff]
  %v268 = vld [vmem:[%s1 + $0x6b4] sm:$0xff]
  %v269 = vld [vmem:[%s1 + $0x6bc] sm:$0xf]
  %v270 = vld [vmem:[%s1 + $0x6c0] sm:$0xff]
  %v271 = vld [vmem:[%s1 + $0x6c8] sm:$0xff]
  %v272 = vld [vmem:[%s1 + $0x6d0] sm:$0xff]
  %v273 = vld [vmem:[%s1 + $0x6d8] sm:$0xff]
  %v274 = vld [vmem:[%s1 + $0x6e0] sm:$0xf]
  %v275 = vld [vmem:[%s1 + $0x6e4] sm:$0xff]
  %v276 = vld [vmem:[%s1 + $0x6ec] sm:$0xff]
  %v277 = vld [vmem:[%s1 + $0x6f4] sm:$0xff]
  %v278 = vld [vmem:[%s1 + $0x6fc] sm:$0xff]
  %v279 = vld [vmem:[%s1 + $0x704] sm:$0xf]
  %v280 = vld [vmem:[%s1 + $0x708] sm:$0xff]
  %v281 = vld [vmem:[%s1 + $0x710] sm:$0xff]
  %v282 = vld [vmem:[%s1 + $0x718] sm:$0xff]
  %v283 = vld [vmem:[%s1 + $0x720] sm:$0xff]
  %v284 = vld [vmem:[%s1 + $0x728] sm:$0xf]
  %v285 = vld [vmem:[%s1 + $0x72c] sm:$0xff]
  %v286 = vld [vmem:[%s1 + $0x734] sm:$0xff]
  %v287 = vld [vmem:[%s1 + $0x73c] sm:$0xff]
  %v288 = vld [vmem:[%s1 + $0x744] sm:$0xff]
  %v289 = vld [vmem:[%s1 + $0x74c] sm:$0xf]
  %v290 = vld [vmem:[%s1 + $0x750] sm:$0xff]
  %v291 = vld [vmem:[%s1 + $0x758] sm:$0xff]
  %v292 = vld [vmem:[%s1 + $0x760] sm:$0xff]
  %v293 = vld [vmem:[%s1 + $0x768] sm:$0xff]
  %v294 = vld [vmem:[%s1 + $0x770] sm:$0xf]
  %v295 = vld [vmem:[%s1 + $0x774] sm:$0xff]
  %v296 = vld [vmem:[%s1 + $0x77c] sm:$0xff]
  %v297 = vld [vmem:[%s1 + $0x784] sm:$0xff]
  %v298 = vld [vmem:[%s1 + $0x78c] sm:$0xff]
  %v299 = vld [vmem:[%s1 + $0x794] sm:$0xf]
  %v300 = vld [vmem:[%s1 + $0x798] sm:$0xff]
  %v301 = vld [vmem:[%s1 + $0x7a0] sm:$0xff]
  %v302 = vld [vmem:[%s1 + $0x7a8] sm:$0xff]
  %v303 = vld [vmem:[%s1 + $0x7b0] sm:$0xff]
  %v304 = vld [vmem:[%s1 + $0x7b8] sm:$0xf]
  %v305 = vld [vmem:[%s1 + $0x7bc] sm:$0xff]
  %v306 = vld [vmem:[%s1 + $0x7c4] sm:$0xff]
  %v307 = vld [vmem:[%s1 + $0x7cc] sm:$0xff]
  %v308 = vld [vmem:[%s1 + $0x7d4] sm:$0xff]
  %v309 = vld [vmem:[%s1 + $0x7dc] sm:$0xf]
  %v310 = vld [vmem:[%s1 + $0x7e0] sm:$0xff]
  %v311 = vld [vmem:[%s1 + $0x7e8] sm:$0xff]
  %v312 = vld [vmem:[%s1 + $0x7f0] sm:$0xff]
  %v313 = vld [vmem:[%s1 + $0x7f8] sm:$0xff]
  %v314 = vld [vmem:[%s1 + $0x800] sm:$0xf]
  %v315 = vld [vmem:[%s1 + $0x804] sm:$0xff]
  %v316 = vld [vmem:[%s1 + $0x80c] sm:$0xff]
  %v317 = vld [vmem:[%s1 + $0x814] sm:$0xff]
  %v318 = vld [vmem:[%s1 + $0x81c] sm:$0xff]
  %v319 = vld [vmem:[%s1 + $0x824] sm:$0xf]
  %v320 = vld [vmem:[%s1 + $0x828] sm:$0xff]
  %v321 = vld [vmem:[%s1 + $0x830] sm:$0xff]
  %v322 = vld [vmem:[%s1 + $0x838] sm:$0xff]
  %v323 = vld [vmem:[%s1 + $0x840] sm:$0xff]
  %v324 = vld [vmem:[%s1 + $0x848] sm:$0xf]
  %v325 = vld [vmem:[%s1 + $0x84c] sm:$0xff]
  %v326 = vld [vmem:[%s1 + $0x854] sm:$0xff]
  %v327 = vld [vmem:[%s1 + $0x85c] sm:$0xff]
  %v328 = vld [vmem:[%s1 + $0x864] sm:$0xff]
  %v329 = vld [vmem:[%s1 + $0x86c] sm:$0xf]
  %v330 = vld [vmem:[%s1 + $0x870] sm:$0xff]
  %v331 = vld [vmem:[%s1 + $0x878] sm:$0xff]
  %v332 = vld [vmem:[%s1 + $0x880] sm:$0xff]
  %v333 = vld [vmem:[%s1 + $0x888] sm:$0xff]
  %v334 = vld [vmem:[%s1 + $0x890] sm:$0xf]
  %v335 = vld [vmem:[%s1 + $0x894] sm:$0xff]
  %v336 = vld [vmem:[%s1 + $0x89c] sm:$0xff]
  %v337 = vld [vmem:[%s1 + $0x8a4] sm:$0xff]
  %v338 = vld [vmem:[%s1 + $0x8ac] sm:$0xff]
  %v339 = vld [vmem:[%s1 + $0x8b4] sm:$0xf]
  %v340 = vld [vmem:[%s1 + $0x8b8] sm:$0xff]
  %v341 = vld [vmem:[%s1 + $0x8c0] sm:$0xff]
  %v342 = vld [vmem:[%s1 + $0x8c8] sm:$0xff]
  %v343 = vld [vmem:[%s1 + $0x8d0] sm:$0xff]
  %v344 = vld [vmem:[%s1 + $0x8d8] sm:$0xf]
  %v345 = vld [vmem:[%s1 + $0x8dc] sm:$0xff]
  %v346 = vld [vmem:[%s1 + $0x8e4] sm:$0xff]
  %v347 = vld [vmem:[%s1 + $0x8ec] sm:$0xff]
  %v348 = vld [vmem:[%s1 + $0x8f4] sm:$0xff]
  %v349 = vld [vmem:[%s1 + $0x8fc] sm:$0xf]
  %v350 = vld [vmem:[%s1 + $0x900] sm:$0xff]
  %v351 = vld [vmem:[%s1 + $0x908] sm:$0xff]
  %v352 = vld [vmem:[%s1 + $0x910] sm:$0xff]
  %v353 = vld [vmem:[%s1 + $0x918] sm:$0xff]
  %v354 = vld [vmem:[%s1 + $0x920] sm:$0xf]
  %v355 = vld [vmem:[%s1 + $0x924] sm:$0xff]
  %v356 = vld [vmem:[%s1 + $0x92c] sm:$0xff]
  %v357 = vld [vmem:[%s1 + $0x934] sm:$0xff]
  %v358 = vld [vmem:[%s1 + $0x93c] sm:$0xff]
  %v359 = vld [vmem:[%s1 + $0x944] sm:$0xf]
  %v360 = vld [vmem:[%s1 + $0x948] sm:$0xff]
  %v361 = vld [vmem:[%s1 + $0x950] sm:$0xff]
  %v362 = vld [vmem:[%s1 + $0x958] sm:$0xff]
  %v363 = vld [vmem:[%s1 + $0x960] sm:$0xff]
  %v364 = vld [vmem:[%s1 + $0x968] sm:$0xf]
  %v365 = vld [vmem:[%s1 + $0x96c] sm:$0xff]
  %v366 = vld [vmem:[%s1 + $0x974] sm:$0xff]
  %v367 = vld [vmem:[%s1 + $0x97c] sm:$0xff]
  %v368 = vld [vmem:[%s1 + $0x984] sm:$0xff]
  %v369 = vld [vmem:[%s1 + $0x98c] sm:$0xf]
  %v370 = vld [vmem:[%s1 + $0x990] sm:$0xff]
  %v371 = vld [vmem:[%s1 + $0x998] sm:$0xff]
  %v372 = vld [vmem:[%s1 + $0x9a0] sm:$0xff]
  %v373 = vld [vmem:[%s1 + $0x9a8] sm:$0xff]
  %v374 = vld [vmem:[%s1 + $0x9b0] sm:$0xf]
  %v375 = vld [vmem:[%s1 + $0x9b4] sm:$0xff]
  %v376 = vld [vmem:[%s1 + $0x9bc] sm:$0xff]
  %v377 = vld [vmem:[%s1 + $0x9c4] sm:$0xff]
  %v378 = vld [vmem:[%s1 + $0x9cc] sm:$0xff]
  %v379 = vld [vmem:[%s1 + $0x9d4] sm:$0xf]
  %v380 = vld [vmem:[%s1 + $0x9d8] sm:$0xff]
  %v381 = vld [vmem:[%s1 + $0x9e0] sm:$0xff]
  %v382 = vld [vmem:[%s1 + $0x9e8] sm:$0xff]
  %v383 = vld [vmem:[%s1 + $0x9f0] sm:$0xff]
  %v384 = vld [vmem:[%s1 + $0x9f8] sm:$0xf]
  %v385 = vld [vmem:[%s1 + $0x9fc] sm:$0xff]
  %v386 = vld [vmem:[%s1 + $0xa04] sm:$0xff]
  %v387 = vld [vmem:[%s1 + $0xa0c] sm:$0xff]
  %v388 = vld [vmem:[%s1 + $0xa14] sm:$0xff]
  %v389 = vld [vmem:[%s1 + $0xa1c] sm:$0xf]
  %v390 = vld [vmem:[%s1 + $0xa20] sm:$0xff]
  %v391 = vld [vmem:[%s1 + $0xa28] sm:$0xff]
  %v392 = vld [vmem:[%s1 + $0xa30] sm:$0xff]
  %v393 = vld [vmem:[%s1 + $0xa38] sm:$0xff]
  %v394 = vld [vmem:[%s1 + $0xa40] sm:$0xf]
  %v395 = vld [vmem:[%s1 + $0xa44] sm:$0xff]
  %v396 = vld [vmem:[%s1 + $0xa4c] sm:$0xff]
  %v397 = vld [vmem:[%s1 + $0xa54] sm:$0xff]
  %v398 = vld [vmem:[%s1 + $0xa5c] sm:$0xff]
  %v399 = vld [vmem:[%s1 + $0xa64] sm:$0xf]
  %v400 = vld [vmem:[%s1 + $0xa68] sm:$0xff]
  %v401 = vld [vmem:[%s1 + $0xa70] sm:$0xff]
  %v402 = vld [vmem:[%s1 + $0xa78] sm:$0xff]
  %v403 = vld [vmem:[%s1 + $0xa80] sm:$0xff]
  %v404 = vld [vmem:[%s1 + $0xa88] sm:$0xf]
  %v405 = vld [vmem:[%s1 + $0xa8c] sm:$0xff]
  %v406 = vld [vmem:[%s1 + $0xa94] sm:$0xff]
  %v407 = vld [vmem:[%s1 + $0xa9c] sm:$0xff]
  %v408 = vld [vmem:[%s1 + $0xaa4] sm:$0xff]
  %v409 = vld [vmem:[%s1 + $0xaac] sm:$0xf]
  %v410 = vld [vmem:[%s1 + $0xab0] sm:$0xff]
  %v411 = vld [vmem:[%s1 + $0xab8] sm:$0xff]
  %v412 = vld [vmem:[%s1 + $0xac0] sm:$0xff]
  %v413 = vld [vmem:[%s1 + $0xac8] sm:$0xff]
  %v414 = vld [vmem:[%s1 + $0xad0] sm:$0xf]
  %v415 = vld [vmem:[%s1 + $0xad4] sm:$0xff]
  %v416 = vld [vmem:[%s1 + $0xadc] sm:$0xff]
  %v417 = vld [vmem:[%s1 + $0xae4] sm:$0xff]
  %v418 = vld [vmem:[%s1 + $0xaec] sm:$0xff]
  %v419 = vld [vmem:[%s1 + $0xaf4] sm:$0xf]
  %v420 = vld [vmem:[%s1 + $0xaf8] sm:$0xff]
  %v421 = vld [vmem:[%s1 + $0xb00] sm:$0xff]
  %v422 = vld [vmem:[%s1 + $0xb08] sm:$0xff]
  %v423 = vld [vmem:[%s1 + $0xb10] sm:$0xff]
  %v424 = vld [vmem:[%s1 + $0xb18] sm:$0xf]
  %v425 = vld [vmem:[%s1 + $0xb1c] sm:$0xff]
  %v426 = vld [vmem:[%s1 + $0xb24] sm:$0xff]
  %v427 = vld [vmem:[%s1 + $0xb2c] sm:$0xff]
  %v428 = vld [vmem:[%s1 + $0xb34] sm:$0xff]
  %v429 = vld [vmem:[%s1 + $0xb3c] sm:$0xf]
  %v430 = vld [vmem:[%s1 + $0xb40] sm:$0xff]
  %v431 = vld [vmem:[%s1 + $0xb48] sm:$0xff]
  %v432 = vld [vmem:[%s1 + $0xb50] sm:$0xff]
  %v433 = vld [vmem:[%s1 + $0xb58] sm:$0xff]
  %v434 = vld [vmem:[%s1 + $0xb60] sm:$0xf]
  %v435 = vld [vmem:[%s1 + $0xb64] sm:$0xff]
  %v436 = vld [vmem:[%s1 + $0xb6c] sm:$0xff]
  %v437 = vld [vmem:[%s1 + $0xb74] sm:$0xff]
  %v438 = vld [vmem:[%s1 + $0xb7c] sm:$0xff]
  %v439 = vld [vmem:[%s1 + $0xb84] sm:$0xf]
  %v440 = vld [vmem:[%s1 + $0xb88] sm:$0xff]
  %v441 = vld [vmem:[%s1 + $0xb90] sm:$0xff]
  %v442 = vld [vmem:[%s1 + $0xb98] sm:$0xff]
  %v443 = vld [vmem:[%s1 + $0xba0] sm:$0xff]
  %v444 = vld [vmem:[%s1 + $0xba8] sm:$0xf]
  %v445 = vld [vmem:[%s1 + $0xbac] sm:$0xff]
  %v446 = vld [vmem:[%s1 + $0xbb4] sm:$0xff]
  %v447 = vld [vmem:[%s1 + $0xbbc] sm:$0xff]
  %v448 = vld [vmem:[%s1 + $0xbc4] sm:$0xff]
  %v449 = vld [vmem:[%s1 + $0xbcc] sm:$0xf]
  %v450 = vld [vmem:[%s1 + $0xbd0] sm:$0xff]
  %v451 = vld [vmem:[%s1 + $0xbd8] sm:$0xff]
  %v452 = vld [vmem:[%s1 + $0xbe0] sm:$0xff]
  %v453 = vld [vmem:[%s1 + $0xbe8] sm:$0xff]
  %v454 = vld [vmem:[%s1 + $0xbf0] sm:$0xf]
  %v455 = vld [vmem:[%s1 + $0xbf4] sm:$0xff]
  %v456 = vld [vmem:[%s1 + $0xbfc] sm:$0xff]
  %v457 = vld [vmem:[%s1 + $0xc04] sm:$0xff]
  %v458 = vld [vmem:[%s1 + $0xc0c] sm:$0xff]
  %v459 = vld [vmem:[%s1 + $0xc14] sm:$0xf]
  %v460 = vld [vmem:[%s1 + $0xc18] sm:$0xff]
  %v461 = vld [vmem:[%s1 + $0xc20] sm:$0xff]
  %v462 = vld [vmem:[%s1 + $0xc28] sm:$0xff]
  %v463 = vld [vmem:[%s1 + $0xc30] sm:$0xff]
  %v464 = vld [vmem:[%s1 + $0xc38] sm:$0xf]
  %v465 = vld [vmem:[%s1 + $0xc3c] sm:$0xff]
  %v466 = vld [vmem:[%s1 + $0xc44] sm:$0xff]
  %v467 = vld [vmem:[%s1 + $0xc4c] sm:$0xff]
  %v468 = vld [vmem:[%s1 + $0xc54] sm:$0xff]
  %v469 = vld [vmem:[%s1 + $0xc5c] sm:$0xf]
  %v470 = vld [vmem:[%s1 + $0xc60] sm:$0xff]
  %v471 = vld [vmem:[%s1 + $0xc68] sm:$0xff]
  %v472 = vld [vmem:[%s1 + $0xc70] sm:$0xff]
  %v473 = vld [vmem:[%s1 + $0xc78] sm:$0xff]
  %v474 = vld [vmem:[%s1 + $0xc80] sm:$0xf]
  %v475 = vld [vmem:[%s1 + $0xc84] sm:$0xff]
  %v476 = vld [vmem:[%s1 + $0xc8c] sm:$0xff]
  %v477 = vld [vmem:[%s1 + $0xc94] sm:$0xff]
  %v478 = vld [vmem:[%s1 + $0xc9c] sm:$0xff]
  %v479 = vld [vmem:[%s1 + $0xca4] sm:$0xf]
  %v480 = vld [vmem:[%s1 + $0xca8] sm:$0xff]
  %v481 = vld [vmem:[%s1 + $0xcb0] sm:$0xff]
  %v482 = vld [vmem:[%s1 + $0xcb8] sm:$0xff]
  %v483 = vld [vmem:[%s1 + $0xcc0] sm:$0xff]
  %v484 = vld [vmem:[%s1 + $0xcc8] sm:$0xf]
  %v485 = vld [vmem:[%s1 + $0xccc] sm:$0xff]
  %v486 = vld [vmem:[%s1 + $0xcd4] sm:$0xff]
  %v487 = vld [vmem:[%s1 + $0xcdc] sm:$0xff]
  %v488 = vld [vmem:[%s1 + $0xce4] sm:$0xff]
  %v489 = vld [vmem:[%s1 + $0xcec] sm:$0xf]
  %v490 = vld [vmem:[%s1 + $0xcf0] sm:$0xff]
  %v491 = vld [vmem:[%s1 + $0xcf8] sm:$0xff]
  %v492 = vld [vmem:[%s1 + $0xd00] sm:$0xff]
  %v493 = vld [vmem:[%s1 + $0xd08] sm:$0xff]
  %v494 = vld [vmem:[%s1 + $0xd10] sm:$0xf]
  %v495 = vld [vmem:[%s1 + $0xd14] sm:$0xff]
  %v496 = vld [vmem:[%s1 + $0xd1c] sm:$0xff]
  %v497 = vld [vmem:[%s1 + $0xd24] sm:$0xff]
  %v498 = vld [vmem:[%s1 + $0xd2c] sm:$0xff]
  %v499 = vld [vmem:[%s1 + $0xd34] sm:$0xf]
  %v500 = vld [vmem:[%s1 + $0xd38] sm:$0xff]
  %v501 = vld [vmem:[%s1 + $0xd40] sm:$0xff]
  %v502 = vld [vmem:[%s1 + $0xd48] sm:$0xff]
  %v503 = vld [vmem:[%s1 + $0xd50] sm:$0xff]
  %v504 = vld [vmem:[%s1 + $0xd58] sm:$0xf]
  %v505 = vld [vmem:[%s1 + $0xd5c] sm:$0xff]
  %v506 = vld [vmem:[%s1 + $0xd64] sm:$0xff]
  %v507 = vld [vmem:[%s1 + $0xd6c] sm:$0xff]
  %v508 = vld [vmem:[%s1 + $0xd74] sm:$0xff]
  %v509 = vld [vmem:[%s1 + $0xd7c] sm:$0xf]
  %v510 = vld [vmem:[%s1 + $0xd80] sm:$0xff]
  %v511 = vld [vmem:[%s1 + $0xd88] sm:$0xff]
  %v512 = vld [vmem:[%s1 + $0xd90] sm:$0xff]
  %v513 = vld [vmem:[%s1 + $0xd98] sm:$0xff]
  %v514 = vld [vmem:[%s1 + $0xda0] sm:$0xf]
  %v515 = vld [vmem:[%s1 + $0xda4] sm:$0xff]
  %v516 = vld [vmem:[%s1 + $0xdac] sm:$0xff]
  %v517 = vld [vmem:[%s1 + $0xdb4] sm:$0xff]
  %v518 = vld [vmem:[%s1 + $0xdbc] sm:$0xff]
  %v519 = vld [vmem:[%s1 + $0xdc4] sm:$0xf]
  %v520 = vld [vmem:[%s1 + $0xdc8] sm:$0xff]
  %v521 = vld [vmem:[%s1 + $0xdd0] sm:$0xff]
  %v522 = vld [vmem:[%s1 + $0xdd8] sm:$0xff]
  %v523 = vld [vmem:[%s1 + $0xde0] sm:$0xff]
  %v524 = vld [vmem:[%s1 + $0xde8] sm:$0xf]
  %v525 = vld [vmem:[%s1 + $0xdec] sm:$0xff]
  %v526 = vld [vmem:[%s1 + $0xdf4] sm:$0xff]
  %v527 = vld [vmem:[%s1 + $0xdfc] sm:$0xff]
  %v528 = vld [vmem:[%s1 + $0xe04] sm:$0xff]
  %v529 = vld [vmem:[%s1 + $0xe0c] sm:$0xf]
  %v530 = vld [vmem:[%s1 + $0xe10] sm:$0xff]
  %v531 = vld [vmem:[%s1 + $0xe18] sm:$0xff]
  %v532 = vld [vmem:[%s1 + $0xe20] sm:$0xff]
  %v533 = vld [vmem:[%s1 + $0xe28] sm:$0xff]
  %v534 = vld [vmem:[%s1 + $0xe30] sm:$0xf]
  %v535 = vld [vmem:[%s1 + $0xe34] sm:$0xff]
  %v536 = vld [vmem:[%s1 + $0xe3c] sm:$0xff]
  %v537 = vld [vmem:[%s1 + $0xe44] sm:$0xff]
  %v538 = vld [vmem:[%s1 + $0xe4c] sm:$0xff]
  %v539 = vld [vmem:[%s1 + $0xe54] sm:$0xf]
  %v540 = vld [vmem:[%s1 + $0xe58] sm:$0xff]
  %v541 = vld [vmem:[%s1 + $0xe60] sm:$0xff]
  %v542 = vld [vmem:[%s1 + $0xe68] sm:$0xff]
  %v543 = vld [vmem:[%s1 + $0xe70] sm:$0xff]
  %v544 = vld [vmem:[%s1 + $0xe78] sm:$0xf]
  %v545 = vld [vmem:[%s1 + $0xe7c] sm:$0xff]
  %v546 = vld [vmem:[%s1 + $0xe84] sm:$0xff]
  %v547 = vld [vmem:[%s1 + $0xe8c] sm:$0xff]
  %v548 = vld [vmem:[%s1 + $0xe94] sm:$0xff]
  %v549 = vld [vmem:[%s1 + $0xe9c] sm:$0xf]
  %v550 = vld [vmem:[%s1 + $0xea0] sm:$0xff]
  %v551 = vld [vmem:[%s1 + $0xea8] sm:$0xff]
  %v552 = vld [vmem:[%s1 + $0xeb0] sm:$0xff]
  %v553 = vld [vmem:[%s1 + $0xeb8] sm:$0xff]
  %v554 = vld [vmem:[%s1 + $0xec0] sm:$0xf]
  %v555 = vld [vmem:[%s1 + $0xec4] sm:$0xff]
  %v556 = vld [vmem:[%s1 + $0xecc] sm:$0xff]
  %v557 = vld [vmem:[%s1 + $0xed4] sm:$0xff]
  %v558 = vld [vmem:[%s1 + $0xedc] sm:$0xff]
  %v559 = vld [vmem:[%s1 + $0xee4] sm:$0xf]
  %v560 = vld [vmem:[%s1 + $0xee8] sm:$0xff]
  %v561 = vld [vmem:[%s1 + $0xef0] sm:$0xff]
  %v562 = vld [vmem:[%s1 + $0xef8] sm:$0xff]
  %v563 = vld [vmem:[%s1 + $0xf00] sm:$0xff]
  %v564 = vld [vmem:[%s1 + $0xf08] sm:$0xf]
  %v565 = vld [vmem:[%s1 + $0xf0c] sm:$0xff]
  %v566 = vld [vmem:[%s1 + $0xf14] sm:$0xff]
  %v567 = vld [vmem:[%s1 + $0xf1c] sm:$0xff]
  %v568 = vld [vmem:[%s1 + $0xf24] sm:$0xff]
  %v569 = vld [vmem:[%s1 + $0xf2c] sm:$0xf]
  %v570 = vld [vmem:[%s1 + $0xf30] sm:$0xff]
  %v571 = vld [vmem:[%s1 + $0xf38] sm:$0xff]
  %v572 = vld [vmem:[%s1 + $0xf40] sm:$0xff]
  %v573 = vld [vmem:[%s1 + $0xf48] sm:$0xff]
  %v574 = vld [vmem:[%s1 + $0xf50] sm:$0xf]
  %v575 = vld [vmem:[%s1 + $0xf54] sm:$0xff]
  %v576 = vld [vmem:[%s1 + $0xf5c] sm:$0xff]
  %v577 = vld [vmem:[%s1 + $0xf64] sm:$0xff]
  %v578 = vld [vmem:[%s1 + $0xf6c] sm:$0xff]
  %v579 = vld [vmem:[%s1 + $0xf74] sm:$0xf]
  %v580 = vld [vmem:[%s1 + $0xf78] sm:$0xff]
  %v581 = vld [vmem:[%s1 + $0xf80] sm:$0xff]
  %v582 = vld [vmem:[%s1 + $0xf88] sm:$0xff]
  %v583 = vld [vmem:[%s1 + $0xf90] sm:$0xff]
  %v584 = vld [vmem:[%s1 + $0xf98] sm:$0xf]
  %v585 = vld [vmem:[%s1 + $0xf9c] sm:$0xff]
  %v586 = vld [vmem:[%s1 + $0xfa4] sm:$0xff]
  %v587 = vld [vmem:[%s1 + $0xfac] sm:$0xff]
  %v588 = vld [vmem:[%s1 + $0xfb4] sm:$0xff]
  %v589 = vld [vmem:[%s1 + $0xfbc] sm:$0xf]
  %v590 = vld [vmem:[%s1 + $0xfc0] sm:$0xff]
  %v591 = vld [vmem:[%s1 + $0xfc8] sm:$0xff]
  %v592 = vld [vmem:[%s1 + $0xfd0] sm:$0xff]
  %v593 = vld [vmem:[%s1 + $0xfd8] sm:$0xff]
  %v594 = vld [vmem:[%s1 + $0xfe0] sm:$0xf]
  %v595 = vld [vmem:[%s1 + $0xfe4] sm:$0xff]
  %v596 = vld [vmem:[%s1 + $0xfec] sm:$0xff]
  %v597 = vld [vmem:[%s1 + $0xff4] sm:$0xff]
  %v598 = vld [vmem:[%s1 + $0xffc] sm:$0xff]
  %v599 = vld [vmem:[%s1 + $0x1004] sm:$0xf]
  %v600 = vld [vmem:[%s1 + $0x1008] sm:$0xff]
  %v601 = vld [vmem:[%s1 + $0x1010] sm:$0xff]
  %v602 = vld [vmem:[%s1 + $0x1018] sm:$0xff]
  %v603 = vld [vmem:[%s1 + $0x1020] sm:$0xff]
  %v604 = vld [vmem:[%s1 + $0x1028] sm:$0xf]
  %v605 = vld [vmem:[%s1 + $0x102c] sm:$0xff]
  %v606 = vld [vmem:[%s1 + $0x1034] sm:$0xff]
  %v607 = vld [vmem:[%s1 + $0x103c] sm:$0xff]
  %v608 = vld [vmem:[%s1 + $0x1044] sm:$0xff]
  %v609 = vld [vmem:[%s1 + $0x104c] sm:$0xf]
  %v610 = vld [vmem:[%s1 + $0x1050] sm:$0xff]
  %v611 = vld [vmem:[%s1 + $0x1058] sm:$0xff]
  %v612 = vld [vmem:[%s1 + $0x1060] sm:$0xff]
  %v613 = vld [vmem:[%s1 + $0x1068] sm:$0xff]
  %v614 = vld [vmem:[%s1 + $0x1070] sm:$0xf]
  %v615 = vld [vmem:[%s1 + $0x1074] sm:$0xff]
  %v616 = vld [vmem:[%s1 + $0x107c] sm:$0xff]
  %v617 = vld [vmem:[%s1 + $0x1084] sm:$0xff]
  %v618 = vld [vmem:[%s1 + $0x108c] sm:$0xff]
  %v619 = vld [vmem:[%s1 + $0x1094] sm:$0xf]
  %v620 = vld [vmem:[%s1 + $0x1098] sm:$0xff]
  %v621 = vld [vmem:[%s1 + $0x10a0] sm:$0xff]
  %v622 = vld [vmem:[%s1 + $0x10a8] sm:$0xff]
  %v623 = vld [vmem:[%s1 + $0x10b0] sm:$0xff]
  %v624 = vld [vmem:[%s1 + $0x10b8] sm:$0xf]
  %v625 = vld [vmem:[%s1 + $0x10bc] sm:$0xff]
  %v626 = vld [vmem:[%s1 + $0x10c4] sm:$0xff]
  %v627 = vld [vmem:[%s1 + $0x10cc] sm:$0xff]
  %v628 = vld [vmem:[%s1 + $0x10d4] sm:$0xff]
  %v629 = vld [vmem:[%s1 + $0x10dc] sm:$0xf]
  %v630 = vld [vmem:[%s1 + $0x10e0] sm:$0xff]
  %v631 = vld [vmem:[%s1 + $0x10e8] sm:$0xff]
  %v632 = vld [vmem:[%s1 + $0x10f0] sm:$0xff]
  %v633 = vld [vmem:[%s1 + $0x10f8] sm:$0xff]
  %v634 = vld [vmem:[%s1 + $0x1100] sm:$0xf]
  %v635 = vld [vmem:[%s1 + $0x1104] sm:$0xff]
  %v636 = vld [vmem:[%s1 + $0x110c] sm:$0xff]
  %v637 = vld [vmem:[%s1 + $0x1114] sm:$0xff]
  %v638 = vld [vmem:[%s1 + $0x111c] sm:$0xff]
  %v639 = vld [vmem:[%s1 + $0x1124] sm:$0xf]
  %v640 = vld [vmem:[%s1 + $0x1128] sm:$0xff]
  %v641 = vld [vmem:[%s1 + $0x1130] sm:$0xff]
  %v642 = vld [vmem:[%s1 + $0x1138] sm:$0xff]
  %v643 = vld [vmem:[%s1 + $0x1140] sm:$0xff]
  %v644 = vld [vmem:[%s1 + $0x1148] sm:$0xf]
  %v645 = vld [vmem:[%s1 + $0x114c] sm:$0xff]
  %v646 = vld [vmem:[%s1 + $0x1154] sm:$0xff]
  %v647 = vld [vmem:[%s1 + $0x115c] sm:$0xff]
  %v648 = vld [vmem:[%s1 + $0x1164] sm:$0xff]
  %v649 = vld [vmem:[%s1 + $0x116c] sm:$0xf]
  %v650 = vld [vmem:[%s1 + $0x1170] sm:$0xff]
  %v651 = vld [vmem:[%s1 + $0x1178] sm:$0xff]
  %v652 = vld [vmem:[%s1 + $0x1180] sm:$0xff]
  %v653 = vld [vmem:[%s1 + $0x1188] sm:$0xff]
  %v654 = vld [vmem:[%s1 + $0x1190] sm:$0xf]
  %v655 = vld [vmem:[%s1 + $0x1194] sm:$0xff]
  %v656 = vld [vmem:[%s1 + $0x119c] sm:$0xff]
  %v657 = vld [vmem:[%s1 + $0x11a4] sm:$0xff]
  %v658 = vld [vmem:[%s1 + $0x11ac] sm:$0xff]
  %v659 = vld [vmem:[%s1 + $0x11b4] sm:$0xf]
  %v660 = vld [vmem:[%s1 + $0x11b8] sm:$0xff]
  %v661 = vld [vmem:[%s1 + $0x11c0] sm:$0xff]
  %v662 = vld [vmem:[%s1 + $0x11c8] sm:$0xff]
  %v663 = vld [vmem:[%s1 + $0x11d0] sm:$0xff]
  %v664 = vld [vmem:[%s1 + $0x11d8] sm:$0xf]
  %v665 = vld [vmem:[%s1 + $0x11dc] sm:$0xff]
  %v666 = vld [vmem:[%s1 + $0x11e4] sm:$0xff]
  %v667 = vld [vmem:[%s1 + $0x11ec] sm:$0xff]
  %v668 = vld [vmem:[%s1 + $0x11f4] sm:$0xff]
  %v669 = vld [vmem:[%s1 + $0x11fc] sm:$0xf]
  %v670 = vld [vmem:[%s2] sm:$0xff]
  %v671 = vld [vmem:[%s2 + $0x8] sm:$0x1]
  %v674 = vlaneseq
  %v675 = vshrl.u32 %v674, 7
  %v676 = vsub.s32 0, %v675
  %v677 = vrot.slane %v670, %v676
  %v678 = vlaneseq
  %v679 = vshrl.u32 %v678, 7
  %v680 = vsub.s32 1, %v679
  %v681 = vrot.slane %v670, %v680
  %v682 = vlaneseq
  %v683 = vshrl.u32 %v682, 7
  %v684 = vsub.s32 2, %v683
  %v685 = vrot.slane %v670, %v684
  %v686 = vlaneseq
  %v687 = vshrl.u32 %v686, 7
  %v688 = vsub.s32 3, %v687
  %v689 = vrot.slane %v670, %v688
  %v690 = vlaneseq
  %v691 = vshrl.u32 %v690, 7
  %v692 = vsub.s32 4, %v691
  %v693 = vrot.slane %v670, %v692
  %v694 = vlaneseq
  %v695 = vshrl.u32 %v694, 7
  %v696 = vsub.s32 5, %v695
  %v697 = vrot.slane %v670, %v696
  %v698 = vlaneseq
  %v699 = vshrl.u32 %v698, 7
  %v700 = vsub.s32 6, %v699
  %v701 = vrot.slane %v670, %v700
  %v702 = vlaneseq
  %v703 = vshrl.u32 %v702, 7
  %v704 = vsub.s32 7, %v703
  %v705 = vrot.slane %v670, %v704
  %v706 = vlaneseq
  %v707 = vshrl.u32 %v706, 7
  %v708 = vsub.s32 0, %v707
  %v709 = vrot.slane %v671, %v708
  %v720 = vcombine.high %v29, %v29
  %v722 = vunpack.c.l.s4 1966171168
  %v723 = vunpack.c.0.s8 %v722
  %v724 = vlaneseq
  %v725 = vshrl.u32 %v724, 7
  %v726 = vsub.s32 %v723, %v725
  %v727 = vrot.slane %v29, %v726
  %v729 = vunpack.c.l.s4 1966171168
  %v730 = vunpack.c.0.s8 %v729
  %v731 = vlaneseq
  %v732 = vshrl.u32 %v731, 7
  %v733 = vsub.s32 %v730, %v732
  %v734 = vrot.slane %v720, %v733
  %v735 = vcombine.high %v727, %v727
  %v736 = vcombine.high %v734, %v734
  %v738 = vunpack.c.l.s4 1966171168
  %v739 = vunpack.c.0.s8 %v738
  %v740 = vlaneseq
  %v741 = vshrl.u32 %v740, 7
  %v742 = vsub.s32 %v739, %v741
  %v743 = vrot.slane %v727, %v742
  %v745 = vunpack.c.l.s4 1966171168
  %v746 = vunpack.c.0.s8 %v745
  %v747 = vlaneseq
  %v748 = vshrl.u32 %v747, 7
  %v749 = vsub.s32 %v746, %v748
  %v750 = vrot.slane %v734, %v749
  %v752 = vunpack.c.l.s4 1966171168
  %v753 = vunpack.c.0.s8 %v752
  %v754 = vlaneseq
  %v755 = vshrl.u32 %v754, 7
  %v756 = vsub.s32 %v753, %v755
  %v757 = vrot.slane %v735, %v756
  %v759 = vunpack.c.l.s4 1966171168
  %v760 = vunpack.c.0.s8 %v759
  %v761 = vlaneseq
  %v762 = vshrl.u32 %v761, 7
  %v763 = vsub.s32 %v760, %v762
  %v764 = vrot.slane %v736, %v763
  %v765 = vcombine.high %v743, %v743
  %v766 = vcombine.high %v750, %v750
  %v767 = vcombine.high %v757, %v757
  %v768 = vcombine.high %v764, %v764
  %v1417 = vunpack.c.l.b16 %v30
  %v1418 = vunpack.c.h.b16 %v30
  %v1419 = vunpack.c.l.b16 %v31
  %v1420 = vunpack.c.h.b16 %v31
  %v1421 = vunpack.c.l.b16 %v32
  %v1422 = vunpack.c.h.b16 %v32
  %v1423 = vunpack.c.l.b16 %v33
  %v1424 = vunpack.c.h.b16 %v33
  %v1425 = vunpack.c.l.b16 %v34
  %v1426 = vunpack.c.l.b16 %v35
  %v1427 = vunpack.c.h.b16 %v35
  %v1428 = vunpack.c.l.b16 %v36
  %v1429 = vunpack.c.h.b16 %v36
  %v1430 = vunpack.c.l.b16 %v37
  %v1431 = vunpack.c.h.b16 %v37
  %v1432 = vunpack.c.l.b16 %v38
  %v1433 = vunpack.c.h.b16 %v38
  %v1434 = vunpack.c.l.b16 %v39
  %v1435 = vunpack.c.l.b16 %v40
  %v1436 = vunpack.c.h.b16 %v40
  %v1437 = vunpack.c.l.b16 %v41
  %v1438 = vunpack.c.h.b16 %v41
  %v1439 = vunpack.c.l.b16 %v42
  %v1440 = vunpack.c.h.b16 %v42
  %v1441 = vunpack.c.l.b16 %v43
  %v1442 = vunpack.c.h.b16 %v43
  %v1443 = vunpack.c.l.b16 %v44
  %v1444 = vunpack.c.l.b16 %v45
  %v1445 = vunpack.c.h.b16 %v45
  %v1446 = vunpack.c.l.b16 %v46
  %v1447 = vunpack.c.h.b16 %v46
  %v1448 = vunpack.c.l.b16 %v47
  %v1449 = vunpack.c.h.b16 %v47
  %v1450 = vunpack.c.l.b16 %v48
  %v1451 = vunpack.c.h.b16 %v48
  %v1452 = vunpack.c.l.b16 %v49
  %v1453 = vunpack.c.l.b16 %v50
  %v1454 = vunpack.c.h.b16 %v50
  %v1455 = vunpack.c.l.b16 %v51
  %v1456 = vunpack.c.h.b16 %v51
  %v1457 = vunpack.c.l.b16 %v52
  %v1458 = vunpack.c.h.b16 %v52
  %v1459 = vunpack.c.l.b16 %v53
  %v1460 = vunpack.c.h.b16 %v53
  %v1461 = vunpack.c.l.b16 %v54
  %v1462 = vunpack.c.l.b16 %v55
  %v1463 = vunpack.c.h.b16 %v55
  %v1464 = vunpack.c.l.b16 %v56
  %v1465 = vunpack.c.h.b16 %v56
  %v1466 = vunpack.c.l.b16 %v57
  %v1467 = vunpack.c.h.b16 %v57
  %v1468 = vunpack.c.l.b16 %v58
  %v1469 = vunpack.c.h.b16 %v58
  %v1470 = vunpack.c.l.b16 %v59
  %v1471 = vunpack.c.l.b16 %v60
  %v1472 = vunpack.c.h.b16 %v60
  %v1473 = vunpack.c.l.b16 %v61
  %v1474 = vunpack.c.h.b16 %v61
  %v1475 = vunpack.c.l.b16 %v62
  %v1476 = vunpack.c.h.b16 %v62
  %v1477 = vunpack.c.l.b16 %v63
  %v1478 = vunpack.c.h.b16 %v63
  %v1479 = vunpack.c.l.b16 %v64
  %v1480 = vunpack.c.l.b16 %v65
  %v1481 = vunpack.c.h.b16 %v65
  %v1482 = vunpack.c.l.b16 %v66
  %v1483 = vunpack.c.h.b16 %v66
  %v1484 = vunpack.c.l.b16 %v67
  %v1485 = vunpack.c.h.b16 %v67
  %v1486 = vunpack.c.l.b16 %v68
  %v1487 = vunpack.c.h.b16 %v68
  %v1488 = vunpack.c.l.b16 %v69
  %v1489 = vunpack.c.l.b16 %v70
  %v1490 = vunpack.c.h.b16 %v70
  %v1491 = vunpack.c.l.b16 %v71
  %v1492 = vunpack.c.h.b16 %v71
  %v1493 = vunpack.c.l.b16 %v72
  %v1494 = vunpack.c.h.b16 %v72
  %v1495 = vunpack.c.l.b16 %v73
  %v1496 = vunpack.c.h.b16 %v73
  %v1497 = vunpack.c.l.b16 %v74
  %v1498 = vunpack.c.l.b16 %v75
  %v1499 = vunpack.c.h.b16 %v75
  %v1500 = vunpack.c.l.b16 %v76
  %v1501 = vunpack.c.h.b16 %v76
  %v1502 = vunpack.c.l.b16 %v77
  %v1503 = vunpack.c.h.b16 %v77
  %v1504 = vunpack.c.l.b16 %v78
  %v1505 = vunpack.c.h.b16 %v78
  %v1506 = vunpack.c.l.b16 %v79
  %v1507 = vunpack.c.l.b16 %v80
  %v1508 = vunpack.c.h.b16 %v80
  %v1509 = vunpack.c.l.b16 %v81
  %v1510 = vunpack.c.h.b16 %v81
  %v1511 = vunpack.c.l.b16 %v82
  %v1512 = vunpack.c.h.b16 %v82
  %v1513 = vunpack.c.l.b16 %v83
  %v1514 = vunpack.c.h.b16 %v83
  %v1515 = vunpack.c.l.b16 %v84
  %v1516 = vunpack.c.l.b16 %v85
  %v1517 = vunpack.c.h.b16 %v85
  %v1518 = vunpack.c.l.b16 %v86
  %v1519 = vunpack.c.h.b16 %v86
  %v1520 = vunpack.c.l.b16 %v87
  %v1521 = vunpack.c.h.b16 %v87
  %v1522 = vunpack.c.l.b16 %v88
  %v1523 = vunpack.c.h.b16 %v88
  %v1524 = vunpack.c.l.b16 %v89
  %v1525 = vunpack.c.l.b16 %v90
  %v1526 = vunpack.c.h.b16 %v90
  %v1527 = vunpack.c.l.b16 %v91
  %v1528 = vunpack.c.h.b16 %v91
  %v1529 = vunpack.c.l.b16 %v92
  %v1530 = vunpack.c.h.b16 %v92
  %v1531 = vunpack.c.l.b16 %v93
  %v1532 = vunpack.c.h.b16 %v93
  %v1533 = vunpack.c.l.b16 %v94
  %v1534 = vunpack.c.l.b16 %v95
  %v1535 = vunpack.c.h.b16 %v95
  %v1536 = vunpack.c.l.b16 %v96
  %v1537 = vunpack.c.h.b16 %v96
  %v1538 = vunpack.c.l.b16 %v97
  %v1539 = vunpack.c.h.b16 %v97
  %v1540 = vunpack.c.l.b16 %v98
  %v1541 = vunpack.c.h.b16 %v98
  %v1542 = vunpack.c.l.b16 %v99
  %v1543 = vunpack.c.l.b16 %v100
  %v1544 = vunpack.c.h.b16 %v100
  %v1545 = vunpack.c.l.b16 %v101
  %v1546 = vunpack.c.h.b16 %v101
  %v1547 = vunpack.c.l.b16 %v102
  %v1548 = vunpack.c.h.b16 %v102
  %v1549 = vunpack.c.l.b16 %v103
  %v1550 = vunpack.c.h.b16 %v103
  %v1551 = vunpack.c.l.b16 %v104
  %v1552 = vunpack.c.l.b16 %v105
  %v1553 = vunpack.c.h.b16 %v105
  %v1554 = vunpack.c.l.b16 %v106
  %v1555 = vunpack.c.h.b16 %v106
  %v1556 = vunpack.c.l.b16 %v107
  %v1557 = vunpack.c.h.b16 %v107
  %v1558 = vunpack.c.l.b16 %v108
  %v1559 = vunpack.c.h.b16 %v108
  %v1560 = vunpack.c.l.b16 %v109
  %v1561 = vunpack.c.l.b16 %v110
  %v1562 = vunpack.c.h.b16 %v110
  %v1563 = vunpack.c.l.b16 %v111
  %v1564 = vunpack.c.h.b16 %v111
  %v1565 = vunpack.c.l.b16 %v112
  %v1566 = vunpack.c.h.b16 %v112
  %v1567 = vunpack.c.l.b16 %v113
  %v1568 = vunpack.c.h.b16 %v113
  %v1569 = vunpack.c.l.b16 %v114
  %v1570 = vunpack.c.l.b16 %v115
  %v1571 = vunpack.c.h.b16 %v115
  %v1572 = vunpack.c.l.b16 %v116
  %v1573 = vunpack.c.h.b16 %v116
  %v1574 = vunpack.c.l.b16 %v117
  %v1575 = vunpack.c.h.b16 %v117
  %v1576 = vunpack.c.l.b16 %v118
  %v1577 = vunpack.c.h.b16 %v118
  %v1578 = vunpack.c.l.b16 %v119
  %v1579 = vunpack.c.l.b16 %v120
  %v1580 = vunpack.c.h.b16 %v120
  %v1581 = vunpack.c.l.b16 %v121
  %v1582 = vunpack.c.h.b16 %v121
  %v1583 = vunpack.c.l.b16 %v122
  %v1584 = vunpack.c.h.b16 %v122
  %v1585 = vunpack.c.l.b16 %v123
  %v1586 = vunpack.c.h.b16 %v123
  %v1587 = vunpack.c.l.b16 %v124
  %v1588 = vunpack.c.l.b16 %v125
  %v1589 = vunpack.c.h.b16 %v125
  %v1590 = vunpack.c.l.b16 %v126
  %v1591 = vunpack.c.h.b16 %v126
  %v1592 = vunpack.c.l.b16 %v127
  %v1593 = vunpack.c.h.b16 %v127
  %v1594 = vunpack.c.l.b16 %v128
  %v1595 = vunpack.c.h.b16 %v128
  %v1596 = vunpack.c.l.b16 %v129
  %v1597 = vunpack.c.l.b16 %v130
  %v1598 = vunpack.c.h.b16 %v130
  %v1599 = vunpack.c.l.b16 %v131
  %v1600 = vunpack.c.h.b16 %v131
  %v1601 = vunpack.c.l.b16 %v132
  %v1602 = vunpack.c.h.b16 %v132
  %v1603 = vunpack.c.l.b16 %v133
  %v1604 = vunpack.c.h.b16 %v133
  %v1605 = vunpack.c.l.b16 %v134
  %v1606 = vunpack.c.l.b16 %v135
  %v1607 = vunpack.c.h.b16 %v135
  %v1608 = vunpack.c.l.b16 %v136
  %v1609 = vunpack.c.h.b16 %v136
  %v1610 = vunpack.c.l.b16 %v137
  %v1611 = vunpack.c.h.b16 %v137
  %v1612 = vunpack.c.l.b16 %v138
  %v1613 = vunpack.c.h.b16 %v138
  %v1614 = vunpack.c.l.b16 %v139
  %v1615 = vunpack.c.l.b16 %v140
  %v1616 = vunpack.c.h.b16 %v140
  %v1617 = vunpack.c.l.b16 %v141
  %v1618 = vunpack.c.h.b16 %v141
  %v1619 = vunpack.c.l.b16 %v142
  %v1620 = vunpack.c.h.b16 %v142
  %v1621 = vunpack.c.l.b16 %v143
  %v1622 = vunpack.c.h.b16 %v143
  %v1623 = vunpack.c.l.b16 %v144
  %v1624 = vunpack.c.l.b16 %v145
  %v1625 = vunpack.c.h.b16 %v145
  %v1626 = vunpack.c.l.b16 %v146
  %v1627 = vunpack.c.h.b16 %v146
  %v1628 = vunpack.c.l.b16 %v147
  %v1629 = vunpack.c.h.b16 %v147
  %v1630 = vunpack.c.l.b16 %v148
  %v1631 = vunpack.c.h.b16 %v148
  %v1632 = vunpack.c.l.b16 %v149
  %v1633 = vunpack.c.l.b16 %v150
  %v1634 = vunpack.c.h.b16 %v150
  %v1635 = vunpack.c.l.b16 %v151
  %v1636 = vunpack.c.h.b16 %v151
  %v1637 = vunpack.c.l.b16 %v152
  %v1638 = vunpack.c.h.b16 %v152
  %v1639 = vunpack.c.l.b16 %v153
  %v1640 = vunpack.c.h.b16 %v153
  %v1641 = vunpack.c.l.b16 %v154
  %v1642 = vunpack.c.l.b16 %v155
  %v1643 = vunpack.c.h.b16 %v155
  %v1644 = vunpack.c.l.b16 %v156
  %v1645 = vunpack.c.h.b16 %v156
  %v1646 = vunpack.c.l.b16 %v157
  %v1647 = vunpack.c.h.b16 %v157
  %v1648 = vunpack.c.l.b16 %v158
  %v1649 = vunpack.c.h.b16 %v158
  %v1650 = vunpack.c.l.b16 %v159
  %v1651 = vunpack.c.l.b16 %v160
  %v1652 = vunpack.c.h.b16 %v160
  %v1653 = vunpack.c.l.b16 %v161
  %v1654 = vunpack.c.h.b16 %v161
  %v1655 = vunpack.c.l.b16 %v162
  %v1656 = vunpack.c.h.b16 %v162
  %v1657 = vunpack.c.l.b16 %v163
  %v1658 = vunpack.c.h.b16 %v163
  %v1659 = vunpack.c.l.b16 %v164
  %v1660 = vunpack.c.l.b16 %v165
  %v1661 = vunpack.c.h.b16 %v165
  %v1662 = vunpack.c.l.b16 %v166
  %v1663 = vunpack.c.h.b16 %v166
  %v1664 = vunpack.c.l.b16 %v167
  %v1665 = vunpack.c.h.b16 %v167
  %v1666 = vunpack.c.l.b16 %v168
  %v1667 = vunpack.c.h.b16 %v168
  %v1668 = vunpack.c.l.b16 %v169
  %v1669 = vunpack.c.l.b16 %v170
  %v1670 = vunpack.c.h.b16 %v170
  %v1671 = vunpack.c.l.b16 %v171
  %v1672 = vunpack.c.h.b16 %v171
  %v1673 = vunpack.c.l.b16 %v172
  %v1674 = vunpack.c.h.b16 %v172
  %v1675 = vunpack.c.l.b16 %v173
  %v1676 = vunpack.c.h.b16 %v173
  %v1677 = vunpack.c.l.b16 %v174
  %v1678 = vunpack.c.l.b16 %v175
  %v1679 = vunpack.c.h.b16 %v175
  %v1680 = vunpack.c.l.b16 %v176
  %v1681 = vunpack.c.h.b16 %v176
  %v1682 = vunpack.c.l.b16 %v177
  %v1683 = vunpack.c.h.b16 %v177
  %v1684 = vunpack.c.l.b16 %v178
  %v1685 = vunpack.c.h.b16 %v178
  %v1686 = vunpack.c.l.b16 %v179
  %v1687 = vunpack.c.l.b16 %v180
  %v1688 = vunpack.c.h.b16 %v180
  %v1689 = vunpack.c.l.b16 %v181
  %v1690 = vunpack.c.h.b16 %v181
  %v1691 = vunpack.c.l.b16 %v182
  %v1692 = vunpack.c.h.b16 %v182
  %v1693 = vunpack.c.l.b16 %v183
  %v1694 = vunpack.c.h.b16 %v183
  %v1695 = vunpack.c.l.b16 %v184
  %v1696 = vunpack.c.l.b16 %v185
  %v1697 = vunpack.c.h.b16 %v185
  %v1698 = vunpack.c.l.b16 %v186
  %v1699 = vunpack.c.h.b16 %v186
  %v1700 = vunpack.c.l.b16 %v187
  %v1701 = vunpack.c.h.b16 %v187
  %v1702 = vunpack.c.l.b16 %v188
  %v1703 = vunpack.c.h.b16 %v188
  %v1704 = vunpack.c.l.b16 %v189
  %v1705 = vunpack.c.l.b16 %v190
  %v1706 = vunpack.c.h.b16 %v190
  %v1707 = vunpack.c.l.b16 %v191
  %v1708 = vunpack.c.h.b16 %v191
  %v1709 = vunpack.c.l.b16 %v192
  %v1710 = vunpack.c.h.b16 %v192
  %v1711 = vunpack.c.l.b16 %v193
  %v1712 = vunpack.c.h.b16 %v193
  %v1713 = vunpack.c.l.b16 %v194
  %v1714 = vunpack.c.l.b16 %v195
  %v1715 = vunpack.c.h.b16 %v195
  %v1716 = vunpack.c.l.b16 %v196
  %v1717 = vunpack.c.h.b16 %v196
  %v1718 = vunpack.c.l.b16 %v197
  %v1719 = vunpack.c.h.b16 %v197
  %v1720 = vunpack.c.l.b16 %v198
  %v1721 = vunpack.c.h.b16 %v198
  %v1722 = vunpack.c.l.b16 %v199
  %v1723 = vunpack.c.l.b16 %v200
  %v1724 = vunpack.c.h.b16 %v200
  %v1725 = vunpack.c.l.b16 %v201
  %v1726 = vunpack.c.h.b16 %v201
  %v1727 = vunpack.c.l.b16 %v202
  %v1728 = vunpack.c.h.b16 %v202
  %v1729 = vunpack.c.l.b16 %v203
  %v1730 = vunpack.c.h.b16 %v203
  %v1731 = vunpack.c.l.b16 %v204
  %v1732 = vunpack.c.l.b16 %v205
  %v1733 = vunpack.c.h.b16 %v205
  %v1734 = vunpack.c.l.b16 %v206
  %v1735 = vunpack.c.h.b16 %v206
  %v1736 = vunpack.c.l.b16 %v207
  %v1737 = vunpack.c.h.b16 %v207
  %v1738 = vunpack.c.l.b16 %v208
  %v1739 = vunpack.c.h.b16 %v208
  %v1740 = vunpack.c.l.b16 %v209
  %v1741 = vunpack.c.l.b16 %v210
  %v1742 = vunpack.c.h.b16 %v210
  %v1743 = vunpack.c.l.b16 %v211
  %v1744 = vunpack.c.h.b16 %v211
  %v1745 = vunpack.c.l.b16 %v212
  %v1746 = vunpack.c.h.b16 %v212
  %v1747 = vunpack.c.l.b16 %v213
  %v1748 = vunpack.c.h.b16 %v213
  %v1749 = vunpack.c.l.b16 %v214
  %v1750 = vunpack.c.l.b16 %v215
  %v1751 = vunpack.c.h.b16 %v215
  %v1752 = vunpack.c.l.b16 %v216
  %v1753 = vunpack.c.h.b16 %v216
  %v1754 = vunpack.c.l.b16 %v217
  %v1755 = vunpack.c.h.b16 %v217
  %v1756 = vunpack.c.l.b16 %v218
  %v1757 = vunpack.c.h.b16 %v218
  %v1758 = vunpack.c.l.b16 %v219
  %v1759 = vunpack.c.l.b16 %v220
  %v1760 = vunpack.c.h.b16 %v220
  %v1761 = vunpack.c.l.b16 %v221
  %v1762 = vunpack.c.h.b16 %v221
  %v1763 = vunpack.c.l.b16 %v222
  %v1764 = vunpack.c.h.b16 %v222
  %v1765 = vunpack.c.l.b16 %v223
  %v1766 = vunpack.c.h.b16 %v223
  %v1767 = vunpack.c.l.b16 %v224
  %v1768 = vunpack.c.l.b16 %v225
  %v1769 = vunpack.c.h.b16 %v225
  %v1770 = vunpack.c.l.b16 %v226
  %v1771 = vunpack.c.h.b16 %v226
  %v1772 = vunpack.c.l.b16 %v227
  %v1773 = vunpack.c.h.b16 %v227
  %v1774 = vunpack.c.l.b16 %v228
  %v1775 = vunpack.c.h.b16 %v228
  %v1776 = vunpack.c.l.b16 %v229
  %v1777 = vunpack.c.l.b16 %v230
  %v1778 = vunpack.c.h.b16 %v230
  %v1779 = vunpack.c.l.b16 %v231
  %v1780 = vunpack.c.h.b16 %v231
  %v1781 = vunpack.c.l.b16 %v232
  %v1782 = vunpack.c.h.b16 %v232
  %v1783 = vunpack.c.l.b16 %v233
  %v1784 = vunpack.c.h.b16 %v233
  %v1785 = vunpack.c.l.b16 %v234
  %v1786 = vunpack.c.l.b16 %v235
  %v1787 = vunpack.c.h.b16 %v235
  %v1788 = vunpack.c.l.b16 %v236
  %v1789 = vunpack.c.h.b16 %v236
  %v1790 = vunpack.c.l.b16 %v237
  %v1791 = vunpack.c.h.b16 %v237
  %v1792 = vunpack.c.l.b16 %v238
  %v1793 = vunpack.c.h.b16 %v238
  %v1794 = vunpack.c.l.b16 %v239
  %v1795 = vunpack.c.l.b16 %v240
  %v1796 = vunpack.c.h.b16 %v240
  %v1797 = vunpack.c.l.b16 %v241
  %v1798 = vunpack.c.h.b16 %v241
  %v1799 = vunpack.c.l.b16 %v242
  %v1800 = vunpack.c.h.b16 %v242
  %v1801 = vunpack.c.l.b16 %v243
  %v1802 = vunpack.c.h.b16 %v243
  %v1803 = vunpack.c.l.b16 %v244
  %v1804 = vunpack.c.l.b16 %v245
  %v1805 = vunpack.c.h.b16 %v245
  %v1806 = vunpack.c.l.b16 %v246
  %v1807 = vunpack.c.h.b16 %v246
  %v1808 = vunpack.c.l.b16 %v247
  %v1809 = vunpack.c.h.b16 %v247
  %v1810 = vunpack.c.l.b16 %v248
  %v1811 = vunpack.c.h.b16 %v248
  %v1812 = vunpack.c.l.b16 %v249
  %v1813 = vunpack.c.l.b16 %v250
  %v1814 = vunpack.c.h.b16 %v250
  %v1815 = vunpack.c.l.b16 %v251
  %v1816 = vunpack.c.h.b16 %v251
  %v1817 = vunpack.c.l.b16 %v252
  %v1818 = vunpack.c.h.b16 %v252
  %v1819 = vunpack.c.l.b16 %v253
  %v1820 = vunpack.c.h.b16 %v253
  %v1821 = vunpack.c.l.b16 %v254
  %v1822 = vunpack.c.l.b16 %v255
  %v1823 = vunpack.c.h.b16 %v255
  %v1824 = vunpack.c.l.b16 %v256
  %v1825 = vunpack.c.h.b16 %v256
  %v1826 = vunpack.c.l.b16 %v257
  %v1827 = vunpack.c.h.b16 %v257
  %v1828 = vunpack.c.l.b16 %v258
  %v1829 = vunpack.c.h.b16 %v258
  %v1830 = vunpack.c.l.b16 %v259
  %v1831 = vunpack.c.l.b16 %v260
  %v1832 = vunpack.c.h.b16 %v260
  %v1833 = vunpack.c.l.b16 %v261
  %v1834 = vunpack.c.h.b16 %v261
  %v1835 = vunpack.c.l.b16 %v262
  %v1836 = vunpack.c.h.b16 %v262
  %v1837 = vunpack.c.l.b16 %v263
  %v1838 = vunpack.c.h.b16 %v263
  %v1839 = vunpack.c.l.b16 %v264
  %v1840 = vunpack.c.l.b16 %v265
  %v1841 = vunpack.c.h.b16 %v265
  %v1842 = vunpack.c.l.b16 %v266
  %v1843 = vunpack.c.h.b16 %v266
  %v1844 = vunpack.c.l.b16 %v267
  %v1845 = vunpack.c.h.b16 %v267
  %v1846 = vunpack.c.l.b16 %v268
  %v1847 = vunpack.c.h.b16 %v268
  %v1848 = vunpack.c.l.b16 %v269
  %v1849 = vunpack.c.l.b16 %v270
  %v1850 = vunpack.c.h.b16 %v270
  %v1851 = vunpack.c.l.b16 %v271
  %v1852 = vunpack.c.h.b16 %v271
  %v1853 = vunpack.c.l.b16 %v272
  %v1854 = vunpack.c.h.b16 %v272
  %v1855 = vunpack.c.l.b16 %v273
  %v1856 = vunpack.c.h.b16 %v273
  %v1857 = vunpack.c.l.b16 %v274
  %v1858 = vunpack.c.l.b16 %v275
  %v1859 = vunpack.c.h.b16 %v275
  %v1860 = vunpack.c.l.b16 %v276
  %v1861 = vunpack.c.h.b16 %v276
  %v1862 = vunpack.c.l.b16 %v277
  %v1863 = vunpack.c.h.b16 %v277
  %v1864 = vunpack.c.l.b16 %v278
  %v1865 = vunpack.c.h.b16 %v278
  %v1866 = vunpack.c.l.b16 %v279
  %v1867 = vunpack.c.l.b16 %v280
  %v1868 = vunpack.c.h.b16 %v280
  %v1869 = vunpack.c.l.b16 %v281
  %v1870 = vunpack.c.h.b16 %v281
  %v1871 = vunpack.c.l.b16 %v282
  %v1872 = vunpack.c.h.b16 %v282
  %v1873 = vunpack.c.l.b16 %v283
  %v1874 = vunpack.c.h.b16 %v283
  %v1875 = vunpack.c.l.b16 %v284
  %v1876 = vunpack.c.l.b16 %v285
  %v1877 = vunpack.c.h.b16 %v285
  %v1878 = vunpack.c.l.b16 %v286
  %v1879 = vunpack.c.h.b16 %v286
  %v1880 = vunpack.c.l.b16 %v287
  %v1881 = vunpack.c.h.b16 %v287
  %v1882 = vunpack.c.l.b16 %v288
  %v1883 = vunpack.c.h.b16 %v288
  %v1884 = vunpack.c.l.b16 %v289
  %v1885 = vunpack.c.l.b16 %v290
  %v1886 = vunpack.c.h.b16 %v290
  %v1887 = vunpack.c.l.b16 %v291
  %v1888 = vunpack.c.h.b16 %v291
  %v1889 = vunpack.c.l.b16 %v292
  %v1890 = vunpack.c.h.b16 %v292
  %v1891 = vunpack.c.l.b16 %v293
  %v1892 = vunpack.c.h.b16 %v293
  %v1893 = vunpack.c.l.b16 %v294
  %v1894 = vunpack.c.l.b16 %v295
  %v1895 = vunpack.c.h.b16 %v295
  %v1896 = vunpack.c.l.b16 %v296
  %v1897 = vunpack.c.h.b16 %v296
  %v1898 = vunpack.c.l.b16 %v297
  %v1899 = vunpack.c.h.b16 %v297
  %v1900 = vunpack.c.l.b16 %v298
  %v1901 = vunpack.c.h.b16 %v298
  %v1902 = vunpack.c.l.b16 %v299
  %v1903 = vunpack.c.l.b16 %v300
  %v1904 = vunpack.c.h.b16 %v300
  %v1905 = vunpack.c.l.b16 %v301
  %v1906 = vunpack.c.h.b16 %v301
  %v1907 = vunpack.c.l.b16 %v302
  %v1908 = vunpack.c.h.b16 %v302
  %v1909 = vunpack.c.l.b16 %v303
  %v1910 = vunpack.c.h.b16 %v303
  %v1911 = vunpack.c.l.b16 %v304
  %v1912 = vunpack.c.l.b16 %v305
  %v1913 = vunpack.c.h.b16 %v305
  %v1914 = vunpack.c.l.b16 %v306
  %v1915 = vunpack.c.h.b16 %v306
  %v1916 = vunpack.c.l.b16 %v307
  %v1917 = vunpack.c.h.b16 %v307
  %v1918 = vunpack.c.l.b16 %v308
  %v1919 = vunpack.c.h.b16 %v308
  %v1920 = vunpack.c.l.b16 %v309
  %v1921 = vunpack.c.l.b16 %v310
  %v1922 = vunpack.c.h.b16 %v310
  %v1923 = vunpack.c.l.b16 %v311
  %v1924 = vunpack.c.h.b16 %v311
  %v1925 = vunpack.c.l.b16 %v312
  %v1926 = vunpack.c.h.b16 %v312
  %v1927 = vunpack.c.l.b16 %v313
  %v1928 = vunpack.c.h.b16 %v313
  %v1929 = vunpack.c.l.b16 %v314
  %v1930 = vunpack.c.l.b16 %v315
  %v1931 = vunpack.c.h.b16 %v315
  %v1932 = vunpack.c.l.b16 %v316
  %v1933 = vunpack.c.h.b16 %v316
  %v1934 = vunpack.c.l.b16 %v317
  %v1935 = vunpack.c.h.b16 %v317
  %v1936 = vunpack.c.l.b16 %v318
  %v1937 = vunpack.c.h.b16 %v318
  %v1938 = vunpack.c.l.b16 %v319
  %v1939 = vunpack.c.l.b16 %v320
  %v1940 = vunpack.c.h.b16 %v320
  %v1941 = vunpack.c.l.b16 %v321
  %v1942 = vunpack.c.h.b16 %v321
  %v1943 = vunpack.c.l.b16 %v322
  %v1944 = vunpack.c.h.b16 %v322
  %v1945 = vunpack.c.l.b16 %v323
  %v1946 = vunpack.c.h.b16 %v323
  %v1947 = vunpack.c.l.b16 %v324
  %v1948 = vunpack.c.l.b16 %v325
  %v1949 = vunpack.c.h.b16 %v325
  %v1950 = vunpack.c.l.b16 %v326
  %v1951 = vunpack.c.h.b16 %v326
  %v1952 = vunpack.c.l.b16 %v327
  %v1953 = vunpack.c.h.b16 %v327
  %v1954 = vunpack.c.l.b16 %v328
  %v1955 = vunpack.c.h.b16 %v328
  %v1956 = vunpack.c.l.b16 %v329
  %v1957 = vunpack.c.l.b16 %v330
  %v1958 = vunpack.c.h.b16 %v330
  %v1959 = vunpack.c.l.b16 %v331
  %v1960 = vunpack.c.h.b16 %v331
  %v1961 = vunpack.c.l.b16 %v332
  %v1962 = vunpack.c.h.b16 %v332
  %v1963 = vunpack.c.l.b16 %v333
  %v1964 = vunpack.c.h.b16 %v333
  %v1965 = vunpack.c.l.b16 %v334
  %v1966 = vunpack.c.l.b16 %v335
  %v1967 = vunpack.c.h.b16 %v335
  %v1968 = vunpack.c.l.b16 %v336
  %v1969 = vunpack.c.h.b16 %v336
  %v1970 = vunpack.c.l.b16 %v337
  %v1971 = vunpack.c.h.b16 %v337
  %v1972 = vunpack.c.l.b16 %v338
  %v1973 = vunpack.c.h.b16 %v338
  %v1974 = vunpack.c.l.b16 %v339
  %v1975 = vunpack.c.l.b16 %v340
  %v1976 = vunpack.c.h.b16 %v340
  %v1977 = vunpack.c.l.b16 %v341
  %v1978 = vunpack.c.h.b16 %v341
  %v1979 = vunpack.c.l.b16 %v342
  %v1980 = vunpack.c.h.b16 %v342
  %v1981 = vunpack.c.l.b16 %v343
  %v1982 = vunpack.c.h.b16 %v343
  %v1983 = vunpack.c.l.b16 %v344
  %v1984 = vunpack.c.l.b16 %v345
  %v1985 = vunpack.c.h.b16 %v345
  %v1986 = vunpack.c.l.b16 %v346
  %v1987 = vunpack.c.h.b16 %v346
  %v1988 = vunpack.c.l.b16 %v347
  %v1989 = vunpack.c.h.b16 %v347
  %v1990 = vunpack.c.l.b16 %v348
  %v1991 = vunpack.c.h.b16 %v348
  %v1992 = vunpack.c.l.b16 %v349
  %v1993 = vunpack.c.l.b16 %v350
  %v1994 = vunpack.c.h.b16 %v350
  %v1995 = vunpack.c.l.b16 %v351
  %v1996 = vunpack.c.h.b16 %v351
  %v1997 = vunpack.c.l.b16 %v352
  %v1998 = vunpack.c.h.b16 %v352
  %v1999 = vunpack.c.l.b16 %v353
  %v2000 = vunpack.c.h.b16 %v353
  %v2001 = vunpack.c.l.b16 %v354
  %v2002 = vunpack.c.l.b16 %v355
  %v2003 = vunpack.c.h.b16 %v355
  %v2004 = vunpack.c.l.b16 %v356
  %v2005 = vunpack.c.h.b16 %v356
  %v2006 = vunpack.c.l.b16 %v357
  %v2007 = vunpack.c.h.b16 %v357
  %v2008 = vunpack.c.l.b16 %v358
  %v2009 = vunpack.c.h.b16 %v358
  %v2010 = vunpack.c.l.b16 %v359
  %v2011 = vunpack.c.l.b16 %v360
  %v2012 = vunpack.c.h.b16 %v360
  %v2013 = vunpack.c.l.b16 %v361
  %v2014 = vunpack.c.h.b16 %v361
  %v2015 = vunpack.c.l.b16 %v362
  %v2016 = vunpack.c.h.b16 %v362
  %v2017 = vunpack.c.l.b16 %v363
  %v2018 = vunpack.c.h.b16 %v363
  %v2019 = vunpack.c.l.b16 %v364
  %v2020 = vunpack.c.l.b16 %v365
  %v2021 = vunpack.c.h.b16 %v365
  %v2022 = vunpack.c.l.b16 %v366
  %v2023 = vunpack.c.h.b16 %v366
  %v2024 = vunpack.c.l.b16 %v367
  %v2025 = vunpack.c.h.b16 %v367
  %v2026 = vunpack.c.l.b16 %v368
  %v2027 = vunpack.c.h.b16 %v368
  %v2028 = vunpack.c.l.b16 %v369
  %v2029 = vunpack.c.l.b16 %v370
  %v2030 = vunpack.c.h.b16 %v370
  %v2031 = vunpack.c.l.b16 %v371
  %v2032 = vunpack.c.h.b16 %v371
  %v2033 = vunpack.c.l.b16 %v372
  %v2034 = vunpack.c.h.b16 %v372
  %v2035 = vunpack.c.l.b16 %v373
  %v2036 = vunpack.c.h.b16 %v373
  %v2037 = vunpack.c.l.b16 %v374
  %v2038 = vunpack.c.l.b16 %v375
  %v2039 = vunpack.c.h.b16 %v375
  %v2040 = vunpack.c.l.b16 %v376
  %v2041 = vunpack.c.h.b16 %v376
  %v2042 = vunpack.c.l.b16 %v377
  %v2043 = vunpack.c.h.b16 %v377
  %v2044 = vunpack.c.l.b16 %v378
  %v2045 = vunpack.c.h.b16 %v378
  %v2046 = vunpack.c.l.b16 %v379
  %v2047 = vunpack.c.l.b16 %v380
  %v2048 = vunpack.c.h.b16 %v380
  %v2049 = vunpack.c.l.b16 %v381
  %v2050 = vunpack.c.h.b16 %v381
  %v2051 = vunpack.c.l.b16 %v382
  %v2052 = vunpack.c.h.b16 %v382
  %v2053 = vunpack.c.l.b16 %v383
  %v2054 = vunpack.c.h.b16 %v383
  %v2055 = vunpack.c.l.b16 %v384
  %v2056 = vunpack.c.l.b16 %v385
  %v2057 = vunpack.c.h.b16 %v385
  %v2058 = vunpack.c.l.b16 %v386
  %v2059 = vunpack.c.h.b16 %v386
  %v2060 = vunpack.c.l.b16 %v387
  %v2061 = vunpack.c.h.b16 %v387
  %v2062 = vunpack.c.l.b16 %v388
  %v2063 = vunpack.c.h.b16 %v388
  %v2064 = vunpack.c.l.b16 %v389
  %v2065 = vunpack.c.l.b16 %v390
  %v2066 = vunpack.c.h.b16 %v390
  %v2067 = vunpack.c.l.b16 %v391
  %v2068 = vunpack.c.h.b16 %v391
  %v2069 = vunpack.c.l.b16 %v392
  %v2070 = vunpack.c.h.b16 %v392
  %v2071 = vunpack.c.l.b16 %v393
  %v2072 = vunpack.c.h.b16 %v393
  %v2073 = vunpack.c.l.b16 %v394
  %v2074 = vunpack.c.l.b16 %v395
  %v2075 = vunpack.c.h.b16 %v395
  %v2076 = vunpack.c.l.b16 %v396
  %v2077 = vunpack.c.h.b16 %v396
  %v2078 = vunpack.c.l.b16 %v397
  %v2079 = vunpack.c.h.b16 %v397
  %v2080 = vunpack.c.l.b16 %v398
  %v2081 = vunpack.c.h.b16 %v398
  %v2082 = vunpack.c.l.b16 %v399
  %v2083 = vunpack.c.l.b16 %v400
  %v2084 = vunpack.c.h.b16 %v400
  %v2085 = vunpack.c.l.b16 %v401
  %v2086 = vunpack.c.h.b16 %v401
  %v2087 = vunpack.c.l.b16 %v402
  %v2088 = vunpack.c.h.b16 %v402
  %v2089 = vunpack.c.l.b16 %v403
  %v2090 = vunpack.c.h.b16 %v403
  %v2091 = vunpack.c.l.b16 %v404
  %v2092 = vunpack.c.l.b16 %v405
  %v2093 = vunpack.c.h.b16 %v405
  %v2094 = vunpack.c.l.b16 %v406
  %v2095 = vunpack.c.h.b16 %v406
  %v2096 = vunpack.c.l.b16 %v407
  %v2097 = vunpack.c.h.b16 %v407
  %v2098 = vunpack.c.l.b16 %v408
  %v2099 = vunpack.c.h.b16 %v408
  %v2100 = vunpack.c.l.b16 %v409
  %v2101 = vunpack.c.l.b16 %v410
  %v2102 = vunpack.c.h.b16 %v410
  %v2103 = vunpack.c.l.b16 %v411
  %v2104 = vunpack.c.h.b16 %v411
  %v2105 = vunpack.c.l.b16 %v412
  %v2106 = vunpack.c.h.b16 %v412
  %v2107 = vunpack.c.l.b16 %v413
  %v2108 = vunpack.c.h.b16 %v413
  %v2109 = vunpack.c.l.b16 %v414
  %v2110 = vunpack.c.l.b16 %v415
  %v2111 = vunpack.c.h.b16 %v415
  %v2112 = vunpack.c.l.b16 %v416
  %v2113 = vunpack.c.h.b16 %v416
  %v2114 = vunpack.c.l.b16 %v417
  %v2115 = vunpack.c.h.b16 %v417
  %v2116 = vunpack.c.l.b16 %v418
  %v2117 = vunpack.c.h.b16 %v418
  %v2118 = vunpack.c.l.b16 %v419
  %v2119 = vunpack.c.l.b16 %v420
  %v2120 = vunpack.c.h.b16 %v420
  %v2121 = vunpack.c.l.b16 %v421
  %v2122 = vunpack.c.h.b16 %v421
  %v2123 = vunpack.c.l.b16 %v422
  %v2124 = vunpack.c.h.b16 %v422
  %v2125 = vunpack.c.l.b16 %v423
  %v2126 = vunpack.c.h.b16 %v423
  %v2127 = vunpack.c.l.b16 %v424
  %v2128 = vunpack.c.l.b16 %v425
  %v2129 = vunpack.c.h.b16 %v425
  %v2130 = vunpack.c.l.b16 %v426
  %v2131 = vunpack.c.h.b16 %v426
  %v2132 = vunpack.c.l.b16 %v427
  %v2133 = vunpack.c.h.b16 %v427
  %v2134 = vunpack.c.l.b16 %v428
  %v2135 = vunpack.c.h.b16 %v428
  %v2136 = vunpack.c.l.b16 %v429
  %v2137 = vunpack.c.l.b16 %v430
  %v2138 = vunpack.c.h.b16 %v430
  %v2139 = vunpack.c.l.b16 %v431
  %v2140 = vunpack.c.h.b16 %v431
  %v2141 = vunpack.c.l.b16 %v432
  %v2142 = vunpack.c.h.b16 %v432
  %v2143 = vunpack.c.l.b16 %v433
  %v2144 = vunpack.c.h.b16 %v433
  %v2145 = vunpack.c.l.b16 %v434
  %v2146 = vunpack.c.l.b16 %v435
  %v2147 = vunpack.c.h.b16 %v435
  %v2148 = vunpack.c.l.b16 %v436
  %v2149 = vunpack.c.h.b16 %v436
  %v2150 = vunpack.c.l.b16 %v437
  %v2151 = vunpack.c.h.b16 %v437
  %v2152 = vunpack.c.l.b16 %v438
  %v2153 = vunpack.c.h.b16 %v438
  %v2154 = vunpack.c.l.b16 %v439
  %v2155 = vunpack.c.l.b16 %v440
  %v2156 = vunpack.c.h.b16 %v440
  %v2157 = vunpack.c.l.b16 %v441
  %v2158 = vunpack.c.h.b16 %v441
  %v2159 = vunpack.c.l.b16 %v442
  %v2160 = vunpack.c.h.b16 %v442
  %v2161 = vunpack.c.l.b16 %v443
  %v2162 = vunpack.c.h.b16 %v443
  %v2163 = vunpack.c.l.b16 %v444
  %v2164 = vunpack.c.l.b16 %v445
  %v2165 = vunpack.c.h.b16 %v445
  %v2166 = vunpack.c.l.b16 %v446
  %v2167 = vunpack.c.h.b16 %v446
  %v2168 = vunpack.c.l.b16 %v447
  %v2169 = vunpack.c.h.b16 %v447
  %v2170 = vunpack.c.l.b16 %v448
  %v2171 = vunpack.c.h.b16 %v448
  %v2172 = vunpack.c.l.b16 %v449
  %v2173 = vunpack.c.l.b16 %v450
  %v2174 = vunpack.c.h.b16 %v450
  %v2175 = vunpack.c.l.b16 %v451
  %v2176 = vunpack.c.h.b16 %v451
  %v2177 = vunpack.c.l.b16 %v452
  %v2178 = vunpack.c.h.b16 %v452
  %v2179 = vunpack.c.l.b16 %v453
  %v2180 = vunpack.c.h.b16 %v453
  %v2181 = vunpack.c.l.b16 %v454
  %v2182 = vunpack.c.l.b16 %v455
  %v2183 = vunpack.c.h.b16 %v455
  %v2184 = vunpack.c.l.b16 %v456
  %v2185 = vunpack.c.h.b16 %v456
  %v2186 = vunpack.c.l.b16 %v457
  %v2187 = vunpack.c.h.b16 %v457
  %v2188 = vunpack.c.l.b16 %v458
  %v2189 = vunpack.c.h.b16 %v458
  %v2190 = vunpack.c.l.b16 %v459
  %v2191 = vunpack.c.l.b16 %v460
  %v2192 = vunpack.c.h.b16 %v460
  %v2193 = vunpack.c.l.b16 %v461
  %v2194 = vunpack.c.h.b16 %v461
  %v2195 = vunpack.c.l.b16 %v462
  %v2196 = vunpack.c.h.b16 %v462
  %v2197 = vunpack.c.l.b16 %v463
  %v2198 = vunpack.c.h.b16 %v463
  %v2199 = vunpack.c.l.b16 %v464
  %v2200 = vunpack.c.l.b16 %v465
  %v2201 = vunpack.c.h.b16 %v465
  %v2202 = vunpack.c.l.b16 %v466
  %v2203 = vunpack.c.h.b16 %v466
  %v2204 = vunpack.c.l.b16 %v467
  %v2205 = vunpack.c.h.b16 %v467
  %v2206 = vunpack.c.l.b16 %v468
  %v2207 = vunpack.c.h.b16 %v468
  %v2208 = vunpack.c.l.b16 %v469
  %v2209 = vunpack.c.l.b16 %v470
  %v2210 = vunpack.c.h.b16 %v470
  %v2211 = vunpack.c.l.b16 %v471
  %v2212 = vunpack.c.h.b16 %v471
  %v2213 = vunpack.c.l.b16 %v472
  %v2214 = vunpack.c.h.b16 %v472
  %v2215 = vunpack.c.l.b16 %v473
  %v2216 = vunpack.c.h.b16 %v473
  %v2217 = vunpack.c.l.b16 %v474
  %v2218 = vunpack.c.l.b16 %v475
  %v2219 = vunpack.c.h.b16 %v475
  %v2220 = vunpack.c.l.b16 %v476
  %v2221 = vunpack.c.h.b16 %v476
  %v2222 = vunpack.c.l.b16 %v477
  %v2223 = vunpack.c.h.b16 %v477
  %v2224 = vunpack.c.l.b16 %v478
  %v2225 = vunpack.c.h.b16 %v478
  %v2226 = vunpack.c.l.b16 %v479
  %v2227 = vunpack.c.l.b16 %v480
  %v2228 = vunpack.c.h.b16 %v480
  %v2229 = vunpack.c.l.b16 %v481
  %v2230 = vunpack.c.h.b16 %v481
  %v2231 = vunpack.c.l.b16 %v482
  %v2232 = vunpack.c.h.b16 %v482
  %v2233 = vunpack.c.l.b16 %v483
  %v2234 = vunpack.c.h.b16 %v483
  %v2235 = vunpack.c.l.b16 %v484
  %v2236 = vunpack.c.l.b16 %v485
  %v2237 = vunpack.c.h.b16 %v485
  %v2238 = vunpack.c.l.b16 %v486
  %v2239 = vunpack.c.h.b16 %v486
  %v2240 = vunpack.c.l.b16 %v487
  %v2241 = vunpack.c.h.b16 %v487
  %v2242 = vunpack.c.l.b16 %v488
  %v2243 = vunpack.c.h.b16 %v488
  %v2244 = vunpack.c.l.b16 %v489
  %v2245 = vunpack.c.l.b16 %v490
  %v2246 = vunpack.c.h.b16 %v490
  %v2247 = vunpack.c.l.b16 %v491
  %v2248 = vunpack.c.h.b16 %v491
  %v2249 = vunpack.c.l.b16 %v492
  %v2250 = vunpack.c.h.b16 %v492
  %v2251 = vunpack.c.l.b16 %v493
  %v2252 = vunpack.c.h.b16 %v493
  %v2253 = vunpack.c.l.b16 %v494
  %v2254 = vunpack.c.l.b16 %v495
  %v2255 = vunpack.c.h.b16 %v495
  %v2256 = vunpack.c.l.b16 %v496
  %v2257 = vunpack.c.h.b16 %v496
  %v2258 = vunpack.c.l.b16 %v497
  %v2259 = vunpack.c.h.b16 %v497
  %v2260 = vunpack.c.l.b16 %v498
  %v2261 = vunpack.c.h.b16 %v498
  %v2262 = vunpack.c.l.b16 %v499
  %v2263 = vunpack.c.l.b16 %v500
  %v2264 = vunpack.c.h.b16 %v500
  %v2265 = vunpack.c.l.b16 %v501
  %v2266 = vunpack.c.h.b16 %v501
  %v2267 = vunpack.c.l.b16 %v502
  %v2268 = vunpack.c.h.b16 %v502
  %v2269 = vunpack.c.l.b16 %v503
  %v2270 = vunpack.c.h.b16 %v503
  %v2271 = vunpack.c.l.b16 %v504
  %v2272 = vunpack.c.l.b16 %v505
  %v2273 = vunpack.c.h.b16 %v505
  %v2274 = vunpack.c.l.b16 %v506
  %v2275 = vunpack.c.h.b16 %v506
  %v2276 = vunpack.c.l.b16 %v507
  %v2277 = vunpack.c.h.b16 %v507
  %v2278 = vunpack.c.l.b16 %v508
  %v2279 = vunpack.c.h.b16 %v508
  %v2280 = vunpack.c.l.b16 %v509
  %v2281 = vunpack.c.l.b16 %v510
  %v2282 = vunpack.c.h.b16 %v510
  %v2283 = vunpack.c.l.b16 %v511
  %v2284 = vunpack.c.h.b16 %v511
  %v2285 = vunpack.c.l.b16 %v512
  %v2286 = vunpack.c.h.b16 %v512
  %v2287 = vunpack.c.l.b16 %v513
  %v2288 = vunpack.c.h.b16 %v513
  %v2289 = vunpack.c.l.b16 %v514
  %v2290 = vunpack.c.l.b16 %v515
  %v2291 = vunpack.c.h.b16 %v515
  %v2292 = vunpack.c.l.b16 %v516
  %v2293 = vunpack.c.h.b16 %v516
  %v2294 = vunpack.c.l.b16 %v517
  %v2295 = vunpack.c.h.b16 %v517
  %v2296 = vunpack.c.l.b16 %v518
  %v2297 = vunpack.c.h.b16 %v518
  %v2298 = vunpack.c.l.b16 %v519
  %v2299 = vunpack.c.l.b16 %v520
  %v2300 = vunpack.c.h.b16 %v520
  %v2301 = vunpack.c.l.b16 %v521
  %v2302 = vunpack.c.h.b16 %v521
  %v2303 = vunpack.c.l.b16 %v522
  %v2304 = vunpack.c.h.b16 %v522
  %v2305 = vunpack.c.l.b16 %v523
  %v2306 = vunpack.c.h.b16 %v523
  %v2307 = vunpack.c.l.b16 %v524
  %v2308 = vunpack.c.l.b16 %v525
  %v2309 = vunpack.c.h.b16 %v525
  %v2310 = vunpack.c.l.b16 %v526
  %v2311 = vunpack.c.h.b16 %v526
  %v2312 = vunpack.c.l.b16 %v527
  %v2313 = vunpack.c.h.b16 %v527
  %v2314 = vunpack.c.l.b16 %v528
  %v2315 = vunpack.c.h.b16 %v528
  %v2316 = vunpack.c.l.b16 %v529
  %v2317 = vunpack.c.l.b16 %v530
  %v2318 = vunpack.c.h.b16 %v530
  %v2319 = vunpack.c.l.b16 %v531
  %v2320 = vunpack.c.h.b16 %v531
  %v2321 = vunpack.c.l.b16 %v532
  %v2322 = vunpack.c.h.b16 %v532
  %v2323 = vunpack.c.l.b16 %v533
  %v2324 = vunpack.c.h.b16 %v533
  %v2325 = vunpack.c.l.b16 %v534
  %v2326 = vunpack.c.l.b16 %v535
  %v2327 = vunpack.c.h.b16 %v535
  %v2328 = vunpack.c.l.b16 %v536
  %v2329 = vunpack.c.h.b16 %v536
  %v2330 = vunpack.c.l.b16 %v537
  %v2331 = vunpack.c.h.b16 %v537
  %v2332 = vunpack.c.l.b16 %v538
  %v2333 = vunpack.c.h.b16 %v538
  %v2334 = vunpack.c.l.b16 %v539
  %v2335 = vunpack.c.l.b16 %v540
  %v2336 = vunpack.c.h.b16 %v540
  %v2337 = vunpack.c.l.b16 %v541
  %v2338 = vunpack.c.h.b16 %v541
  %v2339 = vunpack.c.l.b16 %v542
  %v2340 = vunpack.c.h.b16 %v542
  %v2341 = vunpack.c.l.b16 %v543
  %v2342 = vunpack.c.h.b16 %v543
  %v2343 = vunpack.c.l.b16 %v544
  %v2344 = vunpack.c.l.b16 %v545
  %v2345 = vunpack.c.h.b16 %v545
  %v2346 = vunpack.c.l.b16 %v546
  %v2347 = vunpack.c.h.b16 %v546
  %v2348 = vunpack.c.l.b16 %v547
  %v2349 = vunpack.c.h.b16 %v547
  %v2350 = vunpack.c.l.b16 %v548
  %v2351 = vunpack.c.h.b16 %v548
  %v2352 = vunpack.c.l.b16 %v549
  %v2353 = vunpack.c.l.b16 %v550
  %v2354 = vunpack.c.h.b16 %v550
  %v2355 = vunpack.c.l.b16 %v551
  %v2356 = vunpack.c.h.b16 %v551
  %v2357 = vunpack.c.l.b16 %v552
  %v2358 = vunpack.c.h.b16 %v552
  %v2359 = vunpack.c.l.b16 %v553
  %v2360 = vunpack.c.h.b16 %v553
  %v2361 = vunpack.c.l.b16 %v554
  %v2362 = vunpack.c.l.b16 %v555
  %v2363 = vunpack.c.h.b16 %v555
  %v2364 = vunpack.c.l.b16 %v556
  %v2365 = vunpack.c.h.b16 %v556
  %v2366 = vunpack.c.l.b16 %v557
  %v2367 = vunpack.c.h.b16 %v557
  %v2368 = vunpack.c.l.b16 %v558
  %v2369 = vunpack.c.h.b16 %v558
  %v2370 = vunpack.c.l.b16 %v559
  %v2371 = vunpack.c.l.b16 %v560
  %v2372 = vunpack.c.h.b16 %v560
  %v2373 = vunpack.c.l.b16 %v561
  %v2374 = vunpack.c.h.b16 %v561
  %v2375 = vunpack.c.l.b16 %v562
  %v2376 = vunpack.c.h.b16 %v562
  %v2377 = vunpack.c.l.b16 %v563
  %v2378 = vunpack.c.h.b16 %v563
  %v2379 = vunpack.c.l.b16 %v564
  %v2380 = vunpack.c.l.b16 %v565
  %v2381 = vunpack.c.h.b16 %v565
  %v2382 = vunpack.c.l.b16 %v566
  %v2383 = vunpack.c.h.b16 %v566
  %v2384 = vunpack.c.l.b16 %v567
  %v2385 = vunpack.c.h.b16 %v567
  %v2386 = vunpack.c.l.b16 %v568
  %v2387 = vunpack.c.h.b16 %v568
  %v2388 = vunpack.c.l.b16 %v569
  %v2389 = vunpack.c.l.b16 %v570
  %v2390 = vunpack.c.h.b16 %v570
  %v2391 = vunpack.c.l.b16 %v571
  %v2392 = vunpack.c.h.b16 %v571
  %v2393 = vunpack.c.l.b16 %v572
  %v2394 = vunpack.c.h.b16 %v572
  %v2395 = vunpack.c.l.b16 %v573
  %v2396 = vunpack.c.h.b16 %v573
  %v2397 = vunpack.c.l.b16 %v574
  %v2398 = vunpack.c.l.b16 %v575
  %v2399 = vunpack.c.h.b16 %v575
  %v2400 = vunpack.c.l.b16 %v576
  %v2401 = vunpack.c.h.b16 %v576
  %v2402 = vunpack.c.l.b16 %v577
  %v2403 = vunpack.c.h.b16 %v577
  %v2404 = vunpack.c.l.b16 %v578
  %v2405 = vunpack.c.h.b16 %v578
  %v2406 = vunpack.c.l.b16 %v579
  %v2407 = vunpack.c.l.b16 %v580
  %v2408 = vunpack.c.h.b16 %v580
  %v2409 = vunpack.c.l.b16 %v581
  %v2410 = vunpack.c.h.b16 %v581
  %v2411 = vunpack.c.l.b16 %v582
  %v2412 = vunpack.c.h.b16 %v582
  %v2413 = vunpack.c.l.b16 %v583
  %v2414 = vunpack.c.h.b16 %v583
  %v2415 = vunpack.c.l.b16 %v584
  %v2416 = vunpack.c.l.b16 %v585
  %v2417 = vunpack.c.h.b16 %v585
  %v2418 = vunpack.c.l.b16 %v586
  %v2419 = vunpack.c.h.b16 %v586
  %v2420 = vunpack.c.l.b16 %v587
  %v2421 = vunpack.c.h.b16 %v587
  %v2422 = vunpack.c.l.b16 %v588
  %v2423 = vunpack.c.h.b16 %v588
  %v2424 = vunpack.c.l.b16 %v589
  %v2425 = vunpack.c.l.b16 %v590
  %v2426 = vunpack.c.h.b16 %v590
  %v2427 = vunpack.c.l.b16 %v591
  %v2428 = vunpack.c.h.b16 %v591
  %v2429 = vunpack.c.l.b16 %v592
  %v2430 = vunpack.c.h.b16 %v592
  %v2431 = vunpack.c.l.b16 %v593
  %v2432 = vunpack.c.h.b16 %v593
  %v2433 = vunpack.c.l.b16 %v594
  %v2434 = vunpack.c.l.b16 %v595
  %v2435 = vunpack.c.h.b16 %v595
  %v2436 = vunpack.c.l.b16 %v596
  %v2437 = vunpack.c.h.b16 %v596
  %v2438 = vunpack.c.l.b16 %v597
  %v2439 = vunpack.c.h.b16 %v597
  %v2440 = vunpack.c.l.b16 %v598
  %v2441 = vunpack.c.h.b16 %v598
  %v2442 = vunpack.c.l.b16 %v599
  %v2443 = vunpack.c.l.b16 %v600
  %v2444 = vunpack.c.h.b16 %v600
  %v2445 = vunpack.c.l.b16 %v601
  %v2446 = vunpack.c.h.b16 %v601
  %v2447 = vunpack.c.l.b16 %v602
  %v2448 = vunpack.c.h.b16 %v602
  %v2449 = vunpack.c.l.b16 %v603
  %v2450 = vunpack.c.h.b16 %v603
  %v2451 = vunpack.c.l.b16 %v604
  %v2452 = vunpack.c.l.b16 %v605
  %v2453 = vunpack.c.h.b16 %v605
  %v2454 = vunpack.c.l.b16 %v606
  %v2455 = vunpack.c.h.b16 %v606
  %v2456 = vunpack.c.l.b16 %v607
  %v2457 = vunpack.c.h.b16 %v607
  %v2458 = vunpack.c.l.b16 %v608
  %v2459 = vunpack.c.h.b16 %v608
  %v2460 = vunpack.c.l.b16 %v609
  %v2461 = vunpack.c.l.b16 %v610
  %v2462 = vunpack.c.h.b16 %v610
  %v2463 = vunpack.c.l.b16 %v611
  %v2464 = vunpack.c.h.b16 %v611
  %v2465 = vunpack.c.l.b16 %v612
  %v2466 = vunpack.c.h.b16 %v612
  %v2467 = vunpack.c.l.b16 %v613
  %v2468 = vunpack.c.h.b16 %v613
  %v2469 = vunpack.c.l.b16 %v614
  %v2470 = vunpack.c.l.b16 %v615
  %v2471 = vunpack.c.h.b16 %v615
  %v2472 = vunpack.c.l.b16 %v616
  %v2473 = vunpack.c.h.b16 %v616
  %v2474 = vunpack.c.l.b16 %v617
  %v2475 = vunpack.c.h.b16 %v617
  %v2476 = vunpack.c.l.b16 %v618
  %v2477 = vunpack.c.h.b16 %v618
  %v2478 = vunpack.c.l.b16 %v619
  %v2479 = vunpack.c.l.b16 %v620
  %v2480 = vunpack.c.h.b16 %v620
  %v2481 = vunpack.c.l.b16 %v621
  %v2482 = vunpack.c.h.b16 %v621
  %v2483 = vunpack.c.l.b16 %v622
  %v2484 = vunpack.c.h.b16 %v622
  %v2485 = vunpack.c.l.b16 %v623
  %v2486 = vunpack.c.h.b16 %v623
  %v2487 = vunpack.c.l.b16 %v624
  %v2488 = vunpack.c.l.b16 %v625
  %v2489 = vunpack.c.h.b16 %v625
  %v2490 = vunpack.c.l.b16 %v626
  %v2491 = vunpack.c.h.b16 %v626
  %v2492 = vunpack.c.l.b16 %v627
  %v2493 = vunpack.c.h.b16 %v627
  %v2494 = vunpack.c.l.b16 %v628
  %v2495 = vunpack.c.h.b16 %v628
  %v2496 = vunpack.c.l.b16 %v629
  %v2497 = vunpack.c.l.b16 %v630
  %v2498 = vunpack.c.h.b16 %v630
  %v2499 = vunpack.c.l.b16 %v631
  %v2500 = vunpack.c.h.b16 %v631
  %v2501 = vunpack.c.l.b16 %v632
  %v2502 = vunpack.c.h.b16 %v632
  %v2503 = vunpack.c.l.b16 %v633
  %v2504 = vunpack.c.h.b16 %v633
  %v2505 = vunpack.c.l.b16 %v634
  %v2506 = vunpack.c.l.b16 %v635
  %v2507 = vunpack.c.h.b16 %v635
  %v2508 = vunpack.c.l.b16 %v636
  %v2509 = vunpack.c.h.b16 %v636
  %v2510 = vunpack.c.l.b16 %v637
  %v2511 = vunpack.c.h.b16 %v637
  %v2512 = vunpack.c.l.b16 %v638
  %v2513 = vunpack.c.h.b16 %v638
  %v2514 = vunpack.c.l.b16 %v639
  %v2515 = vunpack.c.l.b16 %v640
  %v2516 = vunpack.c.h.b16 %v640
  %v2517 = vunpack.c.l.b16 %v641
  %v2518 = vunpack.c.h.b16 %v641
  %v2519 = vunpack.c.l.b16 %v642
  %v2520 = vunpack.c.h.b16 %v642
  %v2521 = vunpack.c.l.b16 %v643
  %v2522 = vunpack.c.h.b16 %v643
  %v2523 = vunpack.c.l.b16 %v644
  %v2524 = vunpack.c.l.b16 %v645
  %v2525 = vunpack.c.h.b16 %v645
  %v2526 = vunpack.c.l.b16 %v646
  %v2527 = vunpack.c.h.b16 %v646
  %v2528 = vunpack.c.l.b16 %v647
  %v2529 = vunpack.c.h.b16 %v647
  %v2530 = vunpack.c.l.b16 %v648
  %v2531 = vunpack.c.h.b16 %v648
  %v2532 = vunpack.c.l.b16 %v649
  %v2533 = vunpack.c.l.b16 %v650
  %v2534 = vunpack.c.h.b16 %v650
  %v2535 = vunpack.c.l.b16 %v651
  %v2536 = vunpack.c.h.b16 %v651
  %v2537 = vunpack.c.l.b16 %v652
  %v2538 = vunpack.c.h.b16 %v652
  %v2539 = vunpack.c.l.b16 %v653
  %v2540 = vunpack.c.h.b16 %v653
  %v2541 = vunpack.c.l.b16 %v654
  %v2542 = vunpack.c.l.b16 %v655
  %v2543 = vunpack.c.h.b16 %v655
  %v2544 = vunpack.c.l.b16 %v656
  %v2545 = vunpack.c.h.b16 %v656
  %v2546 = vunpack.c.l.b16 %v657
  %v2547 = vunpack.c.h.b16 %v657
  %v2548 = vunpack.c.l.b16 %v658
  %v2549 = vunpack.c.h.b16 %v658
  %v2550 = vunpack.c.l.b16 %v659
  %v2551 = vunpack.c.l.b16 %v660
  %v2552 = vunpack.c.h.b16 %v660
  %v2553 = vunpack.c.l.b16 %v661
  %v2554 = vunpack.c.h.b16 %v661
  %v2555 = vunpack.c.l.b16 %v662
  %v2556 = vunpack.c.h.b16 %v662
  %v2557 = vunpack.c.l.b16 %v663
  %v2558 = vunpack.c.h.b16 %v663
  %v2559 = vunpack.c.l.b16 %v664
  %v2560 = vunpack.c.l.b16 %v665
  %v2561 = vunpack.c.h.b16 %v665
  %v2562 = vunpack.c.l.b16 %v666
  %v2563 = vunpack.c.h.b16 %v666
  %v2564 = vunpack.c.l.b16 %v667
  %v2565 = vunpack.c.h.b16 %v667
  %v2566 = vunpack.c.l.b16 %v668
  %v2567 = vunpack.c.h.b16 %v668
  %v2568 = vunpack.c.l.b16 %v669
  %v2569 = vpack.c.b16 %v1426, %v1417
  %v2570 = vpack.c.b16 %v1427, %v1418
  %v2571 = vpack.c.b16 %v1428, %v1419
  %v2572 = vpack.c.b16 %v1429, %v1420
  %v2573 = vpack.c.b16 %v1430, %v1421
  %v2574 = vpack.c.b16 %v1431, %v1422
  %v2575 = vpack.c.b16 %v1432, %v1423
  %v2576 = vpack.c.b16 %v1433, %v1424
  %v2577 = vpack.c.b16 %v1434, %v1425
  %v2578 = vpack.c.b16 %v1444, %v1435
  %v2579 = vpack.c.b16 %v1445, %v1436
  %v2580 = vpack.c.b16 %v1446, %v1437
  %v2581 = vpack.c.b16 %v1447, %v1438
  %v2582 = vpack.c.b16 %v1448, %v1439
  %v2583 = vpack.c.b16 %v1449, %v1440
  %v2584 = vpack.c.b16 %v1450, %v1441
  %v2585 = vpack.c.b16 %v1451, %v1442
  %v2586 = vpack.c.b16 %v1452, %v1443
  %v2587 = vpack.c.b16 %v1462, %v1453
  %v2588 = vpack.c.b16 %v1463, %v1454
  %v2589 = vpack.c.b16 %v1464, %v1455
  %v2590 = vpack.c.b16 %v1465, %v1456
  %v2591 = vpack.c.b16 %v1466, %v1457
  %v2592 = vpack.c.b16 %v1467, %v1458
  %v2593 = vpack.c.b16 %v1468, %v1459
  %v2594 = vpack.c.b16 %v1469, %v1460
  %v2595 = vpack.c.b16 %v1470, %v1461
  %v2596 = vpack.c.b16 %v1480, %v1471
  %v2597 = vpack.c.b16 %v1481, %v1472
  %v2598 = vpack.c.b16 %v1482, %v1473
  %v2599 = vpack.c.b16 %v1483, %v1474
  %v2600 = vpack.c.b16 %v1484, %v1475
  %v2601 = vpack.c.b16 %v1485, %v1476
  %v2602 = vpack.c.b16 %v1486, %v1477
  %v2603 = vpack.c.b16 %v1487, %v1478
  %v2604 = vpack.c.b16 %v1488, %v1479
  %v2605 = vpack.c.b16 %v1498, %v1489
  %v2606 = vpack.c.b16 %v1499, %v1490
  %v2607 = vpack.c.b16 %v1500, %v1491
  %v2608 = vpack.c.b16 %v1501, %v1492
  %v2609 = vpack.c.b16 %v1502, %v1493
  %v2610 = vpack.c.b16 %v1503, %v1494
  %v2611 = vpack.c.b16 %v1504, %v1495
  %v2612 = vpack.c.b16 %v1505, %v1496
  %v2613 = vpack.c.b16 %v1506, %v1497
  %v2614 = vpack.c.b16 %v1516, %v1507
  %v2615 = vpack.c.b16 %v1517, %v1508
  %v2616 = vpack.c.b16 %v1518, %v1509
  %v2617 = vpack.c.b16 %v1519, %v1510
  %v2618 = vpack.c.b16 %v1520, %v1511
  %v2619 = vpack.c.b16 %v1521, %v1512
  %v2620 = vpack.c.b16 %v1522, %v1513
  %v2621 = vpack.c.b16 %v1523, %v1514
  %v2622 = vpack.c.b16 %v1524, %v1515
  %v2623 = vpack.c.b16 %v1534, %v1525
  %v2624 = vpack.c.b16 %v1535, %v1526
  %v2625 = vpack.c.b16 %v1536, %v1527
  %v2626 = vpack.c.b16 %v1537, %v1528
  %v2627 = vpack.c.b16 %v1538, %v1529
  %v2628 = vpack.c.b16 %v1539, %v1530
  %v2629 = vpack.c.b16 %v1540, %v1531
  %v2630 = vpack.c.b16 %v1541, %v1532
  %v2631 = vpack.c.b16 %v1542, %v1533
  %v2632 = vpack.c.b16 %v1552, %v1543
  %v2633 = vpack.c.b16 %v1553, %v1544
  %v2634 = vpack.c.b16 %v1554, %v1545
  %v2635 = vpack.c.b16 %v1555, %v1546
  %v2636 = vpack.c.b16 %v1556, %v1547
  %v2637 = vpack.c.b16 %v1557, %v1548
  %v2638 = vpack.c.b16 %v1558, %v1549
  %v2639 = vpack.c.b16 %v1559, %v1550
  %v2640 = vpack.c.b16 %v1560, %v1551
  %v2641 = vpack.c.b16 %v1570, %v1561
  %v2642 = vpack.c.b16 %v1571, %v1562
  %v2643 = vpack.c.b16 %v1572, %v1563
  %v2644 = vpack.c.b16 %v1573, %v1564
  %v2645 = vpack.c.b16 %v1574, %v1565
  %v2646 = vpack.c.b16 %v1575, %v1566
  %v2647 = vpack.c.b16 %v1576, %v1567
  %v2648 = vpack.c.b16 %v1577, %v1568
  %v2649 = vpack.c.b16 %v1578, %v1569
  %v2650 = vpack.c.b16 %v1588, %v1579
  %v2651 = vpack.c.b16 %v1589, %v1580
  %v2652 = vpack.c.b16 %v1590, %v1581
  %v2653 = vpack.c.b16 %v1591, %v1582
  %v2654 = vpack.c.b16 %v1592, %v1583
  %v2655 = vpack.c.b16 %v1593, %v1584
  %v2656 = vpack.c.b16 %v1594, %v1585
  %v2657 = vpack.c.b16 %v1595, %v1586
  %v2658 = vpack.c.b16 %v1596, %v1587
  %v2659 = vpack.c.b16 %v1606, %v1597
  %v2660 = vpack.c.b16 %v1607, %v1598
  %v2661 = vpack.c.b16 %v1608, %v1599
  %v2662 = vpack.c.b16 %v1609, %v1600
  %v2663 = vpack.c.b16 %v1610, %v1601
  %v2664 = vpack.c.b16 %v1611, %v1602
  %v2665 = vpack.c.b16 %v1612, %v1603
  %v2666 = vpack.c.b16 %v1613, %v1604
  %v2667 = vpack.c.b16 %v1614, %v1605
  %v2668 = vpack.c.b16 %v1624, %v1615
  %v2669 = vpack.c.b16 %v1625, %v1616
  %v2670 = vpack.c.b16 %v1626, %v1617
  %v2671 = vpack.c.b16 %v1627, %v1618
  %v2672 = vpack.c.b16 %v1628, %v1619
  %v2673 = vpack.c.b16 %v1629, %v1620
  %v2674 = vpack.c.b16 %v1630, %v1621
  %v2675 = vpack.c.b16 %v1631, %v1622
  %v2676 = vpack.c.b16 %v1632, %v1623
  %v2677 = vpack.c.b16 %v1642, %v1633
  %v2678 = vpack.c.b16 %v1643, %v1634
  %v2679 = vpack.c.b16 %v1644, %v1635
  %v2680 = vpack.c.b16 %v1645, %v1636
  %v2681 = vpack.c.b16 %v1646, %v1637
  %v2682 = vpack.c.b16 %v1647, %v1638
  %v2683 = vpack.c.b16 %v1648, %v1639
  %v2684 = vpack.c.b16 %v1649, %v1640
  %v2685 = vpack.c.b16 %v1650, %v1641
  %v2686 = vpack.c.b16 %v1660, %v1651
  %v2687 = vpack.c.b16 %v1661, %v1652
  %v2688 = vpack.c.b16 %v1662, %v1653
  %v2689 = vpack.c.b16 %v1663, %v1654
  %v2690 = vpack.c.b16 %v1664, %v1655
  %v2691 = vpack.c.b16 %v1665, %v1656
  %v2692 = vpack.c.b16 %v1666, %v1657
  %v2693 = vpack.c.b16 %v1667, %v1658
  %v2694 = vpack.c.b16 %v1668, %v1659
  %v2695 = vpack.c.b16 %v1678, %v1669
  %v2696 = vpack.c.b16 %v1679, %v1670
  %v2697 = vpack.c.b16 %v1680, %v1671
  %v2698 = vpack.c.b16 %v1681, %v1672
  %v2699 = vpack.c.b16 %v1682, %v1673
  %v2700 = vpack.c.b16 %v1683, %v1674
  %v2701 = vpack.c.b16 %v1684, %v1675
  %v2702 = vpack.c.b16 %v1685, %v1676
  %v2703 = vpack.c.b16 %v1686, %v1677
  %v2704 = vpack.c.b16 %v1696, %v1687
  %v2705 = vpack.c.b16 %v1697, %v1688
  %v2706 = vpack.c.b16 %v1698, %v1689
  %v2707 = vpack.c.b16 %v1699, %v1690
  %v2708 = vpack.c.b16 %v1700, %v1691
  %v2709 = vpack.c.b16 %v1701, %v1692
  %v2710 = vpack.c.b16 %v1702, %v1693
  %v2711 = vpack.c.b16 %v1703, %v1694
  %v2712 = vpack.c.b16 %v1704, %v1695
  %v2713 = vpack.c.b16 %v1714, %v1705
  %v2714 = vpack.c.b16 %v1715, %v1706
  %v2715 = vpack.c.b16 %v1716, %v1707
  %v2716 = vpack.c.b16 %v1717, %v1708
  %v2717 = vpack.c.b16 %v1718, %v1709
  %v2718 = vpack.c.b16 %v1719, %v1710
  %v2719 = vpack.c.b16 %v1720, %v1711
  %v2720 = vpack.c.b16 %v1721, %v1712
  %v2721 = vpack.c.b16 %v1722, %v1713
  %v2722 = vpack.c.b16 %v1732, %v1723
  %v2723 = vpack.c.b16 %v1733, %v1724
  %v2724 = vpack.c.b16 %v1734, %v1725
  %v2725 = vpack.c.b16 %v1735, %v1726
  %v2726 = vpack.c.b16 %v1736, %v1727
  %v2727 = vpack.c.b16 %v1737, %v1728
  %v2728 = vpack.c.b16 %v1738, %v1729
  %v2729 = vpack.c.b16 %v1739, %v1730
  %v2730 = vpack.c.b16 %v1740, %v1731
  %v2731 = vpack.c.b16 %v1750, %v1741
  %v2732 = vpack.c.b16 %v1751, %v1742
  %v2733 = vpack.c.b16 %v1752, %v1743
  %v2734 = vpack.c.b16 %v1753, %v1744
  %v2735 = vpack.c.b16 %v1754, %v1745
  %v2736 = vpack.c.b16 %v1755, %v1746
  %v2737 = vpack.c.b16 %v1756, %v1747
  %v2738 = vpack.c.b16 %v1757, %v1748
  %v2739 = vpack.c.b16 %v1758, %v1749
  %v2740 = vpack.c.b16 %v1768, %v1759
  %v2741 = vpack.c.b16 %v1769, %v1760
  %v2742 = vpack.c.b16 %v1770, %v1761
  %v2743 = vpack.c.b16 %v1771, %v1762
  %v2744 = vpack.c.b16 %v1772, %v1763
  %v2745 = vpack.c.b16 %v1773, %v1764
  %v2746 = vpack.c.b16 %v1774, %v1765
  %v2747 = vpack.c.b16 %v1775, %v1766
  %v2748 = vpack.c.b16 %v1776, %v1767
  %v2749 = vpack.c.b16 %v1786, %v1777
  %v2750 = vpack.c.b16 %v1787, %v1778
  %v2751 = vpack.c.b16 %v1788, %v1779
  %v2752 = vpack.c.b16 %v1789, %v1780
  %v2753 = vpack.c.b16 %v1790, %v1781
  %v2754 = vpack.c.b16 %v1791, %v1782
  %v2755 = vpack.c.b16 %v1792, %v1783
  %v2756 = vpack.c.b16 %v1793, %v1784
  %v2757 = vpack.c.b16 %v1794, %v1785
  %v2758 = vpack.c.b16 %v1804, %v1795
  %v2759 = vpack.c.b16 %v1805, %v1796
  %v2760 = vpack.c.b16 %v1806, %v1797
  %v2761 = vpack.c.b16 %v1807, %v1798
  %v2762 = vpack.c.b16 %v1808, %v1799
  %v2763 = vpack.c.b16 %v1809, %v1800
  %v2764 = vpack.c.b16 %v1810, %v1801
  %v2765 = vpack.c.b16 %v1811, %v1802
  %v2766 = vpack.c.b16 %v1812, %v1803
  %v2767 = vpack.c.b16 %v1822, %v1813
  %v2768 = vpack.c.b16 %v1823, %v1814
  %v2769 = vpack.c.b16 %v1824, %v1815
  %v2770 = vpack.c.b16 %v1825, %v1816
  %v2771 = vpack.c.b16 %v1826, %v1817
  %v2772 = vpack.c.b16 %v1827, %v1818
  %v2773 = vpack.c.b16 %v1828, %v1819
  %v2774 = vpack.c.b16 %v1829, %v1820
  %v2775 = vpack.c.b16 %v1830, %v1821
  %v2776 = vpack.c.b16 %v1840, %v1831
  %v2777 = vpack.c.b16 %v1841, %v1832
  %v2778 = vpack.c.b16 %v1842, %v1833
  %v2779 = vpack.c.b16 %v1843, %v1834
  %v2780 = vpack.c.b16 %v1844, %v1835
  %v2781 = vpack.c.b16 %v1845, %v1836
  %v2782 = vpack.c.b16 %v1846, %v1837
  %v2783 = vpack.c.b16 %v1847, %v1838
  %v2784 = vpack.c.b16 %v1848, %v1839
  %v2785 = vpack.c.b16 %v1858, %v1849
  %v2786 = vpack.c.b16 %v1859, %v1850
  %v2787 = vpack.c.b16 %v1860, %v1851
  %v2788 = vpack.c.b16 %v1861, %v1852
  %v2789 = vpack.c.b16 %v1862, %v1853
  %v2790 = vpack.c.b16 %v1863, %v1854
  %v2791 = vpack.c.b16 %v1864, %v1855
  %v2792 = vpack.c.b16 %v1865, %v1856
  %v2793 = vpack.c.b16 %v1866, %v1857
  %v2794 = vpack.c.b16 %v1876, %v1867
  %v2795 = vpack.c.b16 %v1877, %v1868
  %v2796 = vpack.c.b16 %v1878, %v1869
  %v2797 = vpack.c.b16 %v1879, %v1870
  %v2798 = vpack.c.b16 %v1880, %v1871
  %v2799 = vpack.c.b16 %v1881, %v1872
  %v2800 = vpack.c.b16 %v1882, %v1873
  %v2801 = vpack.c.b16 %v1883, %v1874
  %v2802 = vpack.c.b16 %v1884, %v1875
  %v2803 = vpack.c.b16 %v1894, %v1885
  %v2804 = vpack.c.b16 %v1895, %v1886
  %v2805 = vpack.c.b16 %v1896, %v1887
  %v2806 = vpack.c.b16 %v1897, %v1888
  %v2807 = vpack.c.b16 %v1898, %v1889
  %v2808 = vpack.c.b16 %v1899, %v1890
  %v2809 = vpack.c.b16 %v1900, %v1891
  %v2810 = vpack.c.b16 %v1901, %v1892
  %v2811 = vpack.c.b16 %v1902, %v1893
  %v2812 = vpack.c.b16 %v1912, %v1903
  %v2813 = vpack.c.b16 %v1913, %v1904
  %v2814 = vpack.c.b16 %v1914, %v1905
  %v2815 = vpack.c.b16 %v1915, %v1906
  %v2816 = vpack.c.b16 %v1916, %v1907
  %v2817 = vpack.c.b16 %v1917, %v1908
  %v2818 = vpack.c.b16 %v1918, %v1909
  %v2819 = vpack.c.b16 %v1919, %v1910
  %v2820 = vpack.c.b16 %v1920, %v1911
  %v2821 = vpack.c.b16 %v1930, %v1921
  %v2822 = vpack.c.b16 %v1931, %v1922
  %v2823 = vpack.c.b16 %v1932, %v1923
  %v2824 = vpack.c.b16 %v1933, %v1924
  %v2825 = vpack.c.b16 %v1934, %v1925
  %v2826 = vpack.c.b16 %v1935, %v1926
  %v2827 = vpack.c.b16 %v1936, %v1927
  %v2828 = vpack.c.b16 %v1937, %v1928
  %v2829 = vpack.c.b16 %v1938, %v1929
  %v2830 = vpack.c.b16 %v1948, %v1939
  %v2831 = vpack.c.b16 %v1949, %v1940
  %v2832 = vpack.c.b16 %v1950, %v1941
  %v2833 = vpack.c.b16 %v1951, %v1942
  %v2834 = vpack.c.b16 %v1952, %v1943
  %v2835 = vpack.c.b16 %v1953, %v1944
  %v2836 = vpack.c.b16 %v1954, %v1945
  %v2837 = vpack.c.b16 %v1955, %v1946
  %v2838 = vpack.c.b16 %v1956, %v1947
  %v2839 = vpack.c.b16 %v1966, %v1957
  %v2840 = vpack.c.b16 %v1967, %v1958
  %v2841 = vpack.c.b16 %v1968, %v1959
  %v2842 = vpack.c.b16 %v1969, %v1960
  %v2843 = vpack.c.b16 %v1970, %v1961
  %v2844 = vpack.c.b16 %v1971, %v1962
  %v2845 = vpack.c.b16 %v1972, %v1963
  %v2846 = vpack.c.b16 %v1973, %v1964
  %v2847 = vpack.c.b16 %v1974, %v1965
  %v2848 = vpack.c.b16 %v1984, %v1975
  %v2849 = vpack.c.b16 %v1985, %v1976
  %v2850 = vpack.c.b16 %v1986, %v1977
  %v2851 = vpack.c.b16 %v1987, %v1978
  %v2852 = vpack.c.b16 %v1988, %v1979
  %v2853 = vpack.c.b16 %v1989, %v1980
  %v2854 = vpack.c.b16 %v1990, %v1981
  %v2855 = vpack.c.b16 %v1991, %v1982
  %v2856 = vpack.c.b16 %v1992, %v1983
  %v2857 = vpack.c.b16 %v2002, %v1993
  %v2858 = vpack.c.b16 %v2003, %v1994
  %v2859 = vpack.c.b16 %v2004, %v1995
  %v2860 = vpack.c.b16 %v2005, %v1996
  %v2861 = vpack.c.b16 %v2006, %v1997
  %v2862 = vpack.c.b16 %v2007, %v1998
  %v2863 = vpack.c.b16 %v2008, %v1999
  %v2864 = vpack.c.b16 %v2009, %v2000
  %v2865 = vpack.c.b16 %v2010, %v2001
  %v2866 = vpack.c.b16 %v2020, %v2011
  %v2867 = vpack.c.b16 %v2021, %v2012
  %v2868 = vpack.c.b16 %v2022, %v2013
  %v2869 = vpack.c.b16 %v2023, %v2014
  %v2870 = vpack.c.b16 %v2024, %v2015
  %v2871 = vpack.c.b16 %v2025, %v2016
  %v2872 = vpack.c.b16 %v2026, %v2017
  %v2873 = vpack.c.b16 %v2027, %v2018
  %v2874 = vpack.c.b16 %v2028, %v2019
  %v2875 = vpack.c.b16 %v2038, %v2029
  %v2876 = vpack.c.b16 %v2039, %v2030
  %v2877 = vpack.c.b16 %v2040, %v2031
  %v2878 = vpack.c.b16 %v2041, %v2032
  %v2879 = vpack.c.b16 %v2042, %v2033
  %v2880 = vpack.c.b16 %v2043, %v2034
  %v2881 = vpack.c.b16 %v2044, %v2035
  %v2882 = vpack.c.b16 %v2045, %v2036
  %v2883 = vpack.c.b16 %v2046, %v2037
  %v2884 = vpack.c.b16 %v2056, %v2047
  %v2885 = vpack.c.b16 %v2057, %v2048
  %v2886 = vpack.c.b16 %v2058, %v2049
  %v2887 = vpack.c.b16 %v2059, %v2050
  %v2888 = vpack.c.b16 %v2060, %v2051
  %v2889 = vpack.c.b16 %v2061, %v2052
  %v2890 = vpack.c.b16 %v2062, %v2053
  %v2891 = vpack.c.b16 %v2063, %v2054
  %v2892 = vpack.c.b16 %v2064, %v2055
  %v2893 = vpack.c.b16 %v2074, %v2065
  %v2894 = vpack.c.b16 %v2075, %v2066
  %v2895 = vpack.c.b16 %v2076, %v2067
  %v2896 = vpack.c.b16 %v2077, %v2068
  %v2897 = vpack.c.b16 %v2078, %v2069
  %v2898 = vpack.c.b16 %v2079, %v2070
  %v2899 = vpack.c.b16 %v2080, %v2071
  %v2900 = vpack.c.b16 %v2081, %v2072
  %v2901 = vpack.c.b16 %v2082, %v2073
  %v2902 = vpack.c.b16 %v2092, %v2083
  %v2903 = vpack.c.b16 %v2093, %v2084
  %v2904 = vpack.c.b16 %v2094, %v2085
  %v2905 = vpack.c.b16 %v2095, %v2086
  %v2906 = vpack.c.b16 %v2096, %v2087
  %v2907 = vpack.c.b16 %v2097, %v2088
  %v2908 = vpack.c.b16 %v2098, %v2089
  %v2909 = vpack.c.b16 %v2099, %v2090
  %v2910 = vpack.c.b16 %v2100, %v2091
  %v2911 = vpack.c.b16 %v2110, %v2101
  %v2912 = vpack.c.b16 %v2111, %v2102
  %v2913 = vpack.c.b16 %v2112, %v2103
  %v2914 = vpack.c.b16 %v2113, %v2104
  %v2915 = vpack.c.b16 %v2114, %v2105
  %v2916 = vpack.c.b16 %v2115, %v2106
  %v2917 = vpack.c.b16 %v2116, %v2107
  %v2918 = vpack.c.b16 %v2117, %v2108
  %v2919 = vpack.c.b16 %v2118, %v2109
  %v2920 = vpack.c.b16 %v2128, %v2119
  %v2921 = vpack.c.b16 %v2129, %v2120
  %v2922 = vpack.c.b16 %v2130, %v2121
  %v2923 = vpack.c.b16 %v2131, %v2122
  %v2924 = vpack.c.b16 %v2132, %v2123
  %v2925 = vpack.c.b16 %v2133, %v2124
  %v2926 = vpack.c.b16 %v2134, %v2125
  %v2927 = vpack.c.b16 %v2135, %v2126
  %v2928 = vpack.c.b16 %v2136, %v2127
  %v2929 = vpack.c.b16 %v2146, %v2137
  %v2930 = vpack.c.b16 %v2147, %v2138
  %v2931 = vpack.c.b16 %v2148, %v2139
  %v2932 = vpack.c.b16 %v2149, %v2140
  %v2933 = vpack.c.b16 %v2150, %v2141
  %v2934 = vpack.c.b16 %v2151, %v2142
  %v2935 = vpack.c.b16 %v2152, %v2143
  %v2936 = vpack.c.b16 %v2153, %v2144
  %v2937 = vpack.c.b16 %v2154, %v2145
  %v2938 = vpack.c.b16 %v2164, %v2155
  %v2939 = vpack.c.b16 %v2165, %v2156
  %v2940 = vpack.c.b16 %v2166, %v2157
  %v2941 = vpack.c.b16 %v2167, %v2158
  %v2942 = vpack.c.b16 %v2168, %v2159
  %v2943 = vpack.c.b16 %v2169, %v2160
  %v2944 = vpack.c.b16 %v2170, %v2161
  %v2945 = vpack.c.b16 %v2171, %v2162
  %v2946 = vpack.c.b16 %v2172, %v2163
  %v2947 = vpack.c.b16 %v2182, %v2173
  %v2948 = vpack.c.b16 %v2183, %v2174
  %v2949 = vpack.c.b16 %v2184, %v2175
  %v2950 = vpack.c.b16 %v2185, %v2176
  %v2951 = vpack.c.b16 %v2186, %v2177
  %v2952 = vpack.c.b16 %v2187, %v2178
  %v2953 = vpack.c.b16 %v2188, %v2179
  %v2954 = vpack.c.b16 %v2189, %v2180
  %v2955 = vpack.c.b16 %v2190, %v2181
  %v2956 = vpack.c.b16 %v2200, %v2191
  %v2957 = vpack.c.b16 %v2201, %v2192
  %v2958 = vpack.c.b16 %v2202, %v2193
  %v2959 = vpack.c.b16 %v2203, %v2194
  %v2960 = vpack.c.b16 %v2204, %v2195
  %v2961 = vpack.c.b16 %v2205, %v2196
  %v2962 = vpack.c.b16 %v2206, %v2197
  %v2963 = vpack.c.b16 %v2207, %v2198
  %v2964 = vpack.c.b16 %v2208, %v2199
  %v2965 = vpack.c.b16 %v2218, %v2209
  %v2966 = vpack.c.b16 %v2219, %v2210
  %v2967 = vpack.c.b16 %v2220, %v2211
  %v2968 = vpack.c.b16 %v2221, %v2212
  %v2969 = vpack.c.b16 %v2222, %v2213
  %v2970 = vpack.c.b16 %v2223, %v2214
  %v2971 = vpack.c.b16 %v2224, %v2215
  %v2972 = vpack.c.b16 %v2225, %v2216
  %v2973 = vpack.c.b16 %v2226, %v2217
  %v2974 = vpack.c.b16 %v2236, %v2227
  %v2975 = vpack.c.b16 %v2237, %v2228
  %v2976 = vpack.c.b16 %v2238, %v2229
  %v2977 = vpack.c.b16 %v2239, %v2230
  %v2978 = vpack.c.b16 %v2240, %v2231
  %v2979 = vpack.c.b16 %v2241, %v2232
  %v2980 = vpack.c.b16 %v2242, %v2233
  %v2981 = vpack.c.b16 %v2243, %v2234
  %v2982 = vpack.c.b16 %v2244, %v2235
  %v2983 = vpack.c.b16 %v2254, %v2245
  %v2984 = vpack.c.b16 %v2255, %v2246
  %v2985 = vpack.c.b16 %v2256, %v2247
  %v2986 = vpack.c.b16 %v2257, %v2248
  %v2987 = vpack.c.b16 %v2258, %v2249
  %v2988 = vpack.c.b16 %v2259, %v2250
  %v2989 = vpack.c.b16 %v2260, %v2251
  %v2990 = vpack.c.b16 %v2261, %v2252
  %v2991 = vpack.c.b16 %v2262, %v2253
  %v2992 = vpack.c.b16 %v2272, %v2263
  %v2993 = vpack.c.b16 %v2273, %v2264
  %v2994 = vpack.c.b16 %v2274, %v2265
  %v2995 = vpack.c.b16 %v2275, %v2266
  %v2996 = vpack.c.b16 %v2276, %v2267
  %v2997 = vpack.c.b16 %v2277, %v2268
  %v2998 = vpack.c.b16 %v2278, %v2269
  %v2999 = vpack.c.b16 %v2279, %v2270
  %v3000 = vpack.c.b16 %v2280, %v2271
  %v3001 = vpack.c.b16 %v2290, %v2281
  %v3002 = vpack.c.b16 %v2291, %v2282
  %v3003 = vpack.c.b16 %v2292, %v2283
  %v3004 = vpack.c.b16 %v2293, %v2284
  %v3005 = vpack.c.b16 %v2294, %v2285
  %v3006 = vpack.c.b16 %v2295, %v2286
  %v3007 = vpack.c.b16 %v2296, %v2287
  %v3008 = vpack.c.b16 %v2297, %v2288
  %v3009 = vpack.c.b16 %v2298, %v2289
  %v3010 = vpack.c.b16 %v2308, %v2299
  %v3011 = vpack.c.b16 %v2309, %v2300
  %v3012 = vpack.c.b16 %v2310, %v2301
  %v3013 = vpack.c.b16 %v2311, %v2302
  %v3014 = vpack.c.b16 %v2312, %v2303
  %v3015 = vpack.c.b16 %v2313, %v2304
  %v3016 = vpack.c.b16 %v2314, %v2305
  %v3017 = vpack.c.b16 %v2315, %v2306
  %v3018 = vpack.c.b16 %v2316, %v2307
  %v3019 = vpack.c.b16 %v2326, %v2317
  %v3020 = vpack.c.b16 %v2327, %v2318
  %v3021 = vpack.c.b16 %v2328, %v2319
  %v3022 = vpack.c.b16 %v2329, %v2320
  %v3023 = vpack.c.b16 %v2330, %v2321
  %v3024 = vpack.c.b16 %v2331, %v2322
  %v3025 = vpack.c.b16 %v2332, %v2323
  %v3026 = vpack.c.b16 %v2333, %v2324
  %v3027 = vpack.c.b16 %v2334, %v2325
  %v3028 = vpack.c.b16 %v2344, %v2335
  %v3029 = vpack.c.b16 %v2345, %v2336
  %v3030 = vpack.c.b16 %v2346, %v2337
  %v3031 = vpack.c.b16 %v2347, %v2338
  %v3032 = vpack.c.b16 %v2348, %v2339
  %v3033 = vpack.c.b16 %v2349, %v2340
  %v3034 = vpack.c.b16 %v2350, %v2341
  %v3035 = vpack.c.b16 %v2351, %v2342
  %v3036 = vpack.c.b16 %v2352, %v2343
  %v3037 = vpack.c.b16 %v2362, %v2353
  %v3038 = vpack.c.b16 %v2363, %v2354
  %v3039 = vpack.c.b16 %v2364, %v2355
  %v3040 = vpack.c.b16 %v2365, %v2356
  %v3041 = vpack.c.b16 %v2366, %v2357
  %v3042 = vpack.c.b16 %v2367, %v2358
  %v3043 = vpack.c.b16 %v2368, %v2359
  %v3044 = vpack.c.b16 %v2369, %v2360
  %v3045 = vpack.c.b16 %v2370, %v2361
  %v3046 = vpack.c.b16 %v2380, %v2371
  %v3047 = vpack.c.b16 %v2381, %v2372
  %v3048 = vpack.c.b16 %v2382, %v2373
  %v3049 = vpack.c.b16 %v2383, %v2374
  %v3050 = vpack.c.b16 %v2384, %v2375
  %v3051 = vpack.c.b16 %v2385, %v2376
  %v3052 = vpack.c.b16 %v2386, %v2377
  %v3053 = vpack.c.b16 %v2387, %v2378
  %v3054 = vpack.c.b16 %v2388, %v2379
  %v3055 = vpack.c.b16 %v2398, %v2389
  %v3056 = vpack.c.b16 %v2399, %v2390
  %v3057 = vpack.c.b16 %v2400, %v2391
  %v3058 = vpack.c.b16 %v2401, %v2392
  %v3059 = vpack.c.b16 %v2402, %v2393
  %v3060 = vpack.c.b16 %v2403, %v2394
  %v3061 = vpack.c.b16 %v2404, %v2395
  %v3062 = vpack.c.b16 %v2405, %v2396
  %v3063 = vpack.c.b16 %v2406, %v2397
  %v3064 = vpack.c.b16 %v2416, %v2407
  %v3065 = vpack.c.b16 %v2417, %v2408
  %v3066 = vpack.c.b16 %v2418, %v2409
  %v3067 = vpack.c.b16 %v2419, %v2410
  %v3068 = vpack.c.b16 %v2420, %v2411
  %v3069 = vpack.c.b16 %v2421, %v2412
  %v3070 = vpack.c.b16 %v2422, %v2413
  %v3071 = vpack.c.b16 %v2423, %v2414
  %v3072 = vpack.c.b16 %v2424, %v2415
  %v3073 = vpack.c.b16 %v2434, %v2425
  %v3074 = vpack.c.b16 %v2435, %v2426
  %v3075 = vpack.c.b16 %v2436, %v2427
  %v3076 = vpack.c.b16 %v2437, %v2428
  %v3077 = vpack.c.b16 %v2438, %v2429
  %v3078 = vpack.c.b16 %v2439, %v2430
  %v3079 = vpack.c.b16 %v2440, %v2431
  %v3080 = vpack.c.b16 %v2441, %v2432
  %v3081 = vpack.c.b16 %v2442, %v2433
  %v3082 = vpack.c.b16 %v2452, %v2443
  %v3083 = vpack.c.b16 %v2453, %v2444
  %v3084 = vpack.c.b16 %v2454, %v2445
  %v3085 = vpack.c.b16 %v2455, %v2446
  %v3086 = vpack.c.b16 %v2456, %v2447
  %v3087 = vpack.c.b16 %v2457, %v2448
  %v3088 = vpack.c.b16 %v2458, %v2449
  %v3089 = vpack.c.b16 %v2459, %v2450
  %v3090 = vpack.c.b16 %v2460, %v2451
  %v3091 = vpack.c.b16 %v2470, %v2461
  %v3092 = vpack.c.b16 %v2471, %v2462
  %v3093 = vpack.c.b16 %v2472, %v2463
  %v3094 = vpack.c.b16 %v2473, %v2464
  %v3095 = vpack.c.b16 %v2474, %v2465
  %v3096 = vpack.c.b16 %v2475, %v2466
  %v3097 = vpack.c.b16 %v2476, %v2467
  %v3098 = vpack.c.b16 %v2477, %v2468
  %v3099 = vpack.c.b16 %v2478, %v2469
  %v3100 = vpack.c.b16 %v2488, %v2479
  %v3101 = vpack.c.b16 %v2489, %v2480
  %v3102 = vpack.c.b16 %v2490, %v2481
  %v3103 = vpack.c.b16 %v2491, %v2482
  %v3104 = vpack.c.b16 %v2492, %v2483
  %v3105 = vpack.c.b16 %v2493, %v2484
  %v3106 = vpack.c.b16 %v2494, %v2485
  %v3107 = vpack.c.b16 %v2495, %v2486
  %v3108 = vpack.c.b16 %v2496, %v2487
  %v3109 = vpack.c.b16 %v2506, %v2497
  %v3110 = vpack.c.b16 %v2507, %v2498
  %v3111 = vpack.c.b16 %v2508, %v2499
  %v3112 = vpack.c.b16 %v2509, %v2500
  %v3113 = vpack.c.b16 %v2510, %v2501
  %v3114 = vpack.c.b16 %v2511, %v2502
  %v3115 = vpack.c.b16 %v2512, %v2503
  %v3116 = vpack.c.b16 %v2513, %v2504
  %v3117 = vpack.c.b16 %v2514, %v2505
  %v3118 = vpack.c.b16 %v2524, %v2515
  %v3119 = vpack.c.b16 %v2525, %v2516
  %v3120 = vpack.c.b16 %v2526, %v2517
  %v3121 = vpack.c.b16 %v2527, %v2518
  %v3122 = vpack.c.b16 %v2528, %v2519
  %v3123 = vpack.c.b16 %v2529, %v2520
  %v3124 = vpack.c.b16 %v2530, %v2521
  %v3125 = vpack.c.b16 %v2531, %v2522
  %v3126 = vpack.c.b16 %v2532, %v2523
  %v3127 = vpack.c.b16 %v2542, %v2533
  %v3128 = vpack.c.b16 %v2543, %v2534
  %v3129 = vpack.c.b16 %v2544, %v2535
  %v3130 = vpack.c.b16 %v2545, %v2536
  %v3131 = vpack.c.b16 %v2546, %v2537
  %v3132 = vpack.c.b16 %v2547, %v2538
  %v3133 = vpack.c.b16 %v2548, %v2539
  %v3134 = vpack.c.b16 %v2549, %v2540
  %v3135 = vpack.c.b16 %v2550, %v2541
  %v3136 = vpack.c.b16 %v2560, %v2551
  %v3137 = vpack.c.b16 %v2561, %v2552
  %v3138 = vpack.c.b16 %v2562, %v2553
  %v3139 = vpack.c.b16 %v2563, %v2554
  %v3140 = vpack.c.b16 %v2564, %v2555
  %v3141 = vpack.c.b16 %v2565, %v2556
  %v3142 = vpack.c.b16 %v2566, %v2557
  %v3143 = vpack.c.b16 %v2567, %v2558
  %v3144 = vpack.c.b16 %v2568, %v2559
  %3721 = vmatprep.subr.bf16.mxu0 %v2570
  %3722 = vmatpush1.bf16.msra.mxu0 %v2569
  %3723 = vmatprep.subr.bf16.mxu0 %v2579
  %3724 = vmatpush1.bf16.msra.mxu0 %v2578
  %3725 = vmatprep.subr.bf16.mxu0 %v2588
  %3726 = vmatpush1.bf16.msra.mxu0 %v2587
  %3727 = vmatprep.subr.bf16.mxu0 %v2597
  %3728 = vmatpush1.bf16.msra.mxu0 %v2596
  %3729 = vmatprep.subr.bf16.mxu0 %v2606
  %3730 = vmatpush1.bf16.msra.mxu0 %v2605
  %3731 = vmatprep.subr.bf16.mxu0 %v2615
  %3732 = vmatpush1.bf16.msra.mxu0 %v2614
  %3733 = vmatprep.subr.bf16.mxu0 %v2624
  %3734 = vmatpush1.bf16.msra.mxu0 %v2623
  %3735 = vmatprep.subr.bf16.mxu0 %v2633
  %3736 = vmatpush1.bf16.msra.mxu0 %v2632
  %3737 = vmatprep.subr.bf16.mxu0 %v2642
  %3738 = vmatpush1.bf16.msra.mxu0 %v2641
  %3739 = vmatprep.subr.bf16.mxu0 %v2651
  %3740 = vmatpush1.bf16.msra.mxu0 %v2650
  %3741 = vmatprep.subr.bf16.mxu0 %v2660
  %3742 = vmatpush1.bf16.msra.mxu0 %v2659
  %3743 = vmatprep.subr.bf16.mxu0 %v2669
  %3744 = vmatpush1.bf16.msra.mxu0 %v2668
  %3745 = vmatprep.subr.bf16.mxu0 %v2678
  %3746 = vmatpush1.bf16.msra.mxu0 %v2677
  %3747 = vmatprep.subr.bf16.mxu0 %v2687
  %3748 = vmatpush1.bf16.msra.mxu0 %v2686
  %3749 = vmatprep.subr.bf16.mxu0 %v2696
  %3750 = vmatpush1.bf16.msra.mxu0 %v2695
  %3751 = vmatprep.subr.bf16.mxu0 %v2705
  %3752 = vmatpush1.bf16.msra.mxu0 %v2704
  %3753 = vmatprep.mubr.bf16.mxu0 %v757
  %3754 = vmatmul.mubr.bf16.gmra.mrb[0].mxu0 %v743
  %v3755 = vpop.f32.mrb[0].mxu0
  %v3756 = vadd.f32 %v677, %v3755
  %v3757 = vpop.f32.mrb[0].mxu0
  %v3758 = vadd.f32 %v681, %v3757
  %v3759 = vpop.f32.mrb[0].mxu0
  %v3760 = vpop.f32.mrb[0].mxu0
  %3761 = vdwg.mxu0
  %3762 = vmatprep.subr.bf16.mxu0 %v2714
  %3763 = vmatpush1.bf16.msra.mxu0 %v2713
  %3764 = vmatprep.subr.bf16.mxu0 %v2723
  %3765 = vmatpush1.bf16.msra.mxu0 %v2722
  %3766 = vmatprep.subr.bf16.mxu0 %v2732
  %3767 = vmatpush1.bf16.msra.mxu0 %v2731
  %3768 = vmatprep.subr.bf16.mxu0 %v2741
  %3769 = vmatpush1.bf16.msra.mxu0 %v2740
  %3770 = vmatprep.subr.bf16.mxu0 %v2750
  %3771 = vmatpush1.bf16.msra.mxu0 %v2749
  %3772 = vmatprep.subr.bf16.mxu0 %v2759
  %3773 = vmatpush1.bf16.msra.mxu0 %v2758
  %3774 = vmatprep.subr.bf16.mxu0 %v2768
  %3775 = vmatpush1.bf16.msra.mxu0 %v2767
  %3776 = vmatprep.subr.bf16.mxu0 %v2777
  %3777 = vmatpush1.bf16.msra.mxu0 %v2776
  %3778 = vmatprep.subr.bf16.mxu0 %v2786
  %3779 = vmatpush1.bf16.msra.mxu0 %v2785
  %3780 = vmatprep.subr.bf16.mxu0 %v2795
  %3781 = vmatpush1.bf16.msra.mxu0 %v2794
  %3782 = vmatprep.subr.bf16.mxu0 %v2804
  %3783 = vmatpush1.bf16.msra.mxu0 %v2803
  %3784 = vmatprep.subr.bf16.mxu0 %v2813
  %3785 = vmatpush1.bf16.msra.mxu0 %v2812
  %3786 = vmatprep.subr.bf16.mxu0 %v2822
  %3787 = vmatpush1.bf16.msra.mxu0 %v2821
  %3788 = vmatprep.subr.bf16.mxu0 %v2831
  %3789 = vmatpush1.bf16.msra.mxu0 %v2830
  %3790 = vmatprep.subr.bf16.mxu0 %v2840
  %3791 = vmatpush1.bf16.msra.mxu0 %v2839
  %3792 = vmatprep.subr.bf16.mxu0 %v2849
  %3793 = vmatpush1.bf16.msra.mxu0 %v2848
  %3794 = vmatprep.mubr.bf16.mxu0 %v767
  %3795 = vmatmul.mubr.bf16.gmra.mrb[0].mxu0 %v765
  %v3796 = vpop.f32.mrb[0].mxu0
  %v3797 = vadd.f32 %v3756, %v3796
  %v3798 = vpop.f32.mrb[0].mxu0
  %v3799 = vadd.f32 %v3758, %v3798
  %v3800 = vpop.f32.mrb[0].mxu0
  %v3801 = vpop.f32.mrb[0].mxu0
  %3802 = vdwg.mxu0
  %3803 = vmatprep.subr.bf16.mxu0 %v2858
  %3804 = vmatpush1.bf16.msra.mxu0 %v2857
  %3805 = vmatprep.subr.bf16.mxu0 %v2867
  %3806 = vmatpush1.bf16.msra.mxu0 %v2866
  %3807 = vmatprep.subr.bf16.mxu0 %v2876
  %3808 = vmatpush1.bf16.msra.mxu0 %v2875
  %3809 = vmatprep.subr.bf16.mxu0 %v2885
  %3810 = vmatpush1.bf16.msra.mxu0 %v2884
  %3811 = vmatprep.subr.bf16.mxu0 %v2894
  %3812 = vmatpush1.bf16.msra.mxu0 %v2893
  %3813 = vmatprep.subr.bf16.mxu0 %v2903
  %3814 = vmatpush1.bf16.msra.mxu0 %v2902
  %3815 = vmatprep.subr.bf16.mxu0 %v2912
  %3816 = vmatpush1.bf16.msra.mxu0 %v2911
  %3817 = vmatprep.subr.bf16.mxu0 %v2921
  %3818 = vmatpush1.bf16.msra.mxu0 %v2920
  %3819 = vmatprep.subr.bf16.mxu0 %v2930
  %3820 = vmatpush1.bf16.msra.mxu0 %v2929
  %3821 = vmatprep.subr.bf16.mxu0 %v2939
  %3822 = vmatpush1.bf16.msra.mxu0 %v2938
  %3823 = vmatprep.subr.bf16.mxu0 %v2948
  %3824 = vmatpush1.bf16.msra.mxu0 %v2947
  %3825 = vmatprep.subr.bf16.mxu0 %v2957
  %3826 = vmatpush1.bf16.msra.mxu0 %v2956
  %3827 = vmatprep.subr.bf16.mxu0 %v2966
  %3828 = vmatpush1.bf16.msra.mxu0 %v2965
  %3829 = vmatprep.subr.bf16.mxu0 %v2975
  %3830 = vmatpush1.bf16.msra.mxu0 %v2974
  %3831 = vmatprep.subr.bf16.mxu0 %v2984
  %3832 = vmatpush1.bf16.msra.mxu0 %v2983
  %3833 = vmatprep.subr.bf16.mxu0 %v2993
  %3834 = vmatpush1.bf16.msra.mxu0 %v2992
  %3835 = vmatprep.mubr.bf16.mxu0 %v764
  %3836 = vmatmul.mubr.bf16.gmra.mrb[0].mxu0 %v750
  %v3837 = vpop.f32.mrb[0].mxu0
  %v3838 = vadd.f32 %v3797, %v3837
  %v3839 = vpop.f32.mrb[0].mxu0
  %v3840 = vadd.f32 %v3799, %v3839
  %v3841 = vpop.f32.mrb[0].mxu0
  %v3842 = vpop.f32.mrb[0].mxu0
  %3843 = vdwg.mxu0
  %3844 = vmatprep.subr.bf16.mxu0 %v3002
  %3845 = vmatpush1.bf16.msra.mxu0 %v3001
  %3846 = vmatprep.subr.bf16.mxu0 %v3011
  %3847 = vmatpush1.bf16.msra.mxu0 %v3010
  %3848 = vmatprep.subr.bf16.mxu0 %v3020
  %3849 = vmatpush1.bf16.msra.mxu0 %v3019
  %3850 = vmatprep.subr.bf16.mxu0 %v3029
  %3851 = vmatpush1.bf16.msra.mxu0 %v3028
  %3852 = vmatprep.subr.bf16.mxu0 %v3038
  %3853 = vmatpush1.bf16.msra.mxu0 %v3037
  %3854 = vmatprep.subr.bf16.mxu0 %v3047
  %3855 = vmatpush1.bf16.msra.mxu0 %v3046
  %3856 = vmatprep.subr.bf16.mxu0 %v3056
  %3857 = vmatpush1.bf16.msra.mxu0 %v3055
  %3858 = vmatprep.subr.bf16.mxu0 %v3065
  %3859 = vmatpush1.bf16.msra.mxu0 %v3064
  %3860 = vmatprep.subr.bf16.mxu0 %v3074
  %3861 = vmatpush1.bf16.msra.mxu0 %v3073
  %3862 = vmatprep.subr.bf16.mxu0 %v3083
  %3863 = vmatpush1.bf16.msra.mxu0 %v3082
  %3864 = vmatprep.subr.bf16.mxu0 %v3092
  %3865 = vmatpush1.bf16.msra.mxu0 %v3091
  %3866 = vmatprep.subr.bf16.mxu0 %v3101
  %3867 = vmatpush1.bf16.msra.mxu0 %v3100
  %3868 = vmatprep.subr.bf16.mxu0 %v3110
  %3869 = vmatpush1.bf16.msra.mxu0 %v3109
  %3870 = vmatprep.subr.bf16.mxu0 %v3119
  %3871 = vmatpush1.bf16.msra.mxu0 %v3118
  %3872 = vmatprep.subr.bf16.mxu0 %v3128
  %3873 = vmatpush1.bf16.msra.mxu0 %v3127
  %3874 = vmatprep.subr.bf16.mxu0 %v3137
  %3875 = vmatpush1.bf16.msra.mxu0 %v3136
  %3876 = vmatprep.mubr.bf16.mxu0 %v768
  %3877 = vmatmul.mubr.bf16.gmra.mrb[0].mxu0 %v766
  %v3878 = vpop.f32.mrb[0].mxu0
  %v3879 = vadd.f32 %v3838, %v3878
  %v3880 = vpop.f32.mrb[0].mxu0
  %v3881 = vadd.f32 %v3840, %v3880
  %v3882 = vpop.f32.mrb[0].mxu0
  %v3883 = vpop.f32.mrb[0].mxu0
  %3884 = vdwg.mxu0
  %3885 = vmatprep.subr.bf16.mxu0 %v2572
  %3886 = vmatpush1.bf16.msra.mxu0 %v2571
  %3887 = vmatprep.subr.bf16.mxu0 %v2581
  %3888 = vmatpush1.bf16.msra.mxu0 %v2580
  %3889 = vmatprep.subr.bf16.mxu0 %v2590
  %3890 = vmatpush1.bf16.msra.mxu0 %v2589
  %3891 = vmatprep.subr.bf16.mxu0 %v2599
  %3892 = vmatpush1.bf16.msra.mxu0 %v2598
  %3893 = vmatprep.subr.bf16.mxu0 %v2608
  %3894 = vmatpush1.bf16.msra.mxu0 %v2607
  %3895 = vmatprep.subr.bf16.mxu0 %v2617
  %3896 = vmatpush1.bf16.msra.mxu0 %v2616
  %3897 = vmatprep.subr.bf16.mxu0 %v2626
  %3898 = vmatpush1.bf16.msra.mxu0 %v2625
  %3899 = vmatprep.subr.bf16.mxu0 %v2635
  %3900 = vmatpush1.bf16.msra.mxu0 %v2634
  %3901 = vmatprep.subr.bf16.mxu0 %v2644
  %3902 = vmatpush1.bf16.msra.mxu0 %v2643
  %3903 = vmatprep.subr.bf16.mxu0 %v2653
  %3904 = vmatpush1.bf16.msra.mxu0 %v2652
  %3905 = vmatprep.subr.bf16.mxu0 %v2662
  %3906 = vmatpush1.bf16.msra.mxu0 %v2661
  %3907 = vmatprep.subr.bf16.mxu0 %v2671
  %3908 = vmatpush1.bf16.msra.mxu0 %v2670
  %3909 = vmatprep.subr.bf16.mxu0 %v2680
  %3910 = vmatpush1.bf16.msra.mxu0 %v2679
  %3911 = vmatprep.subr.bf16.mxu0 %v2689
  %3912 = vmatpush1.bf16.msra.mxu0 %v2688
  %3913 = vmatprep.subr.bf16.mxu0 %v2698
  %3914 = vmatpush1.bf16.msra.mxu0 %v2697
  %3915 = vmatprep.subr.bf16.mxu0 %v2707
  %3916 = vmatpush1.bf16.msra.mxu0 %v2706
  %3917 = vmatprep.mubr.bf16.mxu0 %v757
  %3918 = vmatmul.mubr.bf16.gmra.mrb[0].mxu0 %v743
  %v3919 = vpop.f32.mrb[0].mxu0
  %v3920 = vadd.f32 %v685, %v3919
  %v3921 = vpop.f32.mrb[0].mxu0
  %v3922 = vadd.f32 %v689, %v3921
  %v3923 = vpop.f32.mrb[0].mxu0
  %v3924 = vpop.f32.mrb[0].mxu0
  %3925 = vdwg.mxu0
  %3926 = vmatprep.subr.bf16.mxu0 %v2716
  %3927 = vmatpush1.bf16.msra.mxu0 %v2715
  %3928 = vmatprep.subr.bf16.mxu0 %v2725
  %3929 = vmatpush1.bf16.msra.mxu0 %v2724
  %3930 = vmatprep.subr.bf16.mxu0 %v2734
  %3931 = vmatpush1.bf16.msra.mxu0 %v2733
  %3932 = vmatprep.subr.bf16.mxu0 %v2743
  %3933 = vmatpush1.bf16.msra.mxu0 %v2742
  %3934 = vmatprep.subr.bf16.mxu0 %v2752
  %3935 = vmatpush1.bf16.msra.mxu0 %v2751
  %3936 = vmatprep.subr.bf16.mxu0 %v2761
  %3937 = vmatpush1.bf16.msra.mxu0 %v2760
  %3938 = vmatprep.subr.bf16.mxu0 %v2770
  %3939 = vmatpush1.bf16.msra.mxu0 %v2769
  %3940 = vmatprep.subr.bf16.mxu0 %v2779
  %3941 = vmatpush1.bf16.msra.mxu0 %v2778
  %3942 = vmatprep.subr.bf16.mxu0 %v2788
  %3943 = vmatpush1.bf16.msra.mxu0 %v2787
  %3944 = vmatprep.subr.bf16.mxu0 %v2797
  %3945 = vmatpush1.bf16.msra.mxu0 %v2796
  %3946 = vmatprep.subr.bf16.mxu0 %v2806
  %3947 = vmatpush1.bf16.msra.mxu0 %v2805
  %3948 = vmatprep.subr.bf16.mxu0 %v2815
  %3949 = vmatpush1.bf16.msra.mxu0 %v2814
  %3950 = vmatprep.subr.bf16.mxu0 %v2824
  %3951 = vmatpush1.bf16.msra.mxu0 %v2823
  %3952 = vmatprep.subr.bf16.mxu0 %v2833
  %3953 = vmatpush1.bf16.msra.mxu0 %v2832
  %3954 = vmatprep.subr.bf16.mxu0 %v2842
  %3955 = vmatpush1.bf16.msra.mxu0 %v2841
  %3956 = vmatprep.subr.bf16.mxu0 %v2851
  %3957 = vmatpush1.bf16.msra.mxu0 %v2850
  %3958 = vmatprep.mubr.bf16.mxu0 %v767
  %3959 = vmatmul.mubr.bf16.gmra.mrb[0].mxu0 %v765
  %v3960 = vpop.f32.mrb[0].mxu0
  %v3961 = vadd.f32 %v3920, %v3960
  %v3962 = vpop.f32.mrb[0].mxu0
  %v3963 = vadd.f32 %v3922, %v3962
  %v3964 = vpop.f32.mrb[0].mxu0
  %v3965 = vpop.f32.mrb[0].mxu0
  %3966 = vdwg.mxu0
  %3967 = vmatprep.subr.bf16.mxu0 %v2860
  %3968 = vmatpush1.bf16.msra.mxu0 %v2859
  %3969 = vmatprep.subr.bf16.mxu0 %v2869
  %3970 = vmatpush1.bf16.msra.mxu0 %v2868
  %3971 = vmatprep.subr.bf16.mxu0 %v2878
  %3972 = vmatpush1.bf16.msra.mxu0 %v2877
  %3973 = vmatprep.subr.bf16.mxu0 %v2887
  %3974 = vmatpush1.bf16.msra.mxu0 %v2886
  %3975 = vmatprep.subr.bf16.mxu0 %v2896
  %3976 = vmatpush1.bf16.msra.mxu0 %v2895
  %3977 = vmatprep.subr.bf16.mxu0 %v2905
  %3978 = vmatpush1.bf16.msra.mxu0 %v2904
  %3979 = vmatprep.subr.bf16.mxu0 %v2914
  %3980 = vmatpush1.bf16.msra.mxu0 %v2913
  %3981 = vmatprep.subr.bf16.mxu0 %v2923
  %3982 = vmatpush1.bf16.msra.mxu0 %v2922
  %3983 = vmatprep.subr.bf16.mxu0 %v2932
  %3984 = vmatpush1.bf16.msra.mxu0 %v2931
  %3985 = vmatprep.subr.bf16.mxu0 %v2941
  %3986 = vmatpush1.bf16.msra.mxu0 %v2940
  %3987 = vmatprep.subr.bf16.mxu0 %v2950
  %3988 = vmatpush1.bf16.msra.mxu0 %v2949
  %3989 = vmatprep.subr.bf16.mxu0 %v2959
  %3990 = vmatpush1.bf16.msra.mxu0 %v2958
  %3991 = vmatprep.subr.bf16.mxu0 %v2968
  %3992 = vmatpush1.bf16.msra.mxu0 %v2967
  %3993 = vmatprep.subr.bf16.mxu0 %v2977
  %3994 = vmatpush1.bf16.msra.mxu0 %v2976
  %3995 = vmatprep.subr.bf16.mxu0 %v2986
  %3996 = vmatpush1.bf16.msra.mxu0 %v2985
  %3997 = vmatprep.subr.bf16.mxu0 %v2995
  %3998 = vmatpush1.bf16.msra.mxu0 %v2994
  %3999 = vmatprep.mubr.bf16.mxu0 %v764
  %4000 = vmatmul.mubr.bf16.gmra.mrb[0].mxu0 %v750
  %v4001 = vpop.f32.mrb[0].mxu0
  %v4002 = vadd.f32 %v3961, %v4001
  %v4003 = vpop.f32.mrb[0].mxu0
  %v4004 = vadd.f32 %v3963, %v4003
  %v4005 = vpop.f32.mrb[0].mxu0
  %v4006 = vpop.f32.mrb[0].mxu0
  %4007 = vdwg.mxu0
  %4008 = vmatprep.subr.bf16.mxu0 %v3004
  %4009 = vmatpush1.bf16.msra.mxu0 %v3003
  %4010 = vmatprep.subr.bf16.mxu0 %v3013
  %4011 = vmatpush1.bf16.msra.mxu0 %v3012
  %4012 = vmatprep.subr.bf16.mxu0 %v3022
  %4013 = vmatpush1.bf16.msra.mxu0 %v3021
  %4014 = vmatprep.subr.bf16.mxu0 %v3031
  %4015 = vmatpush1.bf16.msra.mxu0 %v3030
  %4016 = vmatprep.subr.bf16.mxu0 %v3040
  %4017 = vmatpush1.bf16.msra.mxu0 %v3039
  %4018 = vmatprep.subr.bf16.mxu0 %v3049
  %4019 = vmatpush1.bf16.msra.mxu0 %v3048
  %4020 = vmatprep.subr.bf16.mxu0 %v3058
  %4021 = vmatpush1.bf16.msra.mxu0 %v3057
  %4022 = vmatprep.subr.bf16.mxu0 %v3067
  %4023 = vmatpush1.bf16.msra.mxu0 %v3066
  %4024 = vmatprep.subr.bf16.mxu0 %v3076
  %4025 = vmatpush1.bf16.msra.mxu0 %v3075
  %4026 = vmatprep.subr.bf16.mxu0 %v3085
  %4027 = vmatpush1.bf16.msra.mxu0 %v3084
  %4028 = vmatprep.subr.bf16.mxu0 %v3094
  %4029 = vmatpush1.bf16.msra.mxu0 %v3093
  %4030 = vmatprep.subr.bf16.mxu0 %v3103
  %4031 = vmatpush1.bf16.msra.mxu0 %v3102
  %4032 = vmatprep.subr.bf16.mxu0 %v3112
  %4033 = vmatpush1.bf16.msra.mxu0 %v3111
  %4034 = vmatprep.subr.bf16.mxu0 %v3121
  %4035 = vmatpush1.bf16.msra.mxu0 %v3120
  %4036 = vmatprep.subr.bf16.mxu0 %v3130
  %4037 = vmatpush1.bf16.msra.mxu0 %v3129
  %4038 = vmatprep.subr.bf16.mxu0 %v3139
  %4039 = vmatpush1.bf16.msra.mxu0 %v3138
  %4040 = vmatprep.mubr.bf16.mxu0 %v768
  %4041 = vmatmul.mubr.bf16.gmra.mrb[0].mxu0 %v766
  %v4042 = vpop.f32.mrb[0].mxu0
  %v4043 = vadd.f32 %v4002, %v4042
  %v4044 = vpop.f32.mrb[0].mxu0
  %v4045 = vadd.f32 %v4004, %v4044
  %v4046 = vpop.f32.mrb[0].mxu0
  %v4047 = vpop.f32.mrb[0].mxu0
  %4048 = vdwg.mxu0
  %4049 = vmatprep.subr.bf16.mxu0 %v2574
  %4050 = vmatpush1.bf16.msra.mxu0 %v2573
  %4051 = vmatprep.subr.bf16.mxu0 %v2583
  %4052 = vmatpush1.bf16.msra.mxu0 %v2582
  %4053 = vmatprep.subr.bf16.mxu0 %v2592
  %4054 = vmatpush1.bf16.msra.mxu0 %v2591
  %4055 = vmatprep.subr.bf16.mxu0 %v2601
  %4056 = vmatpush1.bf16.msra.mxu0 %v2600
  %4057 = vmatprep.subr.bf16.mxu0 %v2610
  %4058 = vmatpush1.bf16.msra.mxu0 %v2609
  %4059 = vmatprep.subr.bf16.mxu0 %v2619
  %4060 = vmatpush1.bf16.msra.mxu0 %v2618
  %4061 = vmatprep.subr.bf16.mxu0 %v2628
  %4062 = vmatpush1.bf16.msra.mxu0 %v2627
  %4063 = vmatprep.subr.bf16.mxu0 %v2637
  %4064 = vmatpush1.bf16.msra.mxu0 %v2636
  %4065 = vmatprep.subr.bf16.mxu0 %v2646
  %4066 = vmatpush1.bf16.msra.mxu0 %v2645
  %4067 = vmatprep.subr.bf16.mxu0 %v2655
  %4068 = vmatpush1.bf16.msra.mxu0 %v2654
  %4069 = vmatprep.subr.bf16.mxu0 %v2664
  %4070 = vmatpush1.bf16.msra.mxu0 %v2663
  %4071 = vmatprep.subr.bf16.mxu0 %v2673
  %4072 = vmatpush1.bf16.msra.mxu0 %v2672
  %4073 = vmatprep.subr.bf16.mxu0 %v2682
  %4074 = vmatpush1.bf16.msra.mxu0 %v2681
  %4075 = vmatprep.subr.bf16.mxu0 %v2691
  %4076 = vmatpush1.bf16.msra.mxu0 %v2690
  %4077 = vmatprep.subr.bf16.mxu0 %v2700
  %4078 = vmatpush1.bf16.msra.mxu0 %v2699
  %4079 = vmatprep.subr.bf16.mxu0 %v2709
  %4080 = vmatpush1.bf16.msra.mxu0 %v2708
  %4081 = vmatprep.mubr.bf16.mxu0 %v757
  %4082 = vmatmul.mubr.bf16.gmra.mrb[0].mxu0 %v743
  %v4083 = vpop.f32.mrb[0].mxu0
  %v4084 = vadd.f32 %v693, %v4083
  %v4085 = vpop.f32.mrb[0].mxu0
  %v4086 = vadd.f32 %v697, %v4085
  %v4087 = vpop.f32.mrb[0].mxu0
  %v4088 = vpop.f32.mrb[0].mxu0
  %4089 = vdwg.mxu0
  %4090 = vmatprep.subr.bf16.mxu0 %v2718
  %4091 = vmatpush1.bf16.msra.mxu0 %v2717
  %4092 = vmatprep.subr.bf16.mxu0 %v2727
  %4093 = vmatpush1.bf16.msra.mxu0 %v2726
  %4094 = vmatprep.subr.bf16.mxu0 %v2736
  %4095 = vmatpush1.bf16.msra.mxu0 %v2735
  %4096 = vmatprep.subr.bf16.mxu0 %v2745
  %4097 = vmatpush1.bf16.msra.mxu0 %v2744
  %4098 = vmatprep.subr.bf16.mxu0 %v2754
  %4099 = vmatpush1.bf16.msra.mxu0 %v2753
  %4100 = vmatprep.subr.bf16.mxu0 %v2763
  %4101 = vmatpush1.bf16.msra.mxu0 %v2762
  %4102 = vmatprep.subr.bf16.mxu0 %v2772
  %4103 = vmatpush1.bf16.msra.mxu0 %v2771
  %4104 = vmatprep.subr.bf16.mxu0 %v2781
  %4105 = vmatpush1.bf16.msra.mxu0 %v2780
  %4106 = vmatprep.subr.bf16.mxu0 %v2790
  %4107 = vmatpush1.bf16.msra.mxu0 %v2789
  %4108 = vmatprep.subr.bf16.mxu0 %v2799
  %4109 = vmatpush1.bf16.msra.mxu0 %v2798
  %4110 = vmatprep.subr.bf16.mxu0 %v2808
  %4111 = vmatpush1.bf16.msra.mxu0 %v2807
  %4112 = vmatprep.subr.bf16.mxu0 %v2817
  %4113 = vmatpush1.bf16.msra.mxu0 %v2816
  %4114 = vmatprep.subr.bf16.mxu0 %v2826
  %4115 = vmatpush1.bf16.msra.mxu0 %v2825
  %4116 = vmatprep.subr.bf16.mxu0 %v2835
  %4117 = vmatpush1.bf16.msra.mxu0 %v2834
  %4118 = vmatprep.subr.bf16.mxu0 %v2844
  %4119 = vmatpush1.bf16.msra.mxu0 %v2843
  %4120 = vmatprep.subr.bf16.mxu0 %v2853
  %4121 = vmatpush1.bf16.msra.mxu0 %v2852
  %4122 = vmatprep.mubr.bf16.mxu0 %v767
  %4123 = vmatmul.mubr.bf16.gmra.mrb[0].mxu0 %v765
  %v4124 = vpop.f32.mrb[0].mxu0
  %v4125 = vadd.f32 %v4084, %v4124
  %v4126 = vpop.f32.mrb[0].mxu0
  %v4127 = vadd.f32 %v4086, %v4126
  %v4128 = vpop.f32.mrb[0].mxu0
  %v4129 = vpop.f32.mrb[0].mxu0
  %4130 = vdwg.mxu0
  %4131 = vmatprep.subr.bf16.mxu0 %v2862
  %4132 = vmatpush1.bf16.msra.mxu0 %v2861
  %4133 = vmatprep.subr.bf16.mxu0 %v2871
  %4134 = vmatpush1.bf16.msra.mxu0 %v2870
  %4135 = vmatprep.subr.bf16.mxu0 %v2880
  %4136 = vmatpush1.bf16.msra.mxu0 %v2879
  %4137 = vmatprep.subr.bf16.mxu0 %v2889
  %4138 = vmatpush1.bf16.msra.mxu0 %v2888
  %4139 = vmatprep.subr.bf16.mxu0 %v2898
  %4140 = vmatpush1.bf16.msra.mxu0 %v2897
  %4141 = vmatprep.subr.bf16.mxu0 %v2907
  %4142 = vmatpush1.bf16.msra.mxu0 %v2906
  %4143 = vmatprep.subr.bf16.mxu0 %v2916
  %4144 = vmatpush1.bf16.msra.mxu0 %v2915
  %4145 = vmatprep.subr.bf16.mxu0 %v2925
  %4146 = vmatpush1.bf16.msra.mxu0 %v2924
  %4147 = vmatprep.subr.bf16.mxu0 %v2934
  %4148 = vmatpush1.bf16.msra.mxu0 %v2933
  %4149 = vmatprep.subr.bf16.mxu0 %v2943
  %4150 = vmatpush1.bf16.msra.mxu0 %v2942
  %4151 = vmatprep.subr.bf16.mxu0 %v2952
  %4152 = vmatpush1.bf16.msra.mxu0 %v2951
  %4153 = vmatprep.subr.bf16.mxu0 %v2961
  %4154 = vmatpush1.bf16.msra.mxu0 %v2960
  %4155 = vmatprep.subr.bf16.mxu0 %v2970
  %4156 = vmatpush1.bf16.msra.mxu0 %v2969
  %4157 = vmatprep.subr.bf16.mxu0 %v2979
  %4158 = vmatpush1.bf16.msra.mxu0 %v2978
  %4159 = vmatprep.subr.bf16.mxu0 %v2988
  %4160 = vmatpush1.bf16.msra.mxu0 %v2987
  %4161 = vmatprep.subr.bf16.mxu0 %v2997
  %4162 = vmatpush1.bf16.msra.mxu0 %v2996
  %4163 = vmatprep.mubr.bf16.mxu0 %v764
  %4164 = vmatmul.mubr.bf16.gmra.mrb[0].mxu0 %v750
  %v4165 = vpop.f32.mrb[0].mxu0
  %v4166 = vadd.f32 %v4125, %v4165
  %v4167 = vpop.f32.mrb[0].mxu0
  %v4168 = vadd.f32 %v4127, %v4167
  %v4169 = vpop.f32.mrb[0].mxu0
  %v4170 = vpop.f32.mrb[0].mxu0
  %4171 = vdwg.mxu0
  %4172 = vmatprep.subr.bf16.mxu0 %v3006
  %4173 = vmatpush1.bf16.msra.mxu0 %v3005
  %4174 = vmatprep.subr.bf16.mxu0 %v3015
  %4175 = vmatpush1.bf16.msra.mxu0 %v3014
  %4176 = vmatprep.subr.bf16.mxu0 %v3024
  %4177 = vmatpush1.bf16.msra.mxu0 %v3023
  %4178 = vmatprep.subr.bf16.mxu0 %v3033
  %4179 = vmatpush1.bf16.msra.mxu0 %v3032
  %4180 = vmatprep.subr.bf16.mxu0 %v3042
  %4181 = vmatpush1.bf16.msra.mxu0 %v3041
  %4182 = vmatprep.subr.bf16.mxu0 %v3051
  %4183 = vmatpush1.bf16.msra.mxu0 %v3050
  %4184 = vmatprep.subr.bf16.mxu0 %v3060
  %4185 = vmatpush1.bf16.msra.mxu0 %v3059
  %4186 = vmatprep.subr.bf16.mxu0 %v3069
  %4187 = vmatpush1.bf16.msra.mxu0 %v3068
  %4188 = vmatprep.subr.bf16.mxu0 %v3078
  %4189 = vmatpush1.bf16.msra.mxu0 %v3077
  %4190 = vmatprep.subr.bf16.mxu0 %v3087
  %4191 = vmatpush1.bf16.msra.mxu0 %v3086
  %4192 = vmatprep.subr.bf16.mxu0 %v3096
  %4193 = vmatpush1.bf16.msra.mxu0 %v3095
  %4194 = vmatprep.subr.bf16.mxu0 %v3105
  %4195 = vmatpush1.bf16.msra.mxu0 %v3104
  %4196 = vmatprep.subr.bf16.mxu0 %v3114
  %4197 = vmatpush1.bf16.msra.mxu0 %v3113
  %4198 = vmatprep.subr.bf16.mxu0 %v3123
  %4199 = vmatpush1.bf16.msra.mxu0 %v3122
  %4200 = vmatprep.subr.bf16.mxu0 %v3132
  %4201 = vmatpush1.bf16.msra.mxu0 %v3131
  %4202 = vmatprep.subr.bf16.mxu0 %v3141
  %4203 = vmatpush1.bf16.msra.mxu0 %v3140
  %4204 = vmatprep.mubr.bf16.mxu0 %v768
  %4205 = vmatmul.mubr.bf16.gmra.mrb[0].mxu0 %v766
  %v4206 = vpop.f32.mrb[0].mxu0
  %v4207 = vadd.f32 %v4166, %v4206
  %v4208 = vpop.f32.mrb[0].mxu0
  %v4209 = vadd.f32 %v4168, %v4208
  %v4210 = vpop.f32.mrb[0].mxu0
  %v4211 = vpop.f32.mrb[0].mxu0
  %4212 = vdwg.mxu0
  %4213 = vmatprep.subr.bf16.mxu0 %v2576
  %4214 = vmatpush1.bf16.msra.mxu0 %v2575
  %4215 = vmatprep.subr.bf16.mxu0 %v2585
  %4216 = vmatpush1.bf16.msra.mxu0 %v2584
  %4217 = vmatprep.subr.bf16.mxu0 %v2594
  %4218 = vmatpush1.bf16.msra.mxu0 %v2593
  %4219 = vmatprep.subr.bf16.mxu0 %v2603
  %4220 = vmatpush1.bf16.msra.mxu0 %v2602
  %4221 = vmatprep.subr.bf16.mxu0 %v2612
  %4222 = vmatpush1.bf16.msra.mxu0 %v2611
  %4223 = vmatprep.subr.bf16.mxu0 %v2621
  %4224 = vmatpush1.bf16.msra.mxu0 %v2620
  %4225 = vmatprep.subr.bf16.mxu0 %v2630
  %4226 = vmatpush1.bf16.msra.mxu0 %v2629
  %4227 = vmatprep.subr.bf16.mxu0 %v2639
  %4228 = vmatpush1.bf16.msra.mxu0 %v2638
  %4229 = vmatprep.subr.bf16.mxu0 %v2648
  %4230 = vmatpush1.bf16.msra.mxu0 %v2647
  %4231 = vmatprep.subr.bf16.mxu0 %v2657
  %4232 = vmatpush1.bf16.msra.mxu0 %v2656
  %4233 = vmatprep.subr.bf16.mxu0 %v2666
  %4234 = vmatpush1.bf16.msra.mxu0 %v2665
  %4235 = vmatprep.subr.bf16.mxu0 %v2675
  %4236 = vmatpush1.bf16.msra.mxu0 %v2674
  %4237 = vmatprep.subr.bf16.mxu0 %v2684
  %4238 = vmatpush1.bf16.msra.mxu0 %v2683
  %4239 = vmatprep.subr.bf16.mxu0 %v2693
  %4240 = vmatpush1.bf16.msra.mxu0 %v2692
  %4241 = vmatprep.subr.bf16.mxu0 %v2702
  %4242 = vmatpush1.bf16.msra.mxu0 %v2701
  %4243 = vmatprep.subr.bf16.mxu0 %v2711
  %4244 = vmatpush1.bf16.msra.mxu0 %v2710
  %4245 = vmatprep.mubr.bf16.mxu0 %v757
  %4246 = vmatmul.mubr.bf16.gmra.mrb[0].mxu0 %v743
  %v4247 = vpop.f32.mrb[0].mxu0
  %v4248 = vadd.f32 %v701, %v4247
  %v4249 = vpop.f32.mrb[0].mxu0
  %v4250 = vadd.f32 %v705, %v4249
  %v4251 = vpop.f32.mrb[0].mxu0
  %v4252 = vpop.f32.mrb[0].mxu0
  %4253 = vdwg.mxu0
  %4254 = vmatprep.subr.bf16.mxu0 %v2720
  %4255 = vmatpush1.bf16.msra.mxu0 %v2719
  %4256 = vmatprep.subr.bf16.mxu0 %v2729
  %4257 = vmatpush1.bf16.msra.mxu0 %v2728
  %4258 = vmatprep.subr.bf16.mxu0 %v2738
  %4259 = vmatpush1.bf16.msra.mxu0 %v2737
  %4260 = vmatprep.subr.bf16.mxu0 %v2747
  %4261 = vmatpush1.bf16.msra.mxu0 %v2746
  %4262 = vmatprep.subr.bf16.mxu0 %v2756
  %4263 = vmatpush1.bf16.msra.mxu0 %v2755
  %4264 = vmatprep.subr.bf16.mxu0 %v2765
  %4265 = vmatpush1.bf16.msra.mxu0 %v2764
  %4266 = vmatprep.subr.bf16.mxu0 %v2774
  %4267 = vmatpush1.bf16.msra.mxu0 %v2773
  %4268 = vmatprep.subr.bf16.mxu0 %v2783
  %4269 = vmatpush1.bf16.msra.mxu0 %v2782
  %4270 = vmatprep.subr.bf16.mxu0 %v2792
  %4271 = vmatpush1.bf16.msra.mxu0 %v2791
  %4272 = vmatprep.subr.bf16.mxu0 %v2801
  %4273 = vmatpush1.bf16.msra.mxu0 %v2800
  %4274 = vmatprep.subr.bf16.mxu0 %v2810
  %4275 = vmatpush1.bf16.msra.mxu0 %v2809
  %4276 = vmatprep.subr.bf16.mxu0 %v2819
  %4277 = vmatpush1.bf16.msra.mxu0 %v2818
  %4278 = vmatprep.subr.bf16.mxu0 %v2828
  %4279 = vmatpush1.bf16.msra.mxu0 %v2827
  %4280 = vmatprep.subr.bf16.mxu0 %v2837
  %4281 = vmatpush1.bf16.msra.mxu0 %v2836
  %4282 = vmatprep.subr.bf16.mxu0 %v2846
  %4283 = vmatpush1.bf16.msra.mxu0 %v2845
  %4284 = vmatprep.subr.bf16.mxu0 %v2855
  %4285 = vmatpush1.bf16.msra.mxu0 %v2854
  %4286 = vmatprep.mubr.bf16.mxu0 %v767
  %4287 = vmatmul.mubr.bf16.gmra.mrb[0].mxu0 %v765
  %v4288 = vpop.f32.mrb[0].mxu0
  %v4289 = vadd.f32 %v4248, %v4288
  %v4290 = vpop.f32.mrb[0].mxu0
  %v4291 = vadd.f32 %v4250, %v4290
  %v4292 = vpop.f32.mrb[0].mxu0
  %v4293 = vpop.f32.mrb[0].mxu0
  %4294 = vdwg.mxu0
  %4295 = vmatprep.subr.bf16.mxu0 %v2864
  %4296 = vmatpush1.bf16.msra.mxu0 %v2863
  %4297 = vmatprep.subr.bf16.mxu0 %v2873
  %4298 = vmatpush1.bf16.msra.mxu0 %v2872
  %4299 = vmatprep.subr.bf16.mxu0 %v2882
  %4300 = vmatpush1.bf16.msra.mxu0 %v2881
  %4301 = vmatprep.subr.bf16.mxu0 %v2891
  %4302 = vmatpush1.bf16.msra.mxu0 %v2890
  %4303 = vmatprep.subr.bf16.mxu0 %v2900
  %4304 = vmatpush1.bf16.msra.mxu0 %v2899
  %4305 = vmatprep.subr.bf16.mxu0 %v2909
  %4306 = vmatpush1.bf16.msra.mxu0 %v2908
  %4307 = vmatprep.subr.bf16.mxu0 %v2918
  %4308 = vmatpush1.bf16.msra.mxu0 %v2917
  %4309 = vmatprep.subr.bf16.mxu0 %v2927
  %4310 = vmatpush1.bf16.msra.mxu0 %v2926
  %4311 = vmatprep.subr.bf16.mxu0 %v2936
  %4312 = vmatpush1.bf16.msra.mxu0 %v2935
  %4313 = vmatprep.subr.bf16.mxu0 %v2945
  %4314 = vmatpush1.bf16.msra.mxu0 %v2944
  %4315 = vmatprep.subr.bf16.mxu0 %v2954
  %4316 = vmatpush1.bf16.msra.mxu0 %v2953
  %4317 = vmatprep.subr.bf16.mxu0 %v2963
  %4318 = vmatpush1.bf16.msra.mxu0 %v2962
  %4319 = vmatprep.subr.bf16.mxu0 %v2972
  %4320 = vmatpush1.bf16.msra.mxu0 %v2971
  %4321 = vmatprep.subr.bf16.mxu0 %v2981
  %4322 = vmatpush1.bf16.msra.mxu0 %v2980
  %4323 = vmatprep.subr.bf16.mxu0 %v2990
  %4324 = vmatpush1.bf16.msra.mxu0 %v2989
  %4325 = vmatprep.subr.bf16.mxu0 %v2999
  %4326 = vmatpush1.bf16.msra.mxu0 %v2998
  %4327 = vmatprep.mubr.bf16.mxu0 %v764
  %4328 = vmatmul.mubr.bf16.gmra.mrb[0].mxu0 %v750
  %v4329 = vpop.f32.mrb[0].mxu0
  %v4330 = vadd.f32 %v4289, %v4329
  %v4331 = vpop.f32.mrb[0].mxu0
  %v4332 = vadd.f32 %v4291, %v4331
  %v4333 = vpop.f32.mrb[0].mxu0
  %v4334 = vpop.f32.mrb[0].mxu0
  %4335 = vdwg.mxu0
  %4336 = vmatprep.subr.bf16.mxu0 %v3008
  %4337 = vmatpush1.bf16.msra.mxu0 %v3007
  %4338 = vmatprep.subr.bf16.mxu0 %v3017
  %4339 = vmatpush1.bf16.msra.mxu0 %v3016
  %4340 = vmatprep.subr.bf16.mxu0 %v3026
  %4341 = vmatpush1.bf16.msra.mxu0 %v3025
  %4342 = vmatprep.subr.bf16.mxu0 %v3035
  %4343 = vmatpush1.bf16.msra.mxu0 %v3034
  %4344 = vmatprep.subr.bf16.mxu0 %v3044
  %4345 = vmatpush1.bf16.msra.mxu0 %v3043
  %4346 = vmatprep.subr.bf16.mxu0 %v3053
  %4347 = vmatpush1.bf16.msra.mxu0 %v3052
  %4348 = vmatprep.subr.bf16.mxu0 %v3062
  %4349 = vmatpush1.bf16.msra.mxu0 %v3061
  %4350 = vmatprep.subr.bf16.mxu0 %v3071
  %4351 = vmatpush1.bf16.msra.mxu0 %v3070
  %4352 = vmatprep.subr.bf16.mxu0 %v3080
  %4353 = vmatpush1.bf16.msra.mxu0 %v3079
  %4354 = vmatprep.subr.bf16.mxu0 %v3089
  %4355 = vmatpush1.bf16.msra.mxu0 %v3088
  %4356 = vmatprep.subr.bf16.mxu0 %v3098
  %4357 = vmatpush1.bf16.msra.mxu0 %v3097
  %4358 = vmatprep.subr.bf16.mxu0 %v3107
  %4359 = vmatpush1.bf16.msra.mxu0 %v3106
  %4360 = vmatprep.subr.bf16.mxu0 %v3116
  %4361 = vmatpush1.bf16.msra.mxu0 %v3115
  %4362 = vmatprep.subr.bf16.mxu0 %v3125
  %4363 = vmatpush1.bf16.msra.mxu0 %v3124
  %4364 = vmatprep.subr.bf16.mxu0 %v3134
  %4365 = vmatpush1.bf16.msra.mxu0 %v3133
  %4366 = vmatprep.subr.bf16.mxu0 %v3143
  %4367 = vmatpush1.bf16.msra.mxu0 %v3142
  %4368 = vmatprep.mubr.bf16.mxu0 %v768
  %4369 = vmatmul.mubr.bf16.gmra.mrb[0].mxu0 %v766
  %v4370 = vpop.f32.mrb[0].mxu0
  %v4371 = vadd.f32 %v4330, %v4370
  %v4372 = vpop.f32.mrb[0].mxu0
  %v4373 = vadd.f32 %v4332, %v4372
  %v4374 = vpop.f32.mrb[0].mxu0
  %v4375 = vpop.f32.mrb[0].mxu0
  %4376 = vdwg.mxu0
  %4377 = vmatprep.subr.bf16.mxu0 0
  %4378 = vmatpush1.bf16.msra.mxu0 %v2577
  %4379 = vmatprep.subr.bf16.mxu0 0
  %4380 = vmatpush1.bf16.msra.mxu0 %v2586
  %4381 = vmatprep.subr.bf16.mxu0 0
  %4382 = vmatpush1.bf16.msra.mxu0 %v2595
  %4383 = vmatprep.subr.bf16.mxu0 0
  %4384 = vmatpush1.bf16.msra.mxu0 %v2604
  %4385 = vmatprep.subr.bf16.mxu0 0
  %4386 = vmatpush1.bf16.msra.mxu0 %v2613
  %4387 = vmatprep.subr.bf16.mxu0 0
  %4388 = vmatpush1.bf16.msra.mxu0 %v2622
  %4389 = vmatprep.subr.bf16.mxu0 0
  %4390 = vmatpush1.bf16.msra.mxu0 %v2631
  %4391 = vmatprep.subr.bf16.mxu0 0
  %4392 = vmatpush1.bf16.msra.mxu0 %v2640
  %4393 = vmatprep.subr.bf16.mxu0 0
  %4394 = vmatpush1.bf16.msra.mxu0 %v2649
  %4395 = vmatprep.subr.bf16.mxu0 0
  %4396 = vmatpush1.bf16.msra.mxu0 %v2658
  %4397 = vmatprep.subr.bf16.mxu0 0
  %4398 = vmatpush1.bf16.msra.mxu0 %v2667
  %4399 = vmatprep.subr.bf16.mxu0 0
  %4400 = vmatpush1.bf16.msra.mxu0 %v2676
  %4401 = vmatprep.subr.bf16.mxu0 0
  %4402 = vmatpush1.bf16.msra.mxu0 %v2685
  %4403 = vmatprep.subr.bf16.mxu0 0
  %4404 = vmatpush1.bf16.msra.mxu0 %v2694
  %4405 = vmatprep.subr.bf16.mxu0 0
  %4406 = vmatpush1.bf16.msra.mxu0 %v2703
  %4407 = vmatprep.subr.bf16.mxu0 0
  %4408 = vmatpush1.bf16.msra.mxu0 %v2712
  %4409 = vmatprep.mubr.bf16.mxu0 %v757
  %4410 = vmatmul.mubr.bf16.gmra.mrb[0].mxu0 %v743
  %v4411 = vpop.f32.mrb[0].mxu0
  %v4412 = vadd.f32 %v709, %v4411
  %v4413 = vpop.f32.mrb[0].mxu0
  %v4414 = vpop.f32.mrb[0].mxu0
  %v4415 = vpop.f32.mrb[0].mxu0
  %4416 = vdwg.mxu0
  %4417 = vmatprep.subr.bf16.mxu0 0
  %4418 = vmatpush1.bf16.msra.mxu0 %v2721
  %4419 = vmatprep.subr.bf16.mxu0 0
  %4420 = vmatpush1.bf16.msra.mxu0 %v2730
  %4421 = vmatprep.subr.bf16.mxu0 0
  %4422 = vmatpush1.bf16.msra.mxu0 %v2739
  %4423 = vmatprep.subr.bf16.mxu0 0
  %4424 = vmatpush1.bf16.msra.mxu0 %v2748
  %4425 = vmatprep.subr.bf16.mxu0 0
  %4426 = vmatpush1.bf16.msra.mxu0 %v2757
  %4427 = vmatprep.subr.bf16.mxu0 0
  %4428 = vmatpush1.bf16.msra.mxu0 %v2766
  %4429 = vmatprep.subr.bf16.mxu0 0
  %4430 = vmatpush1.bf16.msra.mxu0 %v2775
  %4431 = vmatprep.subr.bf16.mxu0 0
  %4432 = vmatpush1.bf16.msra.mxu0 %v2784
  %4433 = vmatprep.subr.bf16.mxu0 0
  %4434 = vmatpush1.bf16.msra.mxu0 %v2793
  %4435 = vmatprep.subr.bf16.mxu0 0
  %4436 = vmatpush1.bf16.msra.mxu0 %v2802
  %4437 = vmatprep.subr.bf16.mxu0 0
  %4438 = vmatpush1.bf16.msra.mxu0 %v2811
  %4439 = vmatprep.subr.bf16.mxu0 0
  %4440 = vmatpush1.bf16.msra.mxu0 %v2820
  %4441 = vmatprep.subr.bf16.mxu0 0
  %4442 = vmatpush1.bf16.msra.mxu0 %v2829
  %4443 = vmatprep.subr.bf16.mxu0 0
  %4444 = vmatpush1.bf16.msra.mxu0 %v2838
  %4445 = vmatprep.subr.bf16.mxu0 0
  %4446 = vmatpush1.bf16.msra.mxu0 %v2847
  %4447 = vmatprep.subr.bf16.mxu0 0
  %4448 = vmatpush1.bf16.msra.mxu0 %v2856
  %4449 = vmatprep.mubr.bf16.mxu0 %v767
  %4450 = vmatmul.mubr.bf16.gmra.mrb[0].mxu0 %v765
  %v4451 = vpop.f32.mrb[0].mxu0
  %v4452 = vadd.f32 %v4412, %v4451
  %v4453 = vpop.f32.mrb[0].mxu0
  %v4454 = vpop.f32.mrb[0].mxu0
  %v4455 = vpop.f32.mrb[0].mxu0
  %4456 = vdwg.mxu0
  %4457 = vmatprep.subr.bf16.mxu0 0
  %4458 = vmatpush1.bf16.msra.mxu0 %v2865
  %4459 = vmatprep.subr.bf16.mxu0 0
  %4460 = vmatpush1.bf16.msra.mxu0 %v2874
  %4461 = vmatprep.subr.bf16.mxu0 0
  %4462 = vmatpush1.bf16.msra.mxu0 %v2883
  %4463 = vmatprep.subr.bf16.mxu0 0
  %4464 = vmatpush1.bf16.msra.mxu0 %v2892
  %4465 = vmatprep.subr.bf16.mxu0 0
  %4466 = vmatpush1.bf16.msra.mxu0 %v2901
  %4467 = vmatprep.subr.bf16.mxu0 0
  %4468 = vmatpush1.bf16.msra.mxu0 %v2910
  %4469 = vmatprep.subr.bf16.mxu0 0
  %4470 = vmatpush1.bf16.msra.mxu0 %v2919
  %4471 = vmatprep.subr.bf16.mxu0 0
  %4472 = vmatpush1.bf16.msra.mxu0 %v2928
  %4473 = vmatprep.subr.bf16.mxu0 0
  %4474 = vmatpush1.bf16.msra.mxu0 %v2937
  %4475 = vmatprep.subr.bf16.mxu0 0
  %4476 = vmatpush1.bf16.msra.mxu0 %v2946
  %4477 = vmatprep.subr.bf16.mxu0 0
  %4478 = vmatpush1.bf16.msra.mxu0 %v2955
  %4479 = vmatprep.subr.bf16.mxu0 0
  %4480 = vmatpush1.bf16.msra.mxu0 %v2964
  %4481 = vmatprep.subr.bf16.mxu0 0
  %4482 = vmatpush1.bf16.msra.mxu0 %v2973
  %4483 = vmatprep.subr.bf16.mxu0 0
  %4484 = vmatpush1.bf16.msra.mxu0 %v2982
  %4485 = vmatprep.subr.bf16.mxu0 0
  %4486 = vmatpush1.bf16.msra.mxu0 %v2991
  %4487 = vmatprep.subr.bf16.mxu0 0
  %4488 = vmatpush1.bf16.msra.mxu0 %v3000
  %4489 = vmatprep.mubr.bf16.mxu0 %v764
  %4490 = vmatmul.mubr.bf16.gmra.mrb[0].mxu0 %v750
  %v4491 = vpop.f32.mrb[0].mxu0
  %v4492 = vadd.f32 %v4452, %v4491
  %v4493 = vpop.f32.mrb[0].mxu0
  %v4494 = vpop.f32.mrb[0].mxu0
  %v4495 = vpop.f32.mrb[0].mxu0
  %4496 = vdwg.mxu0
  %4497 = vmatprep.subr.bf16.mxu0 0
  %4498 = vmatpush1.bf16.msra.mxu0 %v3009
  %4499 = vmatprep.subr.bf16.mxu0 0
  %4500 = vmatpush1.bf16.msra.mxu0 %v3018
  %4501 = vmatprep.subr.bf16.mxu0 0
  %4502 = vmatpush1.bf16.msra.mxu0 %v3027
  %4503 = vmatprep.subr.bf16.mxu0 0
  %4504 = vmatpush1.bf16.msra.mxu0 %v3036
  %4505 = vmatprep.subr.bf16.mxu0 0
  %4506 = vmatpush1.bf16.msra.mxu0 %v3045
  %4507 = vmatprep.subr.bf16.mxu0 0
  %4508 = vmatpush1.bf16.msra.mxu0 %v3054
  %4509 = vmatprep.subr.bf16.mxu0 0
  %4510 = vmatpush1.bf16.msra.mxu0 %v3063
  %4511 = vmatprep.subr.bf16.mxu0 0
  %4512 = vmatpush1.bf16.msra.mxu0 %v3072
  %4513 = vmatprep.subr.bf16.mxu0 0
  %4514 = vmatpush1.bf16.msra.mxu0 %v3081
  %4515 = vmatprep.subr.bf16.mxu0 0
  %4516 = vmatpush1.bf16.msra.mxu0 %v3090
  %4517 = vmatprep.subr.bf16.mxu0 0
  %4518 = vmatpush1.bf16.msra.mxu0 %v3099
  %4519 = vmatprep.subr.bf16.mxu0 0
  %4520 = vmatpush1.bf16.msra.mxu0 %v3108
  %4521 = vmatprep.subr.bf16.mxu0 0
  %4522 = vmatpush1.bf16.msra.mxu0 %v3117
  %4523 = vmatprep.subr.bf16.mxu0 0
  %4524 = vmatpush1.bf16.msra.mxu0 %v3126
  %4525 = vmatprep.subr.bf16.mxu0 0
  %4526 = vmatpush1.bf16.msra.mxu0 %v3135
  %4527 = vmatprep.subr.bf16.mxu0 0
  %4528 = vmatpush1.bf16.msra.mxu0 %v3144
  %4529 = vmatprep.mubr.bf16.mxu0 %v768
  %4530 = vmatmul.mubr.bf16.gmra.mrb[0].mxu0 %v766
  %v4531 = vpop.f32.mrb[0].mxu0
  %v4532 = vadd.f32 %v4492, %v4531
  %v4533 = vpop.f32.mrb[0].mxu0
  %v4534 = vpop.f32.mrb[0].mxu0
  %v4535 = vpop.f32.mrb[0].mxu0
  %4536 = vdwg.mxu0
  %v4537 = vmul.f32 %v3879, 0.01
  %v4538 = vmul.f32 %v3881, 0.01
  %v4539 = vmul.f32 %v4043, 0.01
  %v4540 = vmul.f32 %v4045, 0.01
  %v4541 = vmul.f32 %v4207, 0.01
  %v4542 = vmul.f32 %v4209, 0.01
  %v4543 = vmul.f32 %v4371, 0.01
  %v4544 = vmul.f32 %v4373, 0.01
  %v4545 = vmax.f32 %v3879, %v4537
  %v4546 = vmax.f32 %v3881, %v4538
  %v4547 = vmax.f32 %v4043, %v4539
  %v4548 = vmax.f32 %v4045, %v4540
  %v4549 = vmax.f32 %v4207, %v4541
  %v4550 = vmax.f32 %v4209, %v4542
  %v4551 = vmax.f32 %v4371, %v4543
  %v4552 = vmax.f32 %v4373, %v4544
  %v4553 = vpack.c.bf16 %v4545, %v4545
  %v4554 = vpack.c.bf16 %v4546, %v4546
  %v4555 = vpack.c.bf16 %v4547, %v4547
  %v4556 = vpack.c.bf16 %v4548, %v4548
  %v4557 = vpack.c.bf16 %v4549, %v4549
  %v4558 = vpack.c.bf16 %v4550, %v4550
  %v4559 = vpack.c.bf16 %v4551, %v4551
  %v4560 = vpack.c.bf16 %v4552, %v4552
  %v4561 = vld [vmem:[%s3] sm:$0xff]
  %v4562 = vld [vmem:[%s3 + $0x8] sm:$0xff]
  %v4563 = vld [vmem:[%s3 + $0x10] sm:$0xff]
  %v4564 = vld [vmem:[%s3 + $0x18] sm:$0xff]
  %v4565 = vld [vmem:[%s3 + $0x20] sm:$0xff]
  %v4566 = vld [vmem:[%s3 + $0x28] sm:$0xff]
  %v4567 = vld [vmem:[%s3 + $0x30] sm:$0xff]
  %v4568 = vld [vmem:[%s3 + $0x38] sm:$0xff]
  %v4569 = vld [vmem:[%s3 + $0x40] sm:$0xff]
  %v4570 = vld [vmem:[%s3 + $0x48] sm:$0xff]
  %v4571 = vld [vmem:[%s3 + $0x50] sm:$0xff]
  %v4572 = vld [vmem:[%s3 + $0x58] sm:$0xff]
  %v4573 = vld [vmem:[%s3 + $0x60] sm:$0xff]
  %v4574 = vld [vmem:[%s3 + $0x68] sm:$0xff]
  %v4575 = vld [vmem:[%s3 + $0x70] sm:$0xff]
  %v4576 = vld [vmem:[%s3 + $0x78] sm:$0xff]
  %v4577 = vld [vmem:[%s3 + $0x80] sm:$0xff]
  %v4578 = vld [vmem:[%s3 + $0x88] sm:$0xff]
  %v4579 = vld [vmem:[%s3 + $0x90] sm:$0xff]
  %v4580 = vld [vmem:[%s3 + $0x98] sm:$0xff]
  %v4581 = vld [vmem:[%s3 + $0xa0] sm:$0xff]
  %v4582 = vld [vmem:[%s3 + $0xa8] sm:$0xff]
  %v4583 = vld [vmem:[%s3 + $0xb0] sm:$0xff]
  %v4584 = vld [vmem:[%s3 + $0xb8] sm:$0xff]
  %v4585 = vld [vmem:[%s3 + $0xc0] sm:$0xff]
  %v4586 = vld [vmem:[%s3 + $0xc8] sm:$0xff]
  %v4587 = vld [vmem:[%s3 + $0xd0] sm:$0xff]
  %v4588 = vld [vmem:[%s3 + $0xd8] sm:$0xff]
  %v4589 = vld [vmem:[%s3 + $0xe0] sm:$0xff]
  %v4590 = vld [vmem:[%s3 + $0xe8] sm:$0xff]
  %v4591 = vld [vmem:[%s3 + $0xf0] sm:$0xff]
  %v4592 = vld [vmem:[%s3 + $0xf8] sm:$0xff]
  %v4593 = vld [vmem:[%s3 + $0x100] sm:$0xff]
  %v4594 = vld [vmem:[%s3 + $0x108] sm:$0xff]
  %v4595 = vld [vmem:[%s3 + $0x110] sm:$0xff]
  %v4596 = vld [vmem:[%s3 + $0x118] sm:$0xff]
  %v4597 = vld [vmem:[%s3 + $0x120] sm:$0xff]
  %v4598 = vld [vmem:[%s3 + $0x128] sm:$0xff]
  %v4599 = vld [vmem:[%s3 + $0x130] sm:$0xff]
  %v4600 = vld [vmem:[%s3 + $0x138] sm:$0xff]
  %v4601 = vld [vmem:[%s3 + $0x140] sm:$0xff]
  %v4602 = vld [vmem:[%s3 + $0x148] sm:$0xff]
  %v4603 = vld [vmem:[%s3 + $0x150] sm:$0xff]
  %v4604 = vld [vmem:[%s3 + $0x158] sm:$0xff]
  %v4605 = vld [vmem:[%s3 + $0x160] sm:$0xff]
  %v4606 = vld [vmem:[%s3 + $0x168] sm:$0xff]
  %v4607 = vld [vmem:[%s3 + $0x170] sm:$0xff]
  %v4608 = vld [vmem:[%s3 + $0x178] sm:$0xff]
  %v4609 = vld [vmem:[%s3 + $0x180] sm:$0xff]
  %v4610 = vld [vmem:[%s3 + $0x188] sm:$0xff]
  %v4611 = vld [vmem:[%s3 + $0x190] sm:$0xff]
  %v4612 = vld [vmem:[%s3 + $0x198] sm:$0xff]
  %v4613 = vld [vmem:[%s3 + $0x1a0] sm:$0xff]
  %v4614 = vld [vmem:[%s3 + $0x1a8] sm:$0xff]
  %v4615 = vld [vmem:[%s3 + $0x1b0] sm:$0xff]
  %v4616 = vld [vmem:[%s3 + $0x1b8] sm:$0xff]
  %v4617 = vld [vmem:[%s3 + $0x1c0] sm:$0xff]
  %v4618 = vld [vmem:[%s3 + $0x1c8] sm:$0xff]
  %v4619 = vld [vmem:[%s3 + $0x1d0] sm:$0xff]
  %v4620 = vld [vmem:[%s3 + $0x1d8] sm:$0xff]
  %v4621 = vld [vmem:[%s3 + $0x1e0] sm:$0xff]
  %v4622 = vld [vmem:[%s3 + $0x1e8] sm:$0xff]
  %v4623 = vld [vmem:[%s3 + $0x1f0] sm:$0xff]
  %v4624 = vld [vmem:[%s3 + $0x1f8] sm:$0xff]
  %v4625 = vld [vmem:[%s3 + $0x200] sm:$0xff]
  %v4626 = vld [vmem:[%s3 + $0x208] sm:$0xff]
  %v4627 = vld [vmem:[%s3 + $0x210] sm:$0xff]
  %v4628 = vld [vmem:[%s3 + $0x218] sm:$0xff]
  %v4629 = vld [vmem:[%s3 + $0x220] sm:$0xff]
  %v4630 = vld [vmem:[%s3 + $0x228] sm:$0xff]
  %v4631 = vld [vmem:[%s3 + $0x230] sm:$0xff]
  %v4632 = vld [vmem:[%s3 + $0x238] sm:$0xff]
  %v4633 = vld [vmem:[%s3 + $0x240] sm:$0xff]
  %v4634 = vld [vmem:[%s3 + $0x248] sm:$0xff]
  %v4635 = vld [vmem:[%s3 + $0x250] sm:$0xff]
  %v4636 = vld [vmem:[%s3 + $0x258] sm:$0xff]
  %v4637 = vld [vmem:[%s3 + $0x260] sm:$0xff]
  %v4638 = vld [vmem:[%s3 + $0x268] sm:$0xff]
  %v4639 = vld [vmem:[%s3 + $0x270] sm:$0xff]
  %v4640 = vld [vmem:[%s3 + $0x278] sm:$0xff]
  %v4641 = vld [vmem:[%s3 + $0x280] sm:$0xff]
  %v4642 = vld [vmem:[%s3 + $0x288] sm:$0xff]
  %v4643 = vld [vmem:[%s3 + $0x290] sm:$0xff]
  %v4644 = vld [vmem:[%s3 + $0x298] sm:$0xff]
  %v4645 = vld [vmem:[%s3 + $0x2a0] sm:$0xff]
  %v4646 = vld [vmem:[%s3 + $0x2a8] sm:$0xff]
  %v4647 = vld [vmem:[%s3 + $0x2b0] sm:$0xff]
  %v4648 = vld [vmem:[%s3 + $0x2b8] sm:$0xff]
  %v4649 = vld [vmem:[%s3 + $0x2c0] sm:$0xff]
  %v4650 = vld [vmem:[%s3 + $0x2c8] sm:$0xff]
  %v4651 = vld [vmem:[%s3 + $0x2d0] sm:$0xff]
  %v4652 = vld [vmem:[%s3 + $0x2d8] sm:$0xff]
  %v4653 = vld [vmem:[%s3 + $0x2e0] sm:$0xff]
  %v4654 = vld [vmem:[%s3 + $0x2e8] sm:$0xff]
  %v4655 = vld [vmem:[%s3 + $0x2f0] sm:$0xff]
  %v4656 = vld [vmem:[%s3 + $0x2f8] sm:$0xff]
  %v4657 = vld [vmem:[%s3 + $0x300] sm:$0xff]
  %v4658 = vld [vmem:[%s3 + $0x308] sm:$0xff]
  %v4659 = vld [vmem:[%s3 + $0x310] sm:$0xff]
  %v4660 = vld [vmem:[%s3 + $0x318] sm:$0xff]
  %v4661 = vld [vmem:[%s3 + $0x320] sm:$0xff]
  %v4662 = vld [vmem:[%s3 + $0x328] sm:$0xff]
  %v4663 = vld [vmem:[%s3 + $0x330] sm:$0xff]
  %v4664 = vld [vmem:[%s3 + $0x338] sm:$0xff]
  %v4665 = vld [vmem:[%s3 + $0x340] sm:$0xff]
  %v4666 = vld [vmem:[%s3 + $0x348] sm:$0xff]
  %v4667 = vld [vmem:[%s3 + $0x350] sm:$0xff]
  %v4668 = vld [vmem:[%s3 + $0x358] sm:$0xff]
  %v4669 = vld [vmem:[%s3 + $0x360] sm:$0xff]
  %v4670 = vld [vmem:[%s3 + $0x368] sm:$0xff]
  %v4671 = vld [vmem:[%s3 + $0x370] sm:$0xff]
  %v4672 = vld [vmem:[%s3 + $0x378] sm:$0xff]
  %v4673 = vld [vmem:[%s3 + $0x380] sm:$0xff]
  %v4674 = vld [vmem:[%s3 + $0x388] sm:$0xff]
  %v4675 = vld [vmem:[%s3 + $0x390] sm:$0xff]
  %v4676 = vld [vmem:[%s3 + $0x398] sm:$0xff]
  %v4677 = vld [vmem:[%s3 + $0x3a0] sm:$0xff]
  %v4678 = vld [vmem:[%s3 + $0x3a8] sm:$0xff]
  %v4679 = vld [vmem:[%s3 + $0x3b0] sm:$0xff]
  %v4680 = vld [vmem:[%s3 + $0x3b8] sm:$0xff]
  %v4681 = vld [vmem:[%s3 + $0x3c0] sm:$0xff]
  %v4682 = vld [vmem:[%s3 + $0x3c8] sm:$0xff]
  %v4683 = vld [vmem:[%s3 + $0x3d0] sm:$0xff]
  %v4684 = vld [vmem:[%s3 + $0x3d8] sm:$0xff]
  %v4685 = vld [vmem:[%s3 + $0x3e0] sm:$0xff]
  %v4686 = vld [vmem:[%s3 + $0x3e8] sm:$0xff]
  %v4687 = vld [vmem:[%s3 + $0x3f0] sm:$0xff]
  %v4688 = vld [vmem:[%s3 + $0x3f8] sm:$0xff]
  %v4689 = vld [vmem:[%s3 + $0x400] sm:$0xff]
  %v4690 = vld [vmem:[%s3 + $0x408] sm:$0xff]
  %v4691 = vld [vmem:[%s3 + $0x410] sm:$0xff]
  %v4692 = vld [vmem:[%s3 + $0x418] sm:$0xff]
  %v4693 = vld [vmem:[%s3 + $0x420] sm:$0xff]
  %v4694 = vld [vmem:[%s3 + $0x428] sm:$0xff]
  %v4695 = vld [vmem:[%s3 + $0x430] sm:$0xff]
  %v4696 = vld [vmem:[%s3 + $0x438] sm:$0xff]
  %v4697 = vld [vmem:[%s3 + $0x440] sm:$0xff]
  %v4698 = vld [vmem:[%s3 + $0x448] sm:$0xff]
  %v4699 = vld [vmem:[%s3 + $0x450] sm:$0xff]
  %v4700 = vld [vmem:[%s3 + $0x458] sm:$0xff]
  %v4701 = vld [vmem:[%s3 + $0x460] sm:$0xff]
  %v4702 = vld [vmem:[%s3 + $0x468] sm:$0xff]
  %v4703 = vld [vmem:[%s3 + $0x470] sm:$0xff]
  %v4704 = vld [vmem:[%s3 + $0x478] sm:$0xff]
  %v4705 = vld [vmem:[%s3 + $0x480] sm:$0xff]
  %v4706 = vld [vmem:[%s3 + $0x488] sm:$0xff]
  %v4707 = vld [vmem:[%s3 + $0x490] sm:$0xff]
  %v4708 = vld [vmem:[%s3 + $0x498] sm:$0xff]
  %v4709 = vld [vmem:[%s3 + $0x4a0] sm:$0xff]
  %v4710 = vld [vmem:[%s3 + $0x4a8] sm:$0xff]
  %v4711 = vld [vmem:[%s3 + $0x4b0] sm:$0xff]
  %v4712 = vld [vmem:[%s3 + $0x4b8] sm:$0xff]
  %v4713 = vld [vmem:[%s3 + $0x4c0] sm:$0xff]
  %v4714 = vld [vmem:[%s3 + $0x4c8] sm:$0xff]
  %v4715 = vld [vmem:[%s3 + $0x4d0] sm:$0xff]
  %v4716 = vld [vmem:[%s3 + $0x4d8] sm:$0xff]
  %v4717 = vld [vmem:[%s3 + $0x4e0] sm:$0xff]
  %v4718 = vld [vmem:[%s3 + $0x4e8] sm:$0xff]
  %v4719 = vld [vmem:[%s3 + $0x4f0] sm:$0xff]
  %v4720 = vld [vmem:[%s3 + $0x4f8] sm:$0xff]
  %v4721 = vld [vmem:[%s3 + $0x500] sm:$0xff]
  %v4722 = vld [vmem:[%s3 + $0x508] sm:$0xff]
  %v4723 = vld [vmem:[%s3 + $0x510] sm:$0xff]
  %v4724 = vld [vmem:[%s3 + $0x518] sm:$0xff]
  %v4725 = vld [vmem:[%s3 + $0x520] sm:$0xff]
  %v4726 = vld [vmem:[%s3 + $0x528] sm:$0xff]
  %v4727 = vld [vmem:[%s3 + $0x530] sm:$0xff]
  %v4728 = vld [vmem:[%s3 + $0x538] sm:$0xff]
  %v4729 = vld [vmem:[%s3 + $0x540] sm:$0xff]
  %v4730 = vld [vmem:[%s3 + $0x548] sm:$0xff]
  %v4731 = vld [vmem:[%s3 + $0x550] sm:$0xff]
  %v4732 = vld [vmem:[%s3 + $0x558] sm:$0xff]
  %v4733 = vld [vmem:[%s3 + $0x560] sm:$0xff]
  %v4734 = vld [vmem:[%s3 + $0x568] sm:$0xff]
  %v4735 = vld [vmem:[%s3 + $0x570] sm:$0xff]
  %v4736 = vld [vmem:[%s3 + $0x578] sm:$0xff]
  %v4737 = vld [vmem:[%s3 + $0x580] sm:$0xff]
  %v4738 = vld [vmem:[%s3 + $0x588] sm:$0xff]
  %v4739 = vld [vmem:[%s3 + $0x590] sm:$0xff]
  %v4740 = vld [vmem:[%s3 + $0x598] sm:$0xff]
  %v4741 = vld [vmem:[%s3 + $0x5a0] sm:$0xff]
  %v4742 = vld [vmem:[%s3 + $0x5a8] sm:$0xff]
  %v4743 = vld [vmem:[%s3 + $0x5b0] sm:$0xff]
  %v4744 = vld [vmem:[%s3 + $0x5b8] sm:$0xff]
  %v4745 = vld [vmem:[%s3 + $0x5c0] sm:$0xff]
  %v4746 = vld [vmem:[%s3 + $0x5c8] sm:$0xff]
  %v4747 = vld [vmem:[%s3 + $0x5d0] sm:$0xff]
  %v4748 = vld [vmem:[%s3 + $0x5d8] sm:$0xff]
  %v4749 = vld [vmem:[%s3 + $0x5e0] sm:$0xff]
  %v4750 = vld [vmem:[%s3 + $0x5e8] sm:$0xff]
  %v4751 = vld [vmem:[%s3 + $0x5f0] sm:$0xff]
  %v4752 = vld [vmem:[%s3 + $0x5f8] sm:$0xff]
  %v4753 = vld [vmem:[%s3 + $0x600] sm:$0xff]
  %v4754 = vld [vmem:[%s3 + $0x608] sm:$0xff]
  %v4755 = vld [vmem:[%s3 + $0x610] sm:$0xff]
  %v4756 = vld [vmem:[%s3 + $0x618] sm:$0xff]
  %v4757 = vld [vmem:[%s3 + $0x620] sm:$0xff]
  %v4758 = vld [vmem:[%s3 + $0x628] sm:$0xff]
  %v4759 = vld [vmem:[%s3 + $0x630] sm:$0xff]
  %v4760 = vld [vmem:[%s3 + $0x638] sm:$0xff]
  %v4761 = vld [vmem:[%s3 + $0x640] sm:$0xff]
  %v4762 = vld [vmem:[%s3 + $0x648] sm:$0xff]
  %v4763 = vld [vmem:[%s3 + $0x650] sm:$0xff]
  %v4764 = vld [vmem:[%s3 + $0x658] sm:$0xff]
  %v4765 = vld [vmem:[%s3 + $0x660] sm:$0xff]
  %v4766 = vld [vmem:[%s3 + $0x668] sm:$0xff]
  %v4767 = vld [vmem:[%s3 + $0x670] sm:$0xff]
  %v4768 = vld [vmem:[%s3 + $0x678] sm:$0xff]
  %v4769 = vld [vmem:[%s3 + $0x680] sm:$0xff]
  %v4770 = vld [vmem:[%s3 + $0x688] sm:$0xff]
  %v4771 = vld [vmem:[%s3 + $0x690] sm:$0xff]
  %v4772 = vld [vmem:[%s3 + $0x698] sm:$0xff]
  %v4773 = vld [vmem:[%s3 + $0x6a0] sm:$0xff]
  %v4774 = vld [vmem:[%s3 + $0x6a8] sm:$0xff]
  %v4775 = vld [vmem:[%s3 + $0x6b0] sm:$0xff]
  %v4776 = vld [vmem:[%s3 + $0x6b8] sm:$0xff]
  %v4777 = vld [vmem:[%s3 + $0x6c0] sm:$0xff]
  %v4778 = vld [vmem:[%s3 + $0x6c8] sm:$0xff]
  %v4779 = vld [vmem:[%s3 + $0x6d0] sm:$0xff]
  %v4780 = vld [vmem:[%s3 + $0x6d8] sm:$0xff]
  %v4781 = vld [vmem:[%s3 + $0x6e0] sm:$0xff]
  %v4782 = vld [vmem:[%s3 + $0x6e8] sm:$0xff]
  %v4783 = vld [vmem:[%s3 + $0x6f0] sm:$0xff]
  %v4784 = vld [vmem:[%s3 + $0x6f8] sm:$0xff]
  %v4785 = vld [vmem:[%s3 + $0x700] sm:$0xff]
  %v4786 = vld [vmem:[%s3 + $0x708] sm:$0xff]
  %v4787 = vld [vmem:[%s3 + $0x710] sm:$0xff]
  %v4788 = vld [vmem:[%s3 + $0x718] sm:$0xff]
  %v4789 = vld [vmem:[%s3 + $0x720] sm:$0xff]
  %v4790 = vld [vmem:[%s3 + $0x728] sm:$0xff]
  %v4791 = vld [vmem:[%s3 + $0x730] sm:$0xff]
  %v4792 = vld [vmem:[%s3 + $0x738] sm:$0xff]
  %v4793 = vld [vmem:[%s3 + $0x740] sm:$0xff]
  %v4794 = vld [vmem:[%s3 + $0x748] sm:$0xff]
  %v4795 = vld [vmem:[%s3 + $0x750] sm:$0xff]
  %v4796 = vld [vmem:[%s3 + $0x758] sm:$0xff]
  %v4797 = vld [vmem:[%s3 + $0x760] sm:$0xff]
  %v4798 = vld [vmem:[%s3 + $0x768] sm:$0xff]
  %v4799 = vld [vmem:[%s3 + $0x770] sm:$0xff]
  %v4800 = vld [vmem:[%s3 + $0x778] sm:$0xff]
  %v4801 = vld [vmem:[%s3 + $0x780] sm:$0xff]
  %v4802 = vld [vmem:[%s3 + $0x788] sm:$0xff]
  %v4803 = vld [vmem:[%s3 + $0x790] sm:$0xff]
  %v4804 = vld [vmem:[%s3 + $0x798] sm:$0xff]
  %v4805 = vld [vmem:[%s3 + $0x7a0] sm:$0xff]
  %v4806 = vld [vmem:[%s3 + $0x7a8] sm:$0xff]
  %v4807 = vld [vmem:[%s3 + $0x7b0] sm:$0xff]
  %v4808 = vld [vmem:[%s3 + $0x7b8] sm:$0xff]
  %v4809 = vld [vmem:[%s3 + $0x7c0] sm:$0xff]
  %v4810 = vld [vmem:[%s3 + $0x7c8] sm:$0xff]
  %v4811 = vld [vmem:[%s3 + $0x7d0] sm:$0xff]
  %v4812 = vld [vmem:[%s3 + $0x7d8] sm:$0xff]
  %v4813 = vld [vmem:[%s3 + $0x7e0] sm:$0xff]
  %v4814 = vld [vmem:[%s3 + $0x7e8] sm:$0xff]
  %v4815 = vld [vmem:[%s3 + $0x7f0] sm:$0xff]
  %v4816 = vld [vmem:[%s3 + $0x7f8] sm:$0xff]
  %v4817 = vld [vmem:[%s4] sm:$0xf]
  %v4819 = vlaneseq
  %v4820 = vshrl.u32 %v4819, 7
  %v4821 = vsub.s32 0, %v4820
  %v4822 = vrot.slane %v4817, %v4821
  %v4823 = vlaneseq
  %v4824 = vshrl.u32 %v4823, 7
  %v4825 = vsub.s32 1, %v4824
  %v4826 = vrot.slane %v4817, %v4825
  %v4827 = vlaneseq
  %v4828 = vshrl.u32 %v4827, 7
  %v4829 = vsub.s32 2, %v4828
  %v4830 = vrot.slane %v4817, %v4829
  %v4831 = vlaneseq
  %v4832 = vshrl.u32 %v4831, 7
  %v4833 = vsub.s32 3, %v4832
  %v4834 = vrot.slane %v4817, %v4833
  %v5095 = vunpack.c.l.b16 %v4561
  %v5096 = vunpack.c.h.b16 %v4561
  %v5097 = vunpack.c.l.b16 %v4562
  %v5098 = vunpack.c.h.b16 %v4562
  %v5099 = vunpack.c.l.b16 %v4563
  %v5100 = vunpack.c.h.b16 %v4563
  %v5101 = vunpack.c.l.b16 %v4564
  %v5102 = vunpack.c.h.b16 %v4564
  %v5103 = vunpack.c.l.b16 %v4565
  %v5104 = vunpack.c.h.b16 %v4565
  %v5105 = vunpack.c.l.b16 %v4566
  %v5106 = vunpack.c.h.b16 %v4566
  %v5107 = vunpack.c.l.b16 %v4567
  %v5108 = vunpack.c.h.b16 %v4567
  %v5109 = vunpack.c.l.b16 %v4568
  %v5110 = vunpack.c.h.b16 %v4568
  %v5111 = vunpack.c.l.b16 %v4569
  %v5112 = vunpack.c.h.b16 %v4569
  %v5113 = vunpack.c.l.b16 %v4570
  %v5114 = vunpack.c.h.b16 %v4570
  %v5115 = vunpack.c.l.b16 %v4571
  %v5116 = vunpack.c.h.b16 %v4571
  %v5117 = vunpack.c.l.b16 %v4572
  %v5118 = vunpack.c.h.b16 %v4572
  %v5119 = vunpack.c.l.b16 %v4573
  %v5120 = vunpack.c.h.b16 %v4573
  %v5121 = vunpack.c.l.b16 %v4574
  %v5122 = vunpack.c.h.b16 %v4574
  %v5123 = vunpack.c.l.b16 %v4575
  %v5124 = vunpack.c.h.b16 %v4575
  %v5125 = vunpack.c.l.b16 %v4576
  %v5126 = vunpack.c.h.b16 %v4576
  %v5127 = vunpack.c.l.b16 %v4577
  %v5128 = vunpack.c.h.b16 %v4577
  %v5129 = vunpack.c.l.b16 %v4578
  %v5130 = vunpack.c.h.b16 %v4578
  %v5131 = vunpack.c.l.b16 %v4579
  %v5132 = vunpack.c.h.b16 %v4579
  %v5133 = vunpack.c.l.b16 %v4580
  %v5134 = vunpack.c.h.b16 %v4580
  %v5135 = vunpack.c.l.b16 %v4581
  %v5136 = vunpack.c.h.b16 %v4581
  %v5137 = vunpack.c.l.b16 %v4582
  %v5138 = vunpack.c.h.b16 %v4582
  %v5139 = vunpack.c.l.b16 %v4583
  %v5140 = vunpack.c.h.b16 %v4583
  %v5141 = vunpack.c.l.b16 %v4584
  %v5142 = vunpack.c.h.b16 %v4584
  %v5143 = vunpack.c.l.b16 %v4585
  %v5144 = vunpack.c.h.b16 %v4585
  %v5145 = vunpack.c.l.b16 %v4586
  %v5146 = vunpack.c.h.b16 %v4586
  %v5147 = vunpack.c.l.b16 %v4587
  %v5148 = vunpack.c.h.b16 %v4587
  %v5149 = vunpack.c.l.b16 %v4588
  %v5150 = vunpack.c.h.b16 %v4588
  %v5151 = vunpack.c.l.b16 %v4589
  %v5152 = vunpack.c.h.b16 %v4589
  %v5153 = vunpack.c.l.b16 %v4590
  %v5154 = vunpack.c.h.b16 %v4590
  %v5155 = vunpack.c.l.b16 %v4591
  %v5156 = vunpack.c.h.b16 %v4591
  %v5157 = vunpack.c.l.b16 %v4592
  %v5158 = vunpack.c.h.b16 %v4592
  %v5159 = vunpack.c.l.b16 %v4593
  %v5160 = vunpack.c.h.b16 %v4593
  %v5161 = vunpack.c.l.b16 %v4594
  %v5162 = vunpack.c.h.b16 %v4594
  %v5163 = vunpack.c.l.b16 %v4595
  %v5164 = vunpack.c.h.b16 %v4595
  %v5165 = vunpack.c.l.b16 %v4596
  %v5166 = vunpack.c.h.b16 %v4596
  %v5167 = vunpack.c.l.b16 %v4597
  %v5168 = vunpack.c.h.b16 %v4597
  %v5169 = vunpack.c.l.b16 %v4598
  %v5170 = vunpack.c.h.b16 %v4598
  %v5171 = vunpack.c.l.b16 %v4599
  %v5172 = vunpack.c.h.b16 %v4599
  %v5173 = vunpack.c.l.b16 %v4600
  %v5174 = vunpack.c.h.b16 %v4600
  %v5175 = vunpack.c.l.b16 %v4601
  %v5176 = vunpack.c.h.b16 %v4601
  %v5177 = vunpack.c.l.b16 %v4602
  %v5178 = vunpack.c.h.b16 %v4602
  %v5179 = vunpack.c.l.b16 %v4603
  %v5180 = vunpack.c.h.b16 %v4603
  %v5181 = vunpack.c.l.b16 %v4604
  %v5182 = vunpack.c.h.b16 %v4604
  %v5183 = vunpack.c.l.b16 %v4605
  %v5184 = vunpack.c.h.b16 %v4605
  %v5185 = vunpack.c.l.b16 %v4606
  %v5186 = vunpack.c.h.b16 %v4606
  %v5187 = vunpack.c.l.b16 %v4607
  %v5188 = vunpack.c.h.b16 %v4607
  %v5189 = vunpack.c.l.b16 %v4608
  %v5190 = vunpack.c.h.b16 %v4608
  %v5191 = vunpack.c.l.b16 %v4609
  %v5192 = vunpack.c.h.b16 %v4609
  %v5193 = vunpack.c.l.b16 %v4610
  %v5194 = vunpack.c.h.b16 %v4610
  %v5195 = vunpack.c.l.b16 %v4611
  %v5196 = vunpack.c.h.b16 %v4611
  %v5197 = vunpack.c.l.b16 %v4612
  %v5198 = vunpack.c.h.b16 %v4612
  %v5199 = vunpack.c.l.b16 %v4613
  %v5200 = vunpack.c.h.b16 %v4613
  %v5201 = vunpack.c.l.b16 %v4614
  %v5202 = vunpack.c.h.b16 %v4614
  %v5203 = vunpack.c.l.b16 %v4615
  %v5204 = vunpack.c.h.b16 %v4615
  %v5205 = vunpack.c.l.b16 %v4616
  %v5206 = vunpack.c.h.b16 %v4616
  %v5207 = vunpack.c.l.b16 %v4617
  %v5208 = vunpack.c.h.b16 %v4617
  %v5209 = vunpack.c.l.b16 %v4618
  %v5210 = vunpack.c.h.b16 %v4618
  %v5211 = vunpack.c.l.b16 %v4619
  %v5212 = vunpack.c.h.b16 %v4619
  %v5213 = vunpack.c.l.b16 %v4620
  %v5214 = vunpack.c.h.b16 %v4620
  %v5215 = vunpack.c.l.b16 %v4621
  %v5216 = vunpack.c.h.b16 %v4621
  %v5217 = vunpack.c.l.b16 %v4622
  %v5218 = vunpack.c.h.b16 %v4622
  %v5219 = vunpack.c.l.b16 %v4623
  %v5220 = vunpack.c.h.b16 %v4623
  %v5221 = vunpack.c.l.b16 %v4624
  %v5222 = vunpack.c.h.b16 %v4624
  %v5223 = vunpack.c.l.b16 %v4625
  %v5224 = vunpack.c.h.b16 %v4625
  %v5225 = vunpack.c.l.b16 %v4626
  %v5226 = vunpack.c.h.b16 %v4626
  %v5227 = vunpack.c.l.b16 %v4627
  %v5228 = vunpack.c.h.b16 %v4627
  %v5229 = vunpack.c.l.b16 %v4628
  %v5230 = vunpack.c.h.b16 %v4628
  %v5231 = vunpack.c.l.b16 %v4629
  %v5232 = vunpack.c.h.b16 %v4629
  %v5233 = vunpack.c.l.b16 %v4630
  %v5234 = vunpack.c.h.b16 %v4630
  %v5235 = vunpack.c.l.b16 %v4631
  %v5236 = vunpack.c.h.b16 %v4631
  %v5237 = vunpack.c.l.b16 %v4632
  %v5238 = vunpack.c.h.b16 %v4632
  %v5239 = vunpack.c.l.b16 %v4633
  %v5240 = vunpack.c.h.b16 %v4633
  %v5241 = vunpack.c.l.b16 %v4634
  %v5242 = vunpack.c.h.b16 %v4634
  %v5243 = vunpack.c.l.b16 %v4635
  %v5244 = vunpack.c.h.b16 %v4635
  %v5245 = vunpack.c.l.b16 %v4636
  %v5246 = vunpack.c.h.b16 %v4636
  %v5247 = vunpack.c.l.b16 %v4637
  %v5248 = vunpack.c.h.b16 %v4637
  %v5249 = vunpack.c.l.b16 %v4638
  %v5250 = vunpack.c.h.b16 %v4638
  %v5251 = vunpack.c.l.b16 %v4639
  %v5252 = vunpack.c.h.b16 %v4639
  %v5253 = vunpack.c.l.b16 %v4640
  %v5254 = vunpack.c.h.b16 %v4640
  %v5255 = vunpack.c.l.b16 %v4641
  %v5256 = vunpack.c.h.b16 %v4641
  %v5257 = vunpack.c.l.b16 %v4642
  %v5258 = vunpack.c.h.b16 %v4642
  %v5259 = vunpack.c.l.b16 %v4643
  %v5260 = vunpack.c.h.b16 %v4643
  %v5261 = vunpack.c.l.b16 %v4644
  %v5262 = vunpack.c.h.b16 %v4644
  %v5263 = vunpack.c.l.b16 %v4645
  %v5264 = vunpack.c.h.b16 %v4645
  %v5265 = vunpack.c.l.b16 %v4646
  %v5266 = vunpack.c.h.b16 %v4646
  %v5267 = vunpack.c.l.b16 %v4647
  %v5268 = vunpack.c.h.b16 %v4647
  %v5269 = vunpack.c.l.b16 %v4648
  %v5270 = vunpack.c.h.b16 %v4648
  %v5271 = vunpack.c.l.b16 %v4649
  %v5272 = vunpack.c.h.b16 %v4649
  %v5273 = vunpack.c.l.b16 %v4650
  %v5274 = vunpack.c.h.b16 %v4650
  %v5275 = vunpack.c.l.b16 %v4651
  %v5276 = vunpack.c.h.b16 %v4651
  %v5277 = vunpack.c.l.b16 %v4652
  %v5278 = vunpack.c.h.b16 %v4652
  %v5279 = vunpack.c.l.b16 %v4653
  %v5280 = vunpack.c.h.b16 %v4653
  %v5281 = vunpack.c.l.b16 %v4654
  %v5282 = vunpack.c.h.b16 %v4654
  %v5283 = vunpack.c.l.b16 %v4655
  %v5284 = vunpack.c.h.b16 %v4655
  %v5285 = vunpack.c.l.b16 %v4656
  %v5286 = vunpack.c.h.b16 %v4656
  %v5287 = vunpack.c.l.b16 %v4657
  %v5288 = vunpack.c.h.b16 %v4657
  %v5289 = vunpack.c.l.b16 %v4658
  %v5290 = vunpack.c.h.b16 %v4658
  %v5291 = vunpack.c.l.b16 %v4659
  %v5292 = vunpack.c.h.b16 %v4659
  %v5293 = vunpack.c.l.b16 %v4660
  %v5294 = vunpack.c.h.b16 %v4660
  %v5295 = vunpack.c.l.b16 %v4661
  %v5296 = vunpack.c.h.b16 %v4661
  %v5297 = vunpack.c.l.b16 %v4662
  %v5298 = vunpack.c.h.b16 %v4662
  %v5299 = vunpack.c.l.b16 %v4663
  %v5300 = vunpack.c.h.b16 %v4663
  %v5301 = vunpack.c.l.b16 %v4664
  %v5302 = vunpack.c.h.b16 %v4664
  %v5303 = vunpack.c.l.b16 %v4665
  %v5304 = vunpack.c.h.b16 %v4665
  %v5305 = vunpack.c.l.b16 %v4666
  %v5306 = vunpack.c.h.b16 %v4666
  %v5307 = vunpack.c.l.b16 %v4667
  %v5308 = vunpack.c.h.b16 %v4667
  %v5309 = vunpack.c.l.b16 %v4668
  %v5310 = vunpack.c.h.b16 %v4668
  %v5311 = vunpack.c.l.b16 %v4669
  %v5312 = vunpack.c.h.b16 %v4669
  %v5313 = vunpack.c.l.b16 %v4670
  %v5314 = vunpack.c.h.b16 %v4670
  %v5315 = vunpack.c.l.b16 %v4671
  %v5316 = vunpack.c.h.b16 %v4671
  %v5317 = vunpack.c.l.b16 %v4672
  %v5318 = vunpack.c.h.b16 %v4672
  %v5319 = vunpack.c.l.b16 %v4673
  %v5320 = vunpack.c.h.b16 %v4673
  %v5321 = vunpack.c.l.b16 %v4674
  %v5322 = vunpack.c.h.b16 %v4674
  %v5323 = vunpack.c.l.b16 %v4675
  %v5324 = vunpack.c.h.b16 %v4675
  %v5325 = vunpack.c.l.b16 %v4676
  %v5326 = vunpack.c.h.b16 %v4676
  %v5327 = vunpack.c.l.b16 %v4677
  %v5328 = vunpack.c.h.b16 %v4677
  %v5329 = vunpack.c.l.b16 %v4678
  %v5330 = vunpack.c.h.b16 %v4678
  %v5331 = vunpack.c.l.b16 %v4679
  %v5332 = vunpack.c.h.b16 %v4679
  %v5333 = vunpack.c.l.b16 %v4680
  %v5334 = vunpack.c.h.b16 %v4680
  %v5335 = vunpack.c.l.b16 %v4681
  %v5336 = vunpack.c.h.b16 %v4681
  %v5337 = vunpack.c.l.b16 %v4682
  %v5338 = vunpack.c.h.b16 %v4682
  %v5339 = vunpack.c.l.b16 %v4683
  %v5340 = vunpack.c.h.b16 %v4683
  %v5341 = vunpack.c.l.b16 %v4684
  %v5342 = vunpack.c.h.b16 %v4684
  %v5343 = vunpack.c.l.b16 %v4685
  %v5344 = vunpack.c.h.b16 %v4685
  %v5345 = vunpack.c.l.b16 %v4686
  %v5346 = vunpack.c.h.b16 %v4686
  %v5347 = vunpack.c.l.b16 %v4687
  %v5348 = vunpack.c.h.b16 %v4687
  %v5349 = vunpack.c.l.b16 %v4688
  %v5350 = vunpack.c.h.b16 %v4688
  %v5351 = vunpack.c.l.b16 %v4689
  %v5352 = vunpack.c.h.b16 %v4689
  %v5353 = vunpack.c.l.b16 %v4690
  %v5354 = vunpack.c.h.b16 %v4690
  %v5355 = vunpack.c.l.b16 %v4691
  %v5356 = vunpack.c.h.b16 %v4691
  %v5357 = vunpack.c.l.b16 %v4692
  %v5358 = vunpack.c.h.b16 %v4692
  %v5359 = vunpack.c.l.b16 %v4693
  %v5360 = vunpack.c.h.b16 %v4693
  %v5361 = vunpack.c.l.b16 %v4694
  %v5362 = vunpack.c.h.b16 %v4694
  %v5363 = vunpack.c.l.b16 %v4695
  %v5364 = vunpack.c.h.b16 %v4695
  %v5365 = vunpack.c.l.b16 %v4696
  %v5366 = vunpack.c.h.b16 %v4696
  %v5367 = vunpack.c.l.b16 %v4697
  %v5368 = vunpack.c.h.b16 %v4697
  %v5369 = vunpack.c.l.b16 %v4698
  %v5370 = vunpack.c.h.b16 %v4698
  %v5371 = vunpack.c.l.b16 %v4699
  %v5372 = vunpack.c.h.b16 %v4699
  %v5373 = vunpack.c.l.b16 %v4700
  %v5374 = vunpack.c.h.b16 %v4700
  %v5375 = vunpack.c.l.b16 %v4701
  %v5376 = vunpack.c.h.b16 %v4701
  %v5377 = vunpack.c.l.b16 %v4702
  %v5378 = vunpack.c.h.b16 %v4702
  %v5379 = vunpack.c.l.b16 %v4703
  %v5380 = vunpack.c.h.b16 %v4703
  %v5381 = vunpack.c.l.b16 %v4704
  %v5382 = vunpack.c.h.b16 %v4704
  %v5383 = vunpack.c.l.b16 %v4705
  %v5384 = vunpack.c.h.b16 %v4705
  %v5385 = vunpack.c.l.b16 %v4706
  %v5386 = vunpack.c.h.b16 %v4706
  %v5387 = vunpack.c.l.b16 %v4707
  %v5388 = vunpack.c.h.b16 %v4707
  %v5389 = vunpack.c.l.b16 %v4708
  %v5390 = vunpack.c.h.b16 %v4708
  %v5391 = vunpack.c.l.b16 %v4709
  %v5392 = vunpack.c.h.b16 %v4709
  %v5393 = vunpack.c.l.b16 %v4710
  %v5394 = vunpack.c.h.b16 %v4710
  %v5395 = vunpack.c.l.b16 %v4711
  %v5396 = vunpack.c.h.b16 %v4711
  %v5397 = vunpack.c.l.b16 %v4712
  %v5398 = vunpack.c.h.b16 %v4712
  %v5399 = vunpack.c.l.b16 %v4713
  %v5400 = vunpack.c.h.b16 %v4713
  %v5401 = vunpack.c.l.b16 %v4714
  %v5402 = vunpack.c.h.b16 %v4714
  %v5403 = vunpack.c.l.b16 %v4715
  %v5404 = vunpack.c.h.b16 %v4715
  %v5405 = vunpack.c.l.b16 %v4716
  %v5406 = vunpack.c.h.b16 %v4716
  %v5407 = vunpack.c.l.b16 %v4717
  %v5408 = vunpack.c.h.b16 %v4717
  %v5409 = vunpack.c.l.b16 %v4718
  %v5410 = vunpack.c.h.b16 %v4718
  %v5411 = vunpack.c.l.b16 %v4719
  %v5412 = vunpack.c.h.b16 %v4719
  %v5413 = vunpack.c.l.b16 %v4720
  %v5414 = vunpack.c.h.b16 %v4720
  %v5415 = vunpack.c.l.b16 %v4721
  %v5416 = vunpack.c.h.b16 %v4721
  %v5417 = vunpack.c.l.b16 %v4722
  %v5418 = vunpack.c.h.b16 %v4722
  %v5419 = vunpack.c.l.b16 %v4723
  %v5420 = vunpack.c.h.b16 %v4723
  %v5421 = vunpack.c.l.b16 %v4724
  %v5422 = vunpack.c.h.b16 %v4724
  %v5423 = vunpack.c.l.b16 %v4725
  %v5424 = vunpack.c.h.b16 %v4725
  %v5425 = vunpack.c.l.b16 %v4726
  %v5426 = vunpack.c.h.b16 %v4726
  %v5427 = vunpack.c.l.b16 %v4727
  %v5428 = vunpack.c.h.b16 %v4727
  %v5429 = vunpack.c.l.b16 %v4728
  %v5430 = vunpack.c.h.b16 %v4728
  %v5431 = vunpack.c.l.b16 %v4729
  %v5432 = vunpack.c.h.b16 %v4729
  %v5433 = vunpack.c.l.b16 %v4730
  %v5434 = vunpack.c.h.b16 %v4730
  %v5435 = vunpack.c.l.b16 %v4731
  %v5436 = vunpack.c.h.b16 %v4731
  %v5437 = vunpack.c.l.b16 %v4732
  %v5438 = vunpack.c.h.b16 %v4732
  %v5439 = vunpack.c.l.b16 %v4733
  %v5440 = vunpack.c.h.b16 %v4733
  %v5441 = vunpack.c.l.b16 %v4734
  %v5442 = vunpack.c.h.b16 %v4734
  %v5443 = vunpack.c.l.b16 %v4735
  %v5444 = vunpack.c.h.b16 %v4735
  %v5445 = vunpack.c.l.b16 %v4736
  %v5446 = vunpack.c.h.b16 %v4736
  %v5447 = vunpack.c.l.b16 %v4737
  %v5448 = vunpack.c.h.b16 %v4737
  %v5449 = vunpack.c.l.b16 %v4738
  %v5450 = vunpack.c.h.b16 %v4738
  %v5451 = vunpack.c.l.b16 %v4739
  %v5452 = vunpack.c.h.b16 %v4739
  %v5453 = vunpack.c.l.b16 %v4740
  %v5454 = vunpack.c.h.b16 %v4740
  %v5455 = vunpack.c.l.b16 %v4741
  %v5456 = vunpack.c.h.b16 %v4741
  %v5457 = vunpack.c.l.b16 %v4742
  %v5458 = vunpack.c.h.b16 %v4742
  %v5459 = vunpack.c.l.b16 %v4743
  %v5460 = vunpack.c.h.b16 %v4743
  %v5461 = vunpack.c.l.b16 %v4744
  %v5462 = vunpack.c.h.b16 %v4744
  %v5463 = vunpack.c.l.b16 %v4745
  %v5464 = vunpack.c.h.b16 %v4745
  %v5465 = vunpack.c.l.b16 %v4746
  %v5466 = vunpack.c.h.b16 %v4746
  %v5467 = vunpack.c.l.b16 %v4747
  %v5468 = vunpack.c.h.b16 %v4747
  %v5469 = vunpack.c.l.b16 %v4748
  %v5470 = vunpack.c.h.b16 %v4748
  %v5471 = vunpack.c.l.b16 %v4749
  %v5472 = vunpack.c.h.b16 %v4749
  %v5473 = vunpack.c.l.b16 %v4750
  %v5474 = vunpack.c.h.b16 %v4750
  %v5475 = vunpack.c.l.b16 %v4751
  %v5476 = vunpack.c.h.b16 %v4751
  %v5477 = vunpack.c.l.b16 %v4752
  %v5478 = vunpack.c.h.b16 %v4752
  %v5479 = vunpack.c.l.b16 %v4753
  %v5480 = vunpack.c.h.b16 %v4753
  %v5481 = vunpack.c.l.b16 %v4754
  %v5482 = vunpack.c.h.b16 %v4754
  %v5483 = vunpack.c.l.b16 %v4755
  %v5484 = vunpack.c.h.b16 %v4755
  %v5485 = vunpack.c.l.b16 %v4756
  %v5486 = vunpack.c.h.b16 %v4756
  %v5487 = vunpack.c.l.b16 %v4757
  %v5488 = vunpack.c.h.b16 %v4757
  %v5489 = vunpack.c.l.b16 %v4758
  %v5490 = vunpack.c.h.b16 %v4758
  %v5491 = vunpack.c.l.b16 %v4759
  %v5492 = vunpack.c.h.b16 %v4759
  %v5493 = vunpack.c.l.b16 %v4760
  %v5494 = vunpack.c.h.b16 %v4760
  %v5495 = vunpack.c.l.b16 %v4761
  %v5496 = vunpack.c.h.b16 %v4761
  %v5497 = vunpack.c.l.b16 %v4762
  %v5498 = vunpack.c.h.b16 %v4762
  %v5499 = vunpack.c.l.b16 %v4763
  %v5500 = vunpack.c.h.b16 %v4763
  %v5501 = vunpack.c.l.b16 %v4764
  %v5502 = vunpack.c.h.b16 %v4764
  %v5503 = vunpack.c.l.b16 %v4765
  %v5504 = vunpack.c.h.b16 %v4765
  %v5505 = vunpack.c.l.b16 %v4766
  %v5506 = vunpack.c.h.b16 %v4766
  %v5507 = vunpack.c.l.b16 %v4767
  %v5508 = vunpack.c.h.b16 %v4767
  %v5509 = vunpack.c.l.b16 %v4768
  %v5510 = vunpack.c.h.b16 %v4768
  %v5511 = vunpack.c.l.b16 %v4769
  %v5512 = vunpack.c.h.b16 %v4769
  %v5513 = vunpack.c.l.b16 %v4770
  %v5514 = vunpack.c.h.b16 %v4770
  %v5515 = vunpack.c.l.b16 %v4771
  %v5516 = vunpack.c.h.b16 %v4771
  %v5517 = vunpack.c.l.b16 %v4772
  %v5518 = vunpack.c.h.b16 %v4772
  %v5519 = vunpack.c.l.b16 %v4773
  %v5520 = vunpack.c.h.b16 %v4773
  %v5521 = vunpack.c.l.b16 %v4774
  %v5522 = vunpack.c.h.b16 %v4774
  %v5523 = vunpack.c.l.b16 %v4775
  %v5524 = vunpack.c.h.b16 %v4775
  %v5525 = vunpack.c.l.b16 %v4776
  %v5526 = vunpack.c.h.b16 %v4776
  %v5527 = vunpack.c.l.b16 %v4777
  %v5528 = vunpack.c.h.b16 %v4777
  %v5529 = vunpack.c.l.b16 %v4778
  %v5530 = vunpack.c.h.b16 %v4778
  %v5531 = vunpack.c.l.b16 %v4779
  %v5532 = vunpack.c.h.b16 %v4779
  %v5533 = vunpack.c.l.b16 %v4780
  %v5534 = vunpack.c.h.b16 %v4780
  %v5535 = vunpack.c.l.b16 %v4781
  %v5536 = vunpack.c.h.b16 %v4781
  %v5537 = vunpack.c.l.b16 %v4782
  %v5538 = vunpack.c.h.b16 %v4782
  %v5539 = vunpack.c.l.b16 %v4783
  %v5540 = vunpack.c.h.b16 %v4783
  %v5541 = vunpack.c.l.b16 %v4784
  %v5542 = vunpack.c.h.b16 %v4784
  %v5543 = vunpack.c.l.b16 %v4785
  %v5544 = vunpack.c.h.b16 %v4785
  %v5545 = vunpack.c.l.b16 %v4786
  %v5546 = vunpack.c.h.b16 %v4786
  %v5547 = vunpack.c.l.b16 %v4787
  %v5548 = vunpack.c.h.b16 %v4787
  %v5549 = vunpack.c.l.b16 %v4788
  %v5550 = vunpack.c.h.b16 %v4788
  %v5551 = vunpack.c.l.b16 %v4789
  %v5552 = vunpack.c.h.b16 %v4789
  %v5553 = vunpack.c.l.b16 %v4790
  %v5554 = vunpack.c.h.b16 %v4790
  %v5555 = vunpack.c.l.b16 %v4791
  %v5556 = vunpack.c.h.b16 %v4791
  %v5557 = vunpack.c.l.b16 %v4792
  %v5558 = vunpack.c.h.b16 %v4792
  %v5559 = vunpack.c.l.b16 %v4793
  %v5560 = vunpack.c.h.b16 %v4793
  %v5561 = vunpack.c.l.b16 %v4794
  %v5562 = vunpack.c.h.b16 %v4794
  %v5563 = vunpack.c.l.b16 %v4795
  %v5564 = vunpack.c.h.b16 %v4795
  %v5565 = vunpack.c.l.b16 %v4796
  %v5566 = vunpack.c.h.b16 %v4796
  %v5567 = vunpack.c.l.b16 %v4797
  %v5568 = vunpack.c.h.b16 %v4797
  %v5569 = vunpack.c.l.b16 %v4798
  %v5570 = vunpack.c.h.b16 %v4798
  %v5571 = vunpack.c.l.b16 %v4799
  %v5572 = vunpack.c.h.b16 %v4799
  %v5573 = vunpack.c.l.b16 %v4800
  %v5574 = vunpack.c.h.b16 %v4800
  %v5575 = vunpack.c.l.b16 %v4801
  %v5576 = vunpack.c.h.b16 %v4801
  %v5577 = vunpack.c.l.b16 %v4802
  %v5578 = vunpack.c.h.b16 %v4802
  %v5579 = vunpack.c.l.b16 %v4803
  %v5580 = vunpack.c.h.b16 %v4803
  %v5581 = vunpack.c.l.b16 %v4804
  %v5582 = vunpack.c.h.b16 %v4804
  %v5583 = vunpack.c.l.b16 %v4805
  %v5584 = vunpack.c.h.b16 %v4805
  %v5585 = vunpack.c.l.b16 %v4806
  %v5586 = vunpack.c.h.b16 %v4806
  %v5587 = vunpack.c.l.b16 %v4807
  %v5588 = vunpack.c.h.b16 %v4807
  %v5589 = vunpack.c.l.b16 %v4808
  %v5590 = vunpack.c.h.b16 %v4808
  %v5591 = vunpack.c.l.b16 %v4809
  %v5592 = vunpack.c.h.b16 %v4809
  %v5593 = vunpack.c.l.b16 %v4810
  %v5594 = vunpack.c.h.b16 %v4810
  %v5595 = vunpack.c.l.b16 %v4811
  %v5596 = vunpack.c.h.b16 %v4811
  %v5597 = vunpack.c.l.b16 %v4812
  %v5598 = vunpack.c.h.b16 %v4812
  %v5599 = vunpack.c.l.b16 %v4813
  %v5600 = vunpack.c.h.b16 %v4813
  %v5601 = vunpack.c.l.b16 %v4814
  %v5602 = vunpack.c.h.b16 %v4814
  %v5603 = vunpack.c.l.b16 %v4815
  %v5604 = vunpack.c.h.b16 %v4815
  %v5605 = vunpack.c.l.b16 %v4816
  %v5606 = vunpack.c.h.b16 %v4816
  %v5607 = vpack.c.b16 %v5099, %v5095
  %v5608 = vpack.c.b16 %v5100, %v5096
  %v5609 = vpack.c.b16 %v5101, %v5097
  %v5610 = vpack.c.b16 %v5102, %v5098
  %v5611 = vpack.c.b16 %v5107, %v5103
  %v5612 = vpack.c.b16 %v5108, %v5104
  %v5613 = vpack.c.b16 %v5109, %v5105
  %v5614 = vpack.c.b16 %v5110, %v5106
  %v5615 = vpack.c.b16 %v5115, %v5111
  %v5616 = vpack.c.b16 %v5116, %v5112
  %v5617 = vpack.c.b16 %v5117, %v5113
  %v5618 = vpack.c.b16 %v5118, %v5114
  %v5619 = vpack.c.b16 %v5123, %v5119
  %v5620 = vpack.c.b16 %v5124, %v5120
  %v5621 = vpack.c.b16 %v5125, %v5121
  %v5622 = vpack.c.b16 %v5126, %v5122
  %v5623 = vpack.c.b16 %v5131, %v5127
  %v5624 = vpack.c.b16 %v5132, %v5128
  %v5625 = vpack.c.b16 %v5133, %v5129
  %v5626 = vpack.c.b16 %v5134, %v5130
  %v5627 = vpack.c.b16 %v5139, %v5135
  %v5628 = vpack.c.b16 %v5140, %v5136
  %v5629 = vpack.c.b16 %v5141, %v5137
  %v5630 = vpack.c.b16 %v5142, %v5138
  %v5631 = vpack.c.b16 %v5147, %v5143
  %v5632 = vpack.c.b16 %v5148, %v5144
  %v5633 = vpack.c.b16 %v5149, %v5145
  %v5634 = vpack.c.b16 %v5150, %v5146
  %v5635 = vpack.c.b16 %v5155, %v5151
  %v5636 = vpack.c.b16 %v5156, %v5152
  %v5637 = vpack.c.b16 %v5157, %v5153
  %v5638 = vpack.c.b16 %v5158, %v5154
  %v5639 = vpack.c.b16 %v5163, %v5159
  %v5640 = vpack.c.b16 %v5164, %v5160
  %v5641 = vpack.c.b16 %v5165, %v5161
  %v5642 = vpack.c.b16 %v5166, %v5162
  %v5643 = vpack.c.b16 %v5171, %v5167
  %v5644 = vpack.c.b16 %v5172, %v5168
  %v5645 = vpack.c.b16 %v5173, %v5169
  %v5646 = vpack.c.b16 %v5174, %v5170
  %v5647 = vpack.c.b16 %v5179, %v5175
  %v5648 = vpack.c.b16 %v5180, %v5176
  %v5649 = vpack.c.b16 %v5181, %v5177
  %v5650 = vpack.c.b16 %v5182, %v5178
  %v5651 = vpack.c.b16 %v5187, %v5183
  %v5652 = vpack.c.b16 %v5188, %v5184
  %v5653 = vpack.c.b16 %v5189, %v5185
  %v5654 = vpack.c.b16 %v5190, %v5186
  %v5655 = vpack.c.b16 %v5195, %v5191
  %v5656 = vpack.c.b16 %v5196, %v5192
  %v5657 = vpack.c.b16 %v5197, %v5193
  %v5658 = vpack.c.b16 %v5198, %v5194
  %v5659 = vpack.c.b16 %v5203, %v5199
  %v5660 = vpack.c.b16 %v5204, %v5200
  %v5661 = vpack.c.b16 %v5205, %v5201
  %v5662 = vpack.c.b16 %v5206, %v5202
  %v5663 = vpack.c.b16 %v5211, %v5207
  %v5664 = vpack.c.b16 %v5212, %v5208
  %v5665 = vpack.c.b16 %v5213, %v5209
  %v5666 = vpack.c.b16 %v5214, %v5210
  %v5667 = vpack.c.b16 %v5219, %v5215
  %v5668 = vpack.c.b16 %v5220, %v5216
  %v5669 = vpack.c.b16 %v5221, %v5217
  %v5670 = vpack.c.b16 %v5222, %v5218
  %v5671 = vpack.c.b16 %v5227, %v5223
  %v5672 = vpack.c.b16 %v5228, %v5224
  %v5673 = vpack.c.b16 %v5229, %v5225
  %v5674 = vpack.c.b16 %v5230, %v5226
  %v5675 = vpack.c.b16 %v5235, %v5231
  %v5676 = vpack.c.b16 %v5236, %v5232
  %v5677 = vpack.c.b16 %v5237, %v5233
  %v5678 = vpack.c.b16 %v5238, %v5234
  %v5679 = vpack.c.b16 %v5243, %v5239
  %v5680 = vpack.c.b16 %v5244, %v5240
  %v5681 = vpack.c.b16 %v5245, %v5241
  %v5682 = vpack.c.b16 %v5246, %v5242
  %v5683 = vpack.c.b16 %v5251, %v5247
  %v5684 = vpack.c.b16 %v5252, %v5248
  %v5685 = vpack.c.b16 %v5253, %v5249
  %v5686 = vpack.c.b16 %v5254, %v5250
  %v5687 = vpack.c.b16 %v5259, %v5255
  %v5688 = vpack.c.b16 %v5260, %v5256
  %v5689 = vpack.c.b16 %v5261, %v5257
  %v5690 = vpack.c.b16 %v5262, %v5258
  %v5691 = vpack.c.b16 %v5267, %v5263
  %v5692 = vpack.c.b16 %v5268, %v5264
  %v5693 = vpack.c.b16 %v5269, %v5265
  %v5694 = vpack.c.b16 %v5270, %v5266
  %v5695 = vpack.c.b16 %v5275, %v5271
  %v5696 = vpack.c.b16 %v5276, %v5272
  %v5697 = vpack.c.b16 %v5277, %v5273
  %v5698 = vpack.c.b16 %v5278, %v5274
  %v5699 = vpack.c.b16 %v5283, %v5279
  %v5700 = vpack.c.b16 %v5284, %v5280
  %v5701 = vpack.c.b16 %v5285, %v5281
  %v5702 = vpack.c.b16 %v5286, %v5282
  %v5703 = vpack.c.b16 %v5291, %v5287
  %v5704 = vpack.c.b16 %v5292, %v5288
  %v5705 = vpack.c.b16 %v5293, %v5289
  %v5706 = vpack.c.b16 %v5294, %v5290
  %v5707 = vpack.c.b16 %v5299, %v5295
  %v5708 = vpack.c.b16 %v5300, %v5296
  %v5709 = vpack.c.b16 %v5301, %v5297
  %v5710 = vpack.c.b16 %v5302, %v5298
  %v5711 = vpack.c.b16 %v5307, %v5303
  %v5712 = vpack.c.b16 %v5308, %v5304
  %v5713 = vpack.c.b16 %v5309, %v5305
  %v5714 = vpack.c.b16 %v5310, %v5306
  %v5715 = vpack.c.b16 %v5315, %v5311
  %v5716 = vpack.c.b16 %v5316, %v5312
  %v5717 = vpack.c.b16 %v5317, %v5313
  %v5718 = vpack.c.b16 %v5318, %v5314
  %v5719 = vpack.c.b16 %v5323, %v5319
  %v5720 = vpack.c.b16 %v5324, %v5320
  %v5721 = vpack.c.b16 %v5325, %v5321
  %v5722 = vpack.c.b16 %v5326, %v5322
  %v5723 = vpack.c.b16 %v5331, %v5327
  %v5724 = vpack.c.b16 %v5332, %v5328
  %v5725 = vpack.c.b16 %v5333, %v5329
  %v5726 = vpack.c.b16 %v5334, %v5330
  %v5727 = vpack.c.b16 %v5339, %v5335
  %v5728 = vpack.c.b16 %v5340, %v5336
  %v5729 = vpack.c.b16 %v5341, %v5337
  %v5730 = vpack.c.b16 %v5342, %v5338
  %v5731 = vpack.c.b16 %v5347, %v5343
  %v5732 = vpack.c.b16 %v5348, %v5344
  %v5733 = vpack.c.b16 %v5349, %v5345
  %v5734 = vpack.c.b16 %v5350, %v5346
  %v5735 = vpack.c.b16 %v5355, %v5351
  %v5736 = vpack.c.b16 %v5356, %v5352
  %v5737 = vpack.c.b16 %v5357, %v5353
  %v5738 = vpack.c.b16 %v5358, %v5354
  %v5739 = vpack.c.b16 %v5363, %v5359
  %v5740 = vpack.c.b16 %v5364, %v5360
  %v5741 = vpack.c.b16 %v5365, %v5361
  %v5742 = vpack.c.b16 %v5366, %v5362
  %v5743 = vpack.c.b16 %v5371, %v5367
  %v5744 = vpack.c.b16 %v5372, %v5368
  %v5745 = vpack.c.b16 %v5373, %v5369
  %v5746 = vpack.c.b16 %v5374, %v5370
  %v5747 = vpack.c.b16 %v5379, %v5375
  %v5748 = vpack.c.b16 %v5380, %v5376
  %v5749 = vpack.c.b16 %v5381, %v5377
  %v5750 = vpack.c.b16 %v5382, %v5378
  %v5751 = vpack.c.b16 %v5387, %v5383
  %v5752 = vpack.c.b16 %v5388, %v5384
  %v5753 = vpack.c.b16 %v5389, %v5385
  %v5754 = vpack.c.b16 %v5390, %v5386
  %v5755 = vpack.c.b16 %v5395, %v5391
  %v5756 = vpack.c.b16 %v5396, %v5392
  %v5757 = vpack.c.b16 %v5397, %v5393
  %v5758 = vpack.c.b16 %v5398, %v5394
  %v5759 = vpack.c.b16 %v5403, %v5399
  %v5760 = vpack.c.b16 %v5404, %v5400
  %v5761 = vpack.c.b16 %v5405, %v5401
  %v5762 = vpack.c.b16 %v5406, %v5402
  %v5763 = vpack.c.b16 %v5411, %v5407
  %v5764 = vpack.c.b16 %v5412, %v5408
  %v5765 = vpack.c.b16 %v5413, %v5409
  %v5766 = vpack.c.b16 %v5414, %v5410
  %v5767 = vpack.c.b16 %v5419, %v5415
  %v5768 = vpack.c.b16 %v5420, %v5416
  %v5769 = vpack.c.b16 %v5421, %v5417
  %v5770 = vpack.c.b16 %v5422, %v5418
  %v5771 = vpack.c.b16 %v5427, %v5423
  %v5772 = vpack.c.b16 %v5428, %v5424
  %v5773 = vpack.c.b16 %v5429, %v5425
  %v5774 = vpack.c.b16 %v5430, %v5426
  %v5775 = vpack.c.b16 %v5435, %v5431
  %v5776 = vpack.c.b16 %v5436, %v5432
  %v5777 = vpack.c.b16 %v5437, %v5433
  %v5778 = vpack.c.b16 %v5438, %v5434
  %v5779 = vpack.c.b16 %v5443, %v5439
  %v5780 = vpack.c.b16 %v5444, %v5440
  %v5781 = vpack.c.b16 %v5445, %v5441
  %v5782 = vpack.c.b16 %v5446, %v5442
  %v5783 = vpack.c.b16 %v5451, %v5447
  %v5784 = vpack.c.b16 %v5452, %v5448
  %v5785 = vpack.c.b16 %v5453, %v5449
  %v5786 = vpack.c.b16 %v5454, %v5450
  %v5787 = vpack.c.b16 %v5459, %v5455
  %v5788 = vpack.c.b16 %v5460, %v5456
  %v5789 = vpack.c.b16 %v5461, %v5457
  %v5790 = vpack.c.b16 %v5462, %v5458
  %v5791 = vpack.c.b16 %v5467, %v5463
  %v5792 = vpack.c.b16 %v5468, %v5464
  %v5793 = vpack.c.b16 %v5469, %v5465
  %v5794 = vpack.c.b16 %v5470, %v5466
  %v5795 = vpack.c.b16 %v5475, %v5471
  %v5796 = vpack.c.b16 %v5476, %v5472
  %v5797 = vpack.c.b16 %v5477, %v5473
  %v5798 = vpack.c.b16 %v5478, %v5474
  %v5799 = vpack.c.b16 %v5483, %v5479
  %v5800 = vpack.c.b16 %v5484, %v5480
  %v5801 = vpack.c.b16 %v5485, %v5481
  %v5802 = vpack.c.b16 %v5486, %v5482
  %v5803 = vpack.c.b16 %v5491, %v5487
  %v5804 = vpack.c.b16 %v5492, %v5488
  %v5805 = vpack.c.b16 %v5493, %v5489
  %v5806 = vpack.c.b16 %v5494, %v5490
  %v5807 = vpack.c.b16 %v5499, %v5495
  %v5808 = vpack.c.b16 %v5500, %v5496
  %v5809 = vpack.c.b16 %v5501, %v5497
  %v5810 = vpack.c.b16 %v5502, %v5498
  %v5811 = vpack.c.b16 %v5507, %v5503
  %v5812 = vpack.c.b16 %v5508, %v5504
  %v5813 = vpack.c.b16 %v5509, %v5505
  %v5814 = vpack.c.b16 %v5510, %v5506
  %v5815 = vpack.c.b16 %v5515, %v5511
  %v5816 = vpack.c.b16 %v5516, %v5512
  %v5817 = vpack.c.b16 %v5517, %v5513
  %v5818 = vpack.c.b16 %v5518, %v5514
  %v5819 = vpack.c.b16 %v5523, %v5519
  %v5820 = vpack.c.b16 %v5524, %v5520
  %v5821 = vpack.c.b16 %v5525, %v5521
  %v5822 = vpack.c.b16 %v5526, %v5522
  %v5823 = vpack.c.b16 %v5531, %v5527
  %v5824 = vpack.c.b16 %v5532, %v5528
  %v5825 = vpack.c.b16 %v5533, %v5529
  %v5826 = vpack.c.b16 %v5534, %v5530
  %v5827 = vpack.c.b16 %v5539, %v5535
  %v5828 = vpack.c.b16 %v5540, %v5536
  %v5829 = vpack.c.b16 %v5541, %v5537
  %v5830 = vpack.c.b16 %v5542, %v5538
  %v5831 = vpack.c.b16 %v5547, %v5543
  %v5832 = vpack.c.b16 %v5548, %v5544
  %v5833 = vpack.c.b16 %v5549, %v5545
  %v5834 = vpack.c.b16 %v5550, %v5546
  %v5835 = vpack.c.b16 %v5555, %v5551
  %v5836 = vpack.c.b16 %v5556, %v5552
  %v5837 = vpack.c.b16 %v5557, %v5553
  %v5838 = vpack.c.b16 %v5558, %v5554
  %v5839 = vpack.c.b16 %v5563, %v5559
  %v5840 = vpack.c.b16 %v5564, %v5560
  %v5841 = vpack.c.b16 %v5565, %v5561
  %v5842 = vpack.c.b16 %v5566, %v5562
  %v5843 = vpack.c.b16 %v5571, %v5567
  %v5844 = vpack.c.b16 %v5572, %v5568
  %v5845 = vpack.c.b16 %v5573, %v5569
  %v5846 = vpack.c.b16 %v5574, %v5570
  %v5847 = vpack.c.b16 %v5579, %v5575
  %v5848 = vpack.c.b16 %v5580, %v5576
  %v5849 = vpack.c.b16 %v5581, %v5577
  %v5850 = vpack.c.b16 %v5582, %v5578
  %v5851 = vpack.c.b16 %v5587, %v5583
  %v5852 = vpack.c.b16 %v5588, %v5584
  %v5853 = vpack.c.b16 %v5589, %v5585
  %v5854 = vpack.c.b16 %v5590, %v5586
  %v5855 = vpack.c.b16 %v5595, %v5591
  %v5856 = vpack.c.b16 %v5596, %v5592
  %v5857 = vpack.c.b16 %v5597, %v5593
  %v5858 = vpack.c.b16 %v5598, %v5594
  %v5859 = vpack.c.b16 %v5603, %v5599
  %v5860 = vpack.c.b16 %v5604, %v5600
  %v5861 = vpack.c.b16 %v5605, %v5601
  %v5862 = vpack.c.b16 %v5606, %v5602
  %6119 = vmatprep.subr.bf16.mxu0 %v5608
  %6120 = vmatpush1.bf16.msra.mxu0 %v5607
  %6121 = vmatprep.subr.bf16.mxu0 %v5612
  %6122 = vmatpush1.bf16.msra.mxu0 %v5611
  %6123 = vmatprep.subr.bf16.mxu0 %v5616
  %6124 = vmatpush1.bf16.msra.mxu0 %v5615
  %6125 = vmatprep.subr.bf16.mxu0 %v5620
  %6126 = vmatpush1.bf16.msra.mxu0 %v5619
  %6127 = vmatprep.subr.bf16.mxu0 %v5624
  %6128 = vmatpush1.bf16.msra.mxu0 %v5623
  %6129 = vmatprep.subr.bf16.mxu0 %v5628
  %6130 = vmatpush1.bf16.msra.mxu0 %v5627
  %6131 = vmatprep.subr.bf16.mxu0 %v5632
  %6132 = vmatpush1.bf16.msra.mxu0 %v5631
  %6133 = vmatprep.subr.bf16.mxu0 %v5636
  %6134 = vmatpush1.bf16.msra.mxu0 %v5635
  %6135 = vmatprep.subr.bf16.mxu0 %v5640
  %6136 = vmatpush1.bf16.msra.mxu0 %v5639
  %6137 = vmatprep.subr.bf16.mxu0 %v5644
  %6138 = vmatpush1.bf16.msra.mxu0 %v5643
  %6139 = vmatprep.subr.bf16.mxu0 %v5648
  %6140 = vmatpush1.bf16.msra.mxu0 %v5647
  %6141 = vmatprep.subr.bf16.mxu0 %v5652
  %6142 = vmatpush1.bf16.msra.mxu0 %v5651
  %6143 = vmatprep.subr.bf16.mxu0 %v5656
  %6144 = vmatpush1.bf16.msra.mxu0 %v5655
  %6145 = vmatprep.subr.bf16.mxu0 %v5660
  %6146 = vmatpush1.bf16.msra.mxu0 %v5659
  %6147 = vmatprep.subr.bf16.mxu0 %v5664
  %6148 = vmatpush1.bf16.msra.mxu0 %v5663
  %6149 = vmatprep.subr.bf16.mxu0 %v5668
  %6150 = vmatpush1.bf16.msra.mxu0 %v5667
  %6151 = vmatprep.mubr.bf16.mxu0 %v4554
  %6152 = vmatmul.mubr.bf16.gmra.mrb[0].mxu0 %v4553
  %v6153 = vpop.f32.mrb[0].mxu0
  %v6154 = vadd.f32 %v4822, %v6153
  %v6155 = vpop.f32.mrb[0].mxu0
  %v6156 = vadd.f32 %v4826, %v6155
  %v6157 = vpop.f32.mrb[0].mxu0
  %v6158 = vpop.f32.mrb[0].mxu0
  %6159 = vdwg.mxu0
  %6160 = vmatprep.subr.bf16.mxu0 %v5672
  %6161 = vmatpush1.bf16.msra.mxu0 %v5671
  %6162 = vmatprep.subr.bf16.mxu0 %v5676
  %6163 = vmatpush1.bf16.msra.mxu0 %v5675
  %6164 = vmatprep.subr.bf16.mxu0 %v5680
  %6165 = vmatpush1.bf16.msra.mxu0 %v5679
  %6166 = vmatprep.subr.bf16.mxu0 %v5684
  %6167 = vmatpush1.bf16.msra.mxu0 %v5683
  %6168 = vmatprep.subr.bf16.mxu0 %v5688
  %6169 = vmatpush1.bf16.msra.mxu0 %v5687
  %6170 = vmatprep.subr.bf16.mxu0 %v5692
  %6171 = vmatpush1.bf16.msra.mxu0 %v5691
  %6172 = vmatprep.subr.bf16.mxu0 %v5696
  %6173 = vmatpush1.bf16.msra.mxu0 %v5695
  %6174 = vmatprep.subr.bf16.mxu0 %v5700
  %6175 = vmatpush1.bf16.msra.mxu0 %v5699
  %6176 = vmatprep.subr.bf16.mxu0 %v5704
  %6177 = vmatpush1.bf16.msra.mxu0 %v5703
  %6178 = vmatprep.subr.bf16.mxu0 %v5708
  %6179 = vmatpush1.bf16.msra.mxu0 %v5707
  %6180 = vmatprep.subr.bf16.mxu0 %v5712
  %6181 = vmatpush1.bf16.msra.mxu0 %v5711
  %6182 = vmatprep.subr.bf16.mxu0 %v5716
  %6183 = vmatpush1.bf16.msra.mxu0 %v5715
  %6184 = vmatprep.subr.bf16.mxu0 %v5720
  %6185 = vmatpush1.bf16.msra.mxu0 %v5719
  %6186 = vmatprep.subr.bf16.mxu0 %v5724
  %6187 = vmatpush1.bf16.msra.mxu0 %v5723
  %6188 = vmatprep.subr.bf16.mxu0 %v5728
  %6189 = vmatpush1.bf16.msra.mxu0 %v5727
  %6190 = vmatprep.subr.bf16.mxu0 %v5732
  %6191 = vmatpush1.bf16.msra.mxu0 %v5731
  %6192 = vmatprep.mubr.bf16.mxu0 %v4556
  %6193 = vmatmul.mubr.bf16.gmra.mrb[0].mxu0 %v4555
  %v6194 = vpop.f32.mrb[0].mxu0
  %v6195 = vadd.f32 %v6154, %v6194
  %v6196 = vpop.f32.mrb[0].mxu0
  %v6197 = vadd.f32 %v6156, %v6196
  %v6198 = vpop.f32.mrb[0].mxu0
  %v6199 = vpop.f32.mrb[0].mxu0
  %6200 = vdwg.mxu0
  %6201 = vmatprep.subr.bf16.mxu0 %v5736
  %6202 = vmatpush1.bf16.msra.mxu0 %v5735
  %6203 = vmatprep.subr.bf16.mxu0 %v5740
  %6204 = vmatpush1.bf16.msra.mxu0 %v5739
  %6205 = vmatprep.subr.bf16.mxu0 %v5744
  %6206 = vmatpush1.bf16.msra.mxu0 %v5743
  %6207 = vmatprep.subr.bf16.mxu0 %v5748
  %6208 = vmatpush1.bf16.msra.mxu0 %v5747
  %6209 = vmatprep.subr.bf16.mxu0 %v5752
  %6210 = vmatpush1.bf16.msra.mxu0 %v5751
  %6211 = vmatprep.subr.bf16.mxu0 %v5756
  %6212 = vmatpush1.bf16.msra.mxu0 %v5755
  %6213 = vmatprep.subr.bf16.mxu0 %v5760
  %6214 = vmatpush1.bf16.msra.mxu0 %v5759
  %6215 = vmatprep.subr.bf16.mxu0 %v5764
  %6216 = vmatpush1.bf16.msra.mxu0 %v5763
  %6217 = vmatprep.subr.bf16.mxu0 %v5768
  %6218 = vmatpush1.bf16.msra.mxu0 %v5767
  %6219 = vmatprep.subr.bf16.mxu0 %v5772
  %6220 = vmatpush1.bf16.msra.mxu0 %v5771
  %6221 = vmatprep.subr.bf16.mxu0 %v5776
  %6222 = vmatpush1.bf16.msra.mxu0 %v5775
  %6223 = vmatprep.subr.bf16.mxu0 %v5780
  %6224 = vmatpush1.bf16.msra.mxu0 %v5779
  %6225 = vmatprep.subr.bf16.mxu0 %v5784
  %6226 = vmatpush1.bf16.msra.mxu0 %v5783
  %6227 = vmatprep.subr.bf16.mxu0 %v5788
  %6228 = vmatpush1.bf16.msra.mxu0 %v5787
  %6229 = vmatprep.subr.bf16.mxu0 %v5792
  %6230 = vmatpush1.bf16.msra.mxu0 %v5791
  %6231 = vmatprep.subr.bf16.mxu0 %v5796
  %6232 = vmatpush1.bf16.msra.mxu0 %v5795
  %6233 = vmatprep.mubr.bf16.mxu0 %v4558
  %6234 = vmatmul.mubr.bf16.gmra.mrb[0].mxu0 %v4557
  %v6235 = vpop.f32.mrb[0].mxu0
  %v6236 = vadd.f32 %v6195, %v6235
  %v6237 = vpop.f32.mrb[0].mxu0
  %v6238 = vadd.f32 %v6197, %v6237
  %v6239 = vpop.f32.mrb[0].mxu0
  %v6240 = vpop.f32.mrb[0].mxu0
  %6241 = vdwg.mxu0
  %6242 = vmatprep.subr.bf16.mxu0 %v5800
  %6243 = vmatpush1.bf16.msra.mxu0 %v5799
  %6244 = vmatprep.subr.bf16.mxu0 %v5804
  %6245 = vmatpush1.bf16.msra.mxu0 %v5803
  %6246 = vmatprep.subr.bf16.mxu0 %v5808
  %6247 = vmatpush1.bf16.msra.mxu0 %v5807
  %6248 = vmatprep.subr.bf16.mxu0 %v5812
  %6249 = vmatpush1.bf16.msra.mxu0 %v5811
  %6250 = vmatprep.subr.bf16.mxu0 %v5816
  %6251 = vmatpush1.bf16.msra.mxu0 %v5815
  %6252 = vmatprep.subr.bf16.mxu0 %v5820
  %6253 = vmatpush1.bf16.msra.mxu0 %v5819
  %6254 = vmatprep.subr.bf16.mxu0 %v5824
  %6255 = vmatpush1.bf16.msra.mxu0 %v5823
  %6256 = vmatprep.subr.bf16.mxu0 %v5828
  %6257 = vmatpush1.bf16.msra.mxu0 %v5827
  %6258 = vmatprep.subr.bf16.mxu0 %v5832
  %6259 = vmatpush1.bf16.msra.mxu0 %v5831
  %6260 = vmatprep.subr.bf16.mxu0 %v5836
  %6261 = vmatpush1.bf16.msra.mxu0 %v5835
  %6262 = vmatprep.subr.bf16.mxu0 %v5840
  %6263 = vmatpush1.bf16.msra.mxu0 %v5839
  %6264 = vmatprep.subr.bf16.mxu0 %v5844
  %6265 = vmatpush1.bf16.msra.mxu0 %v5843
  %6266 = vmatprep.subr.bf16.mxu0 %v5848
  %6267 = vmatpush1.bf16.msra.mxu0 %v5847
  %6268 = vmatprep.subr.bf16.mxu0 %v5852
  %6269 = vmatpush1.bf16.msra.mxu0 %v5851
  %6270 = vmatprep.subr.bf16.mxu0 %v5856
  %6271 = vmatpush1.bf16.msra.mxu0 %v5855
  %6272 = vmatprep.subr.bf16.mxu0 %v5860
  %6273 = vmatpush1.bf16.msra.mxu0 %v5859
  %6274 = vmatprep.mubr.bf16.mxu0 %v4560
  %6275 = vmatmul.mubr.bf16.gmra.mrb[0].mxu0 %v4559
  %v6276 = vpop.f32.mrb[0].mxu0
  %v6277 = vadd.f32 %v6236, %v6276
  %v6278 = vpop.f32.mrb[0].mxu0
  %v6279 = vadd.f32 %v6238, %v6278
  %v6280 = vpop.f32.mrb[0].mxu0
  %v6281 = vpop.f32.mrb[0].mxu0
  %6282 = vdwg.mxu0
  %6283 = vmatprep.subr.bf16.mxu0 %v5610
  %6284 = vmatpush1.bf16.msra.mxu0 %v5609
  %6285 = vmatprep.subr.bf16.mxu0 %v5614
  %6286 = vmatpush1.bf16.msra.mxu0 %v5613
  %6287 = vmatprep.subr.bf16.mxu0 %v5618
  %6288 = vmatpush1.bf16.msra.mxu0 %v5617
  %6289 = vmatprep.subr.bf16.mxu0 %v5622
  %6290 = vmatpush1.bf16.msra.mxu0 %v5621
  %6291 = vmatprep.subr.bf16.mxu0 %v5626
  %6292 = vmatpush1.bf16.msra.mxu0 %v5625
  %6293 = vmatprep.subr.bf16.mxu0 %v5630
  %6294 = vmatpush1.bf16.msra.mxu0 %v5629
  %6295 = vmatprep.subr.bf16.mxu0 %v5634
  %6296 = vmatpush1.bf16.msra.mxu0 %v5633
  %6297 = vmatprep.subr.bf16.mxu0 %v5638
  %6298 = vmatpush1.bf16.msra.mxu0 %v5637
  %6299 = vmatprep.subr.bf16.mxu0 %v5642
  %6300 = vmatpush1.bf16.msra.mxu0 %v5641
  %6301 = vmatprep.subr.bf16.mxu0 %v5646
  %6302 = vmatpush1.bf16.msra.mxu0 %v5645
  %6303 = vmatprep.subr.bf16.mxu0 %v5650
  %6304 = vmatpush1.bf16.msra.mxu0 %v5649
  %6305 = vmatprep.subr.bf16.mxu0 %v5654
  %6306 = vmatpush1.bf16.msra.mxu0 %v5653
  %6307 = vmatprep.subr.bf16.mxu0 %v5658
  %6308 = vmatpush1.bf16.msra.mxu0 %v5657
  %6309 = vmatprep.subr.bf16.mxu0 %v5662
  %6310 = vmatpush1.bf16.msra.mxu0 %v5661
  %6311 = vmatprep.subr.bf16.mxu0 %v5666
  %6312 = vmatpush1.bf16.msra.mxu0 %v5665
  %6313 = vmatprep.subr.bf16.mxu0 %v5670
  %6314 = vmatpush1.bf16.msra.mxu0 %v5669
  %6315 = vmatprep.mubr.bf16.mxu0 %v4554
  %6316 = vmatmul.mubr.bf16.gmra.mrb[0].mxu0 %v4553
  %v6317 = vpop.f32.mrb[0].mxu0
  %v6318 = vadd.f32 %v4830, %v6317
  %v6319 = vpop.f32.mrb[0].mxu0
  %v6320 = vadd.f32 %v4834, %v6319
  %v6321 = vpop.f32.mrb[0].mxu0
  %v6322 = vpop.f32.mrb[0].mxu0
  %6323 = vdwg.mxu0
  %6324 = vmatprep.subr.bf16.mxu0 %v5674
  %6325 = vmatpush1.bf16.msra.mxu0 %v5673
  %6326 = vmatprep.subr.bf16.mxu0 %v5678
  %6327 = vmatpush1.bf16.msra.mxu0 %v5677
  %6328 = vmatprep.subr.bf16.mxu0 %v5682
  %6329 = vmatpush1.bf16.msra.mxu0 %v5681
  %6330 = vmatprep.subr.bf16.mxu0 %v5686
  %6331 = vmatpush1.bf16.msra.mxu0 %v5685
  %6332 = vmatprep.subr.bf16.mxu0 %v5690
  %6333 = vmatpush1.bf16.msra.mxu0 %v5689
  %6334 = vmatprep.subr.bf16.mxu0 %v5694
  %6335 = vmatpush1.bf16.msra.mxu0 %v5693
  %6336 = vmatprep.subr.bf16.mxu0 %v5698
  %6337 = vmatpush1.bf16.msra.mxu0 %v5697
  %6338 = vmatprep.subr.bf16.mxu0 %v5702
  %6339 = vmatpush1.bf16.msra.mxu0 %v5701
  %6340 = vmatprep.subr.bf16.mxu0 %v5706
  %6341 = vmatpush1.bf16.msra.mxu0 %v5705
  %6342 = vmatprep.subr.bf16.mxu0 %v5710
  %6343 = vmatpush1.bf16.msra.mxu0 %v5709
  %6344 = vmatprep.subr.bf16.mxu0 %v5714
  %6345 = vmatpush1.bf16.msra.mxu0 %v5713
  %6346 = vmatprep.subr.bf16.mxu0 %v5718
  %6347 = vmatpush1.bf16.msra.mxu0 %v5717
  %6348 = vmatprep.subr.bf16.mxu0 %v5722
  %6349 = vmatpush1.bf16.msra.mxu0 %v5721
  %6350 = vmatprep.subr.bf16.mxu0 %v5726
  %6351 = vmatpush1.bf16.msra.mxu0 %v5725
  %6352 = vmatprep.subr.bf16.mxu0 %v5730
  %6353 = vmatpush1.bf16.msra.mxu0 %v5729
  %6354 = vmatprep.subr.bf16.mxu0 %v5734
  %6355 = vmatpush1.bf16.msra.mxu0 %v5733
  %6356 = vmatprep.mubr.bf16.mxu0 %v4556
  %6357 = vmatmul.mubr.bf16.gmra.mrb[0].mxu0 %v4555
  %v6358 = vpop.f32.mrb[0].mxu0
  %v6359 = vadd.f32 %v6318, %v6358
  %v6360 = vpop.f32.mrb[0].mxu0
  %v6361 = vadd.f32 %v6320, %v6360
  %v6362 = vpop.f32.mrb[0].mxu0
  %v6363 = vpop.f32.mrb[0].mxu0
  %6364 = vdwg.mxu0
  %6365 = vmatprep.subr.bf16.mxu0 %v5738
  %6366 = vmatpush1.bf16.msra.mxu0 %v5737
  %6367 = vmatprep.subr.bf16.mxu0 %v5742
  %6368 = vmatpush1.bf16.msra.mxu0 %v5741
  %6369 = vmatprep.subr.bf16.mxu0 %v5746
  %6370 = vmatpush1.bf16.msra.mxu0 %v5745
  %6371 = vmatprep.subr.bf16.mxu0 %v5750
  %6372 = vmatpush1.bf16.msra.mxu0 %v5749
  %6373 = vmatprep.subr.bf16.mxu0 %v5754
  %6374 = vmatpush1.bf16.msra.mxu0 %v5753
  %6375 = vmatprep.subr.bf16.mxu0 %v5758
  %6376 = vmatpush1.bf16.msra.mxu0 %v5757
  %6377 = vmatprep.subr.bf16.mxu0 %v5762
  %6378 = vmatpush1.bf16.msra.mxu0 %v5761
  %6379 = vmatprep.subr.bf16.mxu0 %v5766
  %6380 = vmatpush1.bf16.msra.mxu0 %v5765
  %6381 = vmatprep.subr.bf16.mxu0 %v5770
  %6382 = vmatpush1.bf16.msra.mxu0 %v5769
  %6383 = vmatprep.subr.bf16.mxu0 %v5774
  %6384 = vmatpush1.bf16.msra.mxu0 %v5773
  %6385 = vmatprep.subr.bf16.mxu0 %v5778
  %6386 = vmatpush1.bf16.msra.mxu0 %v5777
  %6387 = vmatprep.subr.bf16.mxu0 %v5782
  %6388 = vmatpush1.bf16.msra.mxu0 %v5781
  %6389 = vmatprep.subr.bf16.mxu0 %v5786
  %6390 = vmatpush1.bf16.msra.mxu0 %v5785
  %6391 = vmatprep.subr.bf16.mxu0 %v5790
  %6392 = vmatpush1.bf16.msra.mxu0 %v5789
  %6393 = vmatprep.subr.bf16.mxu0 %v5794
  %6394 = vmatpush1.bf16.msra.mxu0 %v5793
  %6395 = vmatprep.subr.bf16.mxu0 %v5798
  %6396 = vmatpush1.bf16.msra.mxu0 %v5797
  %6397 = vmatprep.mubr.bf16.mxu0 %v4558
  %6398 = vmatmul.mubr.bf16.gmra.mrb[0].mxu0 %v4557
  %v6399 = vpop.f32.mrb[0].mxu0
  %v6400 = vadd.f32 %v6359, %v6399
  %v6401 = vpop.f32.mrb[0].mxu0
  %v6402 = vadd.f32 %v6361, %v6401
  %v6403 = vpop.f32.mrb[0].mxu0
  %v6404 = vpop.f32.mrb[0].mxu0
  %6405 = vdwg.mxu0
  %6406 = vmatprep.subr.bf16.mxu0 %v5802
  %6407 = vmatpush1.bf16.msra.mxu0 %v5801
  %6408 = vmatprep.subr.bf16.mxu0 %v5806
  %6409 = vmatpush1.bf16.msra.mxu0 %v5805
  %6410 = vmatprep.subr.bf16.mxu0 %v5810
  %6411 = vmatpush1.bf16.msra.mxu0 %v5809
  %6412 = vmatprep.subr.bf16.mxu0 %v5814
  %6413 = vmatpush1.bf16.msra.mxu0 %v5813
  %6414 = vmatprep.subr.bf16.mxu0 %v5818
  %6415 = vmatpush1.bf16.msra.mxu0 %v5817
  %6416 = vmatprep.subr.bf16.mxu0 %v5822
  %6417 = vmatpush1.bf16.msra.mxu0 %v5821
  %6418 = vmatprep.subr.bf16.mxu0 %v5826
  %6419 = vmatpush1.bf16.msra.mxu0 %v5825
  %6420 = vmatprep.subr.bf16.mxu0 %v5830
  %6421 = vmatpush1.bf16.msra.mxu0 %v5829
  %6422 = vmatprep.subr.bf16.mxu0 %v5834
  %6423 = vmatpush1.bf16.msra.mxu0 %v5833
  %6424 = vmatprep.subr.bf16.mxu0 %v5838
  %6425 = vmatpush1.bf16.msra.mxu0 %v5837
  %6426 = vmatprep.subr.bf16.mxu0 %v5842
  %6427 = vmatpush1.bf16.msra.mxu0 %v5841
  %6428 = vmatprep.subr.bf16.mxu0 %v5846
  %6429 = vmatpush1.bf16.msra.mxu0 %v5845
  %6430 = vmatprep.subr.bf16.mxu0 %v5850
  %6431 = vmatpush1.bf16.msra.mxu0 %v5849
  %6432 = vmatprep.subr.bf16.mxu0 %v5854
  %6433 = vmatpush1.bf16.msra.mxu0 %v5853
  %6434 = vmatprep.subr.bf16.mxu0 %v5858
  %6435 = vmatpush1.bf16.msra.mxu0 %v5857
  %6436 = vmatprep.subr.bf16.mxu0 %v5862
  %6437 = vmatpush1.bf16.msra.mxu0 %v5861
  %6438 = vmatprep.mubr.bf16.mxu0 %v4560
  %6439 = vmatmul.mubr.bf16.gmra.mrb[0].mxu0 %v4559
  %v6440 = vpop.f32.mrb[0].mxu0
  %v6441 = vadd.f32 %v6400, %v6440
  %v6442 = vpop.f32.mrb[0].mxu0
  %v6443 = vadd.f32 %v6402, %v6442
  %v6444 = vpop.f32.mrb[0].mxu0
  %v6445 = vpop.f32.mrb[0].mxu0
  %6446 = vdwg.mxu0
  %v6447 = vmul.f32 %v6277, 0.01
  %v6448 = vmul.f32 %v6279, 0.01
  %v6449 = vmul.f32 %v6441, 0.01
  %v6450 = vmul.f32 %v6443, 0.01
  %v6451 = vmax.f32 %v6277, %v6447
  %v6452 = vmax.f32 %v6279, %v6448
  %v6453 = vmax.f32 %v6441, %v6449
  %v6454 = vmax.f32 %v6443, %v6450
  %v6455 = vpack.c.bf16 %v6451, %v6451
  %v6456 = vpack.c.bf16 %v6452, %v6452
  %v6457 = vpack.c.bf16 %v6453, %v6453
  %v6458 = vpack.c.bf16 %v6454, %v6454
  %v6459 = vld [vmem:[%s5] sm:$0xf]
  %v6460 = vld [vmem:[%s5 + $0x4] sm:$0xf]
  %v6461 = vld [vmem:[%s5 + $0x8] sm:$0xf]
  %v6462 = vld [vmem:[%s5 + $0xc] sm:$0xf]
  %v6463 = vld [vmem:[%s5 + $0x10] sm:$0xf]
  %v6464 = vld [vmem:[%s5 + $0x14] sm:$0xf]
  %v6465 = vld [vmem:[%s5 + $0x18] sm:$0xf]
  %v6466 = vld [vmem:[%s5 + $0x1c] sm:$0xf]
  %v6467 = vld [vmem:[%s5 + $0x20] sm:$0xf]
  %v6468 = vld [vmem:[%s5 + $0x24] sm:$0xf]
  %v6469 = vld [vmem:[%s5 + $0x28] sm:$0xf]
  %v6470 = vld [vmem:[%s5 + $0x2c] sm:$0xf]
  %v6471 = vld [vmem:[%s5 + $0x30] sm:$0xf]
  %v6472 = vld [vmem:[%s5 + $0x34] sm:$0xf]
  %v6473 = vld [vmem:[%s5 + $0x38] sm:$0xf]
  %v6474 = vld [vmem:[%s5 + $0x3c] sm:$0xf]
  %v6475 = vld [vmem:[%s5 + $0x40] sm:$0xf]
  %v6476 = vld [vmem:[%s5 + $0x44] sm:$0xf]
  %v6477 = vld [vmem:[%s5 + $0x48] sm:$0xf]
  %v6478 = vld [vmem:[%s5 + $0x4c] sm:$0xf]
  %v6479 = vld [vmem:[%s5 + $0x50] sm:$0xf]
  %v6480 = vld [vmem:[%s5 + $0x54] sm:$0xf]
  %v6481 = vld [vmem:[%s5 + $0x58] sm:$0xf]
  %v6482 = vld [vmem:[%s5 + $0x5c] sm:$0xf]
  %v6483 = vld [vmem:[%s5 + $0x60] sm:$0xf]
  %v6484 = vld [vmem:[%s5 + $0x64] sm:$0xf]
  %v6485 = vld [vmem:[%s5 + $0x68] sm:$0xf]
  %v6486 = vld [vmem:[%s5 + $0x6c] sm:$0xf]
  %v6487 = vld [vmem:[%s5 + $0x70] sm:$0xf]
  %v6488 = vld [vmem:[%s5 + $0x74] sm:$0xf]
  %v6489 = vld [vmem:[%s5 + $0x78] sm:$0xf]
  %v6490 = vld [vmem:[%s5 + $0x7c] sm:$0xf]
  %v6491 = vld [vmem:[%s5 + $0x80] sm:$0xf]
  %v6492 = vld [vmem:[%s5 + $0x84] sm:$0xf]
  %v6493 = vld [vmem:[%s5 + $0x88] sm:$0xf]
  %v6494 = vld [vmem:[%s5 + $0x8c] sm:$0xf]
  %v6495 = vld [vmem:[%s5 + $0x90] sm:$0xf]
  %v6496 = vld [vmem:[%s5 + $0x94] sm:$0xf]
  %v6497 = vld [vmem:[%s5 + $0x98] sm:$0xf]
  %v6498 = vld [vmem:[%s5 + $0x9c] sm:$0xf]
  %v6499 = vld [vmem:[%s5 + $0xa0] sm:$0xf]
  %v6500 = vld [vmem:[%s5 + $0xa4] sm:$0xf]
  %v6501 = vld [vmem:[%s5 + $0xa8] sm:$0xf]
  %v6502 = vld [vmem:[%s5 + $0xac] sm:$0xf]
  %v6503 = vld [vmem:[%s5 + $0xb0] sm:$0xf]
  %v6504 = vld [vmem:[%s5 + $0xb4] sm:$0xf]
  %v6505 = vld [vmem:[%s5 + $0xb8] sm:$0xf]
  %v6506 = vld [vmem:[%s5 + $0xbc] sm:$0xf]
  %v6507 = vld [vmem:[%s5 + $0xc0] sm:$0xf]
  %v6508 = vld [vmem:[%s5 + $0xc4] sm:$0xf]
  %v6509 = vld [vmem:[%s5 + $0xc8] sm:$0xf]
  %v6510 = vld [vmem:[%s5 + $0xcc] sm:$0xf]
  %v6511 = vld [vmem:[%s5 + $0xd0] sm:$0xf]
  %v6512 = vld [vmem:[%s5 + $0xd4] sm:$0xf]
  %v6513 = vld [vmem:[%s5 + $0xd8] sm:$0xf]
  %v6514 = vld [vmem:[%s5 + $0xdc] sm:$0xf]
  %v6515 = vld [vmem:[%s5 + $0xe0] sm:$0xf]
  %v6516 = vld [vmem:[%s5 + $0xe4] sm:$0xf]
  %v6517 = vld [vmem:[%s5 + $0xe8] sm:$0xf]
  %v6518 = vld [vmem:[%s5 + $0xec] sm:$0xf]
  %v6519 = vld [vmem:[%s5 + $0xf0] sm:$0xf]
  %v6520 = vld [vmem:[%s5 + $0xf4] sm:$0xf]
  %v6521 = vld [vmem:[%s5 + $0xf8] sm:$0xf]
  %v6522 = vld [vmem:[%s5 + $0xfc] sm:$0xf]
  %v6523 = vld [vmem:[#allocation2] sm:$0x1]
  %v6525 = vlaneseq
  %v6526 = vshrl.u32 %v6525, 7
  %v6527 = vsub.s32 0, %v6526
  %v6528 = vrot.slane %v6523, %v6527
  %v6594 = vunpack.c.l.b16 %v6459
  %v6595 = vunpack.c.l.b16 %v6460
  %v6596 = vunpack.c.l.b16 %v6461
  %v6597 = vunpack.c.l.b16 %v6462
  %v6598 = vunpack.c.l.b16 %v6463
  %v6599 = vunpack.c.l.b16 %v6464
  %v6600 = vunpack.c.l.b16 %v6465
  %v6601 = vunpack.c.l.b16 %v6466
  %v6602 = vunpack.c.l.b16 %v6467
  %v6603 = vunpack.c.l.b16 %v6468
  %v6604 = vunpack.c.l.b16 %v6469
  %v6605 = vunpack.c.l.b16 %v6470
  %v6606 = vunpack.c.l.b16 %v6471
  %v6607 = vunpack.c.l.b16 %v6472
  %v6608 = vunpack.c.l.b16 %v6473
  %v6609 = vunpack.c.l.b16 %v6474
  %v6610 = vunpack.c.l.b16 %v6475
  %v6611 = vunpack.c.l.b16 %v6476
  %v6612 = vunpack.c.l.b16 %v6477
  %v6613 = vunpack.c.l.b16 %v6478
  %v6614 = vunpack.c.l.b16 %v6479
  %v6615 = vunpack.c.l.b16 %v6480
  %v6616 = vunpack.c.l.b16 %v6481
  %v6617 = vunpack.c.l.b16 %v6482
  %v6618 = vunpack.c.l.b16 %v6483
  %v6619 = vunpack.c.l.b16 %v6484
  %v6620 = vunpack.c.l.b16 %v6485
  %v6621 = vunpack.c.l.b16 %v6486
  %v6622 = vunpack.c.l.b16 %v6487
  %v6623 = vunpack.c.l.b16 %v6488
  %v6624 = vunpack.c.l.b16 %v6489
  %v6625 = vunpack.c.l.b16 %v6490
  %v6626 = vunpack.c.l.b16 %v6491
  %v6627 = vunpack.c.l.b16 %v6492
  %v6628 = vunpack.c.l.b16 %v6493
  %v6629 = vunpack.c.l.b16 %v6494
  %v6630 = vunpack.c.l.b16 %v6495
  %v6631 = vunpack.c.l.b16 %v6496
  %v6632 = vunpack.c.l.b16 %v6497
  %v6633 = vunpack.c.l.b16 %v6498
  %v6634 = vunpack.c.l.b16 %v6499
  %v6635 = vunpack.c.l.b16 %v6500
  %v6636 = vunpack.c.l.b16 %v6501
  %v6637 = vunpack.c.l.b16 %v6502
  %v6638 = vunpack.c.l.b16 %v6503
  %v6639 = vunpack.c.l.b16 %v6504
  %v6640 = vunpack.c.l.b16 %v6505
  %v6641 = vunpack.c.l.b16 %v6506
  %v6642 = vunpack.c.l.b16 %v6507
  %v6643 = vunpack.c.l.b16 %v6508
  %v6644 = vunpack.c.l.b16 %v6509
  %v6645 = vunpack.c.l.b16 %v6510
  %v6646 = vunpack.c.l.b16 %v6511
  %v6647 = vunpack.c.l.b16 %v6512
  %v6648 = vunpack.c.l.b16 %v6513
  %v6649 = vunpack.c.l.b16 %v6514
  %v6650 = vunpack.c.l.b16 %v6515
  %v6651 = vunpack.c.l.b16 %v6516
  %v6652 = vunpack.c.l.b16 %v6517
  %v6653 = vunpack.c.l.b16 %v6518
  %v6654 = vunpack.c.l.b16 %v6519
  %v6655 = vunpack.c.l.b16 %v6520
  %v6656 = vunpack.c.l.b16 %v6521
  %v6657 = vunpack.c.l.b16 %v6522
  %v6658 = vpack.c.b16 %v6595, %v6594
  %v6659 = vpack.c.b16 %v6597, %v6596
  %v6660 = vpack.c.b16 %v6599, %v6598
  %v6661 = vpack.c.b16 %v6601, %v6600
  %v6662 = vpack.c.b16 %v6603, %v6602
  %v6663 = vpack.c.b16 %v6605, %v6604
  %v6664 = vpack.c.b16 %v6607, %v6606
  %v6665 = vpack.c.b16 %v6609, %v6608
  %v6666 = vpack.c.b16 %v6611, %v6610
  %v6667 = vpack.c.b16 %v6613, %v6612
  %v6668 = vpack.c.b16 %v6615, %v6614
  %v6669 = vpack.c.b16 %v6617, %v6616
  %v6670 = vpack.c.b16 %v6619, %v6618
  %v6671 = vpack.c.b16 %v6621, %v6620
  %v6672 = vpack.c.b16 %v6623, %v6622
  %v6673 = vpack.c.b16 %v6625, %v6624
  %v6674 = vpack.c.b16 %v6627, %v6626
  %v6675 = vpack.c.b16 %v6629, %v6628
  %v6676 = vpack.c.b16 %v6631, %v6630
  %v6677 = vpack.c.b16 %v6633, %v6632
  %v6678 = vpack.c.b16 %v6635, %v6634
  %v6679 = vpack.c.b16 %v6637, %v6636
  %v6680 = vpack.c.b16 %v6639, %v6638
  %v6681 = vpack.c.b16 %v6641, %v6640
  %v6682 = vpack.c.b16 %v6643, %v6642
  %v6683 = vpack.c.b16 %v6645, %v6644
  %v6684 = vpack.c.b16 %v6647, %v6646
  %v6685 = vpack.c.b16 %v6649, %v6648
  %v6686 = vpack.c.b16 %v6651, %v6650
  %v6687 = vpack.c.b16 %v6653, %v6652
  %v6688 = vpack.c.b16 %v6655, %v6654
  %v6689 = vpack.c.b16 %v6657, %v6656
  %6722 = vmatprep.subr.bf16.mxu0 0
  %6723 = vmatpush1.bf16.msra.mxu0 %v6658
  %6724 = vmatprep.subr.bf16.mxu0 0
  %6725 = vmatpush1.bf16.msra.mxu0 %v6659
  %6726 = vmatprep.subr.bf16.mxu0 0
  %6727 = vmatpush1.bf16.msra.mxu0 %v6660
  %6728 = vmatprep.subr.bf16.mxu0 0
  %6729 = vmatpush1.bf16.msra.mxu0 %v6661
  %6730 = vmatprep.subr.bf16.mxu0 0
  %6731 = vmatpush1.bf16.msra.mxu0 %v6662
  %6732 = vmatprep.subr.bf16.mxu0 0
  %6733 = vmatpush1.bf16.msra.mxu0 %v6663
  %6734 = vmatprep.subr.bf16.mxu0 0
  %6735 = vmatpush1.bf16.msra.mxu0 %v6664
  %6736 = vmatprep.subr.bf16.mxu0 0
  %6737 = vmatpush1.bf16.msra.mxu0 %v6665
  %6738 = vmatprep.subr.bf16.mxu0 0
  %6739 = vmatpush1.bf16.msra.mxu0 %v6666
  %6740 = vmatprep.subr.bf16.mxu0 0
  %6741 = vmatpush1.bf16.msra.mxu0 %v6667
  %6742 = vmatprep.subr.bf16.mxu0 0
  %6743 = vmatpush1.bf16.msra.mxu0 %v6668
  %6744 = vmatprep.subr.bf16.mxu0 0
  %6745 = vmatpush1.bf16.msra.mxu0 %v6669
  %6746 = vmatprep.subr.bf16.mxu0 0
  %6747 = vmatpush1.bf16.msra.mxu0 %v6670
  %6748 = vmatprep.subr.bf16.mxu0 0
  %6749 = vmatpush1.bf16.msra.mxu0 %v6671
  %6750 = vmatprep.subr.bf16.mxu0 0
  %6751 = vmatpush1.bf16.msra.mxu0 %v6672
  %6752 = vmatprep.subr.bf16.mxu0 0
  %6753 = vmatpush1.bf16.msra.mxu0 %v6673
  %6754 = vmatprep.mubr.bf16.mxu0 %v6456
  %6755 = vmatmul.mubr.bf16.gmra.mrb[0].mxu0 %v6455
  %v6756 = vpop.f32.mrb[0].mxu0
  %v6757 = vadd.f32 %v6528, %v6756
  %v6758 = vpop.f32.mrb[0].mxu0
  %v6759 = vpop.f32.mrb[0].mxu0
  %v6760 = vpop.f32.mrb[0].mxu0
  %6761 = vdwg.mxu0
  %6762 = vmatprep.subr.bf16.mxu0 0
  %6763 = vmatpush1.bf16.msra.mxu0 %v6674
  %6764 = vmatprep.subr.bf16.mxu0 0
  %6765 = vmatpush1.bf16.msra.mxu0 %v6675
  %6766 = vmatprep.subr.bf16.mxu0 0
  %6767 = vmatpush1.bf16.msra.mxu0 %v6676
  %6768 = vmatprep.subr.bf16.mxu0 0
  %6769 = vmatpush1.bf16.msra.mxu0 %v6677
  %6770 = vmatprep.subr.bf16.mxu0 0
  %6771 = vmatpush1.bf16.msra.mxu0 %v6678
  %6772 = vmatprep.subr.bf16.mxu0 0
  %6773 = vmatpush1.bf16.msra.mxu0 %v6679
  %6774 = vmatprep.subr.bf16.mxu0 0
  %6775 = vmatpush1.bf16.msra.mxu0 %v6680
  %6776 = vmatprep.subr.bf16.mxu0 0
  %6777 = vmatpush1.bf16.msra.mxu0 %v6681
  %6778 = vmatprep.subr.bf16.mxu0 0
  %6779 = vmatpush1.bf16.msra.mxu0 %v6682
  %6780 = vmatprep.subr.bf16.mxu0 0
  %6781 = vmatpush1.bf16.msra.mxu0 %v6683
  %6782 = vmatprep.subr.bf16.mxu0 0
  %6783 = vmatpush1.bf16.msra.mxu0 %v6684
  %6784 = vmatprep.subr.bf16.mxu0 0
  %6785 = vmatpush1.bf16.msra.mxu0 %v6685
  %6786 = vmatprep.subr.bf16.mxu0 0
  %6787 = vmatpush1.bf16.msra.mxu0 %v6686
  %6788 = vmatprep.subr.bf16.mxu0 0
  %6789 = vmatpush1.bf16.msra.mxu0 %v6687
  %6790 = vmatprep.subr.bf16.mxu0 0
  %6791 = vmatpush1.bf16.msra.mxu0 %v6688
  %6792 = vmatprep.subr.bf16.mxu0 0
  %6793 = vmatpush1.bf16.msra.mxu0 %v6689
  %6794 = vmatprep.mubr.bf16.mxu0 %v6458
  %6795 = vmatmul.mubr.bf16.gmra.mrb[0].mxu0 %v6457
  %v6796 = vpop.f32.mrb[0].mxu0
  %v6797 = vadd.f32 %v6757, %v6796
  %v6798 = vpop.f32.mrb[0].mxu0
  %v6799 = vpop.f32.mrb[0].mxu0
  %v6800 = vpop.f32.mrb[0].mxu0
  %6801 = vdwg.mxu0
  %v6802 = vmul.f32 %v6797, 0.5
  %v6803 = vtanh.pop %v6802
  %v6804 = vadd.f32 %v6803, 1.0
  %v6805 = vmul.f32 %v6804, 0.5
  %vm6806 = vcmask 1024
  %6807 = vst.msk [vmem:[%s7] sm:$0x3] %vm6806, %v6805
  %6809 = vrot.lane.b32.xlu0 %v4532, 1
  %v6810 = vpop.permute.xlu0 %6809
  %vm6812 = vcmask 9224
  %6813 = vst.msk [vmem:[%s7] sm:$0x3] %vm6812, %v6810
  // Predicated region
  $region30: #{discriminator_forward.5} parent=0 // pred_check
    _
  $region31: #{discriminator_forward.5} parent=0 // pred_check_branch
    %6815 = sbr.rel (0) target = $region33
  $region32: #{discriminator_forward.5} parent=0 // pred_region
    _
  $region33: #{discriminator_forward.5} parent=0 // pred_fallthru
    _
  // Predicated region
  $region34: #{discriminator_forward.5} parent=0 // pred_check
    _
  $region35: #{discriminator_forward.5} parent=0 // pred_check_branch
    %6817 = sbr.rel (0) target = $region37
  $region36: #{discriminator_forward.5} parent=0 // pred_region
    _
  $region37: #{discriminator_forward.5} parent=0 // pred_fallthru
    _

</llo_original>
